<compile_context>
chip_gen: v5e
topology: v5e:2x2
jax: 0.10.0
libtpu: 0.0.40
codegen_flags: <defaults>
</compile_context>

<pallas_src>
import functools

import jax
import jax.numpy as jnp
from jax import lax
from jax.experimental import pallas as pl
from jax.experimental.pallas import tpu as pltpu


# ----------------------------------------------------------------------------
# helpers
# ----------------------------------------------------------------------------
def _round_up(n, m):
    return ((n + m - 1) // m) * m


def _padded_dim_and_tile(n, align, max_tile):
    """Pad `n` up to `align`, choose a tile <= max_tile that divides it."""
    n_p = _round_up(n, align)
    tile = min(n_p, max_tile)
    n_p = _round_up(n_p, tile)
    return n_p, tile


def _pad2(x, rows, cols):
    return jnp.pad(x, ((0, rows - x.shape[0]), (0, cols - x.shape[1])))


def _pad1(x, n):
    return jnp.pad(x, ((0, n - x.shape[0]),))


def _pad_gates_w(w, in_p, hp):
    """w: [In, 4H] (gate order i,f,g,o) -> [in_p, 4*hp], zero-padded per gate."""
    in_dim, four_h = w.shape
    h = four_h // 4
    w = w.reshape(in_dim, 4, h)
    w = jnp.pad(w, ((0, in_p - in_dim), (0, 0), (0, hp - h)))
    return w.reshape(in_p, 4 * hp)


def _pad_gates_b(b, hp):
    """b: [4H] -> [4*hp], zero-padded per gate."""
    h = b.shape[0] // 4
    b = b.reshape(4, h)
    b = jnp.pad(b, ((0, 0), (0, hp - h)))
    return b.reshape(4 * hp)


# ----------------------------------------------------------------------------
# Kernel 1: tiled backbone matmul (P1 pipelining + P3 accumulator + P9 megacore)
# ----------------------------------------------------------------------------
def backbone_matmul_kernel(a_ref, b_ref, bias_ref, o_ref, acc_ref):
    @pl.when(pl.program_id(2) == 0)
    def _():
        acc_ref[...] = jnp.zeros_like(acc_ref)

    acc_ref[...] += jnp.dot(a_ref[...], b_ref[...],
                            preferred_element_type=jnp.float32)

    # store once, at the last K step (keeps the accumulator resident).
    @pl.when(pl.program_id(2) == pl.num_programs(2) - 1)
    def _():
        o_ref[...] = (acc_ref[...] + bias_ref[...]).astype(o_ref.dtype)


def backbone_matmul(a_bf16, w_bf16, bias_f32, *, tm, tn, tk):
    mp, kp = a_bf16.shape
    _, np_ = w_bf16.shape
    grid = (mp // tm, np_ // tn, kp // tk)

    # vmem limit derived from the actual (double-buffered) block bytes + headroom
    a_blk = tm * tk * 2
    b_blk = tk * tn * 2
    bias_blk = tn * 4
    out_blk = tm * tn * 4
    acc_blk = tm * tn * 4
    vmem_limit = min(2 * (a_blk + b_blk + bias_blk + out_blk) + acc_blk
                     + (16 << 20), 100 << 20)

    cost = pl.CostEstimate(
        flops=2 * mp * kp * np_,
        transcendentals=0,
        bytes_accessed=a_bf16.size * 2 + w_bf16.size * 2 + np_ * 4 + mp * np_ * 4,
    )
    return pl.pallas_call(
        backbone_matmul_kernel,
        out_shape=jax.ShapeDtypeStruct((mp, np_), jnp.float32),
        grid_spec=pltpu.PrefetchScalarGridSpec(
            num_scalar_prefetch=0,
            grid=grid,
            in_specs=[
                pl.BlockSpec((tm, tk), lambda i, j, k: (i, k)),
                pl.BlockSpec((tk, tn), lambda i, j, k: (k, j)),
                pl.BlockSpec((1, tn), lambda i, j, k: (0, j)),
            ],
            out_specs=pl.BlockSpec((tm, tn), lambda i, j, k: (i, j)),
            scratch_shapes=[pltpu.VMEM((tm, tn), jnp.float32)],
        ),
        compiler_params=pltpu.CompilerParams(
            dimension_semantics=("parallel", "parallel", "arbitrary"),
            vmem_limit_bytes=int(vmem_limit),
        ),
        cost_estimate=cost,
    )(a_bf16, w_bf16, bias_f32)


# ----------------------------------------------------------------------------
# Kernel 2: fused VQA head (img fc + L2 norm, fused-matmul LSTM, qst fc, fusion)
# ----------------------------------------------------------------------------
def vqa_head_kernel(
    feat_ref,       # [bm, Fvggp] f32  backbone features (batch block)
    ifc_w_ref,      # [Fvggp, Ep] bf16 ImgEncoder.fc
    ifc_b_ref,      # [1, Ep]     f32
    emb_ref,        # [T, bm, Ewp] bf16 tanh(word2vec(q)), time-major
    w0_ref,         # [Ewp+Hp, 4Hp] bf16 fused LSTM layer 0 [Wih0; Whh0]
    b0_ref,         # [1, 4Hp]    f32  b_ih0 + b_hh0
    w1_ref,         # [2Hp, 4Hp]  bf16 fused LSTM layer 1 [Wih1; Whh1]
    b1_ref,         # [1, 4Hp]    f32
    qw_h0_ref,      # [Hp, Ep]    bf16 QstEncoder.fc row-blocks (h0|c0|h1|c1)
    qw_c0_ref,      # [Hp, Ep]    bf16
    qw_h1_ref,      # [Hp, Ep]    bf16
    qw_c1_ref,      # [Hp, Ep]    bf16
    qfc_b_ref,      # [1, Ep]     f32
    fc1_w_ref,      # [Ep, Ap]    bf16
    fc1_b_ref,      # [1, Ap]     f32
    fc2_w_ref,      # [Ap, Ap]    bf16
    fc2_b_ref,      # [1, Ap]     f32
    out_ref,        # [bm, Ap]    f32
    x0_scr,         # [bm, Ewp+Hp] bf16 scratch (fused layer-0 input [x | h0])
    x1_scr,         # [bm, 2Hp]    bf16 scratch (fused layer-1 input [h0 | h1])
):
    f32 = jnp.float32
    bf16 = jnp.bfloat16
    bm = feat_ref.shape[0]
    t_len = emb_ref.shape[0]
    ewp = emb_ref.shape[2]
    hp = w1_ref.shape[0] // 2

    # ---------------- ImgEncoder.fc + L2 normalize ----------------
    img_feature = (jnp.dot(feat_ref[...].astype(bf16), ifc_w_ref[...],
                           preferred_element_type=f32) + ifc_b_ref[...])
    ssq = jnp.sum(img_feature * img_feature, axis=1, keepdims=True)
    # rsqrt (EUP) instead of sqrt+divide; eps avoids NaN on an exactly-zero row.
    img_feature = img_feature * lax.rsqrt(ssq + 1e-12)

    # ---------------- QstEncoder: 2-layer LSTM ----------------
    # One fused matmul per cell: input [x_t | h] against stacked [Wih; Whh].
    # tanh(embedding) was precomputed in the wrapper (off the serial chain).
    # Biases stay [1, 4Hp] (broadcast-add) to keep vreg pressure low.
    def step(t, carry):
        h0, c0, h1, c1 = carry

        # layer 0
        x0_scr[:, :ewp] = emb_ref[t]
        x0_scr[:, ewp:] = h0.astype(bf16)
        g0 = (jnp.dot(x0_scr[...], w0_ref[...], preferred_element_type=f32)
              + b0_ref[...])
        i0 = jax.nn.sigmoid(g0[:, 0 * hp:1 * hp])
        f0 = jax.nn.sigmoid(g0[:, 1 * hp:2 * hp])
        gg0 = jnp.tanh(g0[:, 2 * hp:3 * hp])
        o0 = jax.nn.sigmoid(g0[:, 3 * hp:4 * hp])
        c0n = f0 * c0 + i0 * gg0
        h0n = o0 * jnp.tanh(c0n)

        # layer 1
        x1_scr[:, :hp] = h0n.astype(bf16)
        x1_scr[:, hp:] = h1.astype(bf16)
        g1 = (jnp.dot(x1_scr[...], w1_ref[...], preferred_element_type=f32)
              + b1_ref[...])
        i1 = jax.nn.sigmoid(g1[:, 0 * hp:1 * hp])
        f1 = jax.nn.sigmoid(g1[:, 1 * hp:2 * hp])
        gg1 = jnp.tanh(g1[:, 2 * hp:3 * hp])
        o1 = jax.nn.sigmoid(g1[:, 3 * hp:4 * hp])
        c1n = f1 * c1 + i1 * gg1
        h1n = o1 * jnp.tanh(c1n)

        return (h0n, c0n, h1n, c1n)

    zeros = jnp.zeros((bm, hp), f32)
    unroll = True if t_len <= 16 else 8
    h0, c0, h1, c1 = lax.fori_loop(0, t_len, step, (zeros, zeros, zeros, zeros),
                                   unroll=unroll)

    # cat((hidden, cell), 2).transpose(0,1).reshape(B,-1) -> [h0 | c0 | h1 | c1],
    # then tanh and fc -- concat-free as 4 partial dots against the row-blocks
    # of QstEncoder.fc's weight.
    qst_feature = (
        jnp.dot(jnp.tanh(h0).astype(bf16), qw_h0_ref[...], preferred_element_type=f32)
        + jnp.dot(jnp.tanh(c0).astype(bf16), qw_c0_ref[...], preferred_element_type=f32)
        + jnp.dot(jnp.tanh(h1).astype(bf16), qw_h1_ref[...], preferred_element_type=f32)
        + jnp.dot(jnp.tanh(c1).astype(bf16), qw_c1_ref[...], preferred_element_type=f32)
        + qfc_b_ref[...])

    # ---------------- Fusion head ----------------
    combined = jnp.tanh(img_feature * qst_feature)
    # dropout (eval) = identity
    combined = (jnp.dot(combined.astype(bf16), fc1_w_ref[...],
                        preferred_element_type=f32) + fc1_b_ref[...])
    combined = jnp.tanh(combined)
    # dropout (eval) = identity
    combined = (jnp.dot(combined.astype(bf16), fc2_w_ref[...],
                        preferred_element_type=f32) + fc2_b_ref[...])

    out_ref[...] = combined.astype(out_ref.dtype)


def vqa_head(feat, emb, ws, *, bm, dims):
    f32 = jnp.float32
    bf16 = jnp.bfloat16
    bp, fvggp = feat.shape
    t_len = emb.shape[0]
    ewp, hp, ap = dims["ewp"], dims["hp"], dims["ap"]
    grid = (bp // bm,)

    inputs = (
        feat, ws["ifc_w"], ws["ifc_b"], emb,
        ws["lstm0_w"], ws["lstm0_b"], ws["lstm1_w"], ws["lstm1_b"],
        ws["qw_h0"], ws["qw_c0"], ws["qw_h1"], ws["qw_c1"], ws["qfc_b"],
        ws["fc1_w"], ws["fc1_b"], ws["fc2_w"], ws["fc2_b"],
    )

    def _resident(x):
        nd = x.ndim
        return pl.BlockSpec(x.shape, lambda i, _n=nd: (0,) * _n)

    in_specs = [
        pl.BlockSpec((bm, fvggp), lambda i: (i, 0)),            # feat (batch block)
        _resident(ws["ifc_w"]), _resident(ws["ifc_b"]),
        pl.BlockSpec((t_len, bm, ewp), lambda i: (0, i, 0)),    # emb (batch block)
        _resident(ws["lstm0_w"]), _resident(ws["lstm0_b"]),
        _resident(ws["lstm1_w"]), _resident(ws["lstm1_b"]),
        _resident(ws["qw_h0"]), _resident(ws["qw_c0"]),
        _resident(ws["qw_h1"]), _resident(ws["qw_c1"]), _resident(ws["qfc_b"]),
        _resident(ws["fc1_w"]), _resident(ws["fc1_b"]),
        _resident(ws["fc2_w"]), _resident(ws["fc2_b"]),
    ]
    out_spec = pl.BlockSpec((bm, ap), lambda i: (i, 0))

    # vmem limit from actual block bytes (review: don't hard-code 48 MiB)
    weight_bytes = sum(int(x.size) * x.dtype.itemsize
                       for j, x in enumerate(inputs) if j not in (0, 3))
    blk_bytes = bm * fvggp * 4 + t_len * bm * ewp * 2 + bm * ap * 4
    scratch_bytes = bm * (ewp + hp) * 2 + bm * 2 * hp * 2
    vmem_limit = min(2 * (weight_bytes + blk_bytes) + scratch_bytes + (16 << 20),
                     100 << 20)
    # TODO(synk): on v7x (64 MiB VMEM) peel fc1/fc2 into a separate Ap-tiled
    #             kernel if weight_bytes approaches ~48 MiB.

    return pl.pallas_call(
        vqa_head_kernel,
        out_shape=jax.ShapeDtypeStruct((bp, ap), f32),
        grid_spec=pltpu.PrefetchScalarGridSpec(
            num_scalar_prefetch=0,
            grid=grid,
            in_specs=in_specs,
            out_specs=out_spec,
            scratch_shapes=[pltpu.VMEM((bm, ewp + hp), bf16),
                            pltpu.VMEM((bm, 2 * hp), bf16)],
        ),
        compiler_params=pltpu.CompilerParams(
            dimension_semantics=("parallel",),
            vmem_limit_bytes=int(vmem_limit),
        ),
    )(*inputs)


# ----------------------------------------------------------------------------
# one-time parameter preparation (pad + cast ONCE, not per forward call)
# ----------------------------------------------------------------------------
def prepare_params(params, *, tk_cap=2048, tn_cap=1024):
    f32, bf16 = jnp.float32, jnp.bfloat16
    fin, fvgg = params["backbone_w"].shape
    e_sz = params["img_fc_w"].shape[1]
    ew = params["word2vec"].shape[1]
    h_sz = params["w_hh0"].shape[0]
    a_sz = params["fc2_w"].shape[0]

    kp, tk = _padded_dim_and_tile(fin, 128, tk_cap)
    fvggp, tn = _padded_dim_and_tile(fvgg, 128, tn_cap)
    ep = _round_up(e_sz, 128)
    ewp = _round_up(ew, 128)
    hp = _round_up(h_sz, 128)
    ap = _round_up(a_sz, 128)

    qw = params["qst_fc_w"]                 # [4H, E], rows = h0|c0|h1|c1
    arrays = {
        # stand-in frozen VGG19 backbone (see TODO(synk) above)
        "backbone_w": _pad2(params["backbone_w"], kp, fvggp).astype(bf16),
        "backbone_b": _pad1(params["backbone_b"], fvggp).astype(f32)[None, :],
        # ImgEncoder.fc
        "ifc_w": _pad2(params["img_fc_w"], fvggp, ep).astype(bf16),
        "ifc_b": _pad1(params["img_fc_b"], ep).astype(f32)[None, :],
        # QstEncoder
        "word2vec": _pad2(params["word2vec"],
                          params["word2vec"].shape[0], ewp).astype(f32),
        "lstm0_w": jnp.concatenate(
            [_pad_gates_w(params["w_ih0"], ewp, hp),
             _pad_gates_w(params["w_hh0"], hp, hp)], axis=0).astype(bf16),
        "lstm0_b": _pad_gates_b(params["b0"], hp).astype(f32)[None, :],
        "lstm1_w": jnp.concatenate(
            [_pad_gates_w(params["w_ih1"], hp, hp),
             _pad_gates_w(params["w_hh1"], hp, hp)], axis=0).astype(bf16),
        "lstm1_b": _pad_gates_b(params["b1"], hp).astype(f32)[None, :],
        "qw_h0": _pad2(qw[0 * h_sz:1 * h_sz], hp, ep).astype(bf16),
        "qw_c0": _pad2(qw[1 * h_sz:2 * h_sz], hp, ep).astype(bf16),
        "qw_h1": _pad2(qw[2 * h_sz:3 * h_sz], hp, ep).astype(bf16),
        "qw_c1": _pad2(qw[3 * h_sz:4 * h_sz], hp, ep).astype(bf16),
        "qfc_b": _pad1(params["qst_fc_b"], ep).astype(f32)[None, :],
        # fusion head
        "fc1_w": _pad2(params["fc1_w"], ep, ap).astype(bf16),
        "fc1_b": _pad1(params["fc1_b"], ap).astype(f32)[None, :],
        "fc2_w": _pad2(params["fc2_w"], ap, ap).astype(bf16),
        "fc2_b": _pad1(params["fc2_b"], ap).astype(f32)[None, :],
    }
    dims = dict(kp=kp, tk=tk, fvggp=fvggp, tn=tn,
                ep=ep, ewp=ewp, hp=hp, ap=ap, a_sz=a_sz)
    return arrays, dims


# ----------------------------------------------------------------------------
# forward: only cheap per-call img/qst prep + the two pallas_calls
# ----------------------------------------------------------------------------
def vqa_forward(img, qst, arrays, *, dims):
    """img: [B, C, H, W] float32 (NCHW); qst: [B, T] int32 token ids."""
    f32, bf16 = jnp.float32, jnp.bfloat16
    b_sz = img.shape[0]
    kp, tk, fvggp, tn = dims["kp"], dims["tk"], dims["fvggp"], dims["tn"]

    # batch padding / batch-block size. Batch is NOT over-padded (backbone is
    # HBM-BW bound; a thin LHS costs nothing).
    bp = _round_up(b_sz, 8)
    if bp > 128:
        bm = 128
        bp = _round_up(bp, bm)
    else:
        bm = bp

    # ---- backbone matmul (weights already padded/cast once) ----
    img_flat = img.reshape(b_sz, -1).astype(f32)
    img_p = _pad2(img_flat, bp, kp).astype(bf16)
    feat = backbone_matmul(img_p, arrays["backbone_w"], arrays["backbone_b"],
                           tm=bm, tn=tn, tk=tk)                  # [bp, fvggp] f32

    # ---- question embedding: tanh(word2vec(q)) precomputed here (off the
    #      serial LSTM chain), time-major, bf16 ----
    emb = jnp.tanh(jnp.take(arrays["word2vec"], qst, axis=0))    # [B, T, Ewp]
    emb = jnp.pad(emb, ((0, bp - b_sz), (0, 0), (0, 0)))
    emb = jnp.transpose(emb, (1, 0, 2)).astype(bf16)             # [T, bp, Ewp]

    out_p = vqa_head(feat, emb, arrays, bm=bm, dims=dims)        # [bp, ap] f32
    return out_p[:b_sz, :dims["a_sz"]]


# ----------------------------------------------------------------------------
# parameter init (logical, unpadded shapes; padding happens in prepare_params)
# ----------------------------------------------------------------------------
def init_params(key, *, in_chw, in_features, embed_size, qst_vocab_size,
                ans_vocab_size, word_embed_size, num_layers, hidden_size):
    assert num_layers == 2, "kernel is written for num_layers=2"
    keys = jax.random.split(key, 20)
    s = 0.1

    def rnd(k, shape):
        return s * jax.random.normal(k, shape, dtype=jnp.float32)

    h, ew, e, a = hidden_size, word_embed_size, embed_size, ans_vocab_size
    return {
        # stand-in frozen VGG19 backbone (see TODO(synk) above)
        "backbone_w": rnd(keys[0], (in_chw, in_features)),
        "backbone_b": rnd(keys[1], (in_features,)),
        # ImgEncoder.fc
        "img_fc_w": rnd(keys[2], (in_features, e)),
        "img_fc_b": rnd(keys[3], (e,)),
        # QstEncoder
        "word2vec": rnd(keys[4], (qst_vocab_size, ew)),
        "w_ih0": rnd(keys[5], (ew, 4 * h)),
        "w_hh0": rnd(keys[6], (h, 4 * h)),
        "b0": rnd(keys[7], (4 * h,)) + rnd(keys[8], (4 * h,)),   # b_ih + b_hh
        "w_ih1": rnd(keys[9], (h, 4 * h)),
        "w_hh1": rnd(keys[10], (h, 4 * h)),
        "b1": rnd(keys[11], (4 * h,)) + rnd(keys[12], (4 * h,)),
        "qst_fc_w": rnd(keys[13], (2 * num_layers * h, e)),
        "qst_fc_b": rnd(keys[14], (e,)),
        # fusion head
        "fc1_w": rnd(keys[15], (e, a)),
        "fc1_b": rnd(keys[16], (a,)),
        "fc2_w": rnd(keys[17], (a, a)),
        "fc2_b": rnd(keys[18], (a,)),
    }


if __name__ == "__main__":
    # small, deterministic config
    B, C, Himg, Wimg = 2, 4, 16, 16
    T = 8
    embed_size = 32
    qst_vocab_size = 50
    ans_vocab_size = 16
    word_embed_size = 16
    num_layers = 2
    hidden_size = 16
    in_features = 64   # VGG19 classifier penultimate width (shrunk)

    key = jax.random.PRNGKey(0)
    k_img, k_qst, k_par = jax.random.split(key, 3)

    img = jax.random.normal(k_img, (B, C, Himg, Wimg), dtype=jnp.float32)  # NCHW
    qst = jax.random.randint(k_qst, (B, T), 0, qst_vocab_size, dtype=jnp.int32)

    params = init_params(
        k_par,
        in_chw=C * Himg * Wimg,
        in_features=in_features,
        embed_size=embed_size,
        qst_vocab_size=qst_vocab_size,
        ans_vocab_size=ans_vocab_size,
        word_embed_size=word_embed_size,
        num_layers=num_layers,
        hidden_size=hidden_size,
    )

    # one-time pad + bf16 cast of all weights (NOT per forward call)
    arrays, dims = prepare_params(params)

    fwd = jax.jit(functools.partial(vqa_forward, dims=dims))
    out = fwd(img, qst, arrays)
    out = jax.block_until_ready(out)
    assert out.shape == (B, ans_vocab_size)
    assert bool(jnp.all(jnp.isfinite(out)))
    print("KERNEL_OK")
</pallas_src>

<mosaic_0001>
module attributes {stable_mosaic.version = 11 : i64} {
  func.func @backbone_matmul_kernel(%arg0: i32, %arg1: i32, %arg2: i32, %arg3: memref<8x1024xbf16, #tpu.memory_space<vmem>>, %arg4: memref<1024x128xbf16, #tpu.memory_space<vmem>>, %arg5: memref<1x128xf32, #tpu.memory_space<vmem>>, %arg6: memref<8x128xf32, #tpu.memory_space<vmem>>, %arg7: memref<8x128xf32, #tpu.memory_space<vmem>>) attributes {dimension_semantics = [#tpu.dimension_semantics<parallel>, #tpu.dimension_semantics<parallel>, #tpu.dimension_semantics<arbitrary>], iteration_bounds = array<i64: 1, 1, 1>, scalar_prefetch = 0 : i64, scratch_operands = 1 : i64, tpu.core_type = #tpu.core_type<tc>, window_params = [{transform_indices = @transform_0, window_bounds = array<i64: 8, 1024>}, {transform_indices = @transform_1, window_bounds = array<i64: 1024, 128>}, {transform_indices = @transform_2, window_bounds = array<i64: 1, 128>}, {transform_indices = @transform_3, window_bounds = array<i64: 8, 128>}]} {
    %c0_i32 = arith.constant 0 : i32
    %0 = arith.cmpi eq, %arg2, %c0_i32 : i32
    %1 = arith.extui %0 : i1 to i32
    %c0_i32_0 = arith.constant 0 : i32
    %2 = arith.cmpi ne, %1, %c0_i32_0 : i32
    scf.if %2 {
      %cst_10 = arith.constant 0.000000e+00 : f32
      %12 = vector.broadcast %cst_10 : f32 to vector<8x128xf32>
      %c0_11 = arith.constant 0 : index
      %c0_12 = arith.constant 0 : index
      %13 = vector.load %arg7[%c0_11, %c0_12] : memref<8x128xf32, #tpu.memory_space<vmem>>, vector<8x128xf32>
      tpu.vector_store %arg7[%c0_11, %c0_12], %12 {strides = array<i32>} : memref<8x128xf32, #tpu.memory_space<vmem>>, vector<8x128xf32>,
    } else {
    }
    %c0 = arith.constant 0 : index
    %c0_1 = arith.constant 0 : index
    %3 = vector.load %arg7[%c0, %c0_1] : memref<8x128xf32, #tpu.memory_space<vmem>>, vector<8x128xf32>
    %c0_2 = arith.constant 0 : index
    %c0_3 = arith.constant 0 : index
    %4 = vector.load %arg3[%c0_2, %c0_3] : memref<8x1024xbf16, #tpu.memory_space<vmem>>, vector<8x1024xbf16>
    %c0_4 = arith.constant 0 : index
    %c0_5 = arith.constant 0 : index
    %5 = vector.load %arg4[%c0_4, %c0_5] : memref<1024x128xbf16, #tpu.memory_space<vmem>>, vector<1024x128xbf16>
    %cst = arith.constant dense<0.000000e+00> : vector<8x128xf32>
    %6 = tpu.matmul %4, %5, %cst {dimension_numbers = #tpu.dot_dimension_numbers<[1], [0], [0], [1], [0, 0, 1, 1], [], []>} : vector<8x1024xbf16>, vector<1024x128xbf16>, vector<8x128xf32> -> vector<8x128xf32>
    %7 = arith.addf %3, %6 : vector<8x128xf32>
    %c0_6 = arith.constant 0 : index
    %c0_7 = arith.constant 0 : index
    %8 = vector.load %arg7[%c0_6, %c0_7] : memref<8x128xf32, #tpu.memory_space<vmem>>, vector<8x128xf32>
    tpu.vector_store %arg7[%c0_6, %c0_7], %7 {strides = array<i32>} : memref<8x128xf32, #tpu.memory_space<vmem>>, vector<8x128xf32>,
    %c0_i32_8 = arith.constant 0 : i32
    %9 = arith.cmpi eq, %arg2, %c0_i32_8 : i32
    %10 = arith.extui %9 : i1 to i32
    %c0_i32_9 = arith.constant 0 : i32
    %11 = arith.cmpi ne, %10, %c0_i32_9 : i32
    scf.if %11 {
      %c0_10 = arith.constant 0 : index
      %c0_11 = arith.constant 0 : index
      %12 = vector.load %arg7[%c0_10, %c0_11] : memref<8x128xf32, #tpu.memory_space<vmem>>, vector<8x128xf32>
      %c0_12 = arith.constant 0 : index
      %c0_13 = arith.constant 0 : index
      %13 = vector.load %arg5[%c0_12, %c0_13] : memref<1x128xf32, #tpu.memory_space<vmem>>, vector<1x128xf32>
      %14 = vector.broadcast %13 : vector<1x128xf32> to vector<8x128xf32>
      %15 = arith.addf %12, %14 : vector<8x128xf32>
      %c0_14 = arith.constant 0 : index
      %c0_15 = arith.constant 0 : index
      %16 = vector.load %arg6[%c0_14, %c0_15] : memref<8x128xf32, #tpu.memory_space<vmem>>, vector<8x128xf32>
      tpu.vector_store %arg6[%c0_14, %c0_15], %15 {strides = array<i32>} : memref<8x128xf32, #tpu.memory_space<vmem>>, vector<8x128xf32>,
    } else {
    }
    return
  }
  func.func @transform_0(%arg0: i32, %arg1: i32, %arg2: i32) -> (i32, i32) {
    %c0_i32 = arith.constant 0 : i32
    return %arg0, %arg2 : i32, i32
  }
  func.func @transform_1(%arg0: i32, %arg1: i32, %arg2: i32) -> (i32, i32) {
    %c0_i32 = arith.constant 0 : i32
    return %arg2, %arg1 : i32, i32
  }
  func.func @transform_2(%arg0: i32, %arg1: i32, %arg2: i32) -> (i32, i32) {
    %c0_i32 = arith.constant 0 : i32
    %c0_i32_0 = arith.constant 0 : i32
    return %c0_i32, %arg1 : i32, i32
  }
  func.func @transform_3(%arg0: i32, %arg1: i32, %arg2: i32) -> (i32, i32) {
    %c0_i32 = arith.constant 0 : i32
    return %arg0, %arg1 : i32, i32
  }
}

module attributes {stable_mosaic.version = 11 : i64} {
  func.func @vqa_head_kernel(%arg0: i32, %arg1: memref<8x128xf32, #tpu.memory_space<vmem>>, %arg2: memref<128x128xbf16, #tpu.memory_space<vmem>>, %arg3: memref<1x128xf32, #tpu.memory_space<vmem>>, %arg4: memref<8x8x128xbf16, #tpu.memory_space<vmem>>, %arg5: memref<256x512xbf16, #tpu.memory_space<vmem>>, %arg6: memref<1x512xf32, #tpu.memory_space<vmem>>, %arg7: memref<256x512xbf16, #tpu.memory_space<vmem>>, %arg8: memref<1x512xf32, #tpu.memory_space<vmem>>, %arg9: memref<128x128xbf16, #tpu.memory_space<vmem>>, %arg10: memref<128x128xbf16, #tpu.memory_space<vmem>>, %arg11: memref<128x128xbf16, #tpu.memory_space<vmem>>, %arg12: memref<128x128xbf16, #tpu.memory_space<vmem>>, %arg13: memref<1x128xf32, #tpu.memory_space<vmem>>, %arg14: memref<128x128xbf16, #tpu.memory_space<vmem>>, %arg15: memref<1x128xf32, #tpu.memory_space<vmem>>, %arg16: memref<128x128xbf16, #tpu.memory_space<vmem>>, %arg17: memref<1x128xf32, #tpu.memory_space<vmem>>, %arg18: memref<8x128xf32, #tpu.memory_space<vmem>>, %arg19: memref<8x256xbf16, #tpu.memory_space<vmem>>, %arg20: memref<8x256xbf16, #tpu.memory_space<vmem>>) attributes {dimension_semantics = [#tpu.dimension_semantics<parallel>], iteration_bounds = array<i64: 1>, scalar_prefetch = 0 : i64, scratch_operands = 2 : i64, tpu.core_type = #tpu.core_type<tc>, window_params = [{transform_indices = @transform_0, window_bounds = array<i64: 8, 128>}, {pipeline_mode = #tpu.pipeline_mode<synchronous>, transform_indices = @transform_1, window_bounds = array<i64: 128, 128>}, {pipeline_mode = #tpu.pipeline_mode<synchronous>, transform_indices = @transform_2, window_bounds = array<i64: 1, 128>}, {transform_indices = @transform_3, window_bounds = array<i64: 8, 8, 128>}, {pipeline_mode = #tpu.pipeline_mode<synchronous>, transform_indices = @transform_4, window_bounds = array<i64: 256, 512>}, {pipeline_mode = #tpu.pipeline_mode<synchronous>, transform_indices = @transform_5, window_bounds = array<i64: 1, 512>}, {pipeline_mode = #tpu.pipeline_mode<synchronous>, transform_indices = @transform_6, window_bounds = array<i64: 256, 512>}, {pipeline_mode = #tpu.pipeline_mode<synchronous>, transform_indices = @transform_7, window_bounds = array<i64: 1, 512>}, {pipeline_mode = #tpu.pipeline_mode<synchronous>, transform_indices = @transform_8, window_bounds = array<i64: 128, 128>}, {pipeline_mode = #tpu.pipeline_mode<synchronous>, transform_indices = @transform_9, window_bounds = array<i64: 128, 128>}, {pipeline_mode = #tpu.pipeline_mode<synchronous>, transform_indices = @transform_10, window_bounds = array<i64: 128, 128>}, {pipeline_mode = #tpu.pipeline_mode<synchronous>, transform_indices = @transform_11, window_bounds = array<i64: 128, 128>}, {pipeline_mode = #tpu.pipeline_mode<synchronous>, transform_indices = @transform_12, window_bounds = array<i64: 1, 128>}, {pipeline_mode = #tpu.pipeline_mode<synchronous>, transform_indices = @transform_13, window_bounds = array<i64: 128, 128>}, {pipeline_mode = #tpu.pipeline_mode<synchronous>, transform_indices = @transform_14, window_bounds = array<i64: 1, 128>}, {pipeline_mode = #tpu.pipeline_mode<synchronous>, transform_indices = @transform_15, window_bounds = array<i64: 128, 128>}, {pipeline_mode = #tpu.pipeline_mode<synchronous>, transform_indices = @transform_16, window_bounds = array<i64: 1, 128>}, {transform_indices = @transform_17, window_bounds = array<i64: 8, 128>}]} {
    %c0 = arith.constant 0 : index
    %c0_0 = arith.constant 0 : index
    %0 = vector.load %arg1[%c0, %c0_0] : memref<8x128xf32, #tpu.memory_space<vmem>>, vector<8x128xf32>
    %1 = arith.truncf %0 : vector<8x128xf32> to vector<8x128xbf16>
    %c0_1 = arith.constant 0 : index
    %c0_2 = arith.constant 0 : index
    %2 = vector.load %arg2[%c0_1, %c0_2] : memref<128x128xbf16, #tpu.memory_space<vmem>>, vector<128x128xbf16>
    %cst = arith.constant dense<0.000000e+00> : vector<8x128xf32>
    %3 = tpu.matmul %1, %2, %cst {dimension_numbers = #tpu.dot_dimension_numbers<[1], [0], [0], [1], [0, 0, 1, 1], [], []>} : vector<8x128xbf16>, vector<128x128xbf16>, vector<8x128xf32> -> vector<8x128xf32>
    %c0_3 = arith.constant 0 : index
    %c0_4 = arith.constant 0 : index
    %4 = vector.load %arg3[%c0_3, %c0_4] : memref<1x128xf32, #tpu.memory_space<vmem>>, vector<1x128xf32>
    %5 = vector.broadcast %4 : vector<1x128xf32> to vector<8x128xf32>
    %6 = arith.addf %3, %5 : vector<8x128xf32>
    %7 = arith.mulf %6, %6 : vector<8x128xf32>
    %cst_5 = arith.constant dense<0.000000e+00> : vector<8xf32>
    %8 = vector.multi_reduction <add>, %7, %cst_5 [1] : vector<8x128xf32> to vector<8xf32>
    %9 = vector.shape_cast %8 : vector<8xf32> to vector<8x1xf32>
    %cst_6 = arith.constant 9.99999996E-13 : f32
    %10 = vector.broadcast %cst_6 : f32 to vector<8x1xf32>
    %11 = arith.addf %9, %10 : vector<8x1xf32>
    %12 = math.rsqrt %11 : vector<8x1xf32>
    %13 = vector.broadcast %12 : vector<8x1xf32> to vector<8x128xf32>
    %14 = arith.mulf %6, %13 : vector<8x128xf32>
    %cst_7 = arith.constant 0.000000e+00 : f32
    %15 = vector.broadcast %cst_7 : f32 to vector<8x128xf32>
    %c0_i32 = arith.constant 0 : i32
    %16 = arith.index_cast %c0_i32 : i32 to index
    %c0_8 = arith.constant 0 : index
    %c0_9 = arith.constant 0 : index
    %17 = vector.load %arg4[%16, %c0_8, %c0_9] : memref<8x8x128xbf16, #tpu.memory_space<vmem>>, vector<1x8x128xbf16>
    %18 = vector.shape_cast %17 : vector<1x8x128xbf16> to vector<8x128xbf16>
    %c0_10 = arith.constant 0 : index
    %c0_11 = arith.constant 0 : index
    %19 = vector.load %arg19[%c0_10, %c0_11] : memref<8x256xbf16, #tpu.memory_space<vmem>>, vector<8x128xbf16>
    tpu.vector_store %arg19[%c0_10, %c0_11], %18 {strides = array<i32>} : memref<8x256xbf16, #tpu.memory_space<vmem>>, vector<8x128xbf16>,
    %20 = arith.truncf %15 : vector<8x128xf32> to vector<8x128xbf16>
    %c0_12 = arith.constant 0 : index
    %c128 = arith.constant 128 : index
    %21 = vector.load %arg19[%c0_12, %c128] : memref<8x256xbf16, #tpu.memory_space<vmem>>, vector<8x128xbf16>
    tpu.vector_store %arg19[%c0_12, %c128], %20 {strides = array<i32>} : memref<8x256xbf16, #tpu.memory_space<vmem>>, vector<8x128xbf16>,
    %c0_13 = arith.constant 0 : index
    %c0_14 = arith.constant 0 : index
    %22 = vector.load %arg19[%c0_13, %c0_14] : memref<8x256xbf16, #tpu.memory_space<vmem>>, vector<8x256xbf16>
    %c0_15 = arith.constant 0 : index
    %c0_16 = arith.constant 0 : index
    %23 = vector.load %arg5[%c0_15, %c0_16] : memref<256x512xbf16, #tpu.memory_space<vmem>>, vector<256x512xbf16>
    %cst_17 = arith.constant dense<0.000000e+00> : vector<8x512xf32>
    %24 = tpu.matmul %22, %23, %cst_17 {dimension_numbers = #tpu.dot_dimension_numbers<[1], [0], [0], [1], [0, 0, 1, 1], [], []>} : vector<8x256xbf16>, vector<256x512xbf16>, vector<8x512xf32> -> vector<8x512xf32>
    %c0_18 = arith.constant 0 : index
    %c0_19 = arith.constant 0 : index
    %25 = vector.load %arg6[%c0_18, %c0_19] : memref<1x512xf32, #tpu.memory_space<vmem>>, vector<1x512xf32>
    %26 = vector.broadcast %25 : vector<1x512xf32> to vector<8x512xf32>
    %27 = arith.addf %24, %26 : vector<8x512xf32>
    %28 = vector.extract_strided_slice %27 {offsets = [0, 0], sizes = [8, 128], strides = [1, 1]} : vector<8x512xf32> to vector<8x128xf32>
    %29 = arith.negf %28 : vector<8x128xf32>
    %30 = math.exp %29 : vector<8x128xf32>
    %cst_20 = arith.constant 1.000000e+00 : f32
    %31 = vector.broadcast %cst_20 : f32 to vector<8x128xf32>
    %32 = arith.addf %31, %30 : vector<8x128xf32>
    %33 = arith.divf %31, %32 : vector<8x128xf32>
    %34 = vector.extract_strided_slice %27 {offsets = [0, 128], sizes = [8, 128], strides = [1, 1]} : vector<8x512xf32> to vector<8x128xf32>
    %35 = arith.negf %34 : vector<8x128xf32>
    %36 = math.exp %35 : vector<8x128xf32>
    %cst_21 = arith.constant 1.000000e+00 : f32
    %37 = vector.broadcast %cst_21 : f32 to vector<8x128xf32>
    %38 = arith.addf %37, %36 : vector<8x128xf32>
    %39 = arith.divf %37, %38 : vector<8x128xf32>
    %40 = vector.extract_strided_slice %27 {offsets = [0, 256], sizes = [8, 128], strides = [1, 1]} : vector<8x512xf32> to vector<8x128xf32>
    %41 = math.tanh %40 : vector<8x128xf32>
    %42 = vector.extract_strided_slice %27 {offsets = [0, 384], sizes = [8, 128], strides = [1, 1]} : vector<8x512xf32> to vector<8x128xf32>
    %43 = arith.negf %42 : vector<8x128xf32>
    %44 = math.exp %43 : vector<8x128xf32>
    %cst_22 = arith.constant 1.000000e+00 : f32
    %45 = vector.broadcast %cst_22 : f32 to vector<8x128xf32>
    %46 = arith.addf %45, %44 : vector<8x128xf32>
    %47 = arith.divf %45, %46 : vector<8x128xf32>
    %48 = arith.mulf %39, %15 : vector<8x128xf32>
    %49 = arith.mulf %33, %41 : vector<8x128xf32>
    %50 = arith.addf %48, %49 : vector<8x128xf32>
    %51 = math.tanh %50 : vector<8x128xf32>
    %52 = arith.mulf %47, %51 : vector<8x128xf32>
    %53 = arith.truncf %52 : vector<8x128xf32> to vector<8x128xbf16>
    %c0_23 = arith.constant 0 : index
    %c0_24 = arith.constant 0 : index
    %54 = vector.load %arg20[%c0_23, %c0_24] : memref<8x256xbf16, #tpu.memory_space<vmem>>, vector<8x128xbf16>
    tpu.vector_store %arg20[%c0_23, %c0_24], %53 {strides = array<i32>} : memref<8x256xbf16, #tpu.memory_space<vmem>>, vector<8x128xbf16>,
    %55 = arith.truncf %15 : vector<8x128xf32> to vector<8x128xbf16>
    %c0_25 = arith.constant 0 : index
    %c128_26 = arith.constant 128 : index
    %56 = vector.load %arg20[%c0_25, %c128_26] : memref<8x256xbf16, #tpu.memory_space<vmem>>, vector<8x128xbf16>
    tpu.vector_store %arg20[%c0_25, %c128_26], %55 {strides = array<i32>} : memref<8x256xbf16, #tpu.memory_space<vmem>>, vector<8x128xbf16>,
    %c0_27 = arith.constant 0 : index
    %c0_28 = arith.constant 0 : index
    %57 = vector.load %arg20[%c0_27, %c0_28] : memref<8x256xbf16, #tpu.memory_space<vmem>>, vector<8x256xbf16>
    %c0_29 = arith.constant 0 : index
    %c0_30 = arith.constant 0 : index
    %58 = vector.load %arg7[%c0_29, %c0_30] : memref<256x512xbf16, #tpu.memory_space<vmem>>, vector<256x512xbf16>
    %cst_31 = arith.constant dense<0.000000e+00> : vector<8x512xf32>
    %59 = tpu.matmul %57, %58, %cst_31 {dimension_numbers = #tpu.dot_dimension_numbers<[1], [0], [0], [1], [0, 0, 1, 1], [], []>} : vector<8x256xbf16>, vector<256x512xbf16>, vector<8x512xf32> -> vector<8x512xf32>
    %c0_32 = arith.constant 0 : index
    %c0_33 = arith.constant 0 : index
    %60 = vector.load %arg8[%c0_32, %c0_33] : memref<1x512xf32, #tpu.memory_space<vmem>>, vector<1x512xf32>
    %61 = vector.broadcast %60 : vector<1x512xf32> to vector<8x512xf32>
    %62 = arith.addf %59, %61 : vector<8x512xf32>
    %63 = vector.extract_strided_slice %62 {offsets = [0, 0], sizes = [8, 128], strides = [1, 1]} : vector<8x512xf32> to vector<8x128xf32>
    %64 = arith.negf %63 : vector<8x128xf32>
    %65 = math.exp %64 : vector<8x128xf32>
    %cst_34 = arith.constant 1.000000e+00 : f32
    %66 = vector.broadcast %cst_34 : f32 to vector<8x128xf32>
    %67 = arith.addf %66, %65 : vector<8x128xf32>
    %68 = arith.divf %66, %67 : vector<8x128xf32>
    %69 = vector.extract_strided_slice %62 {offsets = [0, 128], sizes = [8, 128], strides = [1, 1]} : vector<8x512xf32> to vector<8x128xf32>
    %70 = arith.negf %69 : vector<8x128xf32>
    %71 = math.exp %70 : vector<8x128xf32>
    %cst_35 = arith.constant 1.000000e+00 : f32
    %72 = vector.broadcast %cst_35 : f32 to vector<8x128xf32>
    %73 = arith.addf %72, %71 : vector<8x128xf32>
    %74 = arith.divf %72, %73 : vector<8x128xf32>
    %75 = vector.extract_strided_slice %62 {offsets = [0, 256], sizes = [8, 128], strides = [1, 1]} : vector<8x512xf32> to vector<8x128xf32>
    %76 = math.tanh %75 : vector<8x128xf32>
    %77 = vector.extract_strided_slice %62 {offsets = [0, 384], sizes = [8, 128], strides = [1, 1]} : vector<8x512xf32> to vector<8x128xf32>
    %78 = arith.negf %77 : vector<8x128xf32>
    %79 = math.exp %78 : vector<8x128xf32>
    %cst_36 = arith.constant 1.000000e+00 : f32
    %80 = vector.broadcast %cst_36 : f32 to vector<8x128xf32>
    %81 = arith.addf %80, %79 : vector<8x128xf32>
    %82 = arith.divf %80, %81 : vector<8x128xf32>
    %83 = arith.mulf %74, %15 : vector<8x128xf32>
    %84 = arith.mulf %68, %76 : vector<8x128xf32>
    %85 = arith.addf %83, %84 : vector<8x128xf32>
    %86 = math.tanh %85 : vector<8x128xf32>
    %87 = arith.mulf %82, %86 : vector<8x128xf32>
    %c1_i32 = arith.constant 1 : i32
    %88 = arith.index_cast %c1_i32 : i32 to index
    %c0_37 = arith.constant 0 : index
    %c0_38 = arith.constant 0 : index
    %89 = vector.load %arg4[%88, %c0_37, %c0_38] : memref<8x8x128xbf16, #tpu.memory_space<vmem>>, vector<1x8x128xbf16>
    %90 = vector.shape_cast %89 : vector<1x8x128xbf16> to vector<8x128xbf16>
    %c0_39 = arith.constant 0 : index
    %c0_40 = arith.constant 0 : index
    %91 = vector.load %arg19[%c0_39, %c0_40] : memref<8x256xbf16, #tpu.memory_space<vmem>>, vector<8x128xbf16>
    tpu.vector_store %arg19[%c0_39, %c0_40], %90 {strides = array<i32>} : memref<8x256xbf16, #tpu.memory_space<vmem>>, vector<8x128xbf16>,
    %92 = arith.truncf %52 : vector<8x128xf32> to vector<8x128xbf16>
    %c0_41 = arith.constant 0 : index
    %c128_42 = arith.constant 128 : index
    %93 = vector.load %arg19[%c0_41, %c128_42] : memref<8x256xbf16, #tpu.memory_space<vmem>>, vector<8x128xbf16>
    tpu.vector_store %arg19[%c0_41, %c128_42], %92 {strides = array<i32>} : memref<8x256xbf16, #tpu.memory_space<vmem>>, vector<8x128xbf16>,
    %c0_43 = arith.constant 0 : index
    %c0_44 = arith.constant 0 : index
    %94 = vector.load %arg19[%c0_43, %c0_44] : memref<8x256xbf16, #tpu.memory_space<vmem>>, vector<8x256xbf16>
    %c0_45 = arith.constant 0 : index
    %c0_46 = arith.constant 0 : index
    %95 = vector.load %arg5[%c0_45, %c0_46] : memref<256x512xbf16, #tpu.memory_space<vmem>>, vector<256x512xbf16>
    %cst_47 = arith.constant dense<0.000000e+00> : vector<8x512xf32>
    %96 = tpu.matmul %94, %95, %cst_47 {dimension_numbers = #tpu.dot_dimension_numbers<[1], [0], [0], [1], [0, 0, 1, 1], [], []>} : vector<8x256xbf16>, vector<256x512xbf16>, vector<8x512xf32> -> vector<8x512xf32>
    %c0_48 = arith.constant 0 : index
    %c0_49 = arith.constant 0 : index
    %97 = vector.load %arg6[%c0_48, %c0_49] : memref<1x512xf32, #tpu.memory_space<vmem>>, vector<1x512xf32>
    %98 = vector.broadcast %97 : vector<1x512xf32> to vector<8x512xf32>
    %99 = arith.addf %96, %98 : vector<8x512xf32>
    %100 = vector.extract_strided_slice %99 {offsets = [0, 0], sizes = [8, 128], strides = [1, 1]} : vector<8x512xf32> to vector<8x128xf32>
    %101 = arith.negf %100 : vector<8x128xf32>
    %102 = math.exp %101 : vector<8x128xf32>
    %cst_50 = arith.constant 1.000000e+00 : f32
    %103 = vector.broadcast %cst_50 : f32 to vector<8x128xf32>
    %104 = arith.addf %103, %102 : vector<8x128xf32>
    %105 = arith.divf %103, %104 : vector<8x128xf32>
    %106 = vector.extract_strided_slice %99 {offsets = [0, 128], sizes = [8, 128], strides = [1, 1]} : vector<8x512xf32> to vector<8x128xf32>
    %107 = arith.negf %106 : vector<8x128xf32>
    %108 = math.exp %107 : vector<8x128xf32>
    %cst_51 = arith.constant 1.000000e+00 : f32
    %109 = vector.broadcast %cst_51 : f32 to vector<8x128xf32>
    %110 = arith.addf %109, %108 : vector<8x128xf32>
    %111 = arith.divf %109, %110 : vector<8x128xf32>
    %112 = vector.extract_strided_slice %99 {offsets = [0, 256], sizes = [8, 128], strides = [1, 1]} : vector<8x512xf32> to vector<8x128xf32>
    %113 = math.tanh %112 : vector<8x128xf32>
    %114 = vector.extract_strided_slice %99 {offsets = [0, 384], sizes = [8, 128], strides = [1, 1]} : vector<8x512xf32> to vector<8x128xf32>
    %115 = arith.negf %114 : vector<8x128xf32>
    %116 = math.exp %115 : vector<8x128xf32>
    %cst_52 = arith.constant 1.000000e+00 : f32
    %117 = vector.broadcast %cst_52 : f32 to vector<8x128xf32>
    %118 = arith.addf %117, %116 : vector<8x128xf32>
    %119 = arith.divf %117, %118 : vector<8x128xf32>
    %120 = arith.mulf %111, %50 : vector<8x128xf32>
    %121 = arith.mulf %105, %113 : vector<8x128xf32>
    %122 = arith.addf %120, %121 : vector<8x128xf32>
    %123 = math.tanh %122 : vector<8x128xf32>
    %124 = arith.mulf %119, %123 : vector<8x128xf32>
    %125 = arith.truncf %124 : vector<8x128xf32> to vector<8x128xbf16>
    %c0_53 = arith.constant 0 : index
    %c0_54 = arith.constant 0 : index
    %126 = vector.load %arg20[%c0_53, %c0_54] : memref<8x256xbf16, #tpu.memory_space<vmem>>, vector<8x128xbf16>
    tpu.vector_store %arg20[%c0_53, %c0_54], %125 {strides = array<i32>} : memref<8x256xbf16, #tpu.memory_space<vmem>>, vector<8x128xbf16>,
    %127 = arith.truncf %87 : vector<8x128xf32> to vector<8x128xbf16>
    %c0_55 = arith.constant 0 : index
    %c128_56 = arith.constant 128 : index
    %128 = vector.load %arg20[%c0_55, %c128_56] : memref<8x256xbf16, #tpu.memory_space<vmem>>, vector<8x128xbf16>
    tpu.vector_store %arg20[%c0_55, %c128_56], %127 {strides = array<i32>} : memref<8x256xbf16, #tpu.memory_space<vmem>>, vector<8x128xbf16>,
    %c0_57 = arith.constant 0 : index
    %c0_58 = arith.constant 0 : index
    %129 = vector.load %arg20[%c0_57, %c0_58] : memref<8x256xbf16, #tpu.memory_space<vmem>>, vector<8x256xbf16>
    %c0_59 = arith.constant 0 : index
    %c0_60 = arith.constant 0 : index
    %130 = vector.load %arg7[%c0_59, %c0_60] : memref<256x512xbf16, #tpu.memory_space<vmem>>, vector<256x512xbf16>
    %cst_61 = arith.constant dense<0.000000e+00> : vector<8x512xf32>
    %131 = tpu.matmul %129, %130, %cst_61 {dimension_numbers = #tpu.dot_dimension_numbers<[1], [0], [0], [1], [0, 0, 1, 1], [], []>} : vector<8x256xbf16>, vector<256x512xbf16>, vector<8x512xf32> -> vector<8x512xf32>
    %c0_62 = arith.constant 0 : index
    %c0_63 = arith.constant 0 : index
    %132 = vector.load %arg8[%c0_62, %c0_63] : memref<1x512xf32, #tpu.memory_space<vmem>>, vector<1x512xf32>
    %133 = vector.broadcast %132 : vector<1x512xf32> to vector<8x512xf32>
    %134 = arith.addf %131, %133 : vector<8x512xf32>
    %135 = vector.extract_strided_slice %134 {offsets = [0, 0], sizes = [8, 128], strides = [1, 1]} : vector<8x512xf32> to vector<8x128xf32>
    %136 = arith.negf %135 : vector<8x128xf32>
    %137 = math.exp %136 : vector<8x128xf32>
    %cst_64 = arith.constant 1.000000e+00 : f32
    %138 = vector.broadcast %cst_64 : f32 to vector<8x128xf32>
    %139 = arith.addf %138, %137 : vector<8x128xf32>
    %140 = arith.divf %138, %139 : vector<8x128xf32>
    %141 = vector.extract_strided_slice %134 {offsets = [0, 128], sizes = [8, 128], strides = [1, 1]} : vector<8x512xf32> to vector<8x128xf32>
    %142 = arith.negf %141 : vector<8x128xf32>
    %143 = math.exp %142 : vector<8x128xf32>
    %cst_65 = arith.constant 1.000000e+00 : f32
    %144 = vector.broadcast %cst_65 : f32 to vector<8x128xf32>
    %145 = arith.addf %144, %143 : vector<8x128xf32>
    %146 = arith.divf %144, %145 : vector<8x128xf32>
    %147 = vector.extract_strided_slice %134 {offsets = [0, 256], sizes = [8, 128], strides = [1, 1]} : vector<8x512xf32> to vector<8x128xf32>
    %148 = math.tanh %147 : vector<8x128xf32>
    %149 = vector.extract_strided_slice %134 {offsets = [0, 384], sizes = [8, 128], strides = [1, 1]} : vector<8x512xf32> to vector<8x128xf32>
    %150 = arith.negf %149 : vector<8x128xf32>
    %151 = math.exp %150 : vector<8x128xf32>
    %cst_66 = arith.constant 1.000000e+00 : f32
    %152 = vector.broadcast %cst_66 : f32 to vector<8x128xf32>
    %153 = arith.addf %152, %151 : vector<8x128xf32>
    %154 = arith.divf %152, %153 : vector<8x128xf32>
    %155 = arith.mulf %146, %85 : vector<8x128xf32>
    %156 = arith.mulf %140, %148 : vector<8x128xf32>
    %157 = arith.addf %155, %156 : vector<8x128xf32>
    %158 = math.tanh %157 : vector<8x128xf32>
    %159 = arith.mulf %154, %158 : vector<8x128xf32>
    %c2_i32 = arith.constant 2 : i32
    %160 = arith.index_cast %c2_i32 : i32 to index
    %c0_67 = arith.constant 0 : index
    %c0_68 = arith.constant 0 : index
    %161 = vector.load %arg4[%160, %c0_67, %c0_68] : memref<8x8x128xbf16, #tpu.memory_space<vmem>>, vector<1x8x128xbf16>
    %162 = vector.shape_cast %161 : vector<1x8x128xbf16> to vector<8x128xbf16>
    %c0_69 = arith.constant 0 : index
    %c0_70 = arith.constant 0 : index
    %163 = vector.load %arg19[%c0_69, %c0_70] : memref<8x256xbf16, #tpu.memory_space<vmem>>, vector<8x128xbf16>
    tpu.vector_store %arg19[%c0_69, %c0_70], %162 {strides = array<i32>} : memref<8x256xbf16, #tpu.memory_space<vmem>>, vector<8x128xbf16>,
    %164 = arith.truncf %124 : vector<8x128xf32> to vector<8x128xbf16>
    %c0_71 = arith.constant 0 : index
    %c128_72 = arith.constant 128 : index
    %165 = vector.load %arg19[%c0_71, %c128_72] : memref<8x256xbf16, #tpu.memory_space<vmem>>, vector<8x128xbf16>
    tpu.vector_store %arg19[%c0_71, %c128_72], %164 {strides = array<i32>} : memref<8x256xbf16, #tpu.memory_space<vmem>>, vector<8x128xbf16>,
    %c0_73 = arith.constant 0 : index
    %c0_74 = arith.constant 0 : index
    %166 = vector.load %arg19[%c0_73, %c0_74] : memref<8x256xbf16, #tpu.memory_space<vmem>>, vector<8x256xbf16>
    %c0_75 = arith.constant 0 : index
    %c0_76 = arith.constant 0 : index
    %167 = vector.load %arg5[%c0_75, %c0_76] : memref<256x512xbf16, #tpu.memory_space<vmem>>, vector<256x512xbf16>
    %cst_77 = arith.constant dense<0.000000e+00> : vector<8x512xf32>
    %168 = tpu.matmul %166, %167, %cst_77 {dimension_numbers = #tpu.dot_dimension_numbers<[1], [0], [0], [1], [0, 0, 1, 1], [], []>} : vector<8x256xbf16>, vector<256x512xbf16>, vector<8x512xf32> -> vector<8x512xf32>
    %c0_78 = arith.constant 0 : index
    %c0_79 = arith.constant 0 : index
    %169 = vector.load %arg6[%c0_78, %c0_79] : memref<1x512xf32, #tpu.memory_space<vmem>>, vector<1x512xf32>
    %170 = vector.broadcast %169 : vector<1x512xf32> to vector<8x512xf32>
    %171 = arith.addf %168, %170 : vector<8x512xf32>
    %172 = vector.extract_strided_slice %171 {offsets = [0, 0], sizes = [8, 128], strides = [1, 1]} : vector<8x512xf32> to vector<8x128xf32>
    %173 = arith.negf %172 : vector<8x128xf32>
    %174 = math.exp %173 : vector<8x128xf32>
    %cst_80 = arith.constant 1.000000e+00 : f32
    %175 = vector.broadcast %cst_80 : f32 to vector<8x128xf32>
    %176 = arith.addf %175, %174 : vector<8x128xf32>
    %177 = arith.divf %175, %176 : vector<8x128xf32>
    %178 = vector.extract_strided_slice %171 {offsets = [0, 128], sizes = [8, 128], strides = [1, 1]} : vector<8x512xf32> to vector<8x128xf32>
    %179 = arith.negf %178 : vector<8x128xf32>
    %180 = math.exp %179 : vector<8x128xf32>
    %cst_81 = arith.constant 1.000000e+00 : f32
    %181 = vector.broadcast %cst_81 : f32 to vector<8x128xf32>
    %182 = arith.addf %181, %180 : vector<8x128xf32>
    %183 = arith.divf %181, %182 : vector<8x128xf32>
    %184 = vector.extract_strided_slice %171 {offsets = [0, 256], sizes = [8, 128], strides = [1, 1]} : vector<8x512xf32> to vector<8x128xf32>
    %185 = math.tanh %184 : vector<8x128xf32>
    %186 = vector.extract_strided_slice %171 {offsets = [0, 384], sizes = [8, 128], strides = [1, 1]} : vector<8x512xf32> to vector<8x128xf32>
    %187 = arith.negf %186 : vector<8x128xf32>
    %188 = math.exp %187 : vector<8x128xf32>
    %cst_82 = arith.constant 1.000000e+00 : f32
    %189 = vector.broadcast %cst_82 : f32 to vector<8x128xf32>
    %190 = arith.addf %189, %188 : vector<8x128xf32>
    %191 = arith.divf %189, %190 : vector<8x128xf32>
    %192 = arith.mulf %183, %122 : vector<8x128xf32>
    %193 = arith.mulf %177, %185 : vector<8x128xf32>
    %194 = arith.addf %192, %193 : vector<8x128xf32>
    %195 = math.tanh %194 : vector<8x128xf32>
    %196 = arith.mulf %191, %195 : vector<8x128xf32>
    %197 = arith.truncf %196 : vector<8x128xf32> to vector<8x128xbf16>
    %c0_83 = arith.constant 0 : index
    %c0_84 = arith.constant 0 : index
    %198 = vector.load %arg20[%c0_83, %c0_84] : memref<8x256xbf16, #tpu.memory_space<vmem>>, vector<8x128xbf16>
    tpu.vector_store %arg20[%c0_83, %c0_84], %197 {strides = array<i32>} : memref<8x256xbf16, #tpu.memory_space<vmem>>, vector<8x128xbf16>,
    %199 = arith.truncf %159 : vector<8x128xf32> to vector<8x128xbf16>
    %c0_85 = arith.constant 0 : index
    %c128_86 = arith.constant 128 : index
    %200 = vector.load %arg20[%c0_85, %c128_86] : memref<8x256xbf16, #tpu.memory_space<vmem>>, vector<8x128xbf16>
    tpu.vector_store %arg20[%c0_85, %c128_86], %199 {strides = array<i32>} : memref<8x256xbf16, #tpu.memory_space<vmem>>, vector<8x128xbf16>,
    %c0_87 = arith.constant 0 : index
    %c0_88 = arith.constant 0 : index
    %201 = vector.load %arg20[%c0_87, %c0_88] : memref<8x256xbf16, #tpu.memory_space<vmem>>, vector<8x256xbf16>
    %c0_89 = arith.constant 0 : index
    %c0_90 = arith.constant 0 : index
    %202 = vector.load %arg7[%c0_89, %c0_90] : memref<256x512xbf16, #tpu.memory_space<vmem>>, vector<256x512xbf16>
    %cst_91 = arith.constant dense<0.000000e+00> : vector<8x512xf32>
    %203 = tpu.matmul %201, %202, %cst_91 {dimension_numbers = #tpu.dot_dimension_numbers<[1], [0], [0], [1], [0, 0, 1, 1], [], []>} : vector<8x256xbf16>, vector<256x512xbf16>, vector<8x512xf32> -> vector<8x512xf32>
    %c0_92 = arith.constant 0 : index
    %c0_93 = arith.constant 0 : index
    %204 = vector.load %arg8[%c0_92, %c0_93] : memref<1x512xf32, #tpu.memory_space<vmem>>, vector<1x512xf32>
    %205 = vector.broadcast %204 : vector<1x512xf32> to vector<8x512xf32>
    %206 = arith.addf %203, %205 : vector<8x512xf32>
    %207 = vector.extract_strided_slice %206 {offsets = [0, 0], sizes = [8, 128], strides = [1, 1]} : vector<8x512xf32> to vector<8x128xf32>
    %208 = arith.negf %207 : vector<8x128xf32>
    %209 = math.exp %208 : vector<8x128xf32>
    %cst_94 = arith.constant 1.000000e+00 : f32
    %210 = vector.broadcast %cst_94 : f32 to vector<8x128xf32>
    %211 = arith.addf %210, %209 : vector<8x128xf32>
    %212 = arith.divf %210, %211 : vector<8x128xf32>
    %213 = vector.extract_strided_slice %206 {offsets = [0, 128], sizes = [8, 128], strides = [1, 1]} : vector<8x512xf32> to vector<8x128xf32>
    %214 = arith.negf %213 : vector<8x128xf32>
    %215 = math.exp %214 : vector<8x128xf32>
    %cst_95 = arith.constant 1.000000e+00 : f32
    %216 = vector.broadcast %cst_95 : f32 to vector<8x128xf32>
    %217 = arith.addf %216, %215 : vector<8x128xf32>
    %218 = arith.divf %216, %217 : vector<8x128xf32>
    %219 = vector.extract_strided_slice %206 {offsets = [0, 256], sizes = [8, 128], strides = [1, 1]} : vector<8x512xf32> to vector<8x128xf32>
    %220 = math.tanh %219 : vector<8x128xf32>
    %221 = vector.extract_strided_slice %206 {offsets = [0, 384], sizes = [8, 128], strides = [1, 1]} : vector<8x512xf32> to vector<8x128xf32>
    %222 = arith.negf %221 : vector<8x128xf32>
    %223 = math.exp %222 : vector<8x128xf32>
    %cst_96 = arith.constant 1.000000e+00 : f32
    %224 = vector.broadcast %cst_96 : f32 to vector<8x128xf32>
    %225 = arith.addf %224, %223 : vector<8x128xf32>
    %226 = arith.divf %224, %225 : vector<8x128xf32>
    %227 = arith.mulf %218, %157 : vector<8x128xf32>
    %228 = arith.mulf %212, %220 : vector<8x128xf32>
    %229 = arith.addf %227, %228 : vector<8x128xf32>
    %230 = math.tanh %229 : vector<8x128xf32>
    %231 = arith.mulf %226, %230 : vector<8x128xf32>
    %c3_i32 = arith.constant 3 : i32
    %232 = arith.index_cast %c3_i32 : i32 to index
    %c0_97 = arith.constant 0 : index
    %c0_98 = arith.constant 0 : index
    %233 = vector.load %arg4[%232, %c0_97, %c0_98] : memref<8x8x128xbf16, #tpu.memory_space<vmem>>, vector<1x8x128xbf16>
    %234 = vector.shape_cast %233 : vector<1x8x128xbf16> to vector<8x128xbf16>
    %c0_99 = arith.constant 0 : index
    %c0_100 = arith.constant 0 : index
    %235 = vector.load %arg19[%c0_99, %c0_100] : memref<8x256xbf16, #tpu.memory_space<vmem>>, vector<8x128xbf16>
    tpu.vector_store %arg19[%c0_99, %c0_100], %234 {strides = array<i32>} : memref<8x256xbf16, #tpu.memory_space<vmem>>, vector<8x128xbf16>,
    %236 = arith.truncf %196 : vector<8x128xf32> to vector<8x128xbf16>
    %c0_101 = arith.constant 0 : index
    %c128_102 = arith.constant 128 : index
    %237 = vector.load %arg19[%c0_101, %c128_102] : memref<8x256xbf16, #tpu.memory_space<vmem>>, vector<8x128xbf16>
    tpu.vector_store %arg19[%c0_101, %c128_102], %236 {strides = array<i32>} : memref<8x256xbf16, #tpu.memory_space<vmem>>, vector<8x128xbf16>,
    %c0_103 = arith.constant 0 : index
    %c0_104 = arith.constant 0 : index
    %238 = vector.load %arg19[%c0_103, %c0_104] : memref<8x256xbf16, #tpu.memory_space<vmem>>, vector<8x256xbf16>
    %c0_105 = arith.constant 0 : index
    %c0_106 = arith.constant 0 : index
    %239 = vector.load %arg5[%c0_105, %c0_106] : memref<256x512xbf16, #tpu.memory_space<vmem>>, vector<256x512xbf16>
    %cst_107 = arith.constant dense<0.000000e+00> : vector<8x512xf32>
    %240 = tpu.matmul %238, %239, %cst_107 {dimension_numbers = #tpu.dot_dimension_numbers<[1], [0], [0], [1], [0, 0, 1, 1], [], []>} : vector<8x256xbf16>, vector<256x512xbf16>, vector<8x512xf32> -> vector<8x512xf32>
    %c0_108 = arith.constant 0 : index
    %c0_109 = arith.constant 0 : index
    %241 = vector.load %arg6[%c0_108, %c0_109] : memref<1x512xf32, #tpu.memory_space<vmem>>, vector<1x512xf32>
    %242 = vector.broadcast %241 : vector<1x512xf32> to vector<8x512xf32>
    %243 = arith.addf %240, %242 : vector<8x512xf32>
    %244 = vector.extract_strided_slice %243 {offsets = [0, 0], sizes = [8, 128], strides = [1, 1]} : vector<8x512xf32> to vector<8x128xf32>
    %245 = arith.negf %244 : vector<8x128xf32>
    %246 = math.exp %245 : vector<8x128xf32>
    %cst_110 = arith.constant 1.000000e+00 : f32
    %247 = vector.broadcast %cst_110 : f32 to vector<8x128xf32>
    %248 = arith.addf %247, %246 : vector<8x128xf32>
    %249 = arith.divf %247, %248 : vector<8x128xf32>
    %250 = vector.extract_strided_slice %243 {offsets = [0, 128], sizes = [8, 128], strides = [1, 1]} : vector<8x512xf32> to vector<8x128xf32>
    %251 = arith.negf %250 : vector<8x128xf32>
    %252 = math.exp %251 : vector<8x128xf32>
    %cst_111 = arith.constant 1.000000e+00 : f32
    %253 = vector.broadcast %cst_111 : f32 to vector<8x128xf32>
    %254 = arith.addf %253, %252 : vector<8x128xf32>
    %255 = arith.divf %253, %254 : vector<8x128xf32>
    %256 = vector.extract_strided_slice %243 {offsets = [0, 256], sizes = [8, 128], strides = [1, 1]} : vector<8x512xf32> to vector<8x128xf32>
    %257 = math.tanh %256 : vector<8x128xf32>
    %258 = vector.extract_strided_slice %243 {offsets = [0, 384], sizes = [8, 128], strides = [1, 1]} : vector<8x512xf32> to vector<8x128xf32>
    %259 = arith.negf %258 : vector<8x128xf32>
    %260 = math.exp %259 : vector<8x128xf32>
    %cst_112 = arith.constant 1.000000e+00 : f32
    %261 = vector.broadcast %cst_112 : f32 to vector<8x128xf32>
    %262 = arith.addf %261, %260 : vector<8x128xf32>
    %263 = arith.divf %261, %262 : vector<8x128xf32>
    %264 = arith.mulf %255, %194 : vector<8x128xf32>
    %265 = arith.mulf %249, %257 : vector<8x128xf32>
    %266 = arith.addf %264, %265 : vector<8x128xf32>
    %267 = math.tanh %266 : vector<8x128xf32>
    %268 = arith.mulf %263, %267 : vector<8x128xf32>
    %269 = arith.truncf %268 : vector<8x128xf32> to vector<8x128xbf16>
    %c0_113 = arith.constant 0 : index
    %c0_114 = arith.constant 0 : index
    %270 = vector.load %arg20[%c0_113, %c0_114] : memref<8x256xbf16, #tpu.memory_space<vmem>>, vector<8x128xbf16>
    tpu.vector_store %arg20[%c0_113, %c0_114], %269 {strides = array<i32>} : memref<8x256xbf16, #tpu.memory_space<vmem>>, vector<8x128xbf16>,
    %271 = arith.truncf %231 : vector<8x128xf32> to vector<8x128xbf16>
    %c0_115 = arith.constant 0 : index
    %c128_116 = arith.constant 128 : index
    %272 = vector.load %arg20[%c0_115, %c128_116] : memref<8x256xbf16, #tpu.memory_space<vmem>>, vector<8x128xbf16>
    tpu.vector_store %arg20[%c0_115, %c128_116], %271 {strides = array<i32>} : memref<8x256xbf16, #tpu.memory_space<vmem>>, vector<8x128xbf16>,
    %c0_117 = arith.constant 0 : index
    %c0_118 = arith.constant 0 : index
    %273 = vector.load %arg20[%c0_117, %c0_118] : memref<8x256xbf16, #tpu.memory_space<vmem>>, vector<8x256xbf16>
    %c0_119 = arith.constant 0 : index
    %c0_120 = arith.constant 0 : index
    %274 = vector.load %arg7[%c0_119, %c0_120] : memref<256x512xbf16, #tpu.memory_space<vmem>>, vector<256x512xbf16>
    %cst_121 = arith.constant dense<0.000000e+00> : vector<8x512xf32>
    %275 = tpu.matmul %273, %274, %cst_121 {dimension_numbers = #tpu.dot_dimension_numbers<[1], [0], [0], [1], [0, 0, 1, 1], [], []>} : vector<8x256xbf16>, vector<256x512xbf16>, vector<8x512xf32> -> vector<8x512xf32>
    %c0_122 = arith.constant 0 : index
    %c0_123 = arith.constant 0 : index
    %276 = vector.load %arg8[%c0_122, %c0_123] : memref<1x512xf32, #tpu.memory_space<vmem>>, vector<1x512xf32>
    %277 = vector.broadcast %276 : vector<1x512xf32> to vector<8x512xf32>
    %278 = arith.addf %275, %277 : vector<8x512xf32>
    %279 = vector.extract_strided_slice %278 {offsets = [0, 0], sizes = [8, 128], strides = [1, 1]} : vector<8x512xf32> to vector<8x128xf32>
    %280 = arith.negf %279 : vector<8x128xf32>
    %281 = math.exp %280 : vector<8x128xf32>
    %cst_124 = arith.constant 1.000000e+00 : f32
    %282 = vector.broadcast %cst_124 : f32 to vector<8x128xf32>
    %283 = arith.addf %282, %281 : vector<8x128xf32>
    %284 = arith.divf %282, %283 : vector<8x128xf32>
    %285 = vector.extract_strided_slice %278 {offsets = [0, 128], sizes = [8, 128], strides = [1, 1]} : vector<8x512xf32> to vector<8x128xf32>
    %286 = arith.negf %285 : vector<8x128xf32>
    %287 = math.exp %286 : vector<8x128xf32>
    %cst_125 = arith.constant 1.000000e+00 : f32
    %288 = vector.broadcast %cst_125 : f32 to vector<8x128xf32>
    %289 = arith.addf %288, %287 : vector<8x128xf32>
    %290 = arith.divf %288, %289 : vector<8x128xf32>
    %291 = vector.extract_strided_slice %278 {offsets = [0, 256], sizes = [8, 128], strides = [1, 1]} : vector<8x512xf32> to vector<8x128xf32>
    %292 = math.tanh %291 : vector<8x128xf32>
    %293 = vector.extract_strided_slice %278 {offsets = [0, 384], sizes = [8, 128], strides = [1, 1]} : vector<8x512xf32> to vector<8x128xf32>
    %294 = arith.negf %293 : vector<8x128xf32>
    %295 = math.exp %294 : vector<8x128xf32>
    %cst_126 = arith.constant 1.000000e+00 : f32
    %296 = vector.broadcast %cst_126 : f32 to vector<8x128xf32>
    %297 = arith.addf %296, %295 : vector<8x128xf32>
    %298 = arith.divf %296, %297 : vector<8x128xf32>
    %299 = arith.mulf %290, %229 : vector<8x128xf32>
    %300 = arith.mulf %284, %292 : vector<8x128xf32>
    %301 = arith.addf %299, %300 : vector<8x128xf32>
    %302 = math.tanh %301 : vector<8x128xf32>
    %303 = arith.mulf %298, %302 : vector<8x128xf32>
    %c4_i32 = arith.constant 4 : i32
    %304 = arith.index_cast %c4_i32 : i32 to index
    %c0_127 = arith.constant 0 : index
    %c0_128 = arith.constant 0 : index
    %305 = vector.load %arg4[%304, %c0_127, %c0_128] : memref<8x8x128xbf16, #tpu.memory_space<vmem>>, vector<1x8x128xbf16>
    %306 = vector.shape_cast %305 : vector<1x8x128xbf16> to vector<8x128xbf16>
    %c0_129 = arith.constant 0 : index
    %c0_130 = arith.constant 0 : index
    %307 = vector.load %arg19[%c0_129, %c0_130] : memref<8x256xbf16, #tpu.memory_space<vmem>>, vector<8x128xbf16>
    tpu.vector_store %arg19[%c0_129, %c0_130], %306 {strides = array<i32>} : memref<8x256xbf16, #tpu.memory_space<vmem>>, vector<8x128xbf16>,
    %308 = arith.truncf %268 : vector<8x128xf32> to vector<8x128xbf16>
    %c0_131 = arith.constant 0 : index
    %c128_132 = arith.constant 128 : index
    %309 = vector.load %arg19[%c0_131, %c128_132] : memref<8x256xbf16, #tpu.memory_space<vmem>>, vector<8x128xbf16>
    tpu.vector_store %arg19[%c0_131, %c128_132], %308 {strides = array<i32>} : memref<8x256xbf16, #tpu.memory_space<vmem>>, vector<8x128xbf16>,
    %c0_133 = arith.constant 0 : index
    %c0_134 = arith.constant 0 : index
    %310 = vector.load %arg19[%c0_133, %c0_134] : memref<8x256xbf16, #tpu.memory_space<vmem>>, vector<8x256xbf16>
    %c0_135 = arith.constant 0 : index
    %c0_136 = arith.constant 0 : index
    %311 = vector.load %arg5[%c0_135, %c0_136] : memref<256x512xbf16, #tpu.memory_space<vmem>>, vector<256x512xbf16>
    %cst_137 = arith.constant dense<0.000000e+00> : vector<8x512xf32>
    %312 = tpu.matmul %310, %311, %cst_137 {dimension_numbers = #tpu.dot_dimension_numbers<[1], [0], [0], [1], [0, 0, 1, 1], [], []>} : vector<8x256xbf16>, vector<256x512xbf16>, vector<8x512xf32> -> vector<8x512xf32>
    %c0_138 = arith.constant 0 : index
    %c0_139 = arith.constant 0 : index
    %313 = vector.load %arg6[%c0_138, %c0_139] : memref<1x512xf32, #tpu.memory_space<vmem>>, vector<1x512xf32>
    %314 = vector.broadcast %313 : vector<1x512xf32> to vector<8x512xf32>
    %315 = arith.addf %312, %314 : vector<8x512xf32>
    %316 = vector.extract_strided_slice %315 {offsets = [0, 0], sizes = [8, 128], strides = [1, 1]} : vector<8x512xf32> to vector<8x128xf32>
    %317 = arith.negf %316 : vector<8x128xf32>
    %318 = math.exp %317 : vector<8x128xf32>
    %cst_140 = arith.constant 1.000000e+00 : f32
    %319 = vector.broadcast %cst_140 : f32 to vector<8x128xf32>
    %320 = arith.addf %319, %318 : vector<8x128xf32>
    %321 = arith.divf %319, %320 : vector<8x128xf32>
    %322 = vector.extract_strided_slice %315 {offsets = [0, 128], sizes = [8, 128], strides = [1, 1]} : vector<8x512xf32> to vector<8x128xf32>
    %323 = arith.negf %322 : vector<8x128xf32>
    %324 = math.exp %323 : vector<8x128xf32>
    %cst_141 = arith.constant 1.000000e+00 : f32
    %325 = vector.broadcast %cst_141 : f32 to vector<8x128xf32>
    %326 = arith.addf %325, %324 : vector<8x128xf32>
    %327 = arith.divf %325, %326 : vector<8x128xf32>
    %328 = vector.extract_strided_slice %315 {offsets = [0, 256], sizes = [8, 128], strides = [1, 1]} : vector<8x512xf32> to vector<8x128xf32>
    %329 = math.tanh %328 : vector<8x128xf32>
    %330 = vector.extract_strided_slice %315 {offsets = [0, 384], sizes = [8, 128], strides = [1, 1]} : vector<8x512xf32> to vector<8x128xf32>
    %331 = arith.negf %330 : vector<8x128xf32>
    %332 = math.exp %331 : vector<8x128xf32>
    %cst_142 = arith.constant 1.000000e+00 : f32
    %333 = vector.broadcast %cst_142 : f32 to vector<8x128xf32>
    %334 = arith.addf %333, %332 : vector<8x128xf32>
    %335 = arith.divf %333, %334 : vector<8x128xf32>
    %336 = arith.mulf %327, %266 : vector<8x128xf32>
    %337 = arith.mulf %321, %329 : vector<8x128xf32>
    %338 = arith.addf %336, %337 : vector<8x128xf32>
    %339 = math.tanh %338 : vector<8x128xf32>
    %340 = arith.mulf %335, %339 : vector<8x128xf32>
    %341 = arith.truncf %340 : vector<8x128xf32> to vector<8x128xbf16>
    %c0_143 = arith.constant 0 : index
    %c0_144 = arith.constant 0 : index
    %342 = vector.load %arg20[%c0_143, %c0_144] : memref<8x256xbf16, #tpu.memory_space<vmem>>, vector<8x128xbf16>
    tpu.vector_store %arg20[%c0_143, %c0_144], %341 {strides = array<i32>} : memref<8x256xbf16, #tpu.memory_space<vmem>>, vector<8x128xbf16>,
    %343 = arith.truncf %303 : vector<8x128xf32> to vector<8x128xbf16>
    %c0_145 = arith.constant 0 : index
    %c128_146 = arith.constant 128 : index
    %344 = vector.load %arg20[%c0_145, %c128_146] : memref<8x256xbf16, #tpu.memory_space<vmem>>, vector<8x128xbf16>
    tpu.vector_store %arg20[%c0_145, %c128_146], %343 {strides = array<i32>} : memref<8x256xbf16, #tpu.memory_space<vmem>>, vector<8x128xbf16>,
    %c0_147 = arith.constant 0 : index
    %c0_148 = arith.constant 0 : index
    %345 = vector.load %arg20[%c0_147, %c0_148] : memref<8x256xbf16, #tpu.memory_space<vmem>>, vector<8x256xbf16>
    %c0_149 = arith.constant 0 : index
    %c0_150 = arith.constant 0 : index
    %346 = vector.load %arg7[%c0_149, %c0_150] : memref<256x512xbf16, #tpu.memory_space<vmem>>, vector<256x512xbf16>
    %cst_151 = arith.constant dense<0.000000e+00> : vector<8x512xf32>
    %347 = tpu.matmul %345, %346, %cst_151 {dimension_numbers = #tpu.dot_dimension_numbers<[1], [0], [0], [1], [0, 0, 1, 1], [], []>} : vector<8x256xbf16>, vector<256x512xbf16>, vector<8x512xf32> -> vector<8x512xf32>
    %c0_152 = arith.constant 0 : index
    %c0_153 = arith.constant 0 : index
    %348 = vector.load %arg8[%c0_152, %c0_153] : memref<1x512xf32, #tpu.memory_space<vmem>>, vector<1x512xf32>
    %349 = vector.broadcast %348 : vector<1x512xf32> to vector<8x512xf32>
    %350 = arith.addf %347, %349 : vector<8x512xf32>
    %351 = vector.extract_strided_slice %350 {offsets = [0, 0], sizes = [8, 128], strides = [1, 1]} : vector<8x512xf32> to vector<8x128xf32>
    %352 = arith.negf %351 : vector<8x128xf32>
    %353 = math.exp %352 : vector<8x128xf32>
    %cst_154 = arith.constant 1.000000e+00 : f32
    %354 = vector.broadcast %cst_154 : f32 to vector<8x128xf32>
    %355 = arith.addf %354, %353 : vector<8x128xf32>
    %356 = arith.divf %354, %355 : vector<8x128xf32>
    %357 = vector.extract_strided_slice %350 {offsets = [0, 128], sizes = [8, 128], strides = [1, 1]} : vector<8x512xf32> to vector<8x128xf32>
    %358 = arith.negf %357 : vector<8x128xf32>
    %359 = math.exp %358 : vector<8x128xf32>
    %cst_155 = arith.constant 1.000000e+00 : f32
    %360 = vector.broadcast %cst_155 : f32 to vector<8x128xf32>
    %361 = arith.addf %360, %359 : vector<8x128xf32>
    %362 = arith.divf %360, %361 : vector<8x128xf32>
    %363 = vector.extract_strided_slice %350 {offsets = [0, 256], sizes = [8, 128], strides = [1, 1]} : vector<8x512xf32> to vector<8x128xf32>
    %364 = math.tanh %363 : vector<8x128xf32>
    %365 = vector.extract_strided_slice %350 {offsets = [0, 384], sizes = [8, 128], strides = [1, 1]} : vector<8x512xf32> to vector<8x128xf32>
    %366 = arith.negf %365 : vector<8x128xf32>
    %367 = math.exp %366 : vector<8x128xf32>
    %cst_156 = arith.constant 1.000000e+00 : f32
    %368 = vector.broadcast %cst_156 : f32 to vector<8x128xf32>
    %369 = arith.addf %368, %367 : vector<8x128xf32>
    %370 = arith.divf %368, %369 : vector<8x128xf32>
    %371 = arith.mulf %362, %301 : vector<8x128xf32>
    %372 = arith.mulf %356, %364 : vector<8x128xf32>
    %373 = arith.addf %371, %372 : vector<8x128xf32>
    %374 = math.tanh %373 : vector<8x128xf32>
    %375 = arith.mulf %370, %374 : vector<8x128xf32>
    %c5_i32 = arith.constant 5 : i32
    %376 = arith.index_cast %c5_i32 : i32 to index
    %c0_157 = arith.constant 0 : index
    %c0_158 = arith.constant 0 : index
    %377 = vector.load %arg4[%376, %c0_157, %c0_158] : memref<8x8x128xbf16, #tpu.memory_space<vmem>>, vector<1x8x128xbf16>
    %378 = vector.shape_cast %377 : vector<1x8x128xbf16> to vector<8x128xbf16>
    %c0_159 = arith.constant 0 : index
    %c0_160 = arith.constant 0 : index
    %379 = vector.load %arg19[%c0_159, %c0_160] : memref<8x256xbf16, #tpu.memory_space<vmem>>, vector<8x128xbf16>
    tpu.vector_store %arg19[%c0_159, %c0_160], %378 {strides = array<i32>} : memref<8x256xbf16, #tpu.memory_space<vmem>>, vector<8x128xbf16>,
    %380 = arith.truncf %340 : vector<8x128xf32> to vector<8x128xbf16>
    %c0_161 = arith.constant 0 : index
    %c128_162 = arith.constant 128 : index
    %381 = vector.load %arg19[%c0_161, %c128_162] : memref<8x256xbf16, #tpu.memory_space<vmem>>, vector<8x128xbf16>
    tpu.vector_store %arg19[%c0_161, %c128_162], %380 {strides = array<i32>} : memref<8x256xbf16, #tpu.memory_space<vmem>>, vector<8x128xbf16>,
    %c0_163 = arith.constant 0 : index
    %c0_164 = arith.constant 0 : index
    %382 = vector.load %arg19[%c0_163, %c0_164] : memref<8x256xbf16, #tpu.memory_space<vmem>>, vector<8x256xbf16>
    %c0_165 = arith.constant 0 : index
    %c0_166 = arith.constant 0 : index
    %383 = vector.load %arg5[%c0_165, %c0_166] : memref<256x512xbf16, #tpu.memory_space<vmem>>, vector<256x512xbf16>
    %cst_167 = arith.constant dense<0.000000e+00> : vector<8x512xf32>
    %384 = tpu.matmul %382, %383, %cst_167 {dimension_numbers = #tpu.dot_dimension_numbers<[1], [0], [0], [1], [0, 0, 1, 1], [], []>} : vector<8x256xbf16>, vector<256x512xbf16>, vector<8x512xf32> -> vector<8x512xf32>
    %c0_168 = arith.constant 0 : index
    %c0_169 = arith.constant 0 : index
    %385 = vector.load %arg6[%c0_168, %c0_169] : memref<1x512xf32, #tpu.memory_space<vmem>>, vector<1x512xf32>
    %386 = vector.broadcast %385 : vector<1x512xf32> to vector<8x512xf32>
    %387 = arith.addf %384, %386 : vector<8x512xf32>
    %388 = vector.extract_strided_slice %387 {offsets = [0, 0], sizes = [8, 128], strides = [1, 1]} : vector<8x512xf32> to vector<8x128xf32>
    %389 = arith.negf %388 : vector<8x128xf32>
    %390 = math.exp %389 : vector<8x128xf32>
    %cst_170 = arith.constant 1.000000e+00 : f32
    %391 = vector.broadcast %cst_170 : f32 to vector<8x128xf32>
    %392 = arith.addf %391, %390 : vector<8x128xf32>
    %393 = arith.divf %391, %392 : vector<8x128xf32>
    %394 = vector.extract_strided_slice %387 {offsets = [0, 128], sizes = [8, 128], strides = [1, 1]} : vector<8x512xf32> to vector<8x128xf32>
    %395 = arith.negf %394 : vector<8x128xf32>
    %396 = math.exp %395 : vector<8x128xf32>
    %cst_171 = arith.constant 1.000000e+00 : f32
    %397 = vector.broadcast %cst_171 : f32 to vector<8x128xf32>
    %398 = arith.addf %397, %396 : vector<8x128xf32>
    %399 = arith.divf %397, %398 : vector<8x128xf32>
    %400 = vector.extract_strided_slice %387 {offsets = [0, 256], sizes = [8, 128], strides = [1, 1]} : vector<8x512xf32> to vector<8x128xf32>
    %401 = math.tanh %400 : vector<8x128xf32>
    %402 = vector.extract_strided_slice %387 {offsets = [0, 384], sizes = [8, 128], strides = [1, 1]} : vector<8x512xf32> to vector<8x128xf32>
    %403 = arith.negf %402 : vector<8x128xf32>
    %404 = math.exp %403 : vector<8x128xf32>
    %cst_172 = arith.constant 1.000000e+00 : f32
    %405 = vector.broadcast %cst_172 : f32 to vector<8x128xf32>
    %406 = arith.addf %405, %404 : vector<8x128xf32>
    %407 = arith.divf %405, %406 : vector<8x128xf32>
    %408 = arith.mulf %399, %338 : vector<8x128xf32>
    %409 = arith.mulf %393, %401 : vector<8x128xf32>
    %410 = arith.addf %408, %409 : vector<8x128xf32>
    %411 = math.tanh %410 : vector<8x128xf32>
    %412 = arith.mulf %407, %411 : vector<8x128xf32>
    %413 = arith.truncf %412 : vector<8x128xf32> to vector<8x128xbf16>
    %c0_173 = arith.constant 0 : index
    %c0_174 = arith.constant 0 : index
    %414 = vector.load %arg20[%c0_173, %c0_174] : memref<8x256xbf16, #tpu.memory_space<vmem>>, vector<8x128xbf16>
    tpu.vector_store %arg20[%c0_173, %c0_174], %413 {strides = array<i32>} : memref<8x256xbf16, #tpu.memory_space<vmem>>, vector<8x128xbf16>,
    %415 = arith.truncf %375 : vector<8x128xf32> to vector<8x128xbf16>
    %c0_175 = arith.constant 0 : index
    %c128_176 = arith.constant 128 : index
    %416 = vector.load %arg20[%c0_175, %c128_176] : memref<8x256xbf16, #tpu.memory_space<vmem>>, vector<8x128xbf16>
    tpu.vector_store %arg20[%c0_175, %c128_176], %415 {strides = array<i32>} : memref<8x256xbf16, #tpu.memory_space<vmem>>, vector<8x128xbf16>,
    %c0_177 = arith.constant 0 : index
    %c0_178 = arith.constant 0 : index
    %417 = vector.load %arg20[%c0_177, %c0_178] : memref<8x256xbf16, #tpu.memory_space<vmem>>, vector<8x256xbf16>
    %c0_179 = arith.constant 0 : index
    %c0_180 = arith.constant 0 : index
    %418 = vector.load %arg7[%c0_179, %c0_180] : memref<256x512xbf16, #tpu.memory_space<vmem>>, vector<256x512xbf16>
    %cst_181 = arith.constant dense<0.000000e+00> : vector<8x512xf32>
    %419 = tpu.matmul %417, %418, %cst_181 {dimension_numbers = #tpu.dot_dimension_numbers<[1], [0], [0], [1], [0, 0, 1, 1], [], []>} : vector<8x256xbf16>, vector<256x512xbf16>, vector<8x512xf32> -> vector<8x512xf32>
    %c0_182 = arith.constant 0 : index
    %c0_183 = arith.constant 0 : index
    %420 = vector.load %arg8[%c0_182, %c0_183] : memref<1x512xf32, #tpu.memory_space<vmem>>, vector<1x512xf32>
    %421 = vector.broadcast %420 : vector<1x512xf32> to vector<8x512xf32>
    %422 = arith.addf %419, %421 : vector<8x512xf32>
    %423 = vector.extract_strided_slice %422 {offsets = [0, 0], sizes = [8, 128], strides = [1, 1]} : vector<8x512xf32> to vector<8x128xf32>
    %424 = arith.negf %423 : vector<8x128xf32>
    %425 = math.exp %424 : vector<8x128xf32>
    %cst_184 = arith.constant 1.000000e+00 : f32
    %426 = vector.broadcast %cst_184 : f32 to vector<8x128xf32>
    %427 = arith.addf %426, %425 : vector<8x128xf32>
    %428 = arith.divf %426, %427 : vector<8x128xf32>
    %429 = vector.extract_strided_slice %422 {offsets = [0, 128], sizes = [8, 128], strides = [1, 1]} : vector<8x512xf32> to vector<8x128xf32>
    %430 = arith.negf %429 : vector<8x128xf32>
    %431 = math.exp %430 : vector<8x128xf32>
    %cst_185 = arith.constant 1.000000e+00 : f32
    %432 = vector.broadcast %cst_185 : f32 to vector<8x128xf32>
    %433 = arith.addf %432, %431 : vector<8x128xf32>
    %434 = arith.divf %432, %433 : vector<8x128xf32>
    %435 = vector.extract_strided_slice %422 {offsets = [0, 256], sizes = [8, 128], strides = [1, 1]} : vector<8x512xf32> to vector<8x128xf32>
    %436 = math.tanh %435 : vector<8x128xf32>
    %437 = vector.extract_strided_slice %422 {offsets = [0, 384], sizes = [8, 128], strides = [1, 1]} : vector<8x512xf32> to vector<8x128xf32>
    %438 = arith.negf %437 : vector<8x128xf32>
    %439 = math.exp %438 : vector<8x128xf32>
    %cst_186 = arith.constant 1.000000e+00 : f32
    %440 = vector.broadcast %cst_186 : f32 to vector<8x128xf32>
    %441 = arith.addf %440, %439 : vector<8x128xf32>
    %442 = arith.divf %440, %441 : vector<8x128xf32>
    %443 = arith.mulf %434, %373 : vector<8x128xf32>
    %444 = arith.mulf %428, %436 : vector<8x128xf32>
    %445 = arith.addf %443, %444 : vector<8x128xf32>
    %446 = math.tanh %445 : vector<8x128xf32>
    %447 = arith.mulf %442, %446 : vector<8x128xf32>
    %c6_i32 = arith.constant 6 : i32
    %448 = arith.index_cast %c6_i32 : i32 to index
    %c0_187 = arith.constant 0 : index
    %c0_188 = arith.constant 0 : index
    %449 = vector.load %arg4[%448, %c0_187, %c0_188] : memref<8x8x128xbf16, #tpu.memory_space<vmem>>, vector<1x8x128xbf16>
    %450 = vector.shape_cast %449 : vector<1x8x128xbf16> to vector<8x128xbf16>
    %c0_189 = arith.constant 0 : index
    %c0_190 = arith.constant 0 : index
    %451 = vector.load %arg19[%c0_189, %c0_190] : memref<8x256xbf16, #tpu.memory_space<vmem>>, vector<8x128xbf16>
    tpu.vector_store %arg19[%c0_189, %c0_190], %450 {strides = array<i32>} : memref<8x256xbf16, #tpu.memory_space<vmem>>, vector<8x128xbf16>,
    %452 = arith.truncf %412 : vector<8x128xf32> to vector<8x128xbf16>
    %c0_191 = arith.constant 0 : index
    %c128_192 = arith.constant 128 : index
    %453 = vector.load %arg19[%c0_191, %c128_192] : memref<8x256xbf16, #tpu.memory_space<vmem>>, vector<8x128xbf16>
    tpu.vector_store %arg19[%c0_191, %c128_192], %452 {strides = array<i32>} : memref<8x256xbf16, #tpu.memory_space<vmem>>, vector<8x128xbf16>,
    %c0_193 = arith.constant 0 : index
    %c0_194 = arith.constant 0 : index
    %454 = vector.load %arg19[%c0_193, %c0_194] : memref<8x256xbf16, #tpu.memory_space<vmem>>, vector<8x256xbf16>
    %c0_195 = arith.constant 0 : index
    %c0_196 = arith.constant 0 : index
    %455 = vector.load %arg5[%c0_195, %c0_196] : memref<256x512xbf16, #tpu.memory_space<vmem>>, vector<256x512xbf16>
    %cst_197 = arith.constant dense<0.000000e+00> : vector<8x512xf32>
    %456 = tpu.matmul %454, %455, %cst_197 {dimension_numbers = #tpu.dot_dimension_numbers<[1], [0], [0], [1], [0, 0, 1, 1], [], []>} : vector<8x256xbf16>, vector<256x512xbf16>, vector<8x512xf32> -> vector<8x512xf32>
    %c0_198 = arith.constant 0 : index
    %c0_199 = arith.constant 0 : index
    %457 = vector.load %arg6[%c0_198, %c0_199] : memref<1x512xf32, #tpu.memory_space<vmem>>, vector<1x512xf32>
    %458 = vector.broadcast %457 : vector<1x512xf32> to vector<8x512xf32>
    %459 = arith.addf %456, %458 : vector<8x512xf32>
    %460 = vector.extract_strided_slice %459 {offsets = [0, 0], sizes = [8, 128], strides = [1, 1]} : vector<8x512xf32> to vector<8x128xf32>
    %461 = arith.negf %460 : vector<8x128xf32>
    %462 = math.exp %461 : vector<8x128xf32>
    %cst_200 = arith.constant 1.000000e+00 : f32
    %463 = vector.broadcast %cst_200 : f32 to vector<8x128xf32>
    %464 = arith.addf %463, %462 : vector<8x128xf32>
    %465 = arith.divf %463, %464 : vector<8x128xf32>
    %466 = vector.extract_strided_slice %459 {offsets = [0, 128], sizes = [8, 128], strides = [1, 1]} : vector<8x512xf32> to vector<8x128xf32>
    %467 = arith.negf %466 : vector<8x128xf32>
    %468 = math.exp %467 : vector<8x128xf32>
    %cst_201 = arith.constant 1.000000e+00 : f32
    %469 = vector.broadcast %cst_201 : f32 to vector<8x128xf32>
    %470 = arith.addf %469, %468 : vector<8x128xf32>
    %471 = arith.divf %469, %470 : vector<8x128xf32>
    %472 = vector.extract_strided_slice %459 {offsets = [0, 256], sizes = [8, 128], strides = [1, 1]} : vector<8x512xf32> to vector<8x128xf32>
    %473 = math.tanh %472 : vector<8x128xf32>
    %474 = vector.extract_strided_slice %459 {offsets = [0, 384], sizes = [8, 128], strides = [1, 1]} : vector<8x512xf32> to vector<8x128xf32>
    %475 = arith.negf %474 : vector<8x128xf32>
    %476 = math.exp %475 : vector<8x128xf32>
    %cst_202 = arith.constant 1.000000e+00 : f32
    %477 = vector.broadcast %cst_202 : f32 to vector<8x128xf32>
    %478 = arith.addf %477, %476 : vector<8x128xf32>
    %479 = arith.divf %477, %478 : vector<8x128xf32>
    %480 = arith.mulf %471, %410 : vector<8x128xf32>
    %481 = arith.mulf %465, %473 : vector<8x128xf32>
    %482 = arith.addf %480, %481 : vector<8x128xf32>
    %483 = math.tanh %482 : vector<8x128xf32>
    %484 = arith.mulf %479, %483 : vector<8x128xf32>
    %485 = arith.truncf %484 : vector<8x128xf32> to vector<8x128xbf16>
    %c0_203 = arith.constant 0 : index
    %c0_204 = arith.constant 0 : index
    %486 = vector.load %arg20[%c0_203, %c0_204] : memref<8x256xbf16, #tpu.memory_space<vmem>>, vector<8x128xbf16>
    tpu.vector_store %arg20[%c0_203, %c0_204], %485 {strides = array<i32>} : memref<8x256xbf16, #tpu.memory_space<vmem>>, vector<8x128xbf16>,
    %487 = arith.truncf %447 : vector<8x128xf32> to vector<8x128xbf16>
    %c0_205 = arith.constant 0 : index
    %c128_206 = arith.constant 128 : index
    %488 = vector.load %arg20[%c0_205, %c128_206] : memref<8x256xbf16, #tpu.memory_space<vmem>>, vector<8x128xbf16>
    tpu.vector_store %arg20[%c0_205, %c128_206], %487 {strides = array<i32>} : memref<8x256xbf16, #tpu.memory_space<vmem>>, vector<8x128xbf16>,
    %c0_207 = arith.constant 0 : index
    %c0_208 = arith.constant 0 : index
    %489 = vector.load %arg20[%c0_207, %c0_208] : memref<8x256xbf16, #tpu.memory_space<vmem>>, vector<8x256xbf16>
    %c0_209 = arith.constant 0 : index
    %c0_210 = arith.constant 0 : index
    %490 = vector.load %arg7[%c0_209, %c0_210] : memref<256x512xbf16, #tpu.memory_space<vmem>>, vector<256x512xbf16>
    %cst_211 = arith.constant dense<0.000000e+00> : vector<8x512xf32>
    %491 = tpu.matmul %489, %490, %cst_211 {dimension_numbers = #tpu.dot_dimension_numbers<[1], [0], [0], [1], [0, 0, 1, 1], [], []>} : vector<8x256xbf16>, vector<256x512xbf16>, vector<8x512xf32> -> vector<8x512xf32>
    %c0_212 = arith.constant 0 : index
    %c0_213 = arith.constant 0 : index
    %492 = vector.load %arg8[%c0_212, %c0_213] : memref<1x512xf32, #tpu.memory_space<vmem>>, vector<1x512xf32>
    %493 = vector.broadcast %492 : vector<1x512xf32> to vector<8x512xf32>
    %494 = arith.addf %491, %493 : vector<8x512xf32>
    %495 = vector.extract_strided_slice %494 {offsets = [0, 0], sizes = [8, 128], strides = [1, 1]} : vector<8x512xf32> to vector<8x128xf32>
    %496 = arith.negf %495 : vector<8x128xf32>
    %497 = math.exp %496 : vector<8x128xf32>
    %cst_214 = arith.constant 1.000000e+00 : f32
    %498 = vector.broadcast %cst_214 : f32 to vector<8x128xf32>
    %499 = arith.addf %498, %497 : vector<8x128xf32>
    %500 = arith.divf %498, %499 : vector<8x128xf32>
    %501 = vector.extract_strided_slice %494 {offsets = [0, 128], sizes = [8, 128], strides = [1, 1]} : vector<8x512xf32> to vector<8x128xf32>
    %502 = arith.negf %501 : vector<8x128xf32>
    %503 = math.exp %502 : vector<8x128xf32>
    %cst_215 = arith.constant 1.000000e+00 : f32
    %504 = vector.broadcast %cst_215 : f32 to vector<8x128xf32>
    %505 = arith.addf %504, %503 : vector<8x128xf32>
    %506 = arith.divf %504, %505 : vector<8x128xf32>
    %507 = vector.extract_strided_slice %494 {offsets = [0, 256], sizes = [8, 128], strides = [1, 1]} : vector<8x512xf32> to vector<8x128xf32>
    %508 = math.tanh %507 : vector<8x128xf32>
    %509 = vector.extract_strided_slice %494 {offsets = [0, 384], sizes = [8, 128], strides = [1, 1]} : vector<8x512xf32> to vector<8x128xf32>
    %510 = arith.negf %509 : vector<8x128xf32>
    %511 = math.exp %510 : vector<8x128xf32>
    %cst_216 = arith.constant 1.000000e+00 : f32
    %512 = vector.broadcast %cst_216 : f32 to vector<8x128xf32>
    %513 = arith.addf %512, %511 : vector<8x128xf32>
    %514 = arith.divf %512, %513 : vector<8x128xf32>
    %515 = arith.mulf %506, %445 : vector<8x128xf32>
    %516 = arith.mulf %500, %508 : vector<8x128xf32>
    %517 = arith.addf %515, %516 : vector<8x128xf32>
    %518 = math.tanh %517 : vector<8x128xf32>
    %519 = arith.mulf %514, %518 : vector<8x128xf32>
    %c7_i32 = arith.constant 7 : i32
    %520 = arith.index_cast %c7_i32 : i32 to index
    %c0_217 = arith.constant 0 : index
    %c0_218 = arith.constant 0 : index
    %521 = vector.load %arg4[%520, %c0_217, %c0_218] : memref<8x8x128xbf16, #tpu.memory_space<vmem>>, vector<1x8x128xbf16>
    %522 = vector.shape_cast %521 : vector<1x8x128xbf16> to vector<8x128xbf16>
    %c0_219 = arith.constant 0 : index
    %c0_220 = arith.constant 0 : index
    %523 = vector.load %arg19[%c0_219, %c0_220] : memref<8x256xbf16, #tpu.memory_space<vmem>>, vector<8x128xbf16>
    tpu.vector_store %arg19[%c0_219, %c0_220], %522 {strides = array<i32>} : memref<8x256xbf16, #tpu.memory_space<vmem>>, vector<8x128xbf16>,
    %524 = arith.truncf %484 : vector<8x128xf32> to vector<8x128xbf16>
    %c0_221 = arith.constant 0 : index
    %c128_222 = arith.constant 128 : index
    %525 = vector.load %arg19[%c0_221, %c128_222] : memref<8x256xbf16, #tpu.memory_space<vmem>>, vector<8x128xbf16>
    tpu.vector_store %arg19[%c0_221, %c128_222], %524 {strides = array<i32>} : memref<8x256xbf16, #tpu.memory_space<vmem>>, vector<8x128xbf16>,
    %c0_223 = arith.constant 0 : index
    %c0_224 = arith.constant 0 : index
    %526 = vector.load %arg19[%c0_223, %c0_224] : memref<8x256xbf16, #tpu.memory_space<vmem>>, vector<8x256xbf16>
    %c0_225 = arith.constant 0 : index
    %c0_226 = arith.constant 0 : index
    %527 = vector.load %arg5[%c0_225, %c0_226] : memref<256x512xbf16, #tpu.memory_space<vmem>>, vector<256x512xbf16>
    %cst_227 = arith.constant dense<0.000000e+00> : vector<8x512xf32>
    %528 = tpu.matmul %526, %527, %cst_227 {dimension_numbers = #tpu.dot_dimension_numbers<[1], [0], [0], [1], [0, 0, 1, 1], [], []>} : vector<8x256xbf16>, vector<256x512xbf16>, vector<8x512xf32> -> vector<8x512xf32>
    %c0_228 = arith.constant 0 : index
    %c0_229 = arith.constant 0 : index
    %529 = vector.load %arg6[%c0_228, %c0_229] : memref<1x512xf32, #tpu.memory_space<vmem>>, vector<1x512xf32>
    %530 = vector.broadcast %529 : vector<1x512xf32> to vector<8x512xf32>
    %531 = arith.addf %528, %530 : vector<8x512xf32>
    %532 = vector.extract_strided_slice %531 {offsets = [0, 0], sizes = [8, 128], strides = [1, 1]} : vector<8x512xf32> to vector<8x128xf32>
    %533 = arith.negf %532 : vector<8x128xf32>
    %534 = math.exp %533 : vector<8x128xf32>
    %cst_230 = arith.constant 1.000000e+00 : f32
    %535 = vector.broadcast %cst_230 : f32 to vector<8x128xf32>
    %536 = arith.addf %535, %534 : vector<8x128xf32>
    %537 = arith.divf %535, %536 : vector<8x128xf32>
    %538 = vector.extract_strided_slice %531 {offsets = [0, 128], sizes = [8, 128], strides = [1, 1]} : vector<8x512xf32> to vector<8x128xf32>
    %539 = arith.negf %538 : vector<8x128xf32>
    %540 = math.exp %539 : vector<8x128xf32>
    %cst_231 = arith.constant 1.000000e+00 : f32
    %541 = vector.broadcast %cst_231 : f32 to vector<8x128xf32>
    %542 = arith.addf %541, %540 : vector<8x128xf32>
    %543 = arith.divf %541, %542 : vector<8x128xf32>
    %544 = vector.extract_strided_slice %531 {offsets = [0, 256], sizes = [8, 128], strides = [1, 1]} : vector<8x512xf32> to vector<8x128xf32>
    %545 = math.tanh %544 : vector<8x128xf32>
    %546 = vector.extract_strided_slice %531 {offsets = [0, 384], sizes = [8, 128], strides = [1, 1]} : vector<8x512xf32> to vector<8x128xf32>
    %547 = arith.negf %546 : vector<8x128xf32>
    %548 = math.exp %547 : vector<8x128xf32>
    %cst_232 = arith.constant 1.000000e+00 : f32
    %549 = vector.broadcast %cst_232 : f32 to vector<8x128xf32>
    %550 = arith.addf %549, %548 : vector<8x128xf32>
    %551 = arith.divf %549, %550 : vector<8x128xf32>
    %552 = arith.mulf %543, %482 : vector<8x128xf32>
    %553 = arith.mulf %537, %545 : vector<8x128xf32>
    %554 = arith.addf %552, %553 : vector<8x128xf32>
    %555 = math.tanh %554 : vector<8x128xf32>
    %556 = arith.mulf %551, %555 : vector<8x128xf32>
    %557 = arith.truncf %556 : vector<8x128xf32> to vector<8x128xbf16>
    %c0_233 = arith.constant 0 : index
    %c0_234 = arith.constant 0 : index
    %558 = vector.load %arg20[%c0_233, %c0_234] : memref<8x256xbf16, #tpu.memory_space<vmem>>, vector<8x128xbf16>
    tpu.vector_store %arg20[%c0_233, %c0_234], %557 {strides = array<i32>} : memref<8x256xbf16, #tpu.memory_space<vmem>>, vector<8x128xbf16>,
    %559 = arith.truncf %519 : vector<8x128xf32> to vector<8x128xbf16>
    %c0_235 = arith.constant 0 : index
    %c128_236 = arith.constant 128 : index
    %560 = vector.load %arg20[%c0_235, %c128_236] : memref<8x256xbf16, #tpu.memory_space<vmem>>, vector<8x128xbf16>
    tpu.vector_store %arg20[%c0_235, %c128_236], %559 {strides = array<i32>} : memref<8x256xbf16, #tpu.memory_space<vmem>>, vector<8x128xbf16>,
    %c0_237 = arith.constant 0 : index
    %c0_238 = arith.constant 0 : index
    %561 = vector.load %arg20[%c0_237, %c0_238] : memref<8x256xbf16, #tpu.memory_space<vmem>>, vector<8x256xbf16>
    %c0_239 = arith.constant 0 : index
    %c0_240 = arith.constant 0 : index
    %562 = vector.load %arg7[%c0_239, %c0_240] : memref<256x512xbf16, #tpu.memory_space<vmem>>, vector<256x512xbf16>
    %cst_241 = arith.constant dense<0.000000e+00> : vector<8x512xf32>
    %563 = tpu.matmul %561, %562, %cst_241 {dimension_numbers = #tpu.dot_dimension_numbers<[1], [0], [0], [1], [0, 0, 1, 1], [], []>} : vector<8x256xbf16>, vector<256x512xbf16>, vector<8x512xf32> -> vector<8x512xf32>
    %c0_242 = arith.constant 0 : index
    %c0_243 = arith.constant 0 : index
    %564 = vector.load %arg8[%c0_242, %c0_243] : memref<1x512xf32, #tpu.memory_space<vmem>>, vector<1x512xf32>
    %565 = vector.broadcast %564 : vector<1x512xf32> to vector<8x512xf32>
    %566 = arith.addf %563, %565 : vector<8x512xf32>
    %567 = vector.extract_strided_slice %566 {offsets = [0, 0], sizes = [8, 128], strides = [1, 1]} : vector<8x512xf32> to vector<8x128xf32>
    %568 = arith.negf %567 : vector<8x128xf32>
    %569 = math.exp %568 : vector<8x128xf32>
    %cst_244 = arith.constant 1.000000e+00 : f32
    %570 = vector.broadcast %cst_244 : f32 to vector<8x128xf32>
    %571 = arith.addf %570, %569 : vector<8x128xf32>
    %572 = arith.divf %570, %571 : vector<8x128xf32>
    %573 = vector.extract_strided_slice %566 {offsets = [0, 128], sizes = [8, 128], strides = [1, 1]} : vector<8x512xf32> to vector<8x128xf32>
    %574 = arith.negf %573 : vector<8x128xf32>
    %575 = math.exp %574 : vector<8x128xf32>
    %cst_245 = arith.constant 1.000000e+00 : f32
    %576 = vector.broadcast %cst_245 : f32 to vector<8x128xf32>
    %577 = arith.addf %576, %575 : vector<8x128xf32>
    %578 = arith.divf %576, %577 : vector<8x128xf32>
    %579 = vector.extract_strided_slice %566 {offsets = [0, 256], sizes = [8, 128], strides = [1, 1]} : vector<8x512xf32> to vector<8x128xf32>
    %580 = math.tanh %579 : vector<8x128xf32>
    %581 = vector.extract_strided_slice %566 {offsets = [0, 384], sizes = [8, 128], strides = [1, 1]} : vector<8x512xf32> to vector<8x128xf32>
    %582 = arith.negf %581 : vector<8x128xf32>
    %583 = math.exp %582 : vector<8x128xf32>
    %cst_246 = arith.constant 1.000000e+00 : f32
    %584 = vector.broadcast %cst_246 : f32 to vector<8x128xf32>
    %585 = arith.addf %584, %583 : vector<8x128xf32>
    %586 = arith.divf %584, %585 : vector<8x128xf32>
    %587 = arith.mulf %578, %517 : vector<8x128xf32>
    %588 = arith.mulf %572, %580 : vector<8x128xf32>
    %589 = arith.addf %587, %588 : vector<8x128xf32>
    %590 = math.tanh %589 : vector<8x128xf32>
    %591 = arith.mulf %586, %590 : vector<8x128xf32>
    %c8_i32 = arith.constant 8 : i32
    %592 = math.tanh %556 : vector<8x128xf32>
    %593 = arith.truncf %592 : vector<8x128xf32> to vector<8x128xbf16>
    %c0_247 = arith.constant 0 : index
    %c0_248 = arith.constant 0 : index
    %594 = vector.load %arg9[%c0_247, %c0_248] : memref<128x128xbf16, #tpu.memory_space<vmem>>, vector<128x128xbf16>
    %cst_249 = arith.constant dense<0.000000e+00> : vector<8x128xf32>
    %595 = tpu.matmul %593, %594, %cst_249 {dimension_numbers = #tpu.dot_dimension_numbers<[1], [0], [0], [1], [0, 0, 1, 1], [], []>} : vector<8x128xbf16>, vector<128x128xbf16>, vector<8x128xf32> -> vector<8x128xf32>
    %596 = math.tanh %554 : vector<8x128xf32>
    %597 = arith.truncf %596 : vector<8x128xf32> to vector<8x128xbf16>
    %c0_250 = arith.constant 0 : index
    %c0_251 = arith.constant 0 : index
    %598 = vector.load %arg10[%c0_250, %c0_251] : memref<128x128xbf16, #tpu.memory_space<vmem>>, vector<128x128xbf16>
    %cst_252 = arith.constant dense<0.000000e+00> : vector<8x128xf32>
    %599 = tpu.matmul %597, %598, %cst_252 {dimension_numbers = #tpu.dot_dimension_numbers<[1], [0], [0], [1], [0, 0, 1, 1], [], []>} : vector<8x128xbf16>, vector<128x128xbf16>, vector<8x128xf32> -> vector<8x128xf32>
    %600 = arith.addf %595, %599 : vector<8x128xf32>
    %601 = math.tanh %591 : vector<8x128xf32>
    %602 = arith.truncf %601 : vector<8x128xf32> to vector<8x128xbf16>
    %c0_253 = arith.constant 0 : index
    %c0_254 = arith.constant 0 : index
    %603 = vector.load %arg11[%c0_253, %c0_254] : memref<128x128xbf16, #tpu.memory_space<vmem>>, vector<128x128xbf16>
    %cst_255 = arith.constant dense<0.000000e+00> : vector<8x128xf32>
    %604 = tpu.matmul %602, %603, %cst_255 {dimension_numbers = #tpu.dot_dimension_numbers<[1], [0], [0], [1], [0, 0, 1, 1], [], []>} : vector<8x128xbf16>, vector<128x128xbf16>, vector<8x128xf32> -> vector<8x128xf32>
    %605 = arith.addf %600, %604 : vector<8x128xf32>
    %606 = math.tanh %589 : vector<8x128xf32>
    %607 = arith.truncf %606 : vector<8x128xf32> to vector<8x128xbf16>
    %c0_256 = arith.constant 0 : index
    %c0_257 = arith.constant 0 : index
    %608 = vector.load %arg12[%c0_256, %c0_257] : memref<128x128xbf16, #tpu.memory_space<vmem>>, vector<128x128xbf16>
    %cst_258 = arith.constant dense<0.000000e+00> : vector<8x128xf32>
    %609 = tpu.matmul %607, %608, %cst_258 {dimension_numbers = #tpu.dot_dimension_numbers<[1], [0], [0], [1], [0, 0, 1, 1], [], []>} : vector<8x128xbf16>, vector<128x128xbf16>, vector<8x128xf32> -> vector<8x128xf32>
    %610 = arith.addf %605, %609 : vector<8x128xf32>
    %c0_259 = arith.constant 0 : index
    %c0_260 = arith.constant 0 : index
    %611 = vector.load %arg13[%c0_259, %c0_260] : memref<1x128xf32, #tpu.memory_space<vmem>>, vector<1x128xf32>
    %612 = vector.broadcast %611 : vector<1x128xf32> to vector<8x128xf32>
    %613 = arith.addf %610, %612 : vector<8x128xf32>
    %614 = arith.mulf %14, %613 : vector<8x128xf32>
    %615 = math.tanh %614 : vector<8x128xf32>
    %616 = arith.truncf %615 : vector<8x128xf32> to vector<8x128xbf16>
    %c0_261 = arith.constant 0 : index
    %c0_262 = arith.constant 0 : index
    %617 = vector.load %arg14[%c0_261, %c0_262] : memref<128x128xbf16, #tpu.memory_space<vmem>>, vector<128x128xbf16>
    %cst_263 = arith.constant dense<0.000000e+00> : vector<8x128xf32>
    %618 = tpu.matmul %616, %617, %cst_263 {dimension_numbers = #tpu.dot_dimension_numbers<[1], [0], [0], [1], [0, 0, 1, 1], [], []>} : vector<8x128xbf16>, vector<128x128xbf16>, vector<8x128xf32> -> vector<8x128xf32>
    %c0_264 = arith.constant 0 : index
    %c0_265 = arith.constant 0 : index
    %619 = vector.load %arg15[%c0_264, %c0_265] : memref<1x128xf32, #tpu.memory_space<vmem>>, vector<1x128xf32>
    %620 = vector.broadcast %619 : vector<1x128xf32> to vector<8x128xf32>
    %621 = arith.addf %618, %620 : vector<8x128xf32>
    %622 = math.tanh %621 : vector<8x128xf32>
    %623 = arith.truncf %622 : vector<8x128xf32> to vector<8x128xbf16>
    %c0_266 = arith.constant 0 : index
    %c0_267 = arith.constant 0 : index
    %624 = vector.load %arg16[%c0_266, %c0_267] : memref<128x128xbf16, #tpu.memory_space<vmem>>, vector<128x128xbf16>
    %cst_268 = arith.constant dense<0.000000e+00> : vector<8x128xf32>
    %625 = tpu.matmul %623, %624, %cst_268 {dimension_numbers = #tpu.dot_dimension_numbers<[1], [0], [0], [1], [0, 0, 1, 1], [], []>} : vector<8x128xbf16>, vector<128x128xbf16>, vector<8x128xf32> -> vector<8x128xf32>
    %c0_269 = arith.constant 0 : index
    %c0_270 = arith.constant 0 : index
    %626 = vector.load %arg17[%c0_269, %c0_270] : memref<1x128xf32, #tpu.memory_space<vmem>>, vector<1x128xf32>
    %627 = vector.broadcast %626 : vector<1x128xf32> to vector<8x128xf32>
    %628 = arith.addf %625, %627 : vector<8x128xf32>
    %c0_271 = arith.constant 0 : index
    %c0_272 = arith.constant 0 : index
    %629 = vector.load %arg18[%c0_271, %c0_272] : memref<8x128xf32, #tpu.memory_space<vmem>>, vector<8x128xf32>
    tpu.vector_store %arg18[%c0_271, %c0_272], %628 {strides = array<i32>} : memref<8x128xf32, #tpu.memory_space<vmem>>, vector<8x128xf32>,
    return
  }
  func.func @transform_0(%arg0: i32) -> (i32, i32) {
    %c0_i32 = arith.constant 0 : i32
    %c0_i32_0 = arith.constant 0 : i32
    return %arg0, %c0_i32 : i32, i32
  }
  func.func @transform_1(%arg0: i32) -> (i32, i32) {
    %c0_i32 = arith.constant 0 : i32
    %c0_i32_0 = arith.constant 0 : i32
    %c0_i32_1 = arith.constant 0 : i32
    return %c0_i32, %c0_i32_0 : i32, i32
  }
  func.func @transform_2(%arg0: i32) -> (i32, i32) {
    %c0_i32 = arith.constant 0 : i32
    %c0_i32_0 = arith.constant 0 : i32
    %c0_i32_1 = arith.constant 0 : i32
    return %c0_i32, %c0_i32_0 : i32, i32
  }
  func.func @transform_3(%arg0: i32) -> (i32, i32, i32) {
    %c0_i32 = arith.constant 0 : i32
    %c0_i32_0 = arith.constant 0 : i32
    %c0_i32_1 = arith.constant 0 : i32
    return %c0_i32, %arg0, %c0_i32_0 : i32, i32, i32
  }
  func.func @transform_4(%arg0: i32) -> (i32, i32) {
    %c0_i32 = arith.constant 0 : i32
    %c0_i32_0 = arith.constant 0 : i32
    %c0_i32_1 = arith.constant 0 : i32
    return %c0_i32, %c0_i32_0 : i32, i32
  }
  func.func @transform_5(%arg0: i32) -> (i32, i32) {
    %c0_i32 = arith.constant 0 : i32
    %c0_i32_0 = arith.constant 0 : i32
    %c0_i32_1 = arith.constant 0 : i32
    return %c0_i32, %c0_i32_0 : i32, i32
  }
  func.func @transform_6(%arg0: i32) -> (i32, i32) {
    %c0_i32 = arith.constant 0 : i32
    %c0_i32_0 = arith.constant 0 : i32
    %c0_i32_1 = arith.constant 0 : i32
    return %c0_i32, %c0_i32_0 : i32, i32
  }
  func.func @transform_7(%arg0: i32) -> (i32, i32) {
    %c0_i32 = arith.constant 0 : i32
    %c0_i32_0 = arith.constant 0 : i32
    %c0_i32_1 = arith.constant 0 : i32
    return %c0_i32, %c0_i32_0 : i32, i32
  }
  func.func @transform_8(%arg0: i32) -> (i32, i32) {
    %c0_i32 = arith.constant 0 : i32
    %c0_i32_0 = arith.constant 0 : i32
    %c0_i32_1 = arith.constant 0 : i32
    return %c0_i32, %c0_i32_0 : i32, i32
  }
  func.func @transform_9(%arg0: i32) -> (i32, i32) {
    %c0_i32 = arith.constant 0 : i32
    %c0_i32_0 = arith.constant 0 : i32
    %c0_i32_1 = arith.constant 0 : i32
    return %c0_i32, %c0_i32_0 : i32, i32
  }
  func.func @transform_10(%arg0: i32) -> (i32, i32) {
    %c0_i32 = arith.constant 0 : i32
    %c0_i32_0 = arith.constant 0 : i32
    %c0_i32_1 = arith.constant 0 : i32
    return %c0_i32, %c0_i32_0 : i32, i32
  }
  func.func @transform_11(%arg0: i32) -> (i32, i32) {
    %c0_i32 = arith.constant 0 : i32
    %c0_i32_0 = arith.constant 0 : i32
    %c0_i32_1 = arith.constant 0 : i32
    return %c0_i32, %c0_i32_0 : i32, i32
  }
  func.func @transform_12(%arg0: i32) -> (i32, i32) {
    %c0_i32 = arith.constant 0 : i32
    %c0_i32_0 = arith.constant 0 : i32
    %c0_i32_1 = arith.constant 0 : i32
    return %c0_i32, %c0_i32_0 : i32, i32
  }
  func.func @transform_13(%arg0: i32) -> (i32, i32) {
    %c0_i32 = arith.constant 0 : i32
    %c0_i32_0 = arith.constant 0 : i32
    %c0_i32_1 = arith.constant 0 : i32
    return %c0_i32, %c0_i32_0 : i32, i32
  }
  func.func @transform_14(%arg0: i32) -> (i32, i32) {
    %c0_i32 = arith.constant 0 : i32
    %c0_i32_0 = arith.constant 0 : i32
    %c0_i32_1 = arith.constant 0 : i32
    return %c0_i32, %c0_i32_0 : i32, i32
  }
  func.func @transform_15(%arg0: i32) -> (i32, i32) {
    %c0_i32 = arith.constant 0 : i32
    %c0_i32_0 = arith.constant 0 : i32
    %c0_i32_1 = arith.constant 0 : i32
    return %c0_i32, %c0_i32_0 : i32, i32
  }
  func.func @transform_16(%arg0: i32) -> (i32, i32) {
    %c0_i32 = arith.constant 0 : i32
    %c0_i32_0 = arith.constant 0 : i32
    %c0_i32_1 = arith.constant 0 : i32
    return %c0_i32, %c0_i32_0 : i32, i32
  }
  func.func @transform_17(%arg0: i32) -> (i32, i32) {
    %c0_i32 = arith.constant 0 : i32
    %c0_i32_0 = arith.constant 0 : i32
    return %arg0, %c0_i32 : i32, i32
  }
}

</mosaic_0001>

<llo_original>
// kernel: vqa_forward.2
$region0: #{vqa_forward.2}
  #allocation0 [shape = 'u32[]', space=smem, size = 0x4, offset = 0x4, fixed_abs, tag = 'smem constant byte address 0x4 - core index']
  #allocation1 [shape = 'u32[72,128]{1,0:T(1,128)}', space=vmem, size = 0x9000, scoped, tag = 'internal scratch']
  #allocation2 [shape = 'f32[8,128]{1,0:T(8,128)}', space=vmem, size = 0x1000, scoped, tag = 'scratch operand']
  %s0 = inlined_call_operand.vmem [shape: bf16[8,1024], index: 0, kind: input, shape index: {}]
  %s1 = inlined_call_operand.hbm [shape: bf16[1024,128], index: 1, kind: input, shape index: {}]
  %s2 = inlined_call_operand.vmem [shape: f32[1,128], index: 2, kind: input, shape index: {}]
  %s3 = inlined_call_operand.vmem [shape: f32[8,128], index: 3, kind: output, shape index: {}]
  %s4 = sld [smem:[#allocation0]]
  $region34: #{vqa_forward.2} parent=0
    _
  %s6 = ssub.s32 1, %s4
  %s7 = scalar_select 0, %s6, %s4
  $region1: #{vqa_forward.2} parent=0
    #allocation3 [shape = 'u8[262144]{0}', space=vmem, size = 0x40000, scoped, tag = 'input window, operand 1, single buffered']
    #allocation4 [shape = 's32[1]{0}', space=sflag, size = 0x4, scoped, tag = 'scoped memory for vqa_forward.2']
    %8 = vsyncpa [#allocation4], 0
    // Predicated region
    $region2: #{vqa_forward.2} parent=1 // pred_check
      _
    $region3: #{vqa_forward.2} parent=1 // pred_check_branch
      %10 = sbr.rel (0) target = $region5
    $region4: #{vqa_forward.2} parent=1 // pred_region
      _
    $region5: #{vqa_forward.2} parent=1 // pred_fallthru
      _
    // Predicated region
    $region6: #{vqa_forward.2} parent=1 // pred_check
      _
    $region7: #{vqa_forward.2} parent=1 // pred_check_branch
      %12 = sbr.rel (0) target = $region9
    $region8: #{vqa_forward.2} parent=1 // pred_region
      %14 = vsyncadd [#allocation4], 0
      %s15 = sshll.u32 %s1, 4
      %s16 = int_to_ptr.hbm [resolvable:$true] %s15
      %s17 = sshll.u32 [#allocation3], 4
      %s18 = int_to_ptr.vmem [resolvable:$true] %s17
      %23 = dma.hbm_to_vmem [thread:$0]  %s16, 8192, %s18, [#allocation4], 64, 64, 4
    $region9: #{vqa_forward.2} parent=1 // pred_fallthru
      _
    // Predicated region
    $region10: #{vqa_forward.2} parent=1 // pred_check
      _
    $region11: #{vqa_forward.2} parent=1 // pred_check_branch
      %25 = sbr.rel (0) target = $region13
    $region12: #{vqa_forward.2} parent=1 // pred_region
      _
    $region13: #{vqa_forward.2} parent=1 // pred_fallthru
      _
    // Predicated region
    $region14: #{vqa_forward.2} parent=1 // pred_check
      _
    $region15: #{vqa_forward.2} parent=1 // pred_check_branch
      %27 = sbr.rel (0) target = $region17
    $region16: #{vqa_forward.2} parent=1 // pred_region
      %29 = dma.done [#allocation4], 8192
    $region17: #{vqa_forward.2} parent=1 // pred_fallthru
      _
    %p30 = scmp.eq.s32.totalorder 0, 0
    // Predicated region
    $region18: #{vqa_forward.2} parent=1 // pred_check
      %p31 = pneg %p30
    $region19: #{vqa_forward.2} parent=1 // pred_check_branch
      %33 = sbr.rel (%p31) target = $region21
    $region20: #{vqa_forward.2} parent=1 // pred_region
      %34 = vst [vmem:[#allocation2] sm:$0xff] 0.0
    $region21: #{vqa_forward.2} parent=1 // pred_fallthru
      _
    %v35 = vld [vmem:[#allocation2] sm:$0xff]
    %v36 = vld [vmem:[%s0] sm:$0xff]
    %v37 = vld [vmem:[%s0 + $0x8] sm:$0xff]
    %v38 = vld [vmem:[%s0 + $0x10] sm:$0xff]
    %v39 = vld [vmem:[%s0 + $0x18] sm:$0xff]
    %v40 = vld [vmem:[#allocation3] sm:$0xf]
    %v41 = vld [vmem:[#allocation3 + $0x4] sm:$0xf]
    %v42 = vld [vmem:[#allocation3 + $0x8] sm:$0xf]
    %v43 = vld [vmem:[#allocation3 + $0xc] sm:$0xf]
    %v44 = vld [vmem:[#allocation3 + $0x10] sm:$0xf]
    %v45 = vld [vmem:[#allocation3 + $0x14] sm:$0xf]
    %v46 = vld [vmem:[#allocation3 + $0x18] sm:$0xf]
    %v47 = vld [vmem:[#allocation3 + $0x1c] sm:$0xf]
    %v48 = vld [vmem:[#allocation3 + $0x20] sm:$0xf]
    %v49 = vld [vmem:[#allocation3 + $0x24] sm:$0xf]
    %v50 = vld [vmem:[#allocation3 + $0x28] sm:$0xf]
    %v51 = vld [vmem:[#allocation3 + $0x2c] sm:$0xf]
    %v52 = vld [vmem:[#allocation3 + $0x30] sm:$0xf]
    %v53 = vld [vmem:[#allocation3 + $0x34] sm:$0xf]
    %v54 = vld [vmem:[#allocation3 + $0x38] sm:$0xf]
    %v55 = vld [vmem:[#allocation3 + $0x3c] sm:$0xf]
    %v56 = vld [vmem:[#allocation3 + $0x40] sm:$0xf]
    %v57 = vld [vmem:[#allocation3 + $0x44] sm:$0xf]
    %v58 = vld [vmem:[#allocation3 + $0x48] sm:$0xf]
    %v59 = vld [vmem:[#allocation3 + $0x4c] sm:$0xf]
    %v60 = vld [vmem:[#allocation3 + $0x50] sm:$0xf]
    %v61 = vld [vmem:[#allocation3 + $0x54] sm:$0xf]
    %v62 = vld [vmem:[#allocation3 + $0x58] sm:$0xf]
    %v63 = vld [vmem:[#allocation3 + $0x5c] sm:$0xf]
    %v64 = vld [vmem:[#allocation3 + $0x60] sm:$0xf]
    %v65 = vld [vmem:[#allocation3 + $0x64] sm:$0xf]
    %v66 = vld [vmem:[#allocation3 + $0x68] sm:$0xf]
    %v67 = vld [vmem:[#allocation3 + $0x6c] sm:$0xf]
    %v68 = vld [vmem:[#allocation3 + $0x70] sm:$0xf]
    %v69 = vld [vmem:[#allocation3 + $0x74] sm:$0xf]
    %v70 = vld [vmem:[#allocation3 + $0x78] sm:$0xf]
    %v71 = vld [vmem:[#allocation3 + $0x7c] sm:$0xf]
    %v72 = vld [vmem:[#allocation3 + $0x80] sm:$0xf]
    %v73 = vld [vmem:[#allocation3 + $0x84] sm:$0xf]
    %v74 = vld [vmem:[#allocation3 + $0x88] sm:$0xf]
    %v75 = vld [vmem:[#allocation3 + $0x8c] sm:$0xf]
    %v76 = vld [vmem:[#allocation3 + $0x90] sm:$0xf]
    %v77 = vld [vmem:[#allocation3 + $0x94] sm:$0xf]
    %v78 = vld [vmem:[#allocation3 + $0x98] sm:$0xf]
    %v79 = vld [vmem:[#allocation3 + $0x9c] sm:$0xf]
    %v80 = vld [vmem:[#allocation3 + $0xa0] sm:$0xf]
    %v81 = vld [vmem:[#allocation3 + $0xa4] sm:$0xf]
    %v82 = vld [vmem:[#allocation3 + $0xa8] sm:$0xf]
    %v83 = vld [vmem:[#allocation3 + $0xac] sm:$0xf]
    %v84 = vld [vmem:[#allocation3 + $0xb0] sm:$0xf]
    %v85 = vld [vmem:[#allocation3 + $0xb4] sm:$0xf]
    %v86 = vld [vmem:[#allocation3 + $0xb8] sm:$0xf]
    %v87 = vld [vmem:[#allocation3 + $0xbc] sm:$0xf]
    %v88 = vld [vmem:[#allocation3 + $0xc0] sm:$0xf]
    %v89 = vld [vmem:[#allocation3 + $0xc4] sm:$0xf]
    %v90 = vld [vmem:[#allocation3 + $0xc8] sm:$0xf]
    %v91 = vld [vmem:[#allocation3 + $0xcc] sm:$0xf]
    %v92 = vld [vmem:[#allocation3 + $0xd0] sm:$0xf]
    %v93 = vld [vmem:[#allocation3 + $0xd4] sm:$0xf]
    %v94 = vld [vmem:[#allocation3 + $0xd8] sm:$0xf]
    %v95 = vld [vmem:[#allocation3 + $0xdc] sm:$0xf]
    %v96 = vld [vmem:[#allocation3 + $0xe0] sm:$0xf]
    %v97 = vld [vmem:[#allocation3 + $0xe4] sm:$0xf]
    %v98 = vld [vmem:[#allocation3 + $0xe8] sm:$0xf]
    %v99 = vld [vmem:[#allocation3 + $0xec] sm:$0xf]
    %v100 = vld [vmem:[#allocation3 + $0xf0] sm:$0xf]
    %v101 = vld [vmem:[#allocation3 + $0xf4] sm:$0xf]
    %v102 = vld [vmem:[#allocation3 + $0xf8] sm:$0xf]
    %v103 = vld [vmem:[#allocation3 + $0xfc] sm:$0xf]
    %v104 = vld [vmem:[#allocation3 + $0x100] sm:$0xf]
    %v105 = vld [vmem:[#allocation3 + $0x104] sm:$0xf]
    %v106 = vld [vmem:[#allocation3 + $0x108] sm:$0xf]
    %v107 = vld [vmem:[#allocation3 + $0x10c] sm:$0xf]
    %v108 = vld [vmem:[#allocation3 + $0x110] sm:$0xf]
    %v109 = vld [vmem:[#allocation3 + $0x114] sm:$0xf]
    %v110 = vld [vmem:[#allocation3 + $0x118] sm:$0xf]
    %v111 = vld [vmem:[#allocation3 + $0x11c] sm:$0xf]
    %v112 = vld [vmem:[#allocation3 + $0x120] sm:$0xf]
    %v113 = vld [vmem:[#allocation3 + $0x124] sm:$0xf]
    %v114 = vld [vmem:[#allocation3 + $0x128] sm:$0xf]
    %v115 = vld [vmem:[#allocation3 + $0x12c] sm:$0xf]
    %v116 = vld [vmem:[#allocation3 + $0x130] sm:$0xf]
    %v117 = vld [vmem:[#allocation3 + $0x134] sm:$0xf]
    %v118 = vld [vmem:[#allocation3 + $0x138] sm:$0xf]
    %v119 = vld [vmem:[#allocation3 + $0x13c] sm:$0xf]
    %v120 = vld [vmem:[#allocation3 + $0x140] sm:$0xf]
    %v121 = vld [vmem:[#allocation3 + $0x144] sm:$0xf]
    %v122 = vld [vmem:[#allocation3 + $0x148] sm:$0xf]
    %v123 = vld [vmem:[#allocation3 + $0x14c] sm:$0xf]
    %v124 = vld [vmem:[#allocation3 + $0x150] sm:$0xf]
    %v125 = vld [vmem:[#allocation3 + $0x154] sm:$0xf]
    %v126 = vld [vmem:[#allocation3 + $0x158] sm:$0xf]
    %v127 = vld [vmem:[#allocation3 + $0x15c] sm:$0xf]
    %v128 = vld [vmem:[#allocation3 + $0x160] sm:$0xf]
    %v129 = vld [vmem:[#allocation3 + $0x164] sm:$0xf]
    %v130 = vld [vmem:[#allocation3 + $0x168] sm:$0xf]
    %v131 = vld [vmem:[#allocation3 + $0x16c] sm:$0xf]
    %v132 = vld [vmem:[#allocation3 + $0x170] sm:$0xf]
    %v133 = vld [vmem:[#allocation3 + $0x174] sm:$0xf]
    %v134 = vld [vmem:[#allocation3 + $0x178] sm:$0xf]
    %v135 = vld [vmem:[#allocation3 + $0x17c] sm:$0xf]
    %v136 = vld [vmem:[#allocation3 + $0x180] sm:$0xf]
    %v137 = vld [vmem:[#allocation3 + $0x184] sm:$0xf]
    %v138 = vld [vmem:[#allocation3 + $0x188] sm:$0xf]
    %v139 = vld [vmem:[#allocation3 + $0x18c] sm:$0xf]
    %v140 = vld [vmem:[#allocation3 + $0x190] sm:$0xf]
    %v141 = vld [vmem:[#allocation3 + $0x194] sm:$0xf]
    %v142 = vld [vmem:[#allocation3 + $0x198] sm:$0xf]
    %v143 = vld [vmem:[#allocation3 + $0x19c] sm:$0xf]
    %v144 = vld [vmem:[#allocation3 + $0x1a0] sm:$0xf]
    %v145 = vld [vmem:[#allocation3 + $0x1a4] sm:$0xf]
    %v146 = vld [vmem:[#allocation3 + $0x1a8] sm:$0xf]
    %v147 = vld [vmem:[#allocation3 + $0x1ac] sm:$0xf]
    %v148 = vld [vmem:[#allocation3 + $0x1b0] sm:$0xf]
    %v149 = vld [vmem:[#allocation3 + $0x1b4] sm:$0xf]
    %v150 = vld [vmem:[#allocation3 + $0x1b8] sm:$0xf]
    %v151 = vld [vmem:[#allocation3 + $0x1bc] sm:$0xf]
    %v152 = vld [vmem:[#allocation3 + $0x1c0] sm:$0xf]
    %v153 = vld [vmem:[#allocation3 + $0x1c4] sm:$0xf]
    %v154 = vld [vmem:[#allocation3 + $0x1c8] sm:$0xf]
    %v155 = vld [vmem:[#allocation3 + $0x1cc] sm:$0xf]
    %v156 = vld [vmem:[#allocation3 + $0x1d0] sm:$0xf]
    %v157 = vld [vmem:[#allocation3 + $0x1d4] sm:$0xf]
    %v158 = vld [vmem:[#allocation3 + $0x1d8] sm:$0xf]
    %v159 = vld [vmem:[#allocation3 + $0x1dc] sm:$0xf]
    %v160 = vld [vmem:[#allocation3 + $0x1e0] sm:$0xf]
    %v161 = vld [vmem:[#allocation3 + $0x1e4] sm:$0xf]
    %v162 = vld [vmem:[#allocation3 + $0x1e8] sm:$0xf]
    %v163 = vld [vmem:[#allocation3 + $0x1ec] sm:$0xf]
    %v164 = vld [vmem:[#allocation3 + $0x1f0] sm:$0xf]
    %v165 = vld [vmem:[#allocation3 + $0x1f4] sm:$0xf]
    %v166 = vld [vmem:[#allocation3 + $0x1f8] sm:$0xf]
    %v167 = vld [vmem:[#allocation3 + $0x1fc] sm:$0xf]
    %v172 = vunpack.c.l.b16 %v36
    %v173 = vunpack.c.h.b16 %v36
    %v174 = vunpack.c.l.b16 %v37
    %v175 = vunpack.c.h.b16 %v37
    %v176 = vunpack.c.l.b16 %v38
    %v177 = vunpack.c.h.b16 %v38
    %v178 = vunpack.c.l.b16 %v39
    %v179 = vunpack.c.h.b16 %v39
    %v180 = vpack.c.b16 %v172, %v172
    %v181 = vpack.c.b16 %v173, %v173
    %v182 = vpack.c.b16 %v174, %v174
    %v183 = vpack.c.b16 %v175, %v175
    %v184 = vpack.c.b16 %v176, %v176
    %v185 = vpack.c.b16 %v177, %v177
    %v186 = vpack.c.b16 %v178, %v178
    %v187 = vpack.c.b16 %v179, %v179
    %v324 = vunpack.c.l.b16 %v40
    %v325 = vunpack.c.l.b16 %v41
    %v326 = vunpack.c.l.b16 %v42
    %v327 = vunpack.c.l.b16 %v43
    %v328 = vunpack.c.l.b16 %v44
    %v329 = vunpack.c.l.b16 %v45
    %v330 = vunpack.c.l.b16 %v46
    %v331 = vunpack.c.l.b16 %v47
    %v332 = vunpack.c.l.b16 %v48
    %v333 = vunpack.c.l.b16 %v49
    %v334 = vunpack.c.l.b16 %v50
    %v335 = vunpack.c.l.b16 %v51
    %v336 = vunpack.c.l.b16 %v52
    %v337 = vunpack.c.l.b16 %v53
    %v338 = vunpack.c.l.b16 %v54
    %v339 = vunpack.c.l.b16 %v55
    %v340 = vunpack.c.l.b16 %v56
    %v341 = vunpack.c.l.b16 %v57
    %v342 = vunpack.c.l.b16 %v58
    %v343 = vunpack.c.l.b16 %v59
    %v344 = vunpack.c.l.b16 %v60
    %v345 = vunpack.c.l.b16 %v61
    %v346 = vunpack.c.l.b16 %v62
    %v347 = vunpack.c.l.b16 %v63
    %v348 = vunpack.c.l.b16 %v64
    %v349 = vunpack.c.l.b16 %v65
    %v350 = vunpack.c.l.b16 %v66
    %v351 = vunpack.c.l.b16 %v67
    %v352 = vunpack.c.l.b16 %v68
    %v353 = vunpack.c.l.b16 %v69
    %v354 = vunpack.c.l.b16 %v70
    %v355 = vunpack.c.l.b16 %v71
    %v356 = vunpack.c.l.b16 %v72
    %v357 = vunpack.c.l.b16 %v73
    %v358 = vunpack.c.l.b16 %v74
    %v359 = vunpack.c.l.b16 %v75
    %v360 = vunpack.c.l.b16 %v76
    %v361 = vunpack.c.l.b16 %v77
    %v362 = vunpack.c.l.b16 %v78
    %v363 = vunpack.c.l.b16 %v79
    %v364 = vunpack.c.l.b16 %v80
    %v365 = vunpack.c.l.b16 %v81
    %v366 = vunpack.c.l.b16 %v82
    %v367 = vunpack.c.l.b16 %v83
    %v368 = vunpack.c.l.b16 %v84
    %v369 = vunpack.c.l.b16 %v85
    %v370 = vunpack.c.l.b16 %v86
    %v371 = vunpack.c.l.b16 %v87
    %v372 = vunpack.c.l.b16 %v88
    %v373 = vunpack.c.l.b16 %v89
    %v374 = vunpack.c.l.b16 %v90
    %v375 = vunpack.c.l.b16 %v91
    %v376 = vunpack.c.l.b16 %v92
    %v377 = vunpack.c.l.b16 %v93
    %v378 = vunpack.c.l.b16 %v94
    %v379 = vunpack.c.l.b16 %v95
    %v380 = vunpack.c.l.b16 %v96
    %v381 = vunpack.c.l.b16 %v97
    %v382 = vunpack.c.l.b16 %v98
    %v383 = vunpack.c.l.b16 %v99
    %v384 = vunpack.c.l.b16 %v100
    %v385 = vunpack.c.l.b16 %v101
    %v386 = vunpack.c.l.b16 %v102
    %v387 = vunpack.c.l.b16 %v103
    %v388 = vunpack.c.l.b16 %v104
    %v389 = vunpack.c.l.b16 %v105
    %v390 = vunpack.c.l.b16 %v106
    %v391 = vunpack.c.l.b16 %v107
    %v392 = vunpack.c.l.b16 %v108
    %v393 = vunpack.c.l.b16 %v109
    %v394 = vunpack.c.l.b16 %v110
    %v395 = vunpack.c.l.b16 %v111
    %v396 = vunpack.c.l.b16 %v112
    %v397 = vunpack.c.l.b16 %v113
    %v398 = vunpack.c.l.b16 %v114
    %v399 = vunpack.c.l.b16 %v115
    %v400 = vunpack.c.l.b16 %v116
    %v401 = vunpack.c.l.b16 %v117
    %v402 = vunpack.c.l.b16 %v118
    %v403 = vunpack.c.l.b16 %v119
    %v404 = vunpack.c.l.b16 %v120
    %v405 = vunpack.c.l.b16 %v121
    %v406 = vunpack.c.l.b16 %v122
    %v407 = vunpack.c.l.b16 %v123
    %v408 = vunpack.c.l.b16 %v124
    %v409 = vunpack.c.l.b16 %v125
    %v410 = vunpack.c.l.b16 %v126
    %v411 = vunpack.c.l.b16 %v127
    %v412 = vunpack.c.l.b16 %v128
    %v413 = vunpack.c.l.b16 %v129
    %v414 = vunpack.c.l.b16 %v130
    %v415 = vunpack.c.l.b16 %v131
    %v416 = vunpack.c.l.b16 %v132
    %v417 = vunpack.c.l.b16 %v133
    %v418 = vunpack.c.l.b16 %v134
    %v419 = vunpack.c.l.b16 %v135
    %v420 = vunpack.c.l.b16 %v136
    %v421 = vunpack.c.l.b16 %v137
    %v422 = vunpack.c.l.b16 %v138
    %v423 = vunpack.c.l.b16 %v139
    %v424 = vunpack.c.l.b16 %v140
    %v425 = vunpack.c.l.b16 %v141
    %v426 = vunpack.c.l.b16 %v142
    %v427 = vunpack.c.l.b16 %v143
    %v428 = vunpack.c.l.b16 %v144
    %v429 = vunpack.c.l.b16 %v145
    %v430 = vunpack.c.l.b16 %v146
    %v431 = vunpack.c.l.b16 %v147
    %v432 = vunpack.c.l.b16 %v148
    %v433 = vunpack.c.l.b16 %v149
    %v434 = vunpack.c.l.b16 %v150
    %v435 = vunpack.c.l.b16 %v151
    %v436 = vunpack.c.l.b16 %v152
    %v437 = vunpack.c.l.b16 %v153
    %v438 = vunpack.c.l.b16 %v154
    %v439 = vunpack.c.l.b16 %v155
    %v440 = vunpack.c.l.b16 %v156
    %v441 = vunpack.c.l.b16 %v157
    %v442 = vunpack.c.l.b16 %v158
    %v443 = vunpack.c.l.b16 %v159
    %v444 = vunpack.c.l.b16 %v160
    %v445 = vunpack.c.l.b16 %v161
    %v446 = vunpack.c.l.b16 %v162
    %v447 = vunpack.c.l.b16 %v163
    %v448 = vunpack.c.l.b16 %v164
    %v449 = vunpack.c.l.b16 %v165
    %v450 = vunpack.c.l.b16 %v166
    %v451 = vunpack.c.l.b16 %v167
    %v452 = vpack.c.b16 %v325, %v324
    %v453 = vpack.c.b16 %v327, %v326
    %v454 = vpack.c.b16 %v329, %v328
    %v455 = vpack.c.b16 %v331, %v330
    %v456 = vpack.c.b16 %v333, %v332
    %v457 = vpack.c.b16 %v335, %v334
    %v458 = vpack.c.b16 %v337, %v336
    %v459 = vpack.c.b16 %v339, %v338
    %v460 = vpack.c.b16 %v341, %v340
    %v461 = vpack.c.b16 %v343, %v342
    %v462 = vpack.c.b16 %v345, %v344
    %v463 = vpack.c.b16 %v347, %v346
    %v464 = vpack.c.b16 %v349, %v348
    %v465 = vpack.c.b16 %v351, %v350
    %v466 = vpack.c.b16 %v353, %v352
    %v467 = vpack.c.b16 %v355, %v354
    %v468 = vpack.c.b16 %v357, %v356
    %v469 = vpack.c.b16 %v359, %v358
    %v470 = vpack.c.b16 %v361, %v360
    %v471 = vpack.c.b16 %v363, %v362
    %v472 = vpack.c.b16 %v365, %v364
    %v473 = vpack.c.b16 %v367, %v366
    %v474 = vpack.c.b16 %v369, %v368
    %v475 = vpack.c.b16 %v371, %v370
    %v476 = vpack.c.b16 %v373, %v372
    %v477 = vpack.c.b16 %v375, %v374
    %v478 = vpack.c.b16 %v377, %v376
    %v479 = vpack.c.b16 %v379, %v378
    %v480 = vpack.c.b16 %v381, %v380
    %v481 = vpack.c.b16 %v383, %v382
    %v482 = vpack.c.b16 %v385, %v384
    %v483 = vpack.c.b16 %v387, %v386
    %v484 = vpack.c.b16 %v389, %v388
    %v485 = vpack.c.b16 %v391, %v390
    %v486 = vpack.c.b16 %v393, %v392
    %v487 = vpack.c.b16 %v395, %v394
    %v488 = vpack.c.b16 %v397, %v396
    %v489 = vpack.c.b16 %v399, %v398
    %v490 = vpack.c.b16 %v401, %v400
    %v491 = vpack.c.b16 %v403, %v402
    %v492 = vpack.c.b16 %v405, %v404
    %v493 = vpack.c.b16 %v407, %v406
    %v494 = vpack.c.b16 %v409, %v408
    %v495 = vpack.c.b16 %v411, %v410
    %v496 = vpack.c.b16 %v413, %v412
    %v497 = vpack.c.b16 %v415, %v414
    %v498 = vpack.c.b16 %v417, %v416
    %v499 = vpack.c.b16 %v419, %v418
    %v500 = vpack.c.b16 %v421, %v420
    %v501 = vpack.c.b16 %v423, %v422
    %v502 = vpack.c.b16 %v425, %v424
    %v503 = vpack.c.b16 %v427, %v426
    %v504 = vpack.c.b16 %v429, %v428
    %v505 = vpack.c.b16 %v431, %v430
    %v506 = vpack.c.b16 %v433, %v432
    %v507 = vpack.c.b16 %v435, %v434
    %v508 = vpack.c.b16 %v437, %v436
    %v509 = vpack.c.b16 %v439, %v438
    %v510 = vpack.c.b16 %v441, %v440
    %v511 = vpack.c.b16 %v443, %v442
    %v512 = vpack.c.b16 %v445, %v444
    %v513 = vpack.c.b16 %v447, %v446
    %v514 = vpack.c.b16 %v449, %v448
    %v515 = vpack.c.b16 %v451, %v450
    %580 = vmatpush.bf16.msra.mxu0 %v459
    %581 = vmatpush.bf16.msra.mxu0 %v458
    %582 = vmatpush.bf16.msra.mxu0 %v457
    %583 = vmatpush.bf16.msra.mxu0 %v456
    %584 = vmatpush.bf16.msra.mxu0 %v455
    %585 = vmatpush.bf16.msra.mxu0 %v454
    %586 = vmatpush.bf16.msra.mxu0 %v453
    %587 = vmatpush.bf16.msra.mxu0 %v452
    %588 = vmatmul.bf16.gmra.mxu0 %v180
    %v589 = vpop.f32.mrf.mxu0
    %v590 = vadd.f32 0.0, %v589
    %v591 = vpop.f32.mrf.mxu0
    %592 = vdwg.mxu0
    %593 = vmatpush.bf16.msra.mxu0 %v467
    %594 = vmatpush.bf16.msra.mxu0 %v466
    %595 = vmatpush.bf16.msra.mxu0 %v465
    %596 = vmatpush.bf16.msra.mxu0 %v464
    %597 = vmatpush.bf16.msra.mxu0 %v463
    %598 = vmatpush.bf16.msra.mxu0 %v462
    %599 = vmatpush.bf16.msra.mxu0 %v461
    %600 = vmatpush.bf16.msra.mxu0 %v460
    %601 = vmatmul.bf16.gmra.mxu0 %v181
    %v602 = vpop.f32.mrf.mxu0
    %v603 = vadd.f32 %v590, %v602
    %v604 = vpop.f32.mrf.mxu0
    %605 = vdwg.mxu0
    %606 = vmatpush.bf16.msra.mxu0 %v475
    %607 = vmatpush.bf16.msra.mxu0 %v474
    %608 = vmatpush.bf16.msra.mxu0 %v473
    %609 = vmatpush.bf16.msra.mxu0 %v472
    %610 = vmatpush.bf16.msra.mxu0 %v471
    %611 = vmatpush.bf16.msra.mxu0 %v470
    %612 = vmatpush.bf16.msra.mxu0 %v469
    %613 = vmatpush.bf16.msra.mxu0 %v468
    %614 = vmatmul.bf16.gmra.mxu0 %v182
    %v615 = vpop.f32.mrf.mxu0
    %v616 = vadd.f32 %v603, %v615
    %v617 = vpop.f32.mrf.mxu0
    %618 = vdwg.mxu0
    %619 = vmatpush.bf16.msra.mxu0 %v483
    %620 = vmatpush.bf16.msra.mxu0 %v482
    %621 = vmatpush.bf16.msra.mxu0 %v481
    %622 = vmatpush.bf16.msra.mxu0 %v480
    %623 = vmatpush.bf16.msra.mxu0 %v479
    %624 = vmatpush.bf16.msra.mxu0 %v478
    %625 = vmatpush.bf16.msra.mxu0 %v477
    %626 = vmatpush.bf16.msra.mxu0 %v476
    %627 = vmatmul.bf16.gmra.mxu0 %v183
    %v628 = vpop.f32.mrf.mxu0
    %v629 = vadd.f32 %v616, %v628
    %v630 = vpop.f32.mrf.mxu0
    %631 = vdwg.mxu0
    %632 = vmatpush.bf16.msra.mxu0 %v491
    %633 = vmatpush.bf16.msra.mxu0 %v490
    %634 = vmatpush.bf16.msra.mxu0 %v489
    %635 = vmatpush.bf16.msra.mxu0 %v488
    %636 = vmatpush.bf16.msra.mxu0 %v487
    %637 = vmatpush.bf16.msra.mxu0 %v486
    %638 = vmatpush.bf16.msra.mxu0 %v485
    %639 = vmatpush.bf16.msra.mxu0 %v484
    %640 = vmatmul.bf16.gmra.mxu0 %v184
    %v641 = vpop.f32.mrf.mxu0
    %v642 = vadd.f32 %v629, %v641
    %v643 = vpop.f32.mrf.mxu0
    %644 = vdwg.mxu0
    %645 = vmatpush.bf16.msra.mxu0 %v499
    %646 = vmatpush.bf16.msra.mxu0 %v498
    %647 = vmatpush.bf16.msra.mxu0 %v497
    %648 = vmatpush.bf16.msra.mxu0 %v496
    %649 = vmatpush.bf16.msra.mxu0 %v495
    %650 = vmatpush.bf16.msra.mxu0 %v494
    %651 = vmatpush.bf16.msra.mxu0 %v493
    %652 = vmatpush.bf16.msra.mxu0 %v492
    %653 = vmatmul.bf16.gmra.mxu0 %v185
    %v654 = vpop.f32.mrf.mxu0
    %v655 = vadd.f32 %v642, %v654
    %v656 = vpop.f32.mrf.mxu0
    %657 = vdwg.mxu0
    %658 = vmatpush.bf16.msra.mxu0 %v507
    %659 = vmatpush.bf16.msra.mxu0 %v506
    %660 = vmatpush.bf16.msra.mxu0 %v505
    %661 = vmatpush.bf16.msra.mxu0 %v504
    %662 = vmatpush.bf16.msra.mxu0 %v503
    %663 = vmatpush.bf16.msra.mxu0 %v502
    %664 = vmatpush.bf16.msra.mxu0 %v501
    %665 = vmatpush.bf16.msra.mxu0 %v500
    %666 = vmatmul.bf16.gmra.mxu0 %v186
    %v667 = vpop.f32.mrf.mxu0
    %v668 = vadd.f32 %v655, %v667
    %v669 = vpop.f32.mrf.mxu0
    %670 = vdwg.mxu0
    %671 = vmatpush.bf16.msra.mxu0 %v515
    %672 = vmatpush.bf16.msra.mxu0 %v514
    %673 = vmatpush.bf16.msra.mxu0 %v513
    %674 = vmatpush.bf16.msra.mxu0 %v512
    %675 = vmatpush.bf16.msra.mxu0 %v511
    %676 = vmatpush.bf16.msra.mxu0 %v510
    %677 = vmatpush.bf16.msra.mxu0 %v509
    %678 = vmatpush.bf16.msra.mxu0 %v508
    %679 = vmatmul.bf16.gmra.mxu0 %v187
    %v680 = vpop.f32.mrf.mxu0
    %v681 = vadd.f32 %v668, %v680
    %v682 = vpop.f32.mrf.mxu0
    %683 = vdwg.mxu0
    %v684 = vadd.f32 %v35, %v681
    %685 = vst [vmem:[#allocation2] sm:$0xff] %v684
    // Predicated region
    $region22: #{vqa_forward.2} parent=1 // pred_check
      %p686 = pneg %p30
    $region23: #{vqa_forward.2} parent=1 // pred_check_branch
      %688 = sbr.rel (%p686) target = $region25
    $region24: #{vqa_forward.2} parent=1 // pred_region
      %v689 = vld [vmem:[#allocation2] sm:$0xff]
      %v690 = vld [vmem:[%s2] sm:$0x1]
      %v692 = vperm.slane %v690, 0
      %v694 = vadd.f32 %v689, %v692
      %695 = vst [vmem:[%s3] sm:$0xff] %v694
    $region25: #{vqa_forward.2} parent=1 // pred_fallthru
      _
    // Predicated region
    $region26: #{vqa_forward.2} parent=1 // pred_check
      _
    $region27: #{vqa_forward.2} parent=1 // pred_check_branch
      %697 = sbr.rel (0) target = $region29
    $region28: #{vqa_forward.2} parent=1 // pred_region
      _
    $region29: #{vqa_forward.2} parent=1 // pred_fallthru
      _
    // Predicated region
    $region30: #{vqa_forward.2} parent=1 // pred_check
      _
    $region31: #{vqa_forward.2} parent=1 // pred_check_branch
      %699 = sbr.rel (0) target = $region33
    $region32: #{vqa_forward.2} parent=1 // pred_region
      _
    $region33: #{vqa_forward.2} parent=1 // pred_fallthru
      _
    %700 = vsyncpa [#allocation4], 1

// kernel: vqa_forward.3
$region0: #{vqa_forward.3}
  #allocation0 [shape = 'u32[]', space=smem, size = 0x4, offset = 0x4, fixed_abs, tag = 'smem constant byte address 0x4 - core index']
  #allocation1 [shape = 'u32[72,128]{1,0:T(1,128)}', space=vmem, size = 0x9000, scoped, tag = 'internal scratch']
  #allocation2 [shape = 'bf16[8,256]{1,0:T(8,128)(2,1)}', space=vmem, size = 0x1000, scoped, tag = 'scratch operand']
  #allocation3 [shape = 'bf16[8,256]{1,0:T(8,128)(2,1)}', space=vmem, size = 0x1000, scoped, tag = 'scratch operand']
  %s0 = inlined_call_operand.vmem [shape: f32[8,128], index: 0, kind: input, shape index: {}]
  %s1 = inlined_call_operand.vmem [shape: bf16[128,128], index: 1, kind: input, shape index: {}]
  %s2 = inlined_call_operand.vmem [shape: f32[1,128], index: 2, kind: input, shape index: {}]
  %s3 = inlined_call_operand.vmem [shape: bf16[8,8,128], index: 3, kind: input, shape index: {}]
  %s4 = inlined_call_operand.vmem [shape: bf16[256,512], index: 4, kind: input, shape index: {}]
  %s5 = inlined_call_operand.vmem [shape: f32[1,512], index: 5, kind: input, shape index: {}]
  %s6 = inlined_call_operand.hbm [shape: bf16[256,512], index: 6, kind: input, shape index: {}]
  %s7 = inlined_call_operand.vmem [shape: f32[1,512], index: 7, kind: input, shape index: {}]
  %s8 = inlined_call_operand.vmem [shape: bf16[128,128], index: 8, kind: input, shape index: {}]
  %s9 = inlined_call_operand.vmem [shape: bf16[128,128], index: 9, kind: input, shape index: {}]
  %s10 = inlined_call_operand.vmem [shape: bf16[128,128], index: 10, kind: input, shape index: {}]
  %s11 = inlined_call_operand.vmem [shape: bf16[128,128], index: 11, kind: input, shape index: {}]
  %s12 = inlined_call_operand.vmem [shape: f32[1,128], index: 12, kind: input, shape index: {}]
  %s13 = inlined_call_operand.vmem [shape: bf16[128,128], index: 13, kind: input, shape index: {}]
  %s14 = inlined_call_operand.vmem [shape: f32[1,128], index: 14, kind: input, shape index: {}]
  %s15 = inlined_call_operand.vmem [shape: bf16[128,128], index: 15, kind: input, shape index: {}]
  %s16 = inlined_call_operand.vmem [shape: f32[1,128], index: 16, kind: input, shape index: {}]
  %s17 = inlined_call_operand.vmem [shape: f32[8,128], index: 17, kind: output, shape index: {}]
  %s18 = sld [smem:[#allocation0]]
  $region82: #{vqa_forward.3} parent=0
    _
  %s20 = ssub.s32 1, %s18
  %s21 = scalar_select 0, %s20, %s18
  $region1: #{vqa_forward.3} parent=0
    #allocation4 [shape = 'u8[262144]{0}', space=vmem, size = 0x40000, scoped, tag = 'input window, operand 6, single buffered']
    #allocation5 [shape = 's32[1]{0}', space=sflag, size = 0x4, scoped, tag = 'scoped memory for vqa_forward.3']
    %22 = vsyncpa [#allocation5], 0
    // Predicated region
    $region2: #{vqa_forward.3} parent=1 // pred_check
      _
    $region3: #{vqa_forward.3} parent=1 // pred_check_branch
      %24 = sbr.rel (0) target = $region5
    $region4: #{vqa_forward.3} parent=1 // pred_region
      _
    $region5: #{vqa_forward.3} parent=1 // pred_fallthru
      _
    // Predicated region
    $region6: #{vqa_forward.3} parent=1 // pred_check
      _
    $region7: #{vqa_forward.3} parent=1 // pred_check_branch
      %26 = sbr.rel (0) target = $region9
    $region8: #{vqa_forward.3} parent=1 // pred_region
      _
    $region9: #{vqa_forward.3} parent=1 // pred_fallthru
      _
    // Predicated region
    $region10: #{vqa_forward.3} parent=1 // pred_check
      _
    $region11: #{vqa_forward.3} parent=1 // pred_check_branch
      %28 = sbr.rel (0) target = $region13
    $region12: #{vqa_forward.3} parent=1 // pred_region
      _
    $region13: #{vqa_forward.3} parent=1 // pred_fallthru
      _
    // Predicated region
    $region14: #{vqa_forward.3} parent=1 // pred_check
      _
    $region15: #{vqa_forward.3} parent=1 // pred_check_branch
      %30 = sbr.rel (0) target = $region17
    $region16: #{vqa_forward.3} parent=1 // pred_region
      _
    $region17: #{vqa_forward.3} parent=1 // pred_fallthru
      _
    // Predicated region
    $region18: #{vqa_forward.3} parent=1 // pred_check
      _
    $region19: #{vqa_forward.3} parent=1 // pred_check_branch
      %32 = sbr.rel (0) target = $region21
    $region20: #{vqa_forward.3} parent=1 // pred_region
      _
    $region21: #{vqa_forward.3} parent=1 // pred_fallthru
      _
    // Predicated region
    $region22: #{vqa_forward.3} parent=1 // pred_check
      _
    $region23: #{vqa_forward.3} parent=1 // pred_check_branch
      %34 = sbr.rel (0) target = $region25
    $region24: #{vqa_forward.3} parent=1 // pred_region
      _
    $region25: #{vqa_forward.3} parent=1 // pred_fallthru
      _
    // Predicated region
    $region26: #{vqa_forward.3} parent=1 // pred_check
      _
    $region27: #{vqa_forward.3} parent=1 // pred_check_branch
      %36 = sbr.rel (0) target = $region29
    $region28: #{vqa_forward.3} parent=1 // pred_region
      %38 = vsyncadd [#allocation5], 0
      %s39 = sshll.u32 %s6, 4
      %s40 = int_to_ptr.hbm [resolvable:$true] %s39
      %s41 = sshll.u32 [#allocation4], 4
      %s42 = int_to_ptr.vmem [resolvable:$true] %s41
      %47 = dma.hbm_to_vmem [thread:$0]  %s40, 8192, %s42, [#allocation5], 256, 256, 16
    $region29: #{vqa_forward.3} parent=1 // pred_fallthru
      _
    // Predicated region
    $region30: #{vqa_forward.3} parent=1 // pred_check
      _
    $region31: #{vqa_forward.3} parent=1 // pred_check_branch
      %49 = sbr.rel (0) target = $region33
    $region32: #{vqa_forward.3} parent=1 // pred_region
      _
    $region33: #{vqa_forward.3} parent=1 // pred_fallthru
      _
    // Predicated region
    $region34: #{vqa_forward.3} parent=1 // pred_check
      _
    $region35: #{vqa_forward.3} parent=1 // pred_check_branch
      %51 = sbr.rel (0) target = $region37
    $region36: #{vqa_forward.3} parent=1 // pred_region
      _
    $region37: #{vqa_forward.3} parent=1 // pred_fallthru
      _
    // Predicated region
    $region38: #{vqa_forward.3} parent=1 // pred_check
      _
    $region39: #{vqa_forward.3} parent=1 // pred_check_branch
      %53 = sbr.rel (0) target = $region41
    $region40: #{vqa_forward.3} parent=1 // pred_region
      _
    $region41: #{vqa_forward.3} parent=1 // pred_fallthru
      _
    // Predicated region
    $region42: #{vqa_forward.3} parent=1 // pred_check
      _
    $region43: #{vqa_forward.3} parent=1 // pred_check_branch
      %55 = sbr.rel (0) target = $region45
    $region44: #{vqa_forward.3} parent=1 // pred_region
      _
    $region45: #{vqa_forward.3} parent=1 // pred_fallthru
      _
    // Predicated region
    $region46: #{vqa_forward.3} parent=1 // pred_check
      _
    $region47: #{vqa_forward.3} parent=1 // pred_check_branch
      %57 = sbr.rel (0) target = $region49
    $region48: #{vqa_forward.3} parent=1 // pred_region
      _
    $region49: #{vqa_forward.3} parent=1 // pred_fallthru
      _
    // Predicated region
    $region50: #{vqa_forward.3} parent=1 // pred_check
      _
    $region51: #{vqa_forward.3} parent=1 // pred_check_branch
      %59 = sbr.rel (0) target = $region53
    $region52: #{vqa_forward.3} parent=1 // pred_region
      _
    $region53: #{vqa_forward.3} parent=1 // pred_fallthru
      _
    // Predicated region
    $region54: #{vqa_forward.3} parent=1 // pred_check
      _
    $region55: #{vqa_forward.3} parent=1 // pred_check_branch
      %61 = sbr.rel (0) target = $region57
    $region56: #{vqa_forward.3} parent=1 // pred_region
      _
    $region57: #{vqa_forward.3} parent=1 // pred_fallthru
      _
    // Predicated region
    $region58: #{vqa_forward.3} parent=1 // pred_check
      _
    $region59: #{vqa_forward.3} parent=1 // pred_check_branch
      %63 = sbr.rel (0) target = $region61
    $region60: #{vqa_forward.3} parent=1 // pred_region
      _
    $region61: #{vqa_forward.3} parent=1 // pred_fallthru
      _
    // Predicated region
    $region62: #{vqa_forward.3} parent=1 // pred_check
      _
    $region63: #{vqa_forward.3} parent=1 // pred_check_branch
      %65 = sbr.rel (0) target = $region65
    $region64: #{vqa_forward.3} parent=1 // pred_region
      _
    $region65: #{vqa_forward.3} parent=1 // pred_fallthru
      _
    // Predicated region
    $region66: #{vqa_forward.3} parent=1 // pred_check
      _
    $region67: #{vqa_forward.3} parent=1 // pred_check_branch
      %67 = sbr.rel (0) target = $region69
    $region68: #{vqa_forward.3} parent=1 // pred_region
      _
    $region69: #{vqa_forward.3} parent=1 // pred_fallthru
      _
    // Predicated region
    $region70: #{vqa_forward.3} parent=1 // pred_check
      _
    $region71: #{vqa_forward.3} parent=1 // pred_check_branch
      %69 = sbr.rel (0) target = $region73
    $region72: #{vqa_forward.3} parent=1 // pred_region
      %71 = dma.done [#allocation5], 8192
    $region73: #{vqa_forward.3} parent=1 // pred_fallthru
      _
    %v73 = vld [vmem:[%s0] sm:$0xff]
    %v74 = vpack.c.bf16 %v73, %v73
    %v75 = vld [vmem:[%s1] sm:$0xf]
    %v76 = vld [vmem:[%s1 + $0x4] sm:$0xf]
    %v77 = vld [vmem:[%s1 + $0x8] sm:$0xf]
    %v78 = vld [vmem:[%s1 + $0xc] sm:$0xf]
    %v79 = vld [vmem:[%s1 + $0x10] sm:$0xf]
    %v80 = vld [vmem:[%s1 + $0x14] sm:$0xf]
    %v81 = vld [vmem:[%s1 + $0x18] sm:$0xf]
    %v82 = vld [vmem:[%s1 + $0x1c] sm:$0xf]
    %v83 = vld [vmem:[%s1 + $0x20] sm:$0xf]
    %v84 = vld [vmem:[%s1 + $0x24] sm:$0xf]
    %v85 = vld [vmem:[%s1 + $0x28] sm:$0xf]
    %v86 = vld [vmem:[%s1 + $0x2c] sm:$0xf]
    %v87 = vld [vmem:[%s1 + $0x30] sm:$0xf]
    %v88 = vld [vmem:[%s1 + $0x34] sm:$0xf]
    %v89 = vld [vmem:[%s1 + $0x38] sm:$0xf]
    %v90 = vld [vmem:[%s1 + $0x3c] sm:$0xf]
    %v91 = vld [vmem:[%s2] sm:$0x1]
    %v93 = vperm.slane %v91, 0
    %v111 = vunpack.c.l.b16 %v75
    %v112 = vunpack.c.l.b16 %v76
    %v113 = vunpack.c.l.b16 %v77
    %v114 = vunpack.c.l.b16 %v78
    %v115 = vunpack.c.l.b16 %v79
    %v116 = vunpack.c.l.b16 %v80
    %v117 = vunpack.c.l.b16 %v81
    %v118 = vunpack.c.l.b16 %v82
    %v119 = vunpack.c.l.b16 %v83
    %v120 = vunpack.c.l.b16 %v84
    %v121 = vunpack.c.l.b16 %v85
    %v122 = vunpack.c.l.b16 %v86
    %v123 = vunpack.c.l.b16 %v87
    %v124 = vunpack.c.l.b16 %v88
    %v125 = vunpack.c.l.b16 %v89
    %v126 = vunpack.c.l.b16 %v90
    %v127 = vpack.c.b16 %v112, %v111
    %v128 = vpack.c.b16 %v114, %v113
    %v129 = vpack.c.b16 %v116, %v115
    %v130 = vpack.c.b16 %v118, %v117
    %v131 = vpack.c.b16 %v120, %v119
    %v132 = vpack.c.b16 %v122, %v121
    %v133 = vpack.c.b16 %v124, %v123
    %v134 = vpack.c.b16 %v126, %v125
    %143 = vmatpush.bf16.msra.mxu0 %v134
    %144 = vmatpush.bf16.msra.mxu0 %v133
    %145 = vmatpush.bf16.msra.mxu0 %v132
    %146 = vmatpush.bf16.msra.mxu0 %v131
    %147 = vmatpush.bf16.msra.mxu0 %v130
    %148 = vmatpush.bf16.msra.mxu0 %v129
    %149 = vmatpush.bf16.msra.mxu0 %v128
    %150 = vmatpush.bf16.msra.mxu0 %v127
    %151 = vmatmul.bf16.gmra.mxu0 %v74
    %v152 = vpop.f32.mrf.mxu0
    %v153 = vadd.f32 %v93, %v152
    %v154 = vpop.f32.mrf.mxu0
    %155 = vdwg.mxu0
    %v156 = vmul.f32 %v153, %v153
    %157 = vadd.xlane.f32.xlu0 %v156
    %v158 = vpop.xlane.xlu0 %157
    %v159 = vadd.f32 %v158, 1e-12
    %v160 = vrsqrt.pop %v159
    %v161 = vmul.f32 %v160, %v159
    %v162 = vmul.f32 %v161, %v160
    %v163 = vmul.f32 0.5, %v162
    %v164 = vsub.f32 1.5, %v163
    %v165 = vmul.f32 %v160, %v164
    %vm166 = vweird.f32 %v159
    %vm167 = vweird.f32 %v160
    %vm168 = vmor %vm166, %vm167
    %v169 = vsel %vm168, %v160, %v165
    %v170 = vmul.f32 %v153, %v169
    %v171 = vld [vmem:[%s3] sm:$0xf]
    %172 = vst [vmem:[#allocation2] sm:$0xf] %v171
    %173 = vst [vmem:[#allocation2 + $0x4] sm:$0xf] 0
    %v174 = vld [vmem:[#allocation2] sm:$0xff]
    %v175 = vld [vmem:[%s4] sm:$0xff]
    %v176 = vld [vmem:[%s4 + $0x8] sm:$0xff]
    %v177 = vld [vmem:[%s4 + $0x10] sm:$0xff]
    %v178 = vld [vmem:[%s4 + $0x18] sm:$0xff]
    %v179 = vld [vmem:[%s4 + $0x20] sm:$0xff]
    %v180 = vld [vmem:[%s4 + $0x28] sm:$0xff]
    %v181 = vld [vmem:[%s4 + $0x30] sm:$0xff]
    %v182 = vld [vmem:[%s4 + $0x38] sm:$0xff]
    %v183 = vld [vmem:[%s4 + $0x40] sm:$0xff]
    %v184 = vld [vmem:[%s4 + $0x48] sm:$0xff]
    %v185 = vld [vmem:[%s4 + $0x50] sm:$0xff]
    %v186 = vld [vmem:[%s4 + $0x58] sm:$0xff]
    %v187 = vld [vmem:[%s4 + $0x60] sm:$0xff]
    %v188 = vld [vmem:[%s4 + $0x68] sm:$0xff]
    %v189 = vld [vmem:[%s4 + $0x70] sm:$0xff]
    %v190 = vld [vmem:[%s4 + $0x78] sm:$0xff]
    %v191 = vld [vmem:[%s4 + $0x80] sm:$0xff]
    %v192 = vld [vmem:[%s4 + $0x88] sm:$0xff]
    %v193 = vld [vmem:[%s4 + $0x90] sm:$0xff]
    %v194 = vld [vmem:[%s4 + $0x98] sm:$0xff]
    %v195 = vld [vmem:[%s4 + $0xa0] sm:$0xff]
    %v196 = vld [vmem:[%s4 + $0xa8] sm:$0xff]
    %v197 = vld [vmem:[%s4 + $0xb0] sm:$0xff]
    %v198 = vld [vmem:[%s4 + $0xb8] sm:$0xff]
    %v199 = vld [vmem:[%s4 + $0xc0] sm:$0xff]
    %v200 = vld [vmem:[%s4 + $0xc8] sm:$0xff]
    %v201 = vld [vmem:[%s4 + $0xd0] sm:$0xff]
    %v202 = vld [vmem:[%s4 + $0xd8] sm:$0xff]
    %v203 = vld [vmem:[%s4 + $0xe0] sm:$0xff]
    %v204 = vld [vmem:[%s4 + $0xe8] sm:$0xff]
    %v205 = vld [vmem:[%s4 + $0xf0] sm:$0xff]
    %v206 = vld [vmem:[%s4 + $0xf8] sm:$0xff]
    %v207 = vld [vmem:[%s4 + $0x100] sm:$0xff]
    %v208 = vld [vmem:[%s4 + $0x108] sm:$0xff]
    %v209 = vld [vmem:[%s4 + $0x110] sm:$0xff]
    %v210 = vld [vmem:[%s4 + $0x118] sm:$0xff]
    %v211 = vld [vmem:[%s4 + $0x120] sm:$0xff]
    %v212 = vld [vmem:[%s4 + $0x128] sm:$0xff]
    %v213 = vld [vmem:[%s4 + $0x130] sm:$0xff]
    %v214 = vld [vmem:[%s4 + $0x138] sm:$0xff]
    %v215 = vld [vmem:[%s4 + $0x140] sm:$0xff]
    %v216 = vld [vmem:[%s4 + $0x148] sm:$0xff]
    %v217 = vld [vmem:[%s4 + $0x150] sm:$0xff]
    %v218 = vld [vmem:[%s4 + $0x158] sm:$0xff]
    %v219 = vld [vmem:[%s4 + $0x160] sm:$0xff]
    %v220 = vld [vmem:[%s4 + $0x168] sm:$0xff]
    %v221 = vld [vmem:[%s4 + $0x170] sm:$0xff]
    %v222 = vld [vmem:[%s4 + $0x178] sm:$0xff]
    %v223 = vld [vmem:[%s4 + $0x180] sm:$0xff]
    %v224 = vld [vmem:[%s4 + $0x188] sm:$0xff]
    %v225 = vld [vmem:[%s4 + $0x190] sm:$0xff]
    %v226 = vld [vmem:[%s4 + $0x198] sm:$0xff]
    %v227 = vld [vmem:[%s4 + $0x1a0] sm:$0xff]
    %v228 = vld [vmem:[%s4 + $0x1a8] sm:$0xff]
    %v229 = vld [vmem:[%s4 + $0x1b0] sm:$0xff]
    %v230 = vld [vmem:[%s4 + $0x1b8] sm:$0xff]
    %v231 = vld [vmem:[%s4 + $0x1c0] sm:$0xff]
    %v232 = vld [vmem:[%s4 + $0x1c8] sm:$0xff]
    %v233 = vld [vmem:[%s4 + $0x1d0] sm:$0xff]
    %v234 = vld [vmem:[%s4 + $0x1d8] sm:$0xff]
    %v235 = vld [vmem:[%s4 + $0x1e0] sm:$0xff]
    %v236 = vld [vmem:[%s4 + $0x1e8] sm:$0xff]
    %v237 = vld [vmem:[%s4 + $0x1f0] sm:$0xff]
    %v238 = vld [vmem:[%s4 + $0x1f8] sm:$0xff]
    %v239 = vld [vmem:[%s5] sm:$0xf]
    %v241 = vperm.slane %v239, 0
    %v242 = vperm.slane %v239, 1
    %v243 = vperm.slane %v239, 2
    %v244 = vperm.slane %v239, 3
    %v250 = vunpack.c.l.b16 %v174
    %v251 = vunpack.c.h.b16 %v174
    %v252 = vpack.c.b16 %v250, %v250
    %v253 = vpack.c.b16 %v251, %v251
    %v320 = vunpack.c.l.b16 %v175
    %v321 = vunpack.c.h.b16 %v175
    %v322 = vunpack.c.l.b16 %v176
    %v323 = vunpack.c.h.b16 %v176
    %v324 = vunpack.c.l.b16 %v177
    %v325 = vunpack.c.h.b16 %v177
    %v326 = vunpack.c.l.b16 %v178
    %v327 = vunpack.c.h.b16 %v178
    %v328 = vunpack.c.l.b16 %v179
    %v329 = vunpack.c.h.b16 %v179
    %v330 = vunpack.c.l.b16 %v180
    %v331 = vunpack.c.h.b16 %v180
    %v332 = vunpack.c.l.b16 %v181
    %v333 = vunpack.c.h.b16 %v181
    %v334 = vunpack.c.l.b16 %v182
    %v335 = vunpack.c.h.b16 %v182
    %v336 = vunpack.c.l.b16 %v183
    %v337 = vunpack.c.h.b16 %v183
    %v338 = vunpack.c.l.b16 %v184
    %v339 = vunpack.c.h.b16 %v184
    %v340 = vunpack.c.l.b16 %v185
    %v341 = vunpack.c.h.b16 %v185
    %v342 = vunpack.c.l.b16 %v186
    %v343 = vunpack.c.h.b16 %v186
    %v344 = vunpack.c.l.b16 %v187
    %v345 = vunpack.c.h.b16 %v187
    %v346 = vunpack.c.l.b16 %v188
    %v347 = vunpack.c.h.b16 %v188
    %v348 = vunpack.c.l.b16 %v189
    %v349 = vunpack.c.h.b16 %v189
    %v350 = vunpack.c.l.b16 %v190
    %v351 = vunpack.c.h.b16 %v190
    %v352 = vunpack.c.l.b16 %v191
    %v353 = vunpack.c.h.b16 %v191
    %v354 = vunpack.c.l.b16 %v192
    %v355 = vunpack.c.h.b16 %v192
    %v356 = vunpack.c.l.b16 %v193
    %v357 = vunpack.c.h.b16 %v193
    %v358 = vunpack.c.l.b16 %v194
    %v359 = vunpack.c.h.b16 %v194
    %v360 = vunpack.c.l.b16 %v195
    %v361 = vunpack.c.h.b16 %v195
    %v362 = vunpack.c.l.b16 %v196
    %v363 = vunpack.c.h.b16 %v196
    %v364 = vunpack.c.l.b16 %v197
    %v365 = vunpack.c.h.b16 %v197
    %v366 = vunpack.c.l.b16 %v198
    %v367 = vunpack.c.h.b16 %v198
    %v368 = vunpack.c.l.b16 %v199
    %v369 = vunpack.c.h.b16 %v199
    %v370 = vunpack.c.l.b16 %v200
    %v371 = vunpack.c.h.b16 %v200
    %v372 = vunpack.c.l.b16 %v201
    %v373 = vunpack.c.h.b16 %v201
    %v374 = vunpack.c.l.b16 %v202
    %v375 = vunpack.c.h.b16 %v202
    %v376 = vunpack.c.l.b16 %v203
    %v377 = vunpack.c.h.b16 %v203
    %v378 = vunpack.c.l.b16 %v204
    %v379 = vunpack.c.h.b16 %v204
    %v380 = vunpack.c.l.b16 %v205
    %v381 = vunpack.c.h.b16 %v205
    %v382 = vunpack.c.l.b16 %v206
    %v383 = vunpack.c.h.b16 %v206
    %v384 = vunpack.c.l.b16 %v207
    %v385 = vunpack.c.h.b16 %v207
    %v386 = vunpack.c.l.b16 %v208
    %v387 = vunpack.c.h.b16 %v208
    %v388 = vunpack.c.l.b16 %v209
    %v389 = vunpack.c.h.b16 %v209
    %v390 = vunpack.c.l.b16 %v210
    %v391 = vunpack.c.h.b16 %v210
    %v392 = vunpack.c.l.b16 %v211
    %v393 = vunpack.c.h.b16 %v211
    %v394 = vunpack.c.l.b16 %v212
    %v395 = vunpack.c.h.b16 %v212
    %v396 = vunpack.c.l.b16 %v213
    %v397 = vunpack.c.h.b16 %v213
    %v398 = vunpack.c.l.b16 %v214
    %v399 = vunpack.c.h.b16 %v214
    %v400 = vunpack.c.l.b16 %v215
    %v401 = vunpack.c.h.b16 %v215
    %v402 = vunpack.c.l.b16 %v216
    %v403 = vunpack.c.h.b16 %v216
    %v404 = vunpack.c.l.b16 %v217
    %v405 = vunpack.c.h.b16 %v217
    %v406 = vunpack.c.l.b16 %v218
    %v407 = vunpack.c.h.b16 %v218
    %v408 = vunpack.c.l.b16 %v219
    %v409 = vunpack.c.h.b16 %v219
    %v410 = vunpack.c.l.b16 %v220
    %v411 = vunpack.c.h.b16 %v220
    %v412 = vunpack.c.l.b16 %v221
    %v413 = vunpack.c.h.b16 %v221
    %v414 = vunpack.c.l.b16 %v222
    %v415 = vunpack.c.h.b16 %v222
    %v416 = vunpack.c.l.b16 %v223
    %v417 = vunpack.c.h.b16 %v223
    %v418 = vunpack.c.l.b16 %v224
    %v419 = vunpack.c.h.b16 %v224
    %v420 = vunpack.c.l.b16 %v225
    %v421 = vunpack.c.h.b16 %v225
    %v422 = vunpack.c.l.b16 %v226
    %v423 = vunpack.c.h.b16 %v226
    %v424 = vunpack.c.l.b16 %v227
    %v425 = vunpack.c.h.b16 %v227
    %v426 = vunpack.c.l.b16 %v228
    %v427 = vunpack.c.h.b16 %v228
    %v428 = vunpack.c.l.b16 %v229
    %v429 = vunpack.c.h.b16 %v229
    %v430 = vunpack.c.l.b16 %v230
    %v431 = vunpack.c.h.b16 %v230
    %v432 = vunpack.c.l.b16 %v231
    %v433 = vunpack.c.h.b16 %v231
    %v434 = vunpack.c.l.b16 %v232
    %v435 = vunpack.c.h.b16 %v232
    %v436 = vunpack.c.l.b16 %v233
    %v437 = vunpack.c.h.b16 %v233
    %v438 = vunpack.c.l.b16 %v234
    %v439 = vunpack.c.h.b16 %v234
    %v440 = vunpack.c.l.b16 %v235
    %v441 = vunpack.c.h.b16 %v235
    %v442 = vunpack.c.l.b16 %v236
    %v443 = vunpack.c.h.b16 %v236
    %v444 = vunpack.c.l.b16 %v237
    %v445 = vunpack.c.h.b16 %v237
    %v446 = vunpack.c.l.b16 %v238
    %v447 = vunpack.c.h.b16 %v238
    %v448 = vpack.c.b16 %v324, %v320
    %v449 = vpack.c.b16 %v325, %v321
    %v450 = vpack.c.b16 %v326, %v322
    %v451 = vpack.c.b16 %v327, %v323
    %v452 = vpack.c.b16 %v332, %v328
    %v453 = vpack.c.b16 %v333, %v329
    %v454 = vpack.c.b16 %v334, %v330
    %v455 = vpack.c.b16 %v335, %v331
    %v456 = vpack.c.b16 %v340, %v336
    %v457 = vpack.c.b16 %v341, %v337
    %v458 = vpack.c.b16 %v342, %v338
    %v459 = vpack.c.b16 %v343, %v339
    %v460 = vpack.c.b16 %v348, %v344
    %v461 = vpack.c.b16 %v349, %v345
    %v462 = vpack.c.b16 %v350, %v346
    %v463 = vpack.c.b16 %v351, %v347
    %v464 = vpack.c.b16 %v356, %v352
    %v465 = vpack.c.b16 %v357, %v353
    %v466 = vpack.c.b16 %v358, %v354
    %v467 = vpack.c.b16 %v359, %v355
    %v468 = vpack.c.b16 %v364, %v360
    %v469 = vpack.c.b16 %v365, %v361
    %v470 = vpack.c.b16 %v366, %v362
    %v471 = vpack.c.b16 %v367, %v363
    %v472 = vpack.c.b16 %v372, %v368
    %v473 = vpack.c.b16 %v373, %v369
    %v474 = vpack.c.b16 %v374, %v370
    %v475 = vpack.c.b16 %v375, %v371
    %v476 = vpack.c.b16 %v380, %v376
    %v477 = vpack.c.b16 %v381, %v377
    %v478 = vpack.c.b16 %v382, %v378
    %v479 = vpack.c.b16 %v383, %v379
    %v480 = vpack.c.b16 %v388, %v384
    %v481 = vpack.c.b16 %v389, %v385
    %v482 = vpack.c.b16 %v390, %v386
    %v483 = vpack.c.b16 %v391, %v387
    %v484 = vpack.c.b16 %v396, %v392
    %v485 = vpack.c.b16 %v397, %v393
    %v486 = vpack.c.b16 %v398, %v394
    %v487 = vpack.c.b16 %v399, %v395
    %v488 = vpack.c.b16 %v404, %v400
    %v489 = vpack.c.b16 %v405, %v401
    %v490 = vpack.c.b16 %v406, %v402
    %v491 = vpack.c.b16 %v407, %v403
    %v492 = vpack.c.b16 %v412, %v408
    %v493 = vpack.c.b16 %v413, %v409
    %v494 = vpack.c.b16 %v414, %v410
    %v495 = vpack.c.b16 %v415, %v411
    %v496 = vpack.c.b16 %v420, %v416
    %v497 = vpack.c.b16 %v421, %v417
    %v498 = vpack.c.b16 %v422, %v418
    %v499 = vpack.c.b16 %v423, %v419
    %v500 = vpack.c.b16 %v428, %v424
    %v501 = vpack.c.b16 %v429, %v425
    %v502 = vpack.c.b16 %v430, %v426
    %v503 = vpack.c.b16 %v431, %v427
    %v504 = vpack.c.b16 %v436, %v432
    %v505 = vpack.c.b16 %v437, %v433
    %v506 = vpack.c.b16 %v438, %v434
    %v507 = vpack.c.b16 %v439, %v435
    %v508 = vpack.c.b16 %v444, %v440
    %v509 = vpack.c.b16 %v445, %v441
    %v510 = vpack.c.b16 %v446, %v442
    %v511 = vpack.c.b16 %v447, %v443
    %576 = vmatpush.bf16.msra.mxu0 %v476
    %577 = vmatpush.bf16.msra.mxu0 %v472
    %578 = vmatpush.bf16.msra.mxu0 %v468
    %579 = vmatpush.bf16.msra.mxu0 %v464
    %580 = vmatpush.bf16.msra.mxu0 %v460
    %581 = vmatpush.bf16.msra.mxu0 %v456
    %582 = vmatpush.bf16.msra.mxu0 %v452
    %583 = vmatpush.bf16.msra.mxu0 %v448
    %584 = vmatmul.bf16.gmra.mxu0 %v252
    %v585 = vpop.f32.mrf.mxu0
    %v586 = vadd.f32 %v241, %v585
    %v587 = vpop.f32.mrf.mxu0
    %588 = vdwg.mxu0
    %589 = vmatpush.bf16.msra.mxu0 %v508
    %590 = vmatpush.bf16.msra.mxu0 %v504
    %591 = vmatpush.bf16.msra.mxu0 %v500
    %592 = vmatpush.bf16.msra.mxu0 %v496
    %593 = vmatpush.bf16.msra.mxu0 %v492
    %594 = vmatpush.bf16.msra.mxu0 %v488
    %595 = vmatpush.bf16.msra.mxu0 %v484
    %596 = vmatpush.bf16.msra.mxu0 %v480
    %597 = vmatmul.bf16.gmra.mxu0 %v253
    %v598 = vpop.f32.mrf.mxu0
    %v599 = vadd.f32 %v586, %v598
    %v600 = vpop.f32.mrf.mxu0
    %601 = vdwg.mxu0
    %602 = vmatpush.bf16.msra.mxu0 %v477
    %603 = vmatpush.bf16.msra.mxu0 %v473
    %604 = vmatpush.bf16.msra.mxu0 %v469
    %605 = vmatpush.bf16.msra.mxu0 %v465
    %606 = vmatpush.bf16.msra.mxu0 %v461
    %607 = vmatpush.bf16.msra.mxu0 %v457
    %608 = vmatpush.bf16.msra.mxu0 %v453
    %609 = vmatpush.bf16.msra.mxu0 %v449
    %610 = vmatmul.bf16.gmra.mxu0 %v252
    %v611 = vpop.f32.mrf.mxu0
    %v612 = vadd.f32 %v242, %v611
    %v613 = vpop.f32.mrf.mxu0
    %614 = vdwg.mxu0
    %615 = vmatpush.bf16.msra.mxu0 %v509
    %616 = vmatpush.bf16.msra.mxu0 %v505
    %617 = vmatpush.bf16.msra.mxu0 %v501
    %618 = vmatpush.bf16.msra.mxu0 %v497
    %619 = vmatpush.bf16.msra.mxu0 %v493
    %620 = vmatpush.bf16.msra.mxu0 %v489
    %621 = vmatpush.bf16.msra.mxu0 %v485
    %622 = vmatpush.bf16.msra.mxu0 %v481
    %623 = vmatmul.bf16.gmra.mxu0 %v253
    %v624 = vpop.f32.mrf.mxu0
    %v625 = vadd.f32 %v612, %v624
    %v626 = vpop.f32.mrf.mxu0
    %627 = vdwg.mxu0
    %628 = vmatpush.bf16.msra.mxu0 %v478
    %629 = vmatpush.bf16.msra.mxu0 %v474
    %630 = vmatpush.bf16.msra.mxu0 %v470
    %631 = vmatpush.bf16.msra.mxu0 %v466
    %632 = vmatpush.bf16.msra.mxu0 %v462
    %633 = vmatpush.bf16.msra.mxu0 %v458
    %634 = vmatpush.bf16.msra.mxu0 %v454
    %635 = vmatpush.bf16.msra.mxu0 %v450
    %636 = vmatmul.bf16.gmra.mxu0 %v252
    %v637 = vpop.f32.mrf.mxu0
    %v638 = vadd.f32 %v243, %v637
    %v639 = vpop.f32.mrf.mxu0
    %640 = vdwg.mxu0
    %641 = vmatpush.bf16.msra.mxu0 %v510
    %642 = vmatpush.bf16.msra.mxu0 %v506
    %643 = vmatpush.bf16.msra.mxu0 %v502
    %644 = vmatpush.bf16.msra.mxu0 %v498
    %645 = vmatpush.bf16.msra.mxu0 %v494
    %646 = vmatpush.bf16.msra.mxu0 %v490
    %647 = vmatpush.bf16.msra.mxu0 %v486
    %648 = vmatpush.bf16.msra.mxu0 %v482
    %649 = vmatmul.bf16.gmra.mxu0 %v253
    %v650 = vpop.f32.mrf.mxu0
    %v651 = vadd.f32 %v638, %v650
    %v652 = vpop.f32.mrf.mxu0
    %653 = vdwg.mxu0
    %654 = vmatpush.bf16.msra.mxu0 %v479
    %655 = vmatpush.bf16.msra.mxu0 %v475
    %656 = vmatpush.bf16.msra.mxu0 %v471
    %657 = vmatpush.bf16.msra.mxu0 %v467
    %658 = vmatpush.bf16.msra.mxu0 %v463
    %659 = vmatpush.bf16.msra.mxu0 %v459
    %660 = vmatpush.bf16.msra.mxu0 %v455
    %661 = vmatpush.bf16.msra.mxu0 %v451
    %662 = vmatmul.bf16.gmra.mxu0 %v252
    %v663 = vpop.f32.mrf.mxu0
    %v664 = vadd.f32 %v244, %v663
    %v665 = vpop.f32.mrf.mxu0
    %666 = vdwg.mxu0
    %667 = vmatpush.bf16.msra.mxu0 %v511
    %668 = vmatpush.bf16.msra.mxu0 %v507
    %669 = vmatpush.bf16.msra.mxu0 %v503
    %670 = vmatpush.bf16.msra.mxu0 %v499
    %671 = vmatpush.bf16.msra.mxu0 %v495
    %672 = vmatpush.bf16.msra.mxu0 %v491
    %673 = vmatpush.bf16.msra.mxu0 %v487
    %674 = vmatpush.bf16.msra.mxu0 %v483
    %675 = vmatmul.bf16.gmra.mxu0 %v253
    %v676 = vpop.f32.mrf.mxu0
    %v677 = vadd.f32 %v664, %v676
    %v678 = vpop.f32.mrf.mxu0
    %679 = vdwg.mxu0
    %v680 = vxor.u32 %v599, 2147483648
    %v681 = vmul.f32 %v680, 1.442695
    %v682 = vpow.pop %v681
    %v683 = vadd.f32 %v682, 1.0
    %v684 = vrcp.pop %v683
    %v685 = vmul.f32 %v683, %v684
    %v686 = vsub.f32 1.0, %v685
    %v687 = vmul.f32 %v684, %v686
    %v688 = vadd.f32 %v684, %v687
    %vm689 = vweird.f32 %v683
    %vm690 = vweird.f32 %v684
    %vm691 = vmor %vm689, %vm690
    %v692 = vsel %vm691, %v684, %v688
    %v693 = vand.u32 2147483647, %v683
    %vm694 = vcmp.eq.f32.partialorder %v693, 8.507059e+37
    %v695 = vand.u32 %v683, 2147483648
    %v696 = vor.u32 1.1754944e-38, %v695
    %v697 = vsel %vm694, %v696, %v692
    %v698 = vmul.f32 1.0, %v697
    %v699 = vxor.u32 %v625, 2147483648
    %v700 = vmul.f32 %v699, 1.442695
    %v701 = vpow.pop %v700
    %v702 = vadd.f32 %v701, 1.0
    %v703 = vrcp.pop %v702
    %v704 = vmul.f32 %v702, %v703
    %v705 = vsub.f32 1.0, %v704
    %v706 = vmul.f32 %v703, %v705
    %v707 = vadd.f32 %v703, %v706
    %vm708 = vweird.f32 %v702
    %vm709 = vweird.f32 %v703
    %vm710 = vmor %vm708, %vm709
    %v711 = vsel %vm710, %v703, %v707
    %v712 = vand.u32 2147483647, %v702
    %vm713 = vcmp.eq.f32.partialorder %v712, 8.507059e+37
    %v714 = vand.u32 %v702, 2147483648
    %v715 = vor.u32 1.1754944e-38, %v714
    %v716 = vsel %vm713, %v715, %v711
    %v717 = vmul.f32 1.0, %v716
    %v718 = vtanh.pop %v651
    %v719 = vxor.u32 %v677, 2147483648
    %v720 = vmul.f32 %v719, 1.442695
    %v721 = vpow.pop %v720
    %v722 = vadd.f32 %v721, 1.0
    %v723 = vrcp.pop %v722
    %v724 = vmul.f32 %v722, %v723
    %v725 = vsub.f32 1.0, %v724
    %v726 = vmul.f32 %v723, %v725
    %v727 = vadd.f32 %v723, %v726
    %vm728 = vweird.f32 %v722
    %vm729 = vweird.f32 %v723
    %vm730 = vmor %vm728, %vm729
    %v731 = vsel %vm730, %v723, %v727
    %v732 = vand.u32 2147483647, %v722
    %vm733 = vcmp.eq.f32.partialorder %v732, 8.507059e+37
    %v734 = vand.u32 %v722, 2147483648
    %v735 = vor.u32 1.1754944e-38, %v734
    %v736 = vsel %vm733, %v735, %v731
    %v737 = vmul.f32 1.0, %v736
    %v738 = vmul.f32 %v717, 0.0
    %v739 = vmul.f32 %v698, %v718
    %v740 = vadd.f32 %v738, %v739
    %v741 = vtanh.pop %v740
    %v742 = vmul.f32 %v737, %v741
    %v743 = vpack.c.bf16 %v742, %v742
    %744 = vst [vmem:[#allocation3] sm:$0xf] %v743
    %745 = vst [vmem:[#allocation3 + $0x4] sm:$0xf] 0
    %v746 = vld [vmem:[#allocation3] sm:$0xff]
    %v747 = vld [vmem:[#allocation4] sm:$0xff]
    %v748 = vld [vmem:[#allocation4 + $0x8] sm:$0xff]
    %v749 = vld [vmem:[#allocation4 + $0x10] sm:$0xff]
    %v750 = vld [vmem:[#allocation4 + $0x18] sm:$0xff]
    %v751 = vld [vmem:[#allocation4 + $0x20] sm:$0xff]
    %v752 = vld [vmem:[#allocation4 + $0x28] sm:$0xff]
    %v753 = vld [vmem:[#allocation4 + $0x30] sm:$0xff]
    %v754 = vld [vmem:[#allocation4 + $0x38] sm:$0xff]
    %v755 = vld [vmem:[#allocation4 + $0x40] sm:$0xff]
    %v756 = vld [vmem:[#allocation4 + $0x48] sm:$0xff]
    %v757 = vld [vmem:[#allocation4 + $0x50] sm:$0xff]
    %v758 = vld [vmem:[#allocation4 + $0x58] sm:$0xff]
    %v759 = vld [vmem:[#allocation4 + $0x60] sm:$0xff]
    %v760 = vld [vmem:[#allocation4 + $0x68] sm:$0xff]
    %v761 = vld [vmem:[#allocation4 + $0x70] sm:$0xff]
    %v762 = vld [vmem:[#allocation4 + $0x78] sm:$0xff]
    %v763 = vld [vmem:[#allocation4 + $0x80] sm:$0xff]
    %v764 = vld [vmem:[#allocation4 + $0x88] sm:$0xff]
    %v765 = vld [vmem:[#allocation4 + $0x90] sm:$0xff]
    %v766 = vld [vmem:[#allocation4 + $0x98] sm:$0xff]
    %v767 = vld [vmem:[#allocation4 + $0xa0] sm:$0xff]
    %v768 = vld [vmem:[#allocation4 + $0xa8] sm:$0xff]
    %v769 = vld [vmem:[#allocation4 + $0xb0] sm:$0xff]
    %v770 = vld [vmem:[#allocation4 + $0xb8] sm:$0xff]
    %v771 = vld [vmem:[#allocation4 + $0xc0] sm:$0xff]
    %v772 = vld [vmem:[#allocation4 + $0xc8] sm:$0xff]
    %v773 = vld [vmem:[#allocation4 + $0xd0] sm:$0xff]
    %v774 = vld [vmem:[#allocation4 + $0xd8] sm:$0xff]
    %v775 = vld [vmem:[#allocation4 + $0xe0] sm:$0xff]
    %v776 = vld [vmem:[#allocation4 + $0xe8] sm:$0xff]
    %v777 = vld [vmem:[#allocation4 + $0xf0] sm:$0xff]
    %v778 = vld [vmem:[#allocation4 + $0xf8] sm:$0xff]
    %v779 = vld [vmem:[#allocation4 + $0x100] sm:$0xff]
    %v780 = vld [vmem:[#allocation4 + $0x108] sm:$0xff]
    %v781 = vld [vmem:[#allocation4 + $0x110] sm:$0xff]
    %v782 = vld [vmem:[#allocation4 + $0x118] sm:$0xff]
    %v783 = vld [vmem:[#allocation4 + $0x120] sm:$0xff]
    %v784 = vld [vmem:[#allocation4 + $0x128] sm:$0xff]
    %v785 = vld [vmem:[#allocation4 + $0x130] sm:$0xff]
    %v786 = vld [vmem:[#allocation4 + $0x138] sm:$0xff]
    %v787 = vld [vmem:[#allocation4 + $0x140] sm:$0xff]
    %v788 = vld [vmem:[#allocation4 + $0x148] sm:$0xff]
    %v789 = vld [vmem:[#allocation4 + $0x150] sm:$0xff]
    %v790 = vld [vmem:[#allocation4 + $0x158] sm:$0xff]
    %v791 = vld [vmem:[#allocation4 + $0x160] sm:$0xff]
    %v792 = vld [vmem:[#allocation4 + $0x168] sm:$0xff]
    %v793 = vld [vmem:[#allocation4 + $0x170] sm:$0xff]
    %v794 = vld [vmem:[#allocation4 + $0x178] sm:$0xff]
    %v795 = vld [vmem:[#allocation4 + $0x180] sm:$0xff]
    %v796 = vld [vmem:[#allocation4 + $0x188] sm:$0xff]
    %v797 = vld [vmem:[#allocation4 + $0x190] sm:$0xff]
    %v798 = vld [vmem:[#allocation4 + $0x198] sm:$0xff]
    %v799 = vld [vmem:[#allocation4 + $0x1a0] sm:$0xff]
    %v800 = vld [vmem:[#allocation4 + $0x1a8] sm:$0xff]
    %v801 = vld [vmem:[#allocation4 + $0x1b0] sm:$0xff]
    %v802 = vld [vmem:[#allocation4 + $0x1b8] sm:$0xff]
    %v803 = vld [vmem:[#allocation4 + $0x1c0] sm:$0xff]
    %v804 = vld [vmem:[#allocation4 + $0x1c8] sm:$0xff]
    %v805 = vld [vmem:[#allocation4 + $0x1d0] sm:$0xff]
    %v806 = vld [vmem:[#allocation4 + $0x1d8] sm:$0xff]
    %v807 = vld [vmem:[#allocation4 + $0x1e0] sm:$0xff]
    %v808 = vld [vmem:[#allocation4 + $0x1e8] sm:$0xff]
    %v809 = vld [vmem:[#allocation4 + $0x1f0] sm:$0xff]
    %v810 = vld [vmem:[#allocation4 + $0x1f8] sm:$0xff]
    %v811 = vld [vmem:[%s7] sm:$0xf]
    %v813 = vperm.slane %v811, 0
    %v814 = vperm.slane %v811, 1
    %v815 = vperm.slane %v811, 2
    %v816 = vperm.slane %v811, 3
    %v822 = vunpack.c.l.b16 %v746
    %v823 = vunpack.c.h.b16 %v746
    %v824 = vpack.c.b16 %v822, %v822
    %v825 = vpack.c.b16 %v823, %v823
    %v892 = vunpack.c.l.b16 %v747
    %v893 = vunpack.c.h.b16 %v747
    %v894 = vunpack.c.l.b16 %v748
    %v895 = vunpack.c.h.b16 %v748
    %v896 = vunpack.c.l.b16 %v749
    %v897 = vunpack.c.h.b16 %v749
    %v898 = vunpack.c.l.b16 %v750
    %v899 = vunpack.c.h.b16 %v750
    %v900 = vunpack.c.l.b16 %v751
    %v901 = vunpack.c.h.b16 %v751
    %v902 = vunpack.c.l.b16 %v752
    %v903 = vunpack.c.h.b16 %v752
    %v904 = vunpack.c.l.b16 %v753
    %v905 = vunpack.c.h.b16 %v753
    %v906 = vunpack.c.l.b16 %v754
    %v907 = vunpack.c.h.b16 %v754
    %v908 = vunpack.c.l.b16 %v755
    %v909 = vunpack.c.h.b16 %v755
    %v910 = vunpack.c.l.b16 %v756
    %v911 = vunpack.c.h.b16 %v756
    %v912 = vunpack.c.l.b16 %v757
    %v913 = vunpack.c.h.b16 %v757
    %v914 = vunpack.c.l.b16 %v758
    %v915 = vunpack.c.h.b16 %v758
    %v916 = vunpack.c.l.b16 %v759
    %v917 = vunpack.c.h.b16 %v759
    %v918 = vunpack.c.l.b16 %v760
    %v919 = vunpack.c.h.b16 %v760
    %v920 = vunpack.c.l.b16 %v761
    %v921 = vunpack.c.h.b16 %v761
    %v922 = vunpack.c.l.b16 %v762
    %v923 = vunpack.c.h.b16 %v762
    %v924 = vunpack.c.l.b16 %v763
    %v925 = vunpack.c.h.b16 %v763
    %v926 = vunpack.c.l.b16 %v764
    %v927 = vunpack.c.h.b16 %v764
    %v928 = vunpack.c.l.b16 %v765
    %v929 = vunpack.c.h.b16 %v765
    %v930 = vunpack.c.l.b16 %v766
    %v931 = vunpack.c.h.b16 %v766
    %v932 = vunpack.c.l.b16 %v767
    %v933 = vunpack.c.h.b16 %v767
    %v934 = vunpack.c.l.b16 %v768
    %v935 = vunpack.c.h.b16 %v768
    %v936 = vunpack.c.l.b16 %v769
    %v937 = vunpack.c.h.b16 %v769
    %v938 = vunpack.c.l.b16 %v770
    %v939 = vunpack.c.h.b16 %v770
    %v940 = vunpack.c.l.b16 %v771
    %v941 = vunpack.c.h.b16 %v771
    %v942 = vunpack.c.l.b16 %v772
    %v943 = vunpack.c.h.b16 %v772
    %v944 = vunpack.c.l.b16 %v773
    %v945 = vunpack.c.h.b16 %v773
    %v946 = vunpack.c.l.b16 %v774
    %v947 = vunpack.c.h.b16 %v774
    %v948 = vunpack.c.l.b16 %v775
    %v949 = vunpack.c.h.b16 %v775
    %v950 = vunpack.c.l.b16 %v776
    %v951 = vunpack.c.h.b16 %v776
    %v952 = vunpack.c.l.b16 %v777
    %v953 = vunpack.c.h.b16 %v777
    %v954 = vunpack.c.l.b16 %v778
    %v955 = vunpack.c.h.b16 %v778
    %v956 = vunpack.c.l.b16 %v779
    %v957 = vunpack.c.h.b16 %v779
    %v958 = vunpack.c.l.b16 %v780
    %v959 = vunpack.c.h.b16 %v780
    %v960 = vunpack.c.l.b16 %v781
    %v961 = vunpack.c.h.b16 %v781
    %v962 = vunpack.c.l.b16 %v782
    %v963 = vunpack.c.h.b16 %v782
    %v964 = vunpack.c.l.b16 %v783
    %v965 = vunpack.c.h.b16 %v783
    %v966 = vunpack.c.l.b16 %v784
    %v967 = vunpack.c.h.b16 %v784
    %v968 = vunpack.c.l.b16 %v785
    %v969 = vunpack.c.h.b16 %v785
    %v970 = vunpack.c.l.b16 %v786
    %v971 = vunpack.c.h.b16 %v786
    %v972 = vunpack.c.l.b16 %v787
    %v973 = vunpack.c.h.b16 %v787
    %v974 = vunpack.c.l.b16 %v788
    %v975 = vunpack.c.h.b16 %v788
    %v976 = vunpack.c.l.b16 %v789
    %v977 = vunpack.c.h.b16 %v789
    %v978 = vunpack.c.l.b16 %v790
    %v979 = vunpack.c.h.b16 %v790
    %v980 = vunpack.c.l.b16 %v791
    %v981 = vunpack.c.h.b16 %v791
    %v982 = vunpack.c.l.b16 %v792
    %v983 = vunpack.c.h.b16 %v792
    %v984 = vunpack.c.l.b16 %v793
    %v985 = vunpack.c.h.b16 %v793
    %v986 = vunpack.c.l.b16 %v794
    %v987 = vunpack.c.h.b16 %v794
    %v988 = vunpack.c.l.b16 %v795
    %v989 = vunpack.c.h.b16 %v795
    %v990 = vunpack.c.l.b16 %v796
    %v991 = vunpack.c.h.b16 %v796
    %v992 = vunpack.c.l.b16 %v797
    %v993 = vunpack.c.h.b16 %v797
    %v994 = vunpack.c.l.b16 %v798
    %v995 = vunpack.c.h.b16 %v798
    %v996 = vunpack.c.l.b16 %v799
    %v997 = vunpack.c.h.b16 %v799
    %v998 = vunpack.c.l.b16 %v800
    %v999 = vunpack.c.h.b16 %v800
    %v1000 = vunpack.c.l.b16 %v801
    %v1001 = vunpack.c.h.b16 %v801
    %v1002 = vunpack.c.l.b16 %v802
    %v1003 = vunpack.c.h.b16 %v802
    %v1004 = vunpack.c.l.b16 %v803
    %v1005 = vunpack.c.h.b16 %v803
    %v1006 = vunpack.c.l.b16 %v804
    %v1007 = vunpack.c.h.b16 %v804
    %v1008 = vunpack.c.l.b16 %v805
    %v1009 = vunpack.c.h.b16 %v805
    %v1010 = vunpack.c.l.b16 %v806
    %v1011 = vunpack.c.h.b16 %v806
    %v1012 = vunpack.c.l.b16 %v807
    %v1013 = vunpack.c.h.b16 %v807
    %v1014 = vunpack.c.l.b16 %v808
    %v1015 = vunpack.c.h.b16 %v808
    %v1016 = vunpack.c.l.b16 %v809
    %v1017 = vunpack.c.h.b16 %v809
    %v1018 = vunpack.c.l.b16 %v810
    %v1019 = vunpack.c.h.b16 %v810
    %v1020 = vpack.c.b16 %v896, %v892
    %v1021 = vpack.c.b16 %v897, %v893
    %v1022 = vpack.c.b16 %v898, %v894
    %v1023 = vpack.c.b16 %v899, %v895
    %v1024 = vpack.c.b16 %v904, %v900
    %v1025 = vpack.c.b16 %v905, %v901
    %v1026 = vpack.c.b16 %v906, %v902
    %v1027 = vpack.c.b16 %v907, %v903
    %v1028 = vpack.c.b16 %v912, %v908
    %v1029 = vpack.c.b16 %v913, %v909
    %v1030 = vpack.c.b16 %v914, %v910
    %v1031 = vpack.c.b16 %v915, %v911
    %v1032 = vpack.c.b16 %v920, %v916
    %v1033 = vpack.c.b16 %v921, %v917
    %v1034 = vpack.c.b16 %v922, %v918
    %v1035 = vpack.c.b16 %v923, %v919
    %v1036 = vpack.c.b16 %v928, %v924
    %v1037 = vpack.c.b16 %v929, %v925
    %v1038 = vpack.c.b16 %v930, %v926
    %v1039 = vpack.c.b16 %v931, %v927
    %v1040 = vpack.c.b16 %v936, %v932
    %v1041 = vpack.c.b16 %v937, %v933
    %v1042 = vpack.c.b16 %v938, %v934
    %v1043 = vpack.c.b16 %v939, %v935
    %v1044 = vpack.c.b16 %v944, %v940
    %v1045 = vpack.c.b16 %v945, %v941
    %v1046 = vpack.c.b16 %v946, %v942
    %v1047 = vpack.c.b16 %v947, %v943
    %v1048 = vpack.c.b16 %v952, %v948
    %v1049 = vpack.c.b16 %v953, %v949
    %v1050 = vpack.c.b16 %v954, %v950
    %v1051 = vpack.c.b16 %v955, %v951
    %v1052 = vpack.c.b16 %v960, %v956
    %v1053 = vpack.c.b16 %v961, %v957
    %v1054 = vpack.c.b16 %v962, %v958
    %v1055 = vpack.c.b16 %v963, %v959
    %v1056 = vpack.c.b16 %v968, %v964
    %v1057 = vpack.c.b16 %v969, %v965
    %v1058 = vpack.c.b16 %v970, %v966
    %v1059 = vpack.c.b16 %v971, %v967
    %v1060 = vpack.c.b16 %v976, %v972
    %v1061 = vpack.c.b16 %v977, %v973
    %v1062 = vpack.c.b16 %v978, %v974
    %v1063 = vpack.c.b16 %v979, %v975
    %v1064 = vpack.c.b16 %v984, %v980
    %v1065 = vpack.c.b16 %v985, %v981
    %v1066 = vpack.c.b16 %v986, %v982
    %v1067 = vpack.c.b16 %v987, %v983
    %v1068 = vpack.c.b16 %v992, %v988
    %v1069 = vpack.c.b16 %v993, %v989
    %v1070 = vpack.c.b16 %v994, %v990
    %v1071 = vpack.c.b16 %v995, %v991
    %v1072 = vpack.c.b16 %v1000, %v996
    %v1073 = vpack.c.b16 %v1001, %v997
    %v1074 = vpack.c.b16 %v1002, %v998
    %v1075 = vpack.c.b16 %v1003, %v999
    %v1076 = vpack.c.b16 %v1008, %v1004
    %v1077 = vpack.c.b16 %v1009, %v1005
    %v1078 = vpack.c.b16 %v1010, %v1006
    %v1079 = vpack.c.b16 %v1011, %v1007
    %v1080 = vpack.c.b16 %v1016, %v1012
    %v1081 = vpack.c.b16 %v1017, %v1013
    %v1082 = vpack.c.b16 %v1018, %v1014
    %v1083 = vpack.c.b16 %v1019, %v1015
    %1148 = vmatpush.bf16.msra.mxu0 %v1048
    %1149 = vmatpush.bf16.msra.mxu0 %v1044
    %1150 = vmatpush.bf16.msra.mxu0 %v1040
    %1151 = vmatpush.bf16.msra.mxu0 %v1036
    %1152 = vmatpush.bf16.msra.mxu0 %v1032
    %1153 = vmatpush.bf16.msra.mxu0 %v1028
    %1154 = vmatpush.bf16.msra.mxu0 %v1024
    %1155 = vmatpush.bf16.msra.mxu0 %v1020
    %1156 = vmatmul.bf16.gmra.mxu0 %v824
    %v1157 = vpop.f32.mrf.mxu0
    %v1158 = vadd.f32 %v813, %v1157
    %v1159 = vpop.f32.mrf.mxu0
    %1160 = vdwg.mxu0
    %1161 = vmatpush.bf16.msra.mxu0 %v1080
    %1162 = vmatpush.bf16.msra.mxu0 %v1076
    %1163 = vmatpush.bf16.msra.mxu0 %v1072
    %1164 = vmatpush.bf16.msra.mxu0 %v1068
    %1165 = vmatpush.bf16.msra.mxu0 %v1064
    %1166 = vmatpush.bf16.msra.mxu0 %v1060
    %1167 = vmatpush.bf16.msra.mxu0 %v1056
    %1168 = vmatpush.bf16.msra.mxu0 %v1052
    %1169 = vmatmul.bf16.gmra.mxu0 %v825
    %v1170 = vpop.f32.mrf.mxu0
    %v1171 = vadd.f32 %v1158, %v1170
    %v1172 = vpop.f32.mrf.mxu0
    %1173 = vdwg.mxu0
    %1174 = vmatpush.bf16.msra.mxu0 %v1049
    %1175 = vmatpush.bf16.msra.mxu0 %v1045
    %1176 = vmatpush.bf16.msra.mxu0 %v1041
    %1177 = vmatpush.bf16.msra.mxu0 %v1037
    %1178 = vmatpush.bf16.msra.mxu0 %v1033
    %1179 = vmatpush.bf16.msra.mxu0 %v1029
    %1180 = vmatpush.bf16.msra.mxu0 %v1025
    %1181 = vmatpush.bf16.msra.mxu0 %v1021
    %1182 = vmatmul.bf16.gmra.mxu0 %v824
    %v1183 = vpop.f32.mrf.mxu0
    %v1184 = vadd.f32 %v814, %v1183
    %v1185 = vpop.f32.mrf.mxu0
    %1186 = vdwg.mxu0
    %1187 = vmatpush.bf16.msra.mxu0 %v1081
    %1188 = vmatpush.bf16.msra.mxu0 %v1077
    %1189 = vmatpush.bf16.msra.mxu0 %v1073
    %1190 = vmatpush.bf16.msra.mxu0 %v1069
    %1191 = vmatpush.bf16.msra.mxu0 %v1065
    %1192 = vmatpush.bf16.msra.mxu0 %v1061
    %1193 = vmatpush.bf16.msra.mxu0 %v1057
    %1194 = vmatpush.bf16.msra.mxu0 %v1053
    %1195 = vmatmul.bf16.gmra.mxu0 %v825
    %v1196 = vpop.f32.mrf.mxu0
    %v1197 = vadd.f32 %v1184, %v1196
    %v1198 = vpop.f32.mrf.mxu0
    %1199 = vdwg.mxu0
    %1200 = vmatpush.bf16.msra.mxu0 %v1050
    %1201 = vmatpush.bf16.msra.mxu0 %v1046
    %1202 = vmatpush.bf16.msra.mxu0 %v1042
    %1203 = vmatpush.bf16.msra.mxu0 %v1038
    %1204 = vmatpush.bf16.msra.mxu0 %v1034
    %1205 = vmatpush.bf16.msra.mxu0 %v1030
    %1206 = vmatpush.bf16.msra.mxu0 %v1026
    %1207 = vmatpush.bf16.msra.mxu0 %v1022
    %1208 = vmatmul.bf16.gmra.mxu0 %v824
    %v1209 = vpop.f32.mrf.mxu0
    %v1210 = vadd.f32 %v815, %v1209
    %v1211 = vpop.f32.mrf.mxu0
    %1212 = vdwg.mxu0
    %1213 = vmatpush.bf16.msra.mxu0 %v1082
    %1214 = vmatpush.bf16.msra.mxu0 %v1078
    %1215 = vmatpush.bf16.msra.mxu0 %v1074
    %1216 = vmatpush.bf16.msra.mxu0 %v1070
    %1217 = vmatpush.bf16.msra.mxu0 %v1066
    %1218 = vmatpush.bf16.msra.mxu0 %v1062
    %1219 = vmatpush.bf16.msra.mxu0 %v1058
    %1220 = vmatpush.bf16.msra.mxu0 %v1054
    %1221 = vmatmul.bf16.gmra.mxu0 %v825
    %v1222 = vpop.f32.mrf.mxu0
    %v1223 = vadd.f32 %v1210, %v1222
    %v1224 = vpop.f32.mrf.mxu0
    %1225 = vdwg.mxu0
    %1226 = vmatpush.bf16.msra.mxu0 %v1051
    %1227 = vmatpush.bf16.msra.mxu0 %v1047
    %1228 = vmatpush.bf16.msra.mxu0 %v1043
    %1229 = vmatpush.bf16.msra.mxu0 %v1039
    %1230 = vmatpush.bf16.msra.mxu0 %v1035
    %1231 = vmatpush.bf16.msra.mxu0 %v1031
    %1232 = vmatpush.bf16.msra.mxu0 %v1027
    %1233 = vmatpush.bf16.msra.mxu0 %v1023
    %1234 = vmatmul.bf16.gmra.mxu0 %v824
    %v1235 = vpop.f32.mrf.mxu0
    %v1236 = vadd.f32 %v816, %v1235
    %v1237 = vpop.f32.mrf.mxu0
    %1238 = vdwg.mxu0
    %1239 = vmatpush.bf16.msra.mxu0 %v1083
    %1240 = vmatpush.bf16.msra.mxu0 %v1079
    %1241 = vmatpush.bf16.msra.mxu0 %v1075
    %1242 = vmatpush.bf16.msra.mxu0 %v1071
    %1243 = vmatpush.bf16.msra.mxu0 %v1067
    %1244 = vmatpush.bf16.msra.mxu0 %v1063
    %1245 = vmatpush.bf16.msra.mxu0 %v1059
    %1246 = vmatpush.bf16.msra.mxu0 %v1055
    %1247 = vmatmul.bf16.gmra.mxu0 %v825
    %v1248 = vpop.f32.mrf.mxu0
    %v1249 = vadd.f32 %v1236, %v1248
    %v1250 = vpop.f32.mrf.mxu0
    %1251 = vdwg.mxu0
    %v1252 = vxor.u32 %v1171, 2147483648
    %v1253 = vmul.f32 %v1252, 1.442695
    %v1254 = vpow.pop %v1253
    %v1255 = vadd.f32 %v1254, 1.0
    %v1256 = vrcp.pop %v1255
    %v1257 = vmul.f32 %v1255, %v1256
    %v1258 = vsub.f32 1.0, %v1257
    %v1259 = vmul.f32 %v1256, %v1258
    %v1260 = vadd.f32 %v1256, %v1259
    %vm1261 = vweird.f32 %v1255
    %vm1262 = vweird.f32 %v1256
    %vm1263 = vmor %vm1261, %vm1262
    %v1264 = vsel %vm1263, %v1256, %v1260
    %v1265 = vand.u32 2147483647, %v1255
    %vm1266 = vcmp.eq.f32.partialorder %v1265, 8.507059e+37
    %v1267 = vand.u32 %v1255, 2147483648
    %v1268 = vor.u32 1.1754944e-38, %v1267
    %v1269 = vsel %vm1266, %v1268, %v1264
    %v1270 = vmul.f32 1.0, %v1269
    %v1271 = vxor.u32 %v1197, 2147483648
    %v1272 = vmul.f32 %v1271, 1.442695
    %v1273 = vpow.pop %v1272
    %v1274 = vadd.f32 %v1273, 1.0
    %v1275 = vrcp.pop %v1274
    %v1276 = vmul.f32 %v1274, %v1275
    %v1277 = vsub.f32 1.0, %v1276
    %v1278 = vmul.f32 %v1275, %v1277
    %v1279 = vadd.f32 %v1275, %v1278
    %vm1280 = vweird.f32 %v1274
    %vm1281 = vweird.f32 %v1275
    %vm1282 = vmor %vm1280, %vm1281
    %v1283 = vsel %vm1282, %v1275, %v1279
    %v1284 = vand.u32 2147483647, %v1274
    %vm1285 = vcmp.eq.f32.partialorder %v1284, 8.507059e+37
    %v1286 = vand.u32 %v1274, 2147483648
    %v1287 = vor.u32 1.1754944e-38, %v1286
    %v1288 = vsel %vm1285, %v1287, %v1283
    %v1289 = vmul.f32 1.0, %v1288
    %v1290 = vtanh.pop %v1223
    %v1291 = vxor.u32 %v1249, 2147483648
    %v1292 = vmul.f32 %v1291, 1.442695
    %v1293 = vpow.pop %v1292
    %v1294 = vadd.f32 %v1293, 1.0
    %v1295 = vrcp.pop %v1294
    %v1296 = vmul.f32 %v1294, %v1295
    %v1297 = vsub.f32 1.0, %v1296
    %v1298 = vmul.f32 %v1295, %v1297
    %v1299 = vadd.f32 %v1295, %v1298
    %vm1300 = vweird.f32 %v1294
    %vm1301 = vweird.f32 %v1295
    %vm1302 = vmor %vm1300, %vm1301
    %v1303 = vsel %vm1302, %v1295, %v1299
    %v1304 = vand.u32 2147483647, %v1294
    %vm1305 = vcmp.eq.f32.partialorder %v1304, 8.507059e+37
    %v1306 = vand.u32 %v1294, 2147483648
    %v1307 = vor.u32 1.1754944e-38, %v1306
    %v1308 = vsel %vm1305, %v1307, %v1303
    %v1309 = vmul.f32 1.0, %v1308
    %v1310 = vmul.f32 %v1289, 0.0
    %v1311 = vmul.f32 %v1270, %v1290
    %v1312 = vadd.f32 %v1310, %v1311
    %v1313 = vtanh.pop %v1312
    %v1314 = vmul.f32 %v1309, %v1313
    %s1315 = scalar_lea.vmem %s3, 4
    %v1316 = vld [vmem:[%s1315] sm:$0xf]
    %1317 = vst [vmem:[#allocation2] sm:$0xf] %v1316
    %1318 = vst [vmem:[#allocation2 + $0x4] sm:$0xf] %v743
    %v1319 = vld [vmem:[#allocation2] sm:$0xff]
    %v1320 = vld [vmem:[%s4] sm:$0xff]
    %v1321 = vld [vmem:[%s4 + $0x8] sm:$0xff]
    %v1322 = vld [vmem:[%s4 + $0x10] sm:$0xff]
    %v1323 = vld [vmem:[%s4 + $0x18] sm:$0xff]
    %v1324 = vld [vmem:[%s4 + $0x20] sm:$0xff]
    %v1325 = vld [vmem:[%s4 + $0x28] sm:$0xff]
    %v1326 = vld [vmem:[%s4 + $0x30] sm:$0xff]
    %v1327 = vld [vmem:[%s4 + $0x38] sm:$0xff]
    %v1328 = vld [vmem:[%s4 + $0x40] sm:$0xff]
    %v1329 = vld [vmem:[%s4 + $0x48] sm:$0xff]
    %v1330 = vld [vmem:[%s4 + $0x50] sm:$0xff]
    %v1331 = vld [vmem:[%s4 + $0x58] sm:$0xff]
    %v1332 = vld [vmem:[%s4 + $0x60] sm:$0xff]
    %v1333 = vld [vmem:[%s4 + $0x68] sm:$0xff]
    %v1334 = vld [vmem:[%s4 + $0x70] sm:$0xff]
    %v1335 = vld [vmem:[%s4 + $0x78] sm:$0xff]
    %v1336 = vld [vmem:[%s4 + $0x80] sm:$0xff]
    %v1337 = vld [vmem:[%s4 + $0x88] sm:$0xff]
    %v1338 = vld [vmem:[%s4 + $0x90] sm:$0xff]
    %v1339 = vld [vmem:[%s4 + $0x98] sm:$0xff]
    %v1340 = vld [vmem:[%s4 + $0xa0] sm:$0xff]
    %v1341 = vld [vmem:[%s4 + $0xa8] sm:$0xff]
    %v1342 = vld [vmem:[%s4 + $0xb0] sm:$0xff]
    %v1343 = vld [vmem:[%s4 + $0xb8] sm:$0xff]
    %v1344 = vld [vmem:[%s4 + $0xc0] sm:$0xff]
    %v1345 = vld [vmem:[%s4 + $0xc8] sm:$0xff]
    %v1346 = vld [vmem:[%s4 + $0xd0] sm:$0xff]
    %v1347 = vld [vmem:[%s4 + $0xd8] sm:$0xff]
    %v1348 = vld [vmem:[%s4 + $0xe0] sm:$0xff]
    %v1349 = vld [vmem:[%s4 + $0xe8] sm:$0xff]
    %v1350 = vld [vmem:[%s4 + $0xf0] sm:$0xff]
    %v1351 = vld [vmem:[%s4 + $0xf8] sm:$0xff]
    %v1352 = vld [vmem:[%s4 + $0x100] sm:$0xff]
    %v1353 = vld [vmem:[%s4 + $0x108] sm:$0xff]
    %v1354 = vld [vmem:[%s4 + $0x110] sm:$0xff]
    %v1355 = vld [vmem:[%s4 + $0x118] sm:$0xff]
    %v1356 = vld [vmem:[%s4 + $0x120] sm:$0xff]
    %v1357 = vld [vmem:[%s4 + $0x128] sm:$0xff]
    %v1358 = vld [vmem:[%s4 + $0x130] sm:$0xff]
    %v1359 = vld [vmem:[%s4 + $0x138] sm:$0xff]
    %v1360 = vld [vmem:[%s4 + $0x140] sm:$0xff]
    %v1361 = vld [vmem:[%s4 + $0x148] sm:$0xff]
    %v1362 = vld [vmem:[%s4 + $0x150] sm:$0xff]
    %v1363 = vld [vmem:[%s4 + $0x158] sm:$0xff]
    %v1364 = vld [vmem:[%s4 + $0x160] sm:$0xff]
    %v1365 = vld [vmem:[%s4 + $0x168] sm:$0xff]
    %v1366 = vld [vmem:[%s4 + $0x170] sm:$0xff]
    %v1367 = vld [vmem:[%s4 + $0x178] sm:$0xff]
    %v1368 = vld [vmem:[%s4 + $0x180] sm:$0xff]
    %v1369 = vld [vmem:[%s4 + $0x188] sm:$0xff]
    %v1370 = vld [vmem:[%s4 + $0x190] sm:$0xff]
    %v1371 = vld [vmem:[%s4 + $0x198] sm:$0xff]
    %v1372 = vld [vmem:[%s4 + $0x1a0] sm:$0xff]
    %v1373 = vld [vmem:[%s4 + $0x1a8] sm:$0xff]
    %v1374 = vld [vmem:[%s4 + $0x1b0] sm:$0xff]
    %v1375 = vld [vmem:[%s4 + $0x1b8] sm:$0xff]
    %v1376 = vld [vmem:[%s4 + $0x1c0] sm:$0xff]
    %v1377 = vld [vmem:[%s4 + $0x1c8] sm:$0xff]
    %v1378 = vld [vmem:[%s4 + $0x1d0] sm:$0xff]
    %v1379 = vld [vmem:[%s4 + $0x1d8] sm:$0xff]
    %v1380 = vld [vmem:[%s4 + $0x1e0] sm:$0xff]
    %v1381 = vld [vmem:[%s4 + $0x1e8] sm:$0xff]
    %v1382 = vld [vmem:[%s4 + $0x1f0] sm:$0xff]
    %v1383 = vld [vmem:[%s4 + $0x1f8] sm:$0xff]
    %v1384 = vld [vmem:[%s5] sm:$0xf]
    %v1386 = vperm.slane %v1384, 0
    %v1387 = vperm.slane %v1384, 1
    %v1388 = vperm.slane %v1384, 2
    %v1389 = vperm.slane %v1384, 3
    %v1395 = vunpack.c.l.b16 %v1319
    %v1396 = vunpack.c.h.b16 %v1319
    %v1397 = vpack.c.b16 %v1395, %v1395
    %v1398 = vpack.c.b16 %v1396, %v1396
    %v1465 = vunpack.c.l.b16 %v1320
    %v1466 = vunpack.c.h.b16 %v1320
    %v1467 = vunpack.c.l.b16 %v1321
    %v1468 = vunpack.c.h.b16 %v1321
    %v1469 = vunpack.c.l.b16 %v1322
    %v1470 = vunpack.c.h.b16 %v1322
    %v1471 = vunpack.c.l.b16 %v1323
    %v1472 = vunpack.c.h.b16 %v1323
    %v1473 = vunpack.c.l.b16 %v1324
    %v1474 = vunpack.c.h.b16 %v1324
    %v1475 = vunpack.c.l.b16 %v1325
    %v1476 = vunpack.c.h.b16 %v1325
    %v1477 = vunpack.c.l.b16 %v1326
    %v1478 = vunpack.c.h.b16 %v1326
    %v1479 = vunpack.c.l.b16 %v1327
    %v1480 = vunpack.c.h.b16 %v1327
    %v1481 = vunpack.c.l.b16 %v1328
    %v1482 = vunpack.c.h.b16 %v1328
    %v1483 = vunpack.c.l.b16 %v1329
    %v1484 = vunpack.c.h.b16 %v1329
    %v1485 = vunpack.c.l.b16 %v1330
    %v1486 = vunpack.c.h.b16 %v1330
    %v1487 = vunpack.c.l.b16 %v1331
    %v1488 = vunpack.c.h.b16 %v1331
    %v1489 = vunpack.c.l.b16 %v1332
    %v1490 = vunpack.c.h.b16 %v1332
    %v1491 = vunpack.c.l.b16 %v1333
    %v1492 = vunpack.c.h.b16 %v1333
    %v1493 = vunpack.c.l.b16 %v1334
    %v1494 = vunpack.c.h.b16 %v1334
    %v1495 = vunpack.c.l.b16 %v1335
    %v1496 = vunpack.c.h.b16 %v1335
    %v1497 = vunpack.c.l.b16 %v1336
    %v1498 = vunpack.c.h.b16 %v1336
    %v1499 = vunpack.c.l.b16 %v1337
    %v1500 = vunpack.c.h.b16 %v1337
    %v1501 = vunpack.c.l.b16 %v1338
    %v1502 = vunpack.c.h.b16 %v1338
    %v1503 = vunpack.c.l.b16 %v1339
    %v1504 = vunpack.c.h.b16 %v1339
    %v1505 = vunpack.c.l.b16 %v1340
    %v1506 = vunpack.c.h.b16 %v1340
    %v1507 = vunpack.c.l.b16 %v1341
    %v1508 = vunpack.c.h.b16 %v1341
    %v1509 = vunpack.c.l.b16 %v1342
    %v1510 = vunpack.c.h.b16 %v1342
    %v1511 = vunpack.c.l.b16 %v1343
    %v1512 = vunpack.c.h.b16 %v1343
    %v1513 = vunpack.c.l.b16 %v1344
    %v1514 = vunpack.c.h.b16 %v1344
    %v1515 = vunpack.c.l.b16 %v1345
    %v1516 = vunpack.c.h.b16 %v1345
    %v1517 = vunpack.c.l.b16 %v1346
    %v1518 = vunpack.c.h.b16 %v1346
    %v1519 = vunpack.c.l.b16 %v1347
    %v1520 = vunpack.c.h.b16 %v1347
    %v1521 = vunpack.c.l.b16 %v1348
    %v1522 = vunpack.c.h.b16 %v1348
    %v1523 = vunpack.c.l.b16 %v1349
    %v1524 = vunpack.c.h.b16 %v1349
    %v1525 = vunpack.c.l.b16 %v1350
    %v1526 = vunpack.c.h.b16 %v1350
    %v1527 = vunpack.c.l.b16 %v1351
    %v1528 = vunpack.c.h.b16 %v1351
    %v1529 = vunpack.c.l.b16 %v1352
    %v1530 = vunpack.c.h.b16 %v1352
    %v1531 = vunpack.c.l.b16 %v1353
    %v1532 = vunpack.c.h.b16 %v1353
    %v1533 = vunpack.c.l.b16 %v1354
    %v1534 = vunpack.c.h.b16 %v1354
    %v1535 = vunpack.c.l.b16 %v1355
    %v1536 = vunpack.c.h.b16 %v1355
    %v1537 = vunpack.c.l.b16 %v1356
    %v1538 = vunpack.c.h.b16 %v1356
    %v1539 = vunpack.c.l.b16 %v1357
    %v1540 = vunpack.c.h.b16 %v1357
    %v1541 = vunpack.c.l.b16 %v1358
    %v1542 = vunpack.c.h.b16 %v1358
    %v1543 = vunpack.c.l.b16 %v1359
    %v1544 = vunpack.c.h.b16 %v1359
    %v1545 = vunpack.c.l.b16 %v1360
    %v1546 = vunpack.c.h.b16 %v1360
    %v1547 = vunpack.c.l.b16 %v1361
    %v1548 = vunpack.c.h.b16 %v1361
    %v1549 = vunpack.c.l.b16 %v1362
    %v1550 = vunpack.c.h.b16 %v1362
    %v1551 = vunpack.c.l.b16 %v1363
    %v1552 = vunpack.c.h.b16 %v1363
    %v1553 = vunpack.c.l.b16 %v1364
    %v1554 = vunpack.c.h.b16 %v1364
    %v1555 = vunpack.c.l.b16 %v1365
    %v1556 = vunpack.c.h.b16 %v1365
    %v1557 = vunpack.c.l.b16 %v1366
    %v1558 = vunpack.c.h.b16 %v1366
    %v1559 = vunpack.c.l.b16 %v1367
    %v1560 = vunpack.c.h.b16 %v1367
    %v1561 = vunpack.c.l.b16 %v1368
    %v1562 = vunpack.c.h.b16 %v1368
    %v1563 = vunpack.c.l.b16 %v1369
    %v1564 = vunpack.c.h.b16 %v1369
    %v1565 = vunpack.c.l.b16 %v1370
    %v1566 = vunpack.c.h.b16 %v1370
    %v1567 = vunpack.c.l.b16 %v1371
    %v1568 = vunpack.c.h.b16 %v1371
    %v1569 = vunpack.c.l.b16 %v1372
    %v1570 = vunpack.c.h.b16 %v1372
    %v1571 = vunpack.c.l.b16 %v1373
    %v1572 = vunpack.c.h.b16 %v1373
    %v1573 = vunpack.c.l.b16 %v1374
    %v1574 = vunpack.c.h.b16 %v1374
    %v1575 = vunpack.c.l.b16 %v1375
    %v1576 = vunpack.c.h.b16 %v1375
    %v1577 = vunpack.c.l.b16 %v1376
    %v1578 = vunpack.c.h.b16 %v1376
    %v1579 = vunpack.c.l.b16 %v1377
    %v1580 = vunpack.c.h.b16 %v1377
    %v1581 = vunpack.c.l.b16 %v1378
    %v1582 = vunpack.c.h.b16 %v1378
    %v1583 = vunpack.c.l.b16 %v1379
    %v1584 = vunpack.c.h.b16 %v1379
    %v1585 = vunpack.c.l.b16 %v1380
    %v1586 = vunpack.c.h.b16 %v1380
    %v1587 = vunpack.c.l.b16 %v1381
    %v1588 = vunpack.c.h.b16 %v1381
    %v1589 = vunpack.c.l.b16 %v1382
    %v1590 = vunpack.c.h.b16 %v1382
    %v1591 = vunpack.c.l.b16 %v1383
    %v1592 = vunpack.c.h.b16 %v1383
    %v1593 = vpack.c.b16 %v1469, %v1465
    %v1594 = vpack.c.b16 %v1470, %v1466
    %v1595 = vpack.c.b16 %v1471, %v1467
    %v1596 = vpack.c.b16 %v1472, %v1468
    %v1597 = vpack.c.b16 %v1477, %v1473
    %v1598 = vpack.c.b16 %v1478, %v1474
    %v1599 = vpack.c.b16 %v1479, %v1475
    %v1600 = vpack.c.b16 %v1480, %v1476
    %v1601 = vpack.c.b16 %v1485, %v1481
    %v1602 = vpack.c.b16 %v1486, %v1482
    %v1603 = vpack.c.b16 %v1487, %v1483
    %v1604 = vpack.c.b16 %v1488, %v1484
    %v1605 = vpack.c.b16 %v1493, %v1489
    %v1606 = vpack.c.b16 %v1494, %v1490
    %v1607 = vpack.c.b16 %v1495, %v1491
    %v1608 = vpack.c.b16 %v1496, %v1492
    %v1609 = vpack.c.b16 %v1501, %v1497
    %v1610 = vpack.c.b16 %v1502, %v1498
    %v1611 = vpack.c.b16 %v1503, %v1499
    %v1612 = vpack.c.b16 %v1504, %v1500
    %v1613 = vpack.c.b16 %v1509, %v1505
    %v1614 = vpack.c.b16 %v1510, %v1506
    %v1615 = vpack.c.b16 %v1511, %v1507
    %v1616 = vpack.c.b16 %v1512, %v1508
    %v1617 = vpack.c.b16 %v1517, %v1513
    %v1618 = vpack.c.b16 %v1518, %v1514
    %v1619 = vpack.c.b16 %v1519, %v1515
    %v1620 = vpack.c.b16 %v1520, %v1516
    %v1621 = vpack.c.b16 %v1525, %v1521
    %v1622 = vpack.c.b16 %v1526, %v1522
    %v1623 = vpack.c.b16 %v1527, %v1523
    %v1624 = vpack.c.b16 %v1528, %v1524
    %v1625 = vpack.c.b16 %v1533, %v1529
    %v1626 = vpack.c.b16 %v1534, %v1530
    %v1627 = vpack.c.b16 %v1535, %v1531
    %v1628 = vpack.c.b16 %v1536, %v1532
    %v1629 = vpack.c.b16 %v1541, %v1537
    %v1630 = vpack.c.b16 %v1542, %v1538
    %v1631 = vpack.c.b16 %v1543, %v1539
    %v1632 = vpack.c.b16 %v1544, %v1540
    %v1633 = vpack.c.b16 %v1549, %v1545
    %v1634 = vpack.c.b16 %v1550, %v1546
    %v1635 = vpack.c.b16 %v1551, %v1547
    %v1636 = vpack.c.b16 %v1552, %v1548
    %v1637 = vpack.c.b16 %v1557, %v1553
    %v1638 = vpack.c.b16 %v1558, %v1554
    %v1639 = vpack.c.b16 %v1559, %v1555
    %v1640 = vpack.c.b16 %v1560, %v1556
    %v1641 = vpack.c.b16 %v1565, %v1561
    %v1642 = vpack.c.b16 %v1566, %v1562
    %v1643 = vpack.c.b16 %v1567, %v1563
    %v1644 = vpack.c.b16 %v1568, %v1564
    %v1645 = vpack.c.b16 %v1573, %v1569
    %v1646 = vpack.c.b16 %v1574, %v1570
    %v1647 = vpack.c.b16 %v1575, %v1571
    %v1648 = vpack.c.b16 %v1576, %v1572
    %v1649 = vpack.c.b16 %v1581, %v1577
    %v1650 = vpack.c.b16 %v1582, %v1578
    %v1651 = vpack.c.b16 %v1583, %v1579
    %v1652 = vpack.c.b16 %v1584, %v1580
    %v1653 = vpack.c.b16 %v1589, %v1585
    %v1654 = vpack.c.b16 %v1590, %v1586
    %v1655 = vpack.c.b16 %v1591, %v1587
    %v1656 = vpack.c.b16 %v1592, %v1588
    %1721 = vmatpush.bf16.msra.mxu0 %v1621
    %1722 = vmatpush.bf16.msra.mxu0 %v1617
    %1723 = vmatpush.bf16.msra.mxu0 %v1613
    %1724 = vmatpush.bf16.msra.mxu0 %v1609
    %1725 = vmatpush.bf16.msra.mxu0 %v1605
    %1726 = vmatpush.bf16.msra.mxu0 %v1601
    %1727 = vmatpush.bf16.msra.mxu0 %v1597
    %1728 = vmatpush.bf16.msra.mxu0 %v1593
    %1729 = vmatmul.bf16.gmra.mxu0 %v1397
    %v1730 = vpop.f32.mrf.mxu0
    %v1731 = vadd.f32 %v1386, %v1730
    %v1732 = vpop.f32.mrf.mxu0
    %1733 = vdwg.mxu0
    %1734 = vmatpush.bf16.msra.mxu0 %v1653
    %1735 = vmatpush.bf16.msra.mxu0 %v1649
    %1736 = vmatpush.bf16.msra.mxu0 %v1645
    %1737 = vmatpush.bf16.msra.mxu0 %v1641
    %1738 = vmatpush.bf16.msra.mxu0 %v1637
    %1739 = vmatpush.bf16.msra.mxu0 %v1633
    %1740 = vmatpush.bf16.msra.mxu0 %v1629
    %1741 = vmatpush.bf16.msra.mxu0 %v1625
    %1742 = vmatmul.bf16.gmra.mxu0 %v1398
    %v1743 = vpop.f32.mrf.mxu0
    %v1744 = vadd.f32 %v1731, %v1743
    %v1745 = vpop.f32.mrf.mxu0
    %1746 = vdwg.mxu0
    %1747 = vmatpush.bf16.msra.mxu0 %v1622
    %1748 = vmatpush.bf16.msra.mxu0 %v1618
    %1749 = vmatpush.bf16.msra.mxu0 %v1614
    %1750 = vmatpush.bf16.msra.mxu0 %v1610
    %1751 = vmatpush.bf16.msra.mxu0 %v1606
    %1752 = vmatpush.bf16.msra.mxu0 %v1602
    %1753 = vmatpush.bf16.msra.mxu0 %v1598
    %1754 = vmatpush.bf16.msra.mxu0 %v1594
    %1755 = vmatmul.bf16.gmra.mxu0 %v1397
    %v1756 = vpop.f32.mrf.mxu0
    %v1757 = vadd.f32 %v1387, %v1756
    %v1758 = vpop.f32.mrf.mxu0
    %1759 = vdwg.mxu0
    %1760 = vmatpush.bf16.msra.mxu0 %v1654
    %1761 = vmatpush.bf16.msra.mxu0 %v1650
    %1762 = vmatpush.bf16.msra.mxu0 %v1646
    %1763 = vmatpush.bf16.msra.mxu0 %v1642
    %1764 = vmatpush.bf16.msra.mxu0 %v1638
    %1765 = vmatpush.bf16.msra.mxu0 %v1634
    %1766 = vmatpush.bf16.msra.mxu0 %v1630
    %1767 = vmatpush.bf16.msra.mxu0 %v1626
    %1768 = vmatmul.bf16.gmra.mxu0 %v1398
    %v1769 = vpop.f32.mrf.mxu0
    %v1770 = vadd.f32 %v1757, %v1769
    %v1771 = vpop.f32.mrf.mxu0
    %1772 = vdwg.mxu0
    %1773 = vmatpush.bf16.msra.mxu0 %v1623
    %1774 = vmatpush.bf16.msra.mxu0 %v1619
    %1775 = vmatpush.bf16.msra.mxu0 %v1615
    %1776 = vmatpush.bf16.msra.mxu0 %v1611
    %1777 = vmatpush.bf16.msra.mxu0 %v1607
    %1778 = vmatpush.bf16.msra.mxu0 %v1603
    %1779 = vmatpush.bf16.msra.mxu0 %v1599
    %1780 = vmatpush.bf16.msra.mxu0 %v1595
    %1781 = vmatmul.bf16.gmra.mxu0 %v1397
    %v1782 = vpop.f32.mrf.mxu0
    %v1783 = vadd.f32 %v1388, %v1782
    %v1784 = vpop.f32.mrf.mxu0
    %1785 = vdwg.mxu0
    %1786 = vmatpush.bf16.msra.mxu0 %v1655
    %1787 = vmatpush.bf16.msra.mxu0 %v1651
    %1788 = vmatpush.bf16.msra.mxu0 %v1647
    %1789 = vmatpush.bf16.msra.mxu0 %v1643
    %1790 = vmatpush.bf16.msra.mxu0 %v1639
    %1791 = vmatpush.bf16.msra.mxu0 %v1635
    %1792 = vmatpush.bf16.msra.mxu0 %v1631
    %1793 = vmatpush.bf16.msra.mxu0 %v1627
    %1794 = vmatmul.bf16.gmra.mxu0 %v1398
    %v1795 = vpop.f32.mrf.mxu0
    %v1796 = vadd.f32 %v1783, %v1795
    %v1797 = vpop.f32.mrf.mxu0
    %1798 = vdwg.mxu0
    %1799 = vmatpush.bf16.msra.mxu0 %v1624
    %1800 = vmatpush.bf16.msra.mxu0 %v1620
    %1801 = vmatpush.bf16.msra.mxu0 %v1616
    %1802 = vmatpush.bf16.msra.mxu0 %v1612
    %1803 = vmatpush.bf16.msra.mxu0 %v1608
    %1804 = vmatpush.bf16.msra.mxu0 %v1604
    %1805 = vmatpush.bf16.msra.mxu0 %v1600
    %1806 = vmatpush.bf16.msra.mxu0 %v1596
    %1807 = vmatmul.bf16.gmra.mxu0 %v1397
    %v1808 = vpop.f32.mrf.mxu0
    %v1809 = vadd.f32 %v1389, %v1808
    %v1810 = vpop.f32.mrf.mxu0
    %1811 = vdwg.mxu0
    %1812 = vmatpush.bf16.msra.mxu0 %v1656
    %1813 = vmatpush.bf16.msra.mxu0 %v1652
    %1814 = vmatpush.bf16.msra.mxu0 %v1648
    %1815 = vmatpush.bf16.msra.mxu0 %v1644
    %1816 = vmatpush.bf16.msra.mxu0 %v1640
    %1817 = vmatpush.bf16.msra.mxu0 %v1636
    %1818 = vmatpush.bf16.msra.mxu0 %v1632
    %1819 = vmatpush.bf16.msra.mxu0 %v1628
    %1820 = vmatmul.bf16.gmra.mxu0 %v1398
    %v1821 = vpop.f32.mrf.mxu0
    %v1822 = vadd.f32 %v1809, %v1821
    %v1823 = vpop.f32.mrf.mxu0
    %1824 = vdwg.mxu0
    %v1825 = vxor.u32 %v1744, 2147483648
    %v1826 = vmul.f32 %v1825, 1.442695
    %v1827 = vpow.pop %v1826
    %v1828 = vadd.f32 %v1827, 1.0
    %v1829 = vrcp.pop %v1828
    %v1830 = vmul.f32 %v1828, %v1829
    %v1831 = vsub.f32 1.0, %v1830
    %v1832 = vmul.f32 %v1829, %v1831
    %v1833 = vadd.f32 %v1829, %v1832
    %vm1834 = vweird.f32 %v1828
    %vm1835 = vweird.f32 %v1829
    %vm1836 = vmor %vm1834, %vm1835
    %v1837 = vsel %vm1836, %v1829, %v1833
    %v1838 = vand.u32 2147483647, %v1828
    %vm1839 = vcmp.eq.f32.partialorder %v1838, 8.507059e+37
    %v1840 = vand.u32 %v1828, 2147483648
    %v1841 = vor.u32 1.1754944e-38, %v1840
    %v1842 = vsel %vm1839, %v1841, %v1837
    %v1843 = vmul.f32 1.0, %v1842
    %v1844 = vxor.u32 %v1770, 2147483648
    %v1845 = vmul.f32 %v1844, 1.442695
    %v1846 = vpow.pop %v1845
    %v1847 = vadd.f32 %v1846, 1.0
    %v1848 = vrcp.pop %v1847
    %v1849 = vmul.f32 %v1847, %v1848
    %v1850 = vsub.f32 1.0, %v1849
    %v1851 = vmul.f32 %v1848, %v1850
    %v1852 = vadd.f32 %v1848, %v1851
    %vm1853 = vweird.f32 %v1847
    %vm1854 = vweird.f32 %v1848
    %vm1855 = vmor %vm1853, %vm1854
    %v1856 = vsel %vm1855, %v1848, %v1852
    %v1857 = vand.u32 2147483647, %v1847
    %vm1858 = vcmp.eq.f32.partialorder %v1857, 8.507059e+37
    %v1859 = vand.u32 %v1847, 2147483648
    %v1860 = vor.u32 1.1754944e-38, %v1859
    %v1861 = vsel %vm1858, %v1860, %v1856
    %v1862 = vmul.f32 1.0, %v1861
    %v1863 = vtanh.pop %v1796
    %v1864 = vxor.u32 %v1822, 2147483648
    %v1865 = vmul.f32 %v1864, 1.442695
    %v1866 = vpow.pop %v1865
    %v1867 = vadd.f32 %v1866, 1.0
    %v1868 = vrcp.pop %v1867
    %v1869 = vmul.f32 %v1867, %v1868
    %v1870 = vsub.f32 1.0, %v1869
    %v1871 = vmul.f32 %v1868, %v1870
    %v1872 = vadd.f32 %v1868, %v1871
    %vm1873 = vweird.f32 %v1867
    %vm1874 = vweird.f32 %v1868
    %vm1875 = vmor %vm1873, %vm1874
    %v1876 = vsel %vm1875, %v1868, %v1872
    %v1877 = vand.u32 2147483647, %v1867
    %vm1878 = vcmp.eq.f32.partialorder %v1877, 8.507059e+37
    %v1879 = vand.u32 %v1867, 2147483648
    %v1880 = vor.u32 1.1754944e-38, %v1879
    %v1881 = vsel %vm1878, %v1880, %v1876
    %v1882 = vmul.f32 1.0, %v1881
    %v1883 = vmul.f32 %v1862, %v740
    %v1884 = vmul.f32 %v1843, %v1863
    %v1885 = vadd.f32 %v1883, %v1884
    %v1886 = vtanh.pop %v1885
    %v1887 = vmul.f32 %v1882, %v1886
    %v1888 = vpack.c.bf16 %v1887, %v1887
    %1889 = vst [vmem:[#allocation3] sm:$0xf] %v1888
    %v1890 = vpack.c.bf16 %v1314, %v1314
    %1891 = vst [vmem:[#allocation3 + $0x4] sm:$0xf] %v1890
    %v1892 = vld [vmem:[#allocation3] sm:$0xff]
    %v1893 = vld [vmem:[#allocation4] sm:$0xff]
    %v1894 = vld [vmem:[#allocation4 + $0x8] sm:$0xff]
    %v1895 = vld [vmem:[#allocation4 + $0x10] sm:$0xff]
    %v1896 = vld [vmem:[#allocation4 + $0x18] sm:$0xff]
    %v1897 = vld [vmem:[#allocation4 + $0x20] sm:$0xff]
    %v1898 = vld [vmem:[#allocation4 + $0x28] sm:$0xff]
    %v1899 = vld [vmem:[#allocation4 + $0x30] sm:$0xff]
    %v1900 = vld [vmem:[#allocation4 + $0x38] sm:$0xff]
    %v1901 = vld [vmem:[#allocation4 + $0x40] sm:$0xff]
    %v1902 = vld [vmem:[#allocation4 + $0x48] sm:$0xff]
    %v1903 = vld [vmem:[#allocation4 + $0x50] sm:$0xff]
    %v1904 = vld [vmem:[#allocation4 + $0x58] sm:$0xff]
    %v1905 = vld [vmem:[#allocation4 + $0x60] sm:$0xff]
    %v1906 = vld [vmem:[#allocation4 + $0x68] sm:$0xff]
    %v1907 = vld [vmem:[#allocation4 + $0x70] sm:$0xff]
    %v1908 = vld [vmem:[#allocation4 + $0x78] sm:$0xff]
    %v1909 = vld [vmem:[#allocation4 + $0x80] sm:$0xff]
    %v1910 = vld [vmem:[#allocation4 + $0x88] sm:$0xff]
    %v1911 = vld [vmem:[#allocation4 + $0x90] sm:$0xff]
    %v1912 = vld [vmem:[#allocation4 + $0x98] sm:$0xff]
    %v1913 = vld [vmem:[#allocation4 + $0xa0] sm:$0xff]
    %v1914 = vld [vmem:[#allocation4 + $0xa8] sm:$0xff]
    %v1915 = vld [vmem:[#allocation4 + $0xb0] sm:$0xff]
    %v1916 = vld [vmem:[#allocation4 + $0xb8] sm:$0xff]
    %v1917 = vld [vmem:[#allocation4 + $0xc0] sm:$0xff]
    %v1918 = vld [vmem:[#allocation4 + $0xc8] sm:$0xff]
    %v1919 = vld [vmem:[#allocation4 + $0xd0] sm:$0xff]
    %v1920 = vld [vmem:[#allocation4 + $0xd8] sm:$0xff]
    %v1921 = vld [vmem:[#allocation4 + $0xe0] sm:$0xff]
    %v1922 = vld [vmem:[#allocation4 + $0xe8] sm:$0xff]
    %v1923 = vld [vmem:[#allocation4 + $0xf0] sm:$0xff]
    %v1924 = vld [vmem:[#allocation4 + $0xf8] sm:$0xff]
    %v1925 = vld [vmem:[#allocation4 + $0x100] sm:$0xff]
    %v1926 = vld [vmem:[#allocation4 + $0x108] sm:$0xff]
    %v1927 = vld [vmem:[#allocation4 + $0x110] sm:$0xff]
    %v1928 = vld [vmem:[#allocation4 + $0x118] sm:$0xff]
    %v1929 = vld [vmem:[#allocation4 + $0x120] sm:$0xff]
    %v1930 = vld [vmem:[#allocation4 + $0x128] sm:$0xff]
    %v1931 = vld [vmem:[#allocation4 + $0x130] sm:$0xff]
    %v1932 = vld [vmem:[#allocation4 + $0x138] sm:$0xff]
    %v1933 = vld [vmem:[#allocation4 + $0x140] sm:$0xff]
    %v1934 = vld [vmem:[#allocation4 + $0x148] sm:$0xff]
    %v1935 = vld [vmem:[#allocation4 + $0x150] sm:$0xff]
    %v1936 = vld [vmem:[#allocation4 + $0x158] sm:$0xff]
    %v1937 = vld [vmem:[#allocation4 + $0x160] sm:$0xff]
    %v1938 = vld [vmem:[#allocation4 + $0x168] sm:$0xff]
    %v1939 = vld [vmem:[#allocation4 + $0x170] sm:$0xff]
    %v1940 = vld [vmem:[#allocation4 + $0x178] sm:$0xff]
    %v1941 = vld [vmem:[#allocation4 + $0x180] sm:$0xff]
    %v1942 = vld [vmem:[#allocation4 + $0x188] sm:$0xff]
    %v1943 = vld [vmem:[#allocation4 + $0x190] sm:$0xff]
    %v1944 = vld [vmem:[#allocation4 + $0x198] sm:$0xff]
    %v1945 = vld [vmem:[#allocation4 + $0x1a0] sm:$0xff]
    %v1946 = vld [vmem:[#allocation4 + $0x1a8] sm:$0xff]
    %v1947 = vld [vmem:[#allocation4 + $0x1b0] sm:$0xff]
    %v1948 = vld [vmem:[#allocation4 + $0x1b8] sm:$0xff]
    %v1949 = vld [vmem:[#allocation4 + $0x1c0] sm:$0xff]
    %v1950 = vld [vmem:[#allocation4 + $0x1c8] sm:$0xff]
    %v1951 = vld [vmem:[#allocation4 + $0x1d0] sm:$0xff]
    %v1952 = vld [vmem:[#allocation4 + $0x1d8] sm:$0xff]
    %v1953 = vld [vmem:[#allocation4 + $0x1e0] sm:$0xff]
    %v1954 = vld [vmem:[#allocation4 + $0x1e8] sm:$0xff]
    %v1955 = vld [vmem:[#allocation4 + $0x1f0] sm:$0xff]
    %v1956 = vld [vmem:[#allocation4 + $0x1f8] sm:$0xff]
    %v1957 = vld [vmem:[%s7] sm:$0xf]
    %v1959 = vperm.slane %v1957, 0
    %v1960 = vperm.slane %v1957, 1
    %v1961 = vperm.slane %v1957, 2
    %v1962 = vperm.slane %v1957, 3
    %v1968 = vunpack.c.l.b16 %v1892
    %v1969 = vunpack.c.h.b16 %v1892
    %v1970 = vpack.c.b16 %v1968, %v1968
    %v1971 = vpack.c.b16 %v1969, %v1969
    %v2038 = vunpack.c.l.b16 %v1893
    %v2039 = vunpack.c.h.b16 %v1893
    %v2040 = vunpack.c.l.b16 %v1894
    %v2041 = vunpack.c.h.b16 %v1894
    %v2042 = vunpack.c.l.b16 %v1895
    %v2043 = vunpack.c.h.b16 %v1895
    %v2044 = vunpack.c.l.b16 %v1896
    %v2045 = vunpack.c.h.b16 %v1896
    %v2046 = vunpack.c.l.b16 %v1897
    %v2047 = vunpack.c.h.b16 %v1897
    %v2048 = vunpack.c.l.b16 %v1898
    %v2049 = vunpack.c.h.b16 %v1898
    %v2050 = vunpack.c.l.b16 %v1899
    %v2051 = vunpack.c.h.b16 %v1899
    %v2052 = vunpack.c.l.b16 %v1900
    %v2053 = vunpack.c.h.b16 %v1900
    %v2054 = vunpack.c.l.b16 %v1901
    %v2055 = vunpack.c.h.b16 %v1901
    %v2056 = vunpack.c.l.b16 %v1902
    %v2057 = vunpack.c.h.b16 %v1902
    %v2058 = vunpack.c.l.b16 %v1903
    %v2059 = vunpack.c.h.b16 %v1903
    %v2060 = vunpack.c.l.b16 %v1904
    %v2061 = vunpack.c.h.b16 %v1904
    %v2062 = vunpack.c.l.b16 %v1905
    %v2063 = vunpack.c.h.b16 %v1905
    %v2064 = vunpack.c.l.b16 %v1906
    %v2065 = vunpack.c.h.b16 %v1906
    %v2066 = vunpack.c.l.b16 %v1907
    %v2067 = vunpack.c.h.b16 %v1907
    %v2068 = vunpack.c.l.b16 %v1908
    %v2069 = vunpack.c.h.b16 %v1908
    %v2070 = vunpack.c.l.b16 %v1909
    %v2071 = vunpack.c.h.b16 %v1909
    %v2072 = vunpack.c.l.b16 %v1910
    %v2073 = vunpack.c.h.b16 %v1910
    %v2074 = vunpack.c.l.b16 %v1911
    %v2075 = vunpack.c.h.b16 %v1911
    %v2076 = vunpack.c.l.b16 %v1912
    %v2077 = vunpack.c.h.b16 %v1912
    %v2078 = vunpack.c.l.b16 %v1913
    %v2079 = vunpack.c.h.b16 %v1913
    %v2080 = vunpack.c.l.b16 %v1914
    %v2081 = vunpack.c.h.b16 %v1914
    %v2082 = vunpack.c.l.b16 %v1915
    %v2083 = vunpack.c.h.b16 %v1915
    %v2084 = vunpack.c.l.b16 %v1916
    %v2085 = vunpack.c.h.b16 %v1916
    %v2086 = vunpack.c.l.b16 %v1917
    %v2087 = vunpack.c.h.b16 %v1917
    %v2088 = vunpack.c.l.b16 %v1918
    %v2089 = vunpack.c.h.b16 %v1918
    %v2090 = vunpack.c.l.b16 %v1919
    %v2091 = vunpack.c.h.b16 %v1919
    %v2092 = vunpack.c.l.b16 %v1920
    %v2093 = vunpack.c.h.b16 %v1920
    %v2094 = vunpack.c.l.b16 %v1921
    %v2095 = vunpack.c.h.b16 %v1921
    %v2096 = vunpack.c.l.b16 %v1922
    %v2097 = vunpack.c.h.b16 %v1922
    %v2098 = vunpack.c.l.b16 %v1923
    %v2099 = vunpack.c.h.b16 %v1923
    %v2100 = vunpack.c.l.b16 %v1924
    %v2101 = vunpack.c.h.b16 %v1924
    %v2102 = vunpack.c.l.b16 %v1925
    %v2103 = vunpack.c.h.b16 %v1925
    %v2104 = vunpack.c.l.b16 %v1926
    %v2105 = vunpack.c.h.b16 %v1926
    %v2106 = vunpack.c.l.b16 %v1927
    %v2107 = vunpack.c.h.b16 %v1927
    %v2108 = vunpack.c.l.b16 %v1928
    %v2109 = vunpack.c.h.b16 %v1928
    %v2110 = vunpack.c.l.b16 %v1929
    %v2111 = vunpack.c.h.b16 %v1929
    %v2112 = vunpack.c.l.b16 %v1930
    %v2113 = vunpack.c.h.b16 %v1930
    %v2114 = vunpack.c.l.b16 %v1931
    %v2115 = vunpack.c.h.b16 %v1931
    %v2116 = vunpack.c.l.b16 %v1932
    %v2117 = vunpack.c.h.b16 %v1932
    %v2118 = vunpack.c.l.b16 %v1933
    %v2119 = vunpack.c.h.b16 %v1933
    %v2120 = vunpack.c.l.b16 %v1934
    %v2121 = vunpack.c.h.b16 %v1934
    %v2122 = vunpack.c.l.b16 %v1935
    %v2123 = vunpack.c.h.b16 %v1935
    %v2124 = vunpack.c.l.b16 %v1936
    %v2125 = vunpack.c.h.b16 %v1936
    %v2126 = vunpack.c.l.b16 %v1937
    %v2127 = vunpack.c.h.b16 %v1937
    %v2128 = vunpack.c.l.b16 %v1938
    %v2129 = vunpack.c.h.b16 %v1938
    %v2130 = vunpack.c.l.b16 %v1939
    %v2131 = vunpack.c.h.b16 %v1939
    %v2132 = vunpack.c.l.b16 %v1940
    %v2133 = vunpack.c.h.b16 %v1940
    %v2134 = vunpack.c.l.b16 %v1941
    %v2135 = vunpack.c.h.b16 %v1941
    %v2136 = vunpack.c.l.b16 %v1942
    %v2137 = vunpack.c.h.b16 %v1942
    %v2138 = vunpack.c.l.b16 %v1943
    %v2139 = vunpack.c.h.b16 %v1943
    %v2140 = vunpack.c.l.b16 %v1944
    %v2141 = vunpack.c.h.b16 %v1944
    %v2142 = vunpack.c.l.b16 %v1945
    %v2143 = vunpack.c.h.b16 %v1945
    %v2144 = vunpack.c.l.b16 %v1946
    %v2145 = vunpack.c.h.b16 %v1946
    %v2146 = vunpack.c.l.b16 %v1947
    %v2147 = vunpack.c.h.b16 %v1947
    %v2148 = vunpack.c.l.b16 %v1948
    %v2149 = vunpack.c.h.b16 %v1948
    %v2150 = vunpack.c.l.b16 %v1949
    %v2151 = vunpack.c.h.b16 %v1949
    %v2152 = vunpack.c.l.b16 %v1950
    %v2153 = vunpack.c.h.b16 %v1950
    %v2154 = vunpack.c.l.b16 %v1951
    %v2155 = vunpack.c.h.b16 %v1951
    %v2156 = vunpack.c.l.b16 %v1952
    %v2157 = vunpack.c.h.b16 %v1952
    %v2158 = vunpack.c.l.b16 %v1953
    %v2159 = vunpack.c.h.b16 %v1953
    %v2160 = vunpack.c.l.b16 %v1954
    %v2161 = vunpack.c.h.b16 %v1954
    %v2162 = vunpack.c.l.b16 %v1955
    %v2163 = vunpack.c.h.b16 %v1955
    %v2164 = vunpack.c.l.b16 %v1956
    %v2165 = vunpack.c.h.b16 %v1956
    %v2166 = vpack.c.b16 %v2042, %v2038
    %v2167 = vpack.c.b16 %v2043, %v2039
    %v2168 = vpack.c.b16 %v2044, %v2040
    %v2169 = vpack.c.b16 %v2045, %v2041
    %v2170 = vpack.c.b16 %v2050, %v2046
    %v2171 = vpack.c.b16 %v2051, %v2047
    %v2172 = vpack.c.b16 %v2052, %v2048
    %v2173 = vpack.c.b16 %v2053, %v2049
    %v2174 = vpack.c.b16 %v2058, %v2054
    %v2175 = vpack.c.b16 %v2059, %v2055
    %v2176 = vpack.c.b16 %v2060, %v2056
    %v2177 = vpack.c.b16 %v2061, %v2057
    %v2178 = vpack.c.b16 %v2066, %v2062
    %v2179 = vpack.c.b16 %v2067, %v2063
    %v2180 = vpack.c.b16 %v2068, %v2064
    %v2181 = vpack.c.b16 %v2069, %v2065
    %v2182 = vpack.c.b16 %v2074, %v2070
    %v2183 = vpack.c.b16 %v2075, %v2071
    %v2184 = vpack.c.b16 %v2076, %v2072
    %v2185 = vpack.c.b16 %v2077, %v2073
    %v2186 = vpack.c.b16 %v2082, %v2078
    %v2187 = vpack.c.b16 %v2083, %v2079
    %v2188 = vpack.c.b16 %v2084, %v2080
    %v2189 = vpack.c.b16 %v2085, %v2081
    %v2190 = vpack.c.b16 %v2090, %v2086
    %v2191 = vpack.c.b16 %v2091, %v2087
    %v2192 = vpack.c.b16 %v2092, %v2088
    %v2193 = vpack.c.b16 %v2093, %v2089
    %v2194 = vpack.c.b16 %v2098, %v2094
    %v2195 = vpack.c.b16 %v2099, %v2095
    %v2196 = vpack.c.b16 %v2100, %v2096
    %v2197 = vpack.c.b16 %v2101, %v2097
    %v2198 = vpack.c.b16 %v2106, %v2102
    %v2199 = vpack.c.b16 %v2107, %v2103
    %v2200 = vpack.c.b16 %v2108, %v2104
    %v2201 = vpack.c.b16 %v2109, %v2105
    %v2202 = vpack.c.b16 %v2114, %v2110
    %v2203 = vpack.c.b16 %v2115, %v2111
    %v2204 = vpack.c.b16 %v2116, %v2112
    %v2205 = vpack.c.b16 %v2117, %v2113
    %v2206 = vpack.c.b16 %v2122, %v2118
    %v2207 = vpack.c.b16 %v2123, %v2119
    %v2208 = vpack.c.b16 %v2124, %v2120
    %v2209 = vpack.c.b16 %v2125, %v2121
    %v2210 = vpack.c.b16 %v2130, %v2126
    %v2211 = vpack.c.b16 %v2131, %v2127
    %v2212 = vpack.c.b16 %v2132, %v2128
    %v2213 = vpack.c.b16 %v2133, %v2129
    %v2214 = vpack.c.b16 %v2138, %v2134
    %v2215 = vpack.c.b16 %v2139, %v2135
    %v2216 = vpack.c.b16 %v2140, %v2136
    %v2217 = vpack.c.b16 %v2141, %v2137
    %v2218 = vpack.c.b16 %v2146, %v2142
    %v2219 = vpack.c.b16 %v2147, %v2143
    %v2220 = vpack.c.b16 %v2148, %v2144
    %v2221 = vpack.c.b16 %v2149, %v2145
    %v2222 = vpack.c.b16 %v2154, %v2150
    %v2223 = vpack.c.b16 %v2155, %v2151
    %v2224 = vpack.c.b16 %v2156, %v2152
    %v2225 = vpack.c.b16 %v2157, %v2153
    %v2226 = vpack.c.b16 %v2162, %v2158
    %v2227 = vpack.c.b16 %v2163, %v2159
    %v2228 = vpack.c.b16 %v2164, %v2160
    %v2229 = vpack.c.b16 %v2165, %v2161
    %2294 = vmatpush.bf16.msra.mxu0 %v2194
    %2295 = vmatpush.bf16.msra.mxu0 %v2190
    %2296 = vmatpush.bf16.msra.mxu0 %v2186
    %2297 = vmatpush.bf16.msra.mxu0 %v2182
    %2298 = vmatpush.bf16.msra.mxu0 %v2178
    %2299 = vmatpush.bf16.msra.mxu0 %v2174
    %2300 = vmatpush.bf16.msra.mxu0 %v2170
    %2301 = vmatpush.bf16.msra.mxu0 %v2166
    %2302 = vmatmul.bf16.gmra.mxu0 %v1970
    %v2303 = vpop.f32.mrf.mxu0
    %v2304 = vadd.f32 %v1959, %v2303
    %v2305 = vpop.f32.mrf.mxu0
    %2306 = vdwg.mxu0
    %2307 = vmatpush.bf16.msra.mxu0 %v2226
    %2308 = vmatpush.bf16.msra.mxu0 %v2222
    %2309 = vmatpush.bf16.msra.mxu0 %v2218
    %2310 = vmatpush.bf16.msra.mxu0 %v2214
    %2311 = vmatpush.bf16.msra.mxu0 %v2210
    %2312 = vmatpush.bf16.msra.mxu0 %v2206
    %2313 = vmatpush.bf16.msra.mxu0 %v2202
    %2314 = vmatpush.bf16.msra.mxu0 %v2198
    %2315 = vmatmul.bf16.gmra.mxu0 %v1971
    %v2316 = vpop.f32.mrf.mxu0
    %v2317 = vadd.f32 %v2304, %v2316
    %v2318 = vpop.f32.mrf.mxu0
    %2319 = vdwg.mxu0
    %2320 = vmatpush.bf16.msra.mxu0 %v2195
    %2321 = vmatpush.bf16.msra.mxu0 %v2191
    %2322 = vmatpush.bf16.msra.mxu0 %v2187
    %2323 = vmatpush.bf16.msra.mxu0 %v2183
    %2324 = vmatpush.bf16.msra.mxu0 %v2179
    %2325 = vmatpush.bf16.msra.mxu0 %v2175
    %2326 = vmatpush.bf16.msra.mxu0 %v2171
    %2327 = vmatpush.bf16.msra.mxu0 %v2167
    %2328 = vmatmul.bf16.gmra.mxu0 %v1970
    %v2329 = vpop.f32.mrf.mxu0
    %v2330 = vadd.f32 %v1960, %v2329
    %v2331 = vpop.f32.mrf.mxu0
    %2332 = vdwg.mxu0
    %2333 = vmatpush.bf16.msra.mxu0 %v2227
    %2334 = vmatpush.bf16.msra.mxu0 %v2223
    %2335 = vmatpush.bf16.msra.mxu0 %v2219
    %2336 = vmatpush.bf16.msra.mxu0 %v2215
    %2337 = vmatpush.bf16.msra.mxu0 %v2211
    %2338 = vmatpush.bf16.msra.mxu0 %v2207
    %2339 = vmatpush.bf16.msra.mxu0 %v2203
    %2340 = vmatpush.bf16.msra.mxu0 %v2199
    %2341 = vmatmul.bf16.gmra.mxu0 %v1971
    %v2342 = vpop.f32.mrf.mxu0
    %v2343 = vadd.f32 %v2330, %v2342
    %v2344 = vpop.f32.mrf.mxu0
    %2345 = vdwg.mxu0
    %2346 = vmatpush.bf16.msra.mxu0 %v2196
    %2347 = vmatpush.bf16.msra.mxu0 %v2192
    %2348 = vmatpush.bf16.msra.mxu0 %v2188
    %2349 = vmatpush.bf16.msra.mxu0 %v2184
    %2350 = vmatpush.bf16.msra.mxu0 %v2180
    %2351 = vmatpush.bf16.msra.mxu0 %v2176
    %2352 = vmatpush.bf16.msra.mxu0 %v2172
    %2353 = vmatpush.bf16.msra.mxu0 %v2168
    %2354 = vmatmul.bf16.gmra.mxu0 %v1970
    %v2355 = vpop.f32.mrf.mxu0
    %v2356 = vadd.f32 %v1961, %v2355
    %v2357 = vpop.f32.mrf.mxu0
    %2358 = vdwg.mxu0
    %2359 = vmatpush.bf16.msra.mxu0 %v2228
    %2360 = vmatpush.bf16.msra.mxu0 %v2224
    %2361 = vmatpush.bf16.msra.mxu0 %v2220
    %2362 = vmatpush.bf16.msra.mxu0 %v2216
    %2363 = vmatpush.bf16.msra.mxu0 %v2212
    %2364 = vmatpush.bf16.msra.mxu0 %v2208
    %2365 = vmatpush.bf16.msra.mxu0 %v2204
    %2366 = vmatpush.bf16.msra.mxu0 %v2200
    %2367 = vmatmul.bf16.gmra.mxu0 %v1971
    %v2368 = vpop.f32.mrf.mxu0
    %v2369 = vadd.f32 %v2356, %v2368
    %v2370 = vpop.f32.mrf.mxu0
    %2371 = vdwg.mxu0
    %2372 = vmatpush.bf16.msra.mxu0 %v2197
    %2373 = vmatpush.bf16.msra.mxu0 %v2193
    %2374 = vmatpush.bf16.msra.mxu0 %v2189
    %2375 = vmatpush.bf16.msra.mxu0 %v2185
    %2376 = vmatpush.bf16.msra.mxu0 %v2181
    %2377 = vmatpush.bf16.msra.mxu0 %v2177
    %2378 = vmatpush.bf16.msra.mxu0 %v2173
    %2379 = vmatpush.bf16.msra.mxu0 %v2169
    %2380 = vmatmul.bf16.gmra.mxu0 %v1970
    %v2381 = vpop.f32.mrf.mxu0
    %v2382 = vadd.f32 %v1962, %v2381
    %v2383 = vpop.f32.mrf.mxu0
    %2384 = vdwg.mxu0
    %2385 = vmatpush.bf16.msra.mxu0 %v2229
    %2386 = vmatpush.bf16.msra.mxu0 %v2225
    %2387 = vmatpush.bf16.msra.mxu0 %v2221
    %2388 = vmatpush.bf16.msra.mxu0 %v2217
    %2389 = vmatpush.bf16.msra.mxu0 %v2213
    %2390 = vmatpush.bf16.msra.mxu0 %v2209
    %2391 = vmatpush.bf16.msra.mxu0 %v2205
    %2392 = vmatpush.bf16.msra.mxu0 %v2201
    %2393 = vmatmul.bf16.gmra.mxu0 %v1971
    %v2394 = vpop.f32.mrf.mxu0
    %v2395 = vadd.f32 %v2382, %v2394
    %v2396 = vpop.f32.mrf.mxu0
    %2397 = vdwg.mxu0
    %v2398 = vxor.u32 %v2317, 2147483648
    %v2399 = vmul.f32 %v2398, 1.442695
    %v2400 = vpow.pop %v2399
    %v2401 = vadd.f32 %v2400, 1.0
    %v2402 = vrcp.pop %v2401
    %v2403 = vmul.f32 %v2401, %v2402
    %v2404 = vsub.f32 1.0, %v2403
    %v2405 = vmul.f32 %v2402, %v2404
    %v2406 = vadd.f32 %v2402, %v2405
    %vm2407 = vweird.f32 %v2401
    %vm2408 = vweird.f32 %v2402
    %vm2409 = vmor %vm2407, %vm2408
    %v2410 = vsel %vm2409, %v2402, %v2406
    %v2411 = vand.u32 2147483647, %v2401
    %vm2412 = vcmp.eq.f32.partialorder %v2411, 8.507059e+37
    %v2413 = vand.u32 %v2401, 2147483648
    %v2414 = vor.u32 1.1754944e-38, %v2413
    %v2415 = vsel %vm2412, %v2414, %v2410
    %v2416 = vmul.f32 1.0, %v2415
    %v2417 = vxor.u32 %v2343, 2147483648
    %v2418 = vmul.f32 %v2417, 1.442695
    %v2419 = vpow.pop %v2418
    %v2420 = vadd.f32 %v2419, 1.0
    %v2421 = vrcp.pop %v2420
    %v2422 = vmul.f32 %v2420, %v2421
    %v2423 = vsub.f32 1.0, %v2422
    %v2424 = vmul.f32 %v2421, %v2423
    %v2425 = vadd.f32 %v2421, %v2424
    %vm2426 = vweird.f32 %v2420
    %vm2427 = vweird.f32 %v2421
    %vm2428 = vmor %vm2426, %vm2427
    %v2429 = vsel %vm2428, %v2421, %v2425
    %v2430 = vand.u32 2147483647, %v2420
    %vm2431 = vcmp.eq.f32.partialorder %v2430, 8.507059e+37
    %v2432 = vand.u32 %v2420, 2147483648
    %v2433 = vor.u32 1.1754944e-38, %v2432
    %v2434 = vsel %vm2431, %v2433, %v2429
    %v2435 = vmul.f32 1.0, %v2434
    %v2436 = vtanh.pop %v2369
    %v2437 = vxor.u32 %v2395, 2147483648
    %v2438 = vmul.f32 %v2437, 1.442695
    %v2439 = vpow.pop %v2438
    %v2440 = vadd.f32 %v2439, 1.0
    %v2441 = vrcp.pop %v2440
    %v2442 = vmul.f32 %v2440, %v2441
    %v2443 = vsub.f32 1.0, %v2442
    %v2444 = vmul.f32 %v2441, %v2443
    %v2445 = vadd.f32 %v2441, %v2444
    %vm2446 = vweird.f32 %v2440
    %vm2447 = vweird.f32 %v2441
    %vm2448 = vmor %vm2446, %vm2447
    %v2449 = vsel %vm2448, %v2441, %v2445
    %v2450 = vand.u32 2147483647, %v2440
    %vm2451 = vcmp.eq.f32.partialorder %v2450, 8.507059e+37
    %v2452 = vand.u32 %v2440, 2147483648
    %v2453 = vor.u32 1.1754944e-38, %v2452
    %v2454 = vsel %vm2451, %v2453, %v2449
    %v2455 = vmul.f32 1.0, %v2454
    %v2456 = vmul.f32 %v2435, %v1312
    %v2457 = vmul.f32 %v2416, %v2436
    %v2458 = vadd.f32 %v2456, %v2457
    %v2459 = vtanh.pop %v2458
    %v2460 = vmul.f32 %v2455, %v2459
    %s2461 = scalar_lea.vmem %s3, 8
    %v2462 = vld [vmem:[%s2461] sm:$0xf]
    %2463 = vst [vmem:[#allocation2] sm:$0xf] %v2462
    %2464 = vst [vmem:[#allocation2 + $0x4] sm:$0xf] %v1888
    %v2465 = vld [vmem:[#allocation2] sm:$0xff]
    %v2466 = vld [vmem:[%s4] sm:$0xff]
    %v2467 = vld [vmem:[%s4 + $0x8] sm:$0xff]
    %v2468 = vld [vmem:[%s4 + $0x10] sm:$0xff]
    %v2469 = vld [vmem:[%s4 + $0x18] sm:$0xff]
    %v2470 = vld [vmem:[%s4 + $0x20] sm:$0xff]
    %v2471 = vld [vmem:[%s4 + $0x28] sm:$0xff]
    %v2472 = vld [vmem:[%s4 + $0x30] sm:$0xff]
    %v2473 = vld [vmem:[%s4 + $0x38] sm:$0xff]
    %v2474 = vld [vmem:[%s4 + $0x40] sm:$0xff]
    %v2475 = vld [vmem:[%s4 + $0x48] sm:$0xff]
    %v2476 = vld [vmem:[%s4 + $0x50] sm:$0xff]
    %v2477 = vld [vmem:[%s4 + $0x58] sm:$0xff]
    %v2478 = vld [vmem:[%s4 + $0x60] sm:$0xff]
    %v2479 = vld [vmem:[%s4 + $0x68] sm:$0xff]
    %v2480 = vld [vmem:[%s4 + $0x70] sm:$0xff]
    %v2481 = vld [vmem:[%s4 + $0x78] sm:$0xff]
    %v2482 = vld [vmem:[%s4 + $0x80] sm:$0xff]
    %v2483 = vld [vmem:[%s4 + $0x88] sm:$0xff]
    %v2484 = vld [vmem:[%s4 + $0x90] sm:$0xff]
    %v2485 = vld [vmem:[%s4 + $0x98] sm:$0xff]
    %v2486 = vld [vmem:[%s4 + $0xa0] sm:$0xff]
    %v2487 = vld [vmem:[%s4 + $0xa8] sm:$0xff]
    %v2488 = vld [vmem:[%s4 + $0xb0] sm:$0xff]
    %v2489 = vld [vmem:[%s4 + $0xb8] sm:$0xff]
    %v2490 = vld [vmem:[%s4 + $0xc0] sm:$0xff]
    %v2491 = vld [vmem:[%s4 + $0xc8] sm:$0xff]
    %v2492 = vld [vmem:[%s4 + $0xd0] sm:$0xff]
    %v2493 = vld [vmem:[%s4 + $0xd8] sm:$0xff]
    %v2494 = vld [vmem:[%s4 + $0xe0] sm:$0xff]
    %v2495 = vld [vmem:[%s4 + $0xe8] sm:$0xff]
    %v2496 = vld [vmem:[%s4 + $0xf0] sm:$0xff]
    %v2497 = vld [vmem:[%s4 + $0xf8] sm:$0xff]
    %v2498 = vld [vmem:[%s4 + $0x100] sm:$0xff]
    %v2499 = vld [vmem:[%s4 + $0x108] sm:$0xff]
    %v2500 = vld [vmem:[%s4 + $0x110] sm:$0xff]
    %v2501 = vld [vmem:[%s4 + $0x118] sm:$0xff]
    %v2502 = vld [vmem:[%s4 + $0x120] sm:$0xff]
    %v2503 = vld [vmem:[%s4 + $0x128] sm:$0xff]
    %v2504 = vld [vmem:[%s4 + $0x130] sm:$0xff]
    %v2505 = vld [vmem:[%s4 + $0x138] sm:$0xff]
    %v2506 = vld [vmem:[%s4 + $0x140] sm:$0xff]
    %v2507 = vld [vmem:[%s4 + $0x148] sm:$0xff]
    %v2508 = vld [vmem:[%s4 + $0x150] sm:$0xff]
    %v2509 = vld [vmem:[%s4 + $0x158] sm:$0xff]
    %v2510 = vld [vmem:[%s4 + $0x160] sm:$0xff]
    %v2511 = vld [vmem:[%s4 + $0x168] sm:$0xff]
    %v2512 = vld [vmem:[%s4 + $0x170] sm:$0xff]
    %v2513 = vld [vmem:[%s4 + $0x178] sm:$0xff]
    %v2514 = vld [vmem:[%s4 + $0x180] sm:$0xff]
    %v2515 = vld [vmem:[%s4 + $0x188] sm:$0xff]
    %v2516 = vld [vmem:[%s4 + $0x190] sm:$0xff]
    %v2517 = vld [vmem:[%s4 + $0x198] sm:$0xff]
    %v2518 = vld [vmem:[%s4 + $0x1a0] sm:$0xff]
    %v2519 = vld [vmem:[%s4 + $0x1a8] sm:$0xff]
    %v2520 = vld [vmem:[%s4 + $0x1b0] sm:$0xff]
    %v2521 = vld [vmem:[%s4 + $0x1b8] sm:$0xff]
    %v2522 = vld [vmem:[%s4 + $0x1c0] sm:$0xff]
    %v2523 = vld [vmem:[%s4 + $0x1c8] sm:$0xff]
    %v2524 = vld [vmem:[%s4 + $0x1d0] sm:$0xff]
    %v2525 = vld [vmem:[%s4 + $0x1d8] sm:$0xff]
    %v2526 = vld [vmem:[%s4 + $0x1e0] sm:$0xff]
    %v2527 = vld [vmem:[%s4 + $0x1e8] sm:$0xff]
    %v2528 = vld [vmem:[%s4 + $0x1f0] sm:$0xff]
    %v2529 = vld [vmem:[%s4 + $0x1f8] sm:$0xff]
    %v2530 = vld [vmem:[%s5] sm:$0xf]
    %v2532 = vperm.slane %v2530, 0
    %v2533 = vperm.slane %v2530, 1
    %v2534 = vperm.slane %v2530, 2
    %v2535 = vperm.slane %v2530, 3
    %v2541 = vunpack.c.l.b16 %v2465
    %v2542 = vunpack.c.h.b16 %v2465
    %v2543 = vpack.c.b16 %v2541, %v2541
    %v2544 = vpack.c.b16 %v2542, %v2542
    %v2611 = vunpack.c.l.b16 %v2466
    %v2612 = vunpack.c.h.b16 %v2466
    %v2613 = vunpack.c.l.b16 %v2467
    %v2614 = vunpack.c.h.b16 %v2467
    %v2615 = vunpack.c.l.b16 %v2468
    %v2616 = vunpack.c.h.b16 %v2468
    %v2617 = vunpack.c.l.b16 %v2469
    %v2618 = vunpack.c.h.b16 %v2469
    %v2619 = vunpack.c.l.b16 %v2470
    %v2620 = vunpack.c.h.b16 %v2470
    %v2621 = vunpack.c.l.b16 %v2471
    %v2622 = vunpack.c.h.b16 %v2471
    %v2623 = vunpack.c.l.b16 %v2472
    %v2624 = vunpack.c.h.b16 %v2472
    %v2625 = vunpack.c.l.b16 %v2473
    %v2626 = vunpack.c.h.b16 %v2473
    %v2627 = vunpack.c.l.b16 %v2474
    %v2628 = vunpack.c.h.b16 %v2474
    %v2629 = vunpack.c.l.b16 %v2475
    %v2630 = vunpack.c.h.b16 %v2475
    %v2631 = vunpack.c.l.b16 %v2476
    %v2632 = vunpack.c.h.b16 %v2476
    %v2633 = vunpack.c.l.b16 %v2477
    %v2634 = vunpack.c.h.b16 %v2477
    %v2635 = vunpack.c.l.b16 %v2478
    %v2636 = vunpack.c.h.b16 %v2478
    %v2637 = vunpack.c.l.b16 %v2479
    %v2638 = vunpack.c.h.b16 %v2479
    %v2639 = vunpack.c.l.b16 %v2480
    %v2640 = vunpack.c.h.b16 %v2480
    %v2641 = vunpack.c.l.b16 %v2481
    %v2642 = vunpack.c.h.b16 %v2481
    %v2643 = vunpack.c.l.b16 %v2482
    %v2644 = vunpack.c.h.b16 %v2482
    %v2645 = vunpack.c.l.b16 %v2483
    %v2646 = vunpack.c.h.b16 %v2483
    %v2647 = vunpack.c.l.b16 %v2484
    %v2648 = vunpack.c.h.b16 %v2484
    %v2649 = vunpack.c.l.b16 %v2485
    %v2650 = vunpack.c.h.b16 %v2485
    %v2651 = vunpack.c.l.b16 %v2486
    %v2652 = vunpack.c.h.b16 %v2486
    %v2653 = vunpack.c.l.b16 %v2487
    %v2654 = vunpack.c.h.b16 %v2487
    %v2655 = vunpack.c.l.b16 %v2488
    %v2656 = vunpack.c.h.b16 %v2488
    %v2657 = vunpack.c.l.b16 %v2489
    %v2658 = vunpack.c.h.b16 %v2489
    %v2659 = vunpack.c.l.b16 %v2490
    %v2660 = vunpack.c.h.b16 %v2490
    %v2661 = vunpack.c.l.b16 %v2491
    %v2662 = vunpack.c.h.b16 %v2491
    %v2663 = vunpack.c.l.b16 %v2492
    %v2664 = vunpack.c.h.b16 %v2492
    %v2665 = vunpack.c.l.b16 %v2493
    %v2666 = vunpack.c.h.b16 %v2493
    %v2667 = vunpack.c.l.b16 %v2494
    %v2668 = vunpack.c.h.b16 %v2494
    %v2669 = vunpack.c.l.b16 %v2495
    %v2670 = vunpack.c.h.b16 %v2495
    %v2671 = vunpack.c.l.b16 %v2496
    %v2672 = vunpack.c.h.b16 %v2496
    %v2673 = vunpack.c.l.b16 %v2497
    %v2674 = vunpack.c.h.b16 %v2497
    %v2675 = vunpack.c.l.b16 %v2498
    %v2676 = vunpack.c.h.b16 %v2498
    %v2677 = vunpack.c.l.b16 %v2499
    %v2678 = vunpack.c.h.b16 %v2499
    %v2679 = vunpack.c.l.b16 %v2500
    %v2680 = vunpack.c.h.b16 %v2500
    %v2681 = vunpack.c.l.b16 %v2501
    %v2682 = vunpack.c.h.b16 %v2501
    %v2683 = vunpack.c.l.b16 %v2502
    %v2684 = vunpack.c.h.b16 %v2502
    %v2685 = vunpack.c.l.b16 %v2503
    %v2686 = vunpack.c.h.b16 %v2503
    %v2687 = vunpack.c.l.b16 %v2504
    %v2688 = vunpack.c.h.b16 %v2504
    %v2689 = vunpack.c.l.b16 %v2505
    %v2690 = vunpack.c.h.b16 %v2505
    %v2691 = vunpack.c.l.b16 %v2506
    %v2692 = vunpack.c.h.b16 %v2506
    %v2693 = vunpack.c.l.b16 %v2507
    %v2694 = vunpack.c.h.b16 %v2507
    %v2695 = vunpack.c.l.b16 %v2508
    %v2696 = vunpack.c.h.b16 %v2508
    %v2697 = vunpack.c.l.b16 %v2509
    %v2698 = vunpack.c.h.b16 %v2509
    %v2699 = vunpack.c.l.b16 %v2510
    %v2700 = vunpack.c.h.b16 %v2510
    %v2701 = vunpack.c.l.b16 %v2511
    %v2702 = vunpack.c.h.b16 %v2511
    %v2703 = vunpack.c.l.b16 %v2512
    %v2704 = vunpack.c.h.b16 %v2512
    %v2705 = vunpack.c.l.b16 %v2513
    %v2706 = vunpack.c.h.b16 %v2513
    %v2707 = vunpack.c.l.b16 %v2514
    %v2708 = vunpack.c.h.b16 %v2514
    %v2709 = vunpack.c.l.b16 %v2515
    %v2710 = vunpack.c.h.b16 %v2515
    %v2711 = vunpack.c.l.b16 %v2516
    %v2712 = vunpack.c.h.b16 %v2516
    %v2713 = vunpack.c.l.b16 %v2517
    %v2714 = vunpack.c.h.b16 %v2517
    %v2715 = vunpack.c.l.b16 %v2518
    %v2716 = vunpack.c.h.b16 %v2518
    %v2717 = vunpack.c.l.b16 %v2519
    %v2718 = vunpack.c.h.b16 %v2519
    %v2719 = vunpack.c.l.b16 %v2520
    %v2720 = vunpack.c.h.b16 %v2520
    %v2721 = vunpack.c.l.b16 %v2521
    %v2722 = vunpack.c.h.b16 %v2521
    %v2723 = vunpack.c.l.b16 %v2522
    %v2724 = vunpack.c.h.b16 %v2522
    %v2725 = vunpack.c.l.b16 %v2523
    %v2726 = vunpack.c.h.b16 %v2523
    %v2727 = vunpack.c.l.b16 %v2524
    %v2728 = vunpack.c.h.b16 %v2524
    %v2729 = vunpack.c.l.b16 %v2525
    %v2730 = vunpack.c.h.b16 %v2525
    %v2731 = vunpack.c.l.b16 %v2526
    %v2732 = vunpack.c.h.b16 %v2526
    %v2733 = vunpack.c.l.b16 %v2527
    %v2734 = vunpack.c.h.b16 %v2527
    %v2735 = vunpack.c.l.b16 %v2528
    %v2736 = vunpack.c.h.b16 %v2528
    %v2737 = vunpack.c.l.b16 %v2529
    %v2738 = vunpack.c.h.b16 %v2529
    %v2739 = vpack.c.b16 %v2615, %v2611
    %v2740 = vpack.c.b16 %v2616, %v2612
    %v2741 = vpack.c.b16 %v2617, %v2613
    %v2742 = vpack.c.b16 %v2618, %v2614
    %v2743 = vpack.c.b16 %v2623, %v2619
    %v2744 = vpack.c.b16 %v2624, %v2620
    %v2745 = vpack.c.b16 %v2625, %v2621
    %v2746 = vpack.c.b16 %v2626, %v2622
    %v2747 = vpack.c.b16 %v2631, %v2627
    %v2748 = vpack.c.b16 %v2632, %v2628
    %v2749 = vpack.c.b16 %v2633, %v2629
    %v2750 = vpack.c.b16 %v2634, %v2630
    %v2751 = vpack.c.b16 %v2639, %v2635
    %v2752 = vpack.c.b16 %v2640, %v2636
    %v2753 = vpack.c.b16 %v2641, %v2637
    %v2754 = vpack.c.b16 %v2642, %v2638
    %v2755 = vpack.c.b16 %v2647, %v2643
    %v2756 = vpack.c.b16 %v2648, %v2644
    %v2757 = vpack.c.b16 %v2649, %v2645
    %v2758 = vpack.c.b16 %v2650, %v2646
    %v2759 = vpack.c.b16 %v2655, %v2651
    %v2760 = vpack.c.b16 %v2656, %v2652
    %v2761 = vpack.c.b16 %v2657, %v2653
    %v2762 = vpack.c.b16 %v2658, %v2654
    %v2763 = vpack.c.b16 %v2663, %v2659
    %v2764 = vpack.c.b16 %v2664, %v2660
    %v2765 = vpack.c.b16 %v2665, %v2661
    %v2766 = vpack.c.b16 %v2666, %v2662
    %v2767 = vpack.c.b16 %v2671, %v2667
    %v2768 = vpack.c.b16 %v2672, %v2668
    %v2769 = vpack.c.b16 %v2673, %v2669
    %v2770 = vpack.c.b16 %v2674, %v2670
    %v2771 = vpack.c.b16 %v2679, %v2675
    %v2772 = vpack.c.b16 %v2680, %v2676
    %v2773 = vpack.c.b16 %v2681, %v2677
    %v2774 = vpack.c.b16 %v2682, %v2678
    %v2775 = vpack.c.b16 %v2687, %v2683
    %v2776 = vpack.c.b16 %v2688, %v2684
    %v2777 = vpack.c.b16 %v2689, %v2685
    %v2778 = vpack.c.b16 %v2690, %v2686
    %v2779 = vpack.c.b16 %v2695, %v2691
    %v2780 = vpack.c.b16 %v2696, %v2692
    %v2781 = vpack.c.b16 %v2697, %v2693
    %v2782 = vpack.c.b16 %v2698, %v2694
    %v2783 = vpack.c.b16 %v2703, %v2699
    %v2784 = vpack.c.b16 %v2704, %v2700
    %v2785 = vpack.c.b16 %v2705, %v2701
    %v2786 = vpack.c.b16 %v2706, %v2702
    %v2787 = vpack.c.b16 %v2711, %v2707
    %v2788 = vpack.c.b16 %v2712, %v2708
    %v2789 = vpack.c.b16 %v2713, %v2709
    %v2790 = vpack.c.b16 %v2714, %v2710
    %v2791 = vpack.c.b16 %v2719, %v2715
    %v2792 = vpack.c.b16 %v2720, %v2716
    %v2793 = vpack.c.b16 %v2721, %v2717
    %v2794 = vpack.c.b16 %v2722, %v2718
    %v2795 = vpack.c.b16 %v2727, %v2723
    %v2796 = vpack.c.b16 %v2728, %v2724
    %v2797 = vpack.c.b16 %v2729, %v2725
    %v2798 = vpack.c.b16 %v2730, %v2726
    %v2799 = vpack.c.b16 %v2735, %v2731
    %v2800 = vpack.c.b16 %v2736, %v2732
    %v2801 = vpack.c.b16 %v2737, %v2733
    %v2802 = vpack.c.b16 %v2738, %v2734
    %2867 = vmatpush.bf16.msra.mxu0 %v2767
    %2868 = vmatpush.bf16.msra.mxu0 %v2763
    %2869 = vmatpush.bf16.msra.mxu0 %v2759
    %2870 = vmatpush.bf16.msra.mxu0 %v2755
    %2871 = vmatpush.bf16.msra.mxu0 %v2751
    %2872 = vmatpush.bf16.msra.mxu0 %v2747
    %2873 = vmatpush.bf16.msra.mxu0 %v2743
    %2874 = vmatpush.bf16.msra.mxu0 %v2739
    %2875 = vmatmul.bf16.gmra.mxu0 %v2543
    %v2876 = vpop.f32.mrf.mxu0
    %v2877 = vadd.f32 %v2532, %v2876
    %v2878 = vpop.f32.mrf.mxu0
    %2879 = vdwg.mxu0
    %2880 = vmatpush.bf16.msra.mxu0 %v2799
    %2881 = vmatpush.bf16.msra.mxu0 %v2795
    %2882 = vmatpush.bf16.msra.mxu0 %v2791
    %2883 = vmatpush.bf16.msra.mxu0 %v2787
    %2884 = vmatpush.bf16.msra.mxu0 %v2783
    %2885 = vmatpush.bf16.msra.mxu0 %v2779
    %2886 = vmatpush.bf16.msra.mxu0 %v2775
    %2887 = vmatpush.bf16.msra.mxu0 %v2771
    %2888 = vmatmul.bf16.gmra.mxu0 %v2544
    %v2889 = vpop.f32.mrf.mxu0
    %v2890 = vadd.f32 %v2877, %v2889
    %v2891 = vpop.f32.mrf.mxu0
    %2892 = vdwg.mxu0
    %2893 = vmatpush.bf16.msra.mxu0 %v2768
    %2894 = vmatpush.bf16.msra.mxu0 %v2764
    %2895 = vmatpush.bf16.msra.mxu0 %v2760
    %2896 = vmatpush.bf16.msra.mxu0 %v2756
    %2897 = vmatpush.bf16.msra.mxu0 %v2752
    %2898 = vmatpush.bf16.msra.mxu0 %v2748
    %2899 = vmatpush.bf16.msra.mxu0 %v2744
    %2900 = vmatpush.bf16.msra.mxu0 %v2740
    %2901 = vmatmul.bf16.gmra.mxu0 %v2543
    %v2902 = vpop.f32.mrf.mxu0
    %v2903 = vadd.f32 %v2533, %v2902
    %v2904 = vpop.f32.mrf.mxu0
    %2905 = vdwg.mxu0
    %2906 = vmatpush.bf16.msra.mxu0 %v2800
    %2907 = vmatpush.bf16.msra.mxu0 %v2796
    %2908 = vmatpush.bf16.msra.mxu0 %v2792
    %2909 = vmatpush.bf16.msra.mxu0 %v2788
    %2910 = vmatpush.bf16.msra.mxu0 %v2784
    %2911 = vmatpush.bf16.msra.mxu0 %v2780
    %2912 = vmatpush.bf16.msra.mxu0 %v2776
    %2913 = vmatpush.bf16.msra.mxu0 %v2772
    %2914 = vmatmul.bf16.gmra.mxu0 %v2544
    %v2915 = vpop.f32.mrf.mxu0
    %v2916 = vadd.f32 %v2903, %v2915
    %v2917 = vpop.f32.mrf.mxu0
    %2918 = vdwg.mxu0
    %2919 = vmatpush.bf16.msra.mxu0 %v2769
    %2920 = vmatpush.bf16.msra.mxu0 %v2765
    %2921 = vmatpush.bf16.msra.mxu0 %v2761
    %2922 = vmatpush.bf16.msra.mxu0 %v2757
    %2923 = vmatpush.bf16.msra.mxu0 %v2753
    %2924 = vmatpush.bf16.msra.mxu0 %v2749
    %2925 = vmatpush.bf16.msra.mxu0 %v2745
    %2926 = vmatpush.bf16.msra.mxu0 %v2741
    %2927 = vmatmul.bf16.gmra.mxu0 %v2543
    %v2928 = vpop.f32.mrf.mxu0
    %v2929 = vadd.f32 %v2534, %v2928
    %v2930 = vpop.f32.mrf.mxu0
    %2931 = vdwg.mxu0
    %2932 = vmatpush.bf16.msra.mxu0 %v2801
    %2933 = vmatpush.bf16.msra.mxu0 %v2797
    %2934 = vmatpush.bf16.msra.mxu0 %v2793
    %2935 = vmatpush.bf16.msra.mxu0 %v2789
    %2936 = vmatpush.bf16.msra.mxu0 %v2785
    %2937 = vmatpush.bf16.msra.mxu0 %v2781
    %2938 = vmatpush.bf16.msra.mxu0 %v2777
    %2939 = vmatpush.bf16.msra.mxu0 %v2773
    %2940 = vmatmul.bf16.gmra.mxu0 %v2544
    %v2941 = vpop.f32.mrf.mxu0
    %v2942 = vadd.f32 %v2929, %v2941
    %v2943 = vpop.f32.mrf.mxu0
    %2944 = vdwg.mxu0
    %2945 = vmatpush.bf16.msra.mxu0 %v2770
    %2946 = vmatpush.bf16.msra.mxu0 %v2766
    %2947 = vmatpush.bf16.msra.mxu0 %v2762
    %2948 = vmatpush.bf16.msra.mxu0 %v2758
    %2949 = vmatpush.bf16.msra.mxu0 %v2754
    %2950 = vmatpush.bf16.msra.mxu0 %v2750
    %2951 = vmatpush.bf16.msra.mxu0 %v2746
    %2952 = vmatpush.bf16.msra.mxu0 %v2742
    %2953 = vmatmul.bf16.gmra.mxu0 %v2543
    %v2954 = vpop.f32.mrf.mxu0
    %v2955 = vadd.f32 %v2535, %v2954
    %v2956 = vpop.f32.mrf.mxu0
    %2957 = vdwg.mxu0
    %2958 = vmatpush.bf16.msra.mxu0 %v2802
    %2959 = vmatpush.bf16.msra.mxu0 %v2798
    %2960 = vmatpush.bf16.msra.mxu0 %v2794
    %2961 = vmatpush.bf16.msra.mxu0 %v2790
    %2962 = vmatpush.bf16.msra.mxu0 %v2786
    %2963 = vmatpush.bf16.msra.mxu0 %v2782
    %2964 = vmatpush.bf16.msra.mxu0 %v2778
    %2965 = vmatpush.bf16.msra.mxu0 %v2774
    %2966 = vmatmul.bf16.gmra.mxu0 %v2544
    %v2967 = vpop.f32.mrf.mxu0
    %v2968 = vadd.f32 %v2955, %v2967
    %v2969 = vpop.f32.mrf.mxu0
    %2970 = vdwg.mxu0
    %v2971 = vxor.u32 %v2890, 2147483648
    %v2972 = vmul.f32 %v2971, 1.442695
    %v2973 = vpow.pop %v2972
    %v2974 = vadd.f32 %v2973, 1.0
    %v2975 = vrcp.pop %v2974
    %v2976 = vmul.f32 %v2974, %v2975
    %v2977 = vsub.f32 1.0, %v2976
    %v2978 = vmul.f32 %v2975, %v2977
    %v2979 = vadd.f32 %v2975, %v2978
    %vm2980 = vweird.f32 %v2974
    %vm2981 = vweird.f32 %v2975
    %vm2982 = vmor %vm2980, %vm2981
    %v2983 = vsel %vm2982, %v2975, %v2979
    %v2984 = vand.u32 2147483647, %v2974
    %vm2985 = vcmp.eq.f32.partialorder %v2984, 8.507059e+37
    %v2986 = vand.u32 %v2974, 2147483648
    %v2987 = vor.u32 1.1754944e-38, %v2986
    %v2988 = vsel %vm2985, %v2987, %v2983
    %v2989 = vmul.f32 1.0, %v2988
    %v2990 = vxor.u32 %v2916, 2147483648
    %v2991 = vmul.f32 %v2990, 1.442695
    %v2992 = vpow.pop %v2991
    %v2993 = vadd.f32 %v2992, 1.0
    %v2994 = vrcp.pop %v2993
    %v2995 = vmul.f32 %v2993, %v2994
    %v2996 = vsub.f32 1.0, %v2995
    %v2997 = vmul.f32 %v2994, %v2996
    %v2998 = vadd.f32 %v2994, %v2997
    %vm2999 = vweird.f32 %v2993
    %vm3000 = vweird.f32 %v2994
    %vm3001 = vmor %vm2999, %vm3000
    %v3002 = vsel %vm3001, %v2994, %v2998
    %v3003 = vand.u32 2147483647, %v2993
    %vm3004 = vcmp.eq.f32.partialorder %v3003, 8.507059e+37
    %v3005 = vand.u32 %v2993, 2147483648
    %v3006 = vor.u32 1.1754944e-38, %v3005
    %v3007 = vsel %vm3004, %v3006, %v3002
    %v3008 = vmul.f32 1.0, %v3007
    %v3009 = vtanh.pop %v2942
    %v3010 = vxor.u32 %v2968, 2147483648
    %v3011 = vmul.f32 %v3010, 1.442695
    %v3012 = vpow.pop %v3011
    %v3013 = vadd.f32 %v3012, 1.0
    %v3014 = vrcp.pop %v3013
    %v3015 = vmul.f32 %v3013, %v3014
    %v3016 = vsub.f32 1.0, %v3015
    %v3017 = vmul.f32 %v3014, %v3016
    %v3018 = vadd.f32 %v3014, %v3017
    %vm3019 = vweird.f32 %v3013
    %vm3020 = vweird.f32 %v3014
    %vm3021 = vmor %vm3019, %vm3020
    %v3022 = vsel %vm3021, %v3014, %v3018
    %v3023 = vand.u32 2147483647, %v3013
    %vm3024 = vcmp.eq.f32.partialorder %v3023, 8.507059e+37
    %v3025 = vand.u32 %v3013, 2147483648
    %v3026 = vor.u32 1.1754944e-38, %v3025
    %v3027 = vsel %vm3024, %v3026, %v3022
    %v3028 = vmul.f32 1.0, %v3027
    %v3029 = vmul.f32 %v3008, %v1885
    %v3030 = vmul.f32 %v2989, %v3009
    %v3031 = vadd.f32 %v3029, %v3030
    %v3032 = vtanh.pop %v3031
    %v3033 = vmul.f32 %v3028, %v3032
    %v3034 = vpack.c.bf16 %v3033, %v3033
    %3035 = vst [vmem:[#allocation3] sm:$0xf] %v3034
    %v3036 = vpack.c.bf16 %v2460, %v2460
    %3037 = vst [vmem:[#allocation3 + $0x4] sm:$0xf] %v3036
    %v3038 = vld [vmem:[#allocation3] sm:$0xff]
    %v3039 = vld [vmem:[#allocation4] sm:$0xff]
    %v3040 = vld [vmem:[#allocation4 + $0x8] sm:$0xff]
    %v3041 = vld [vmem:[#allocation4 + $0x10] sm:$0xff]
    %v3042 = vld [vmem:[#allocation4 + $0x18] sm:$0xff]
    %v3043 = vld [vmem:[#allocation4 + $0x20] sm:$0xff]
    %v3044 = vld [vmem:[#allocation4 + $0x28] sm:$0xff]
    %v3045 = vld [vmem:[#allocation4 + $0x30] sm:$0xff]
    %v3046 = vld [vmem:[#allocation4 + $0x38] sm:$0xff]
    %v3047 = vld [vmem:[#allocation4 + $0x40] sm:$0xff]
    %v3048 = vld [vmem:[#allocation4 + $0x48] sm:$0xff]
    %v3049 = vld [vmem:[#allocation4 + $0x50] sm:$0xff]
    %v3050 = vld [vmem:[#allocation4 + $0x58] sm:$0xff]
    %v3051 = vld [vmem:[#allocation4 + $0x60] sm:$0xff]
    %v3052 = vld [vmem:[#allocation4 + $0x68] sm:$0xff]
    %v3053 = vld [vmem:[#allocation4 + $0x70] sm:$0xff]
    %v3054 = vld [vmem:[#allocation4 + $0x78] sm:$0xff]
    %v3055 = vld [vmem:[#allocation4 + $0x80] sm:$0xff]
    %v3056 = vld [vmem:[#allocation4 + $0x88] sm:$0xff]
    %v3057 = vld [vmem:[#allocation4 + $0x90] sm:$0xff]
    %v3058 = vld [vmem:[#allocation4 + $0x98] sm:$0xff]
    %v3059 = vld [vmem:[#allocation4 + $0xa0] sm:$0xff]
    %v3060 = vld [vmem:[#allocation4 + $0xa8] sm:$0xff]
    %v3061 = vld [vmem:[#allocation4 + $0xb0] sm:$0xff]
    %v3062 = vld [vmem:[#allocation4 + $0xb8] sm:$0xff]
    %v3063 = vld [vmem:[#allocation4 + $0xc0] sm:$0xff]
    %v3064 = vld [vmem:[#allocation4 + $0xc8] sm:$0xff]
    %v3065 = vld [vmem:[#allocation4 + $0xd0] sm:$0xff]
    %v3066 = vld [vmem:[#allocation4 + $0xd8] sm:$0xff]
    %v3067 = vld [vmem:[#allocation4 + $0xe0] sm:$0xff]
    %v3068 = vld [vmem:[#allocation4 + $0xe8] sm:$0xff]
    %v3069 = vld [vmem:[#allocation4 + $0xf0] sm:$0xff]
    %v3070 = vld [vmem:[#allocation4 + $0xf8] sm:$0xff]
    %v3071 = vld [vmem:[#allocation4 + $0x100] sm:$0xff]
    %v3072 = vld [vmem:[#allocation4 + $0x108] sm:$0xff]
    %v3073 = vld [vmem:[#allocation4 + $0x110] sm:$0xff]
    %v3074 = vld [vmem:[#allocation4 + $0x118] sm:$0xff]
    %v3075 = vld [vmem:[#allocation4 + $0x120] sm:$0xff]
    %v3076 = vld [vmem:[#allocation4 + $0x128] sm:$0xff]
    %v3077 = vld [vmem:[#allocation4 + $0x130] sm:$0xff]
    %v3078 = vld [vmem:[#allocation4 + $0x138] sm:$0xff]
    %v3079 = vld [vmem:[#allocation4 + $0x140] sm:$0xff]
    %v3080 = vld [vmem:[#allocation4 + $0x148] sm:$0xff]
    %v3081 = vld [vmem:[#allocation4 + $0x150] sm:$0xff]
    %v3082 = vld [vmem:[#allocation4 + $0x158] sm:$0xff]
    %v3083 = vld [vmem:[#allocation4 + $0x160] sm:$0xff]
    %v3084 = vld [vmem:[#allocation4 + $0x168] sm:$0xff]
    %v3085 = vld [vmem:[#allocation4 + $0x170] sm:$0xff]
    %v3086 = vld [vmem:[#allocation4 + $0x178] sm:$0xff]
    %v3087 = vld [vmem:[#allocation4 + $0x180] sm:$0xff]
    %v3088 = vld [vmem:[#allocation4 + $0x188] sm:$0xff]
    %v3089 = vld [vmem:[#allocation4 + $0x190] sm:$0xff]
    %v3090 = vld [vmem:[#allocation4 + $0x198] sm:$0xff]
    %v3091 = vld [vmem:[#allocation4 + $0x1a0] sm:$0xff]
    %v3092 = vld [vmem:[#allocation4 + $0x1a8] sm:$0xff]
    %v3093 = vld [vmem:[#allocation4 + $0x1b0] sm:$0xff]
    %v3094 = vld [vmem:[#allocation4 + $0x1b8] sm:$0xff]
    %v3095 = vld [vmem:[#allocation4 + $0x1c0] sm:$0xff]
    %v3096 = vld [vmem:[#allocation4 + $0x1c8] sm:$0xff]
    %v3097 = vld [vmem:[#allocation4 + $0x1d0] sm:$0xff]
    %v3098 = vld [vmem:[#allocation4 + $0x1d8] sm:$0xff]
    %v3099 = vld [vmem:[#allocation4 + $0x1e0] sm:$0xff]
    %v3100 = vld [vmem:[#allocation4 + $0x1e8] sm:$0xff]
    %v3101 = vld [vmem:[#allocation4 + $0x1f0] sm:$0xff]
    %v3102 = vld [vmem:[#allocation4 + $0x1f8] sm:$0xff]
    %v3103 = vld [vmem:[%s7] sm:$0xf]
    %v3105 = vperm.slane %v3103, 0
    %v3106 = vperm.slane %v3103, 1
    %v3107 = vperm.slane %v3103, 2
    %v3108 = vperm.slane %v3103, 3
    %v3114 = vunpack.c.l.b16 %v3038
    %v3115 = vunpack.c.h.b16 %v3038
    %v3116 = vpack.c.b16 %v3114, %v3114
    %v3117 = vpack.c.b16 %v3115, %v3115
    %v3184 = vunpack.c.l.b16 %v3039
    %v3185 = vunpack.c.h.b16 %v3039
    %v3186 = vunpack.c.l.b16 %v3040
    %v3187 = vunpack.c.h.b16 %v3040
    %v3188 = vunpack.c.l.b16 %v3041
    %v3189 = vunpack.c.h.b16 %v3041
    %v3190 = vunpack.c.l.b16 %v3042
    %v3191 = vunpack.c.h.b16 %v3042
    %v3192 = vunpack.c.l.b16 %v3043
    %v3193 = vunpack.c.h.b16 %v3043
    %v3194 = vunpack.c.l.b16 %v3044
    %v3195 = vunpack.c.h.b16 %v3044
    %v3196 = vunpack.c.l.b16 %v3045
    %v3197 = vunpack.c.h.b16 %v3045
    %v3198 = vunpack.c.l.b16 %v3046
    %v3199 = vunpack.c.h.b16 %v3046
    %v3200 = vunpack.c.l.b16 %v3047
    %v3201 = vunpack.c.h.b16 %v3047
    %v3202 = vunpack.c.l.b16 %v3048
    %v3203 = vunpack.c.h.b16 %v3048
    %v3204 = vunpack.c.l.b16 %v3049
    %v3205 = vunpack.c.h.b16 %v3049
    %v3206 = vunpack.c.l.b16 %v3050
    %v3207 = vunpack.c.h.b16 %v3050
    %v3208 = vunpack.c.l.b16 %v3051
    %v3209 = vunpack.c.h.b16 %v3051
    %v3210 = vunpack.c.l.b16 %v3052
    %v3211 = vunpack.c.h.b16 %v3052
    %v3212 = vunpack.c.l.b16 %v3053
    %v3213 = vunpack.c.h.b16 %v3053
    %v3214 = vunpack.c.l.b16 %v3054
    %v3215 = vunpack.c.h.b16 %v3054
    %v3216 = vunpack.c.l.b16 %v3055
    %v3217 = vunpack.c.h.b16 %v3055
    %v3218 = vunpack.c.l.b16 %v3056
    %v3219 = vunpack.c.h.b16 %v3056
    %v3220 = vunpack.c.l.b16 %v3057
    %v3221 = vunpack.c.h.b16 %v3057
    %v3222 = vunpack.c.l.b16 %v3058
    %v3223 = vunpack.c.h.b16 %v3058
    %v3224 = vunpack.c.l.b16 %v3059
    %v3225 = vunpack.c.h.b16 %v3059
    %v3226 = vunpack.c.l.b16 %v3060
    %v3227 = vunpack.c.h.b16 %v3060
    %v3228 = vunpack.c.l.b16 %v3061
    %v3229 = vunpack.c.h.b16 %v3061
    %v3230 = vunpack.c.l.b16 %v3062
    %v3231 = vunpack.c.h.b16 %v3062
    %v3232 = vunpack.c.l.b16 %v3063
    %v3233 = vunpack.c.h.b16 %v3063
    %v3234 = vunpack.c.l.b16 %v3064
    %v3235 = vunpack.c.h.b16 %v3064
    %v3236 = vunpack.c.l.b16 %v3065
    %v3237 = vunpack.c.h.b16 %v3065
    %v3238 = vunpack.c.l.b16 %v3066
    %v3239 = vunpack.c.h.b16 %v3066
    %v3240 = vunpack.c.l.b16 %v3067
    %v3241 = vunpack.c.h.b16 %v3067
    %v3242 = vunpack.c.l.b16 %v3068
    %v3243 = vunpack.c.h.b16 %v3068
    %v3244 = vunpack.c.l.b16 %v3069
    %v3245 = vunpack.c.h.b16 %v3069
    %v3246 = vunpack.c.l.b16 %v3070
    %v3247 = vunpack.c.h.b16 %v3070
    %v3248 = vunpack.c.l.b16 %v3071
    %v3249 = vunpack.c.h.b16 %v3071
    %v3250 = vunpack.c.l.b16 %v3072
    %v3251 = vunpack.c.h.b16 %v3072
    %v3252 = vunpack.c.l.b16 %v3073
    %v3253 = vunpack.c.h.b16 %v3073
    %v3254 = vunpack.c.l.b16 %v3074
    %v3255 = vunpack.c.h.b16 %v3074
    %v3256 = vunpack.c.l.b16 %v3075
    %v3257 = vunpack.c.h.b16 %v3075
    %v3258 = vunpack.c.l.b16 %v3076
    %v3259 = vunpack.c.h.b16 %v3076
    %v3260 = vunpack.c.l.b16 %v3077
    %v3261 = vunpack.c.h.b16 %v3077
    %v3262 = vunpack.c.l.b16 %v3078
    %v3263 = vunpack.c.h.b16 %v3078
    %v3264 = vunpack.c.l.b16 %v3079
    %v3265 = vunpack.c.h.b16 %v3079
    %v3266 = vunpack.c.l.b16 %v3080
    %v3267 = vunpack.c.h.b16 %v3080
    %v3268 = vunpack.c.l.b16 %v3081
    %v3269 = vunpack.c.h.b16 %v3081
    %v3270 = vunpack.c.l.b16 %v3082
    %v3271 = vunpack.c.h.b16 %v3082
    %v3272 = vunpack.c.l.b16 %v3083
    %v3273 = vunpack.c.h.b16 %v3083
    %v3274 = vunpack.c.l.b16 %v3084
    %v3275 = vunpack.c.h.b16 %v3084
    %v3276 = vunpack.c.l.b16 %v3085
    %v3277 = vunpack.c.h.b16 %v3085
    %v3278 = vunpack.c.l.b16 %v3086
    %v3279 = vunpack.c.h.b16 %v3086
    %v3280 = vunpack.c.l.b16 %v3087
    %v3281 = vunpack.c.h.b16 %v3087
    %v3282 = vunpack.c.l.b16 %v3088
    %v3283 = vunpack.c.h.b16 %v3088
    %v3284 = vunpack.c.l.b16 %v3089
    %v3285 = vunpack.c.h.b16 %v3089
    %v3286 = vunpack.c.l.b16 %v3090
    %v3287 = vunpack.c.h.b16 %v3090
    %v3288 = vunpack.c.l.b16 %v3091
    %v3289 = vunpack.c.h.b16 %v3091
    %v3290 = vunpack.c.l.b16 %v3092
    %v3291 = vunpack.c.h.b16 %v3092
    %v3292 = vunpack.c.l.b16 %v3093
    %v3293 = vunpack.c.h.b16 %v3093
    %v3294 = vunpack.c.l.b16 %v3094
    %v3295 = vunpack.c.h.b16 %v3094
    %v3296 = vunpack.c.l.b16 %v3095
    %v3297 = vunpack.c.h.b16 %v3095
    %v3298 = vunpack.c.l.b16 %v3096
    %v3299 = vunpack.c.h.b16 %v3096
    %v3300 = vunpack.c.l.b16 %v3097
    %v3301 = vunpack.c.h.b16 %v3097
    %v3302 = vunpack.c.l.b16 %v3098
    %v3303 = vunpack.c.h.b16 %v3098
    %v3304 = vunpack.c.l.b16 %v3099
    %v3305 = vunpack.c.h.b16 %v3099
    %v3306 = vunpack.c.l.b16 %v3100
    %v3307 = vunpack.c.h.b16 %v3100
    %v3308 = vunpack.c.l.b16 %v3101
    %v3309 = vunpack.c.h.b16 %v3101
    %v3310 = vunpack.c.l.b16 %v3102
    %v3311 = vunpack.c.h.b16 %v3102
    %v3312 = vpack.c.b16 %v3188, %v3184
    %v3313 = vpack.c.b16 %v3189, %v3185
    %v3314 = vpack.c.b16 %v3190, %v3186
    %v3315 = vpack.c.b16 %v3191, %v3187
    %v3316 = vpack.c.b16 %v3196, %v3192
    %v3317 = vpack.c.b16 %v3197, %v3193
    %v3318 = vpack.c.b16 %v3198, %v3194
    %v3319 = vpack.c.b16 %v3199, %v3195
    %v3320 = vpack.c.b16 %v3204, %v3200
    %v3321 = vpack.c.b16 %v3205, %v3201
    %v3322 = vpack.c.b16 %v3206, %v3202
    %v3323 = vpack.c.b16 %v3207, %v3203
    %v3324 = vpack.c.b16 %v3212, %v3208
    %v3325 = vpack.c.b16 %v3213, %v3209
    %v3326 = vpack.c.b16 %v3214, %v3210
    %v3327 = vpack.c.b16 %v3215, %v3211
    %v3328 = vpack.c.b16 %v3220, %v3216
    %v3329 = vpack.c.b16 %v3221, %v3217
    %v3330 = vpack.c.b16 %v3222, %v3218
    %v3331 = vpack.c.b16 %v3223, %v3219
    %v3332 = vpack.c.b16 %v3228, %v3224
    %v3333 = vpack.c.b16 %v3229, %v3225
    %v3334 = vpack.c.b16 %v3230, %v3226
    %v3335 = vpack.c.b16 %v3231, %v3227
    %v3336 = vpack.c.b16 %v3236, %v3232
    %v3337 = vpack.c.b16 %v3237, %v3233
    %v3338 = vpack.c.b16 %v3238, %v3234
    %v3339 = vpack.c.b16 %v3239, %v3235
    %v3340 = vpack.c.b16 %v3244, %v3240
    %v3341 = vpack.c.b16 %v3245, %v3241
    %v3342 = vpack.c.b16 %v3246, %v3242
    %v3343 = vpack.c.b16 %v3247, %v3243
    %v3344 = vpack.c.b16 %v3252, %v3248
    %v3345 = vpack.c.b16 %v3253, %v3249
    %v3346 = vpack.c.b16 %v3254, %v3250
    %v3347 = vpack.c.b16 %v3255, %v3251
    %v3348 = vpack.c.b16 %v3260, %v3256
    %v3349 = vpack.c.b16 %v3261, %v3257
    %v3350 = vpack.c.b16 %v3262, %v3258
    %v3351 = vpack.c.b16 %v3263, %v3259
    %v3352 = vpack.c.b16 %v3268, %v3264
    %v3353 = vpack.c.b16 %v3269, %v3265
    %v3354 = vpack.c.b16 %v3270, %v3266
    %v3355 = vpack.c.b16 %v3271, %v3267
    %v3356 = vpack.c.b16 %v3276, %v3272
    %v3357 = vpack.c.b16 %v3277, %v3273
    %v3358 = vpack.c.b16 %v3278, %v3274
    %v3359 = vpack.c.b16 %v3279, %v3275
    %v3360 = vpack.c.b16 %v3284, %v3280
    %v3361 = vpack.c.b16 %v3285, %v3281
    %v3362 = vpack.c.b16 %v3286, %v3282
    %v3363 = vpack.c.b16 %v3287, %v3283
    %v3364 = vpack.c.b16 %v3292, %v3288
    %v3365 = vpack.c.b16 %v3293, %v3289
    %v3366 = vpack.c.b16 %v3294, %v3290
    %v3367 = vpack.c.b16 %v3295, %v3291
    %v3368 = vpack.c.b16 %v3300, %v3296
    %v3369 = vpack.c.b16 %v3301, %v3297
    %v3370 = vpack.c.b16 %v3302, %v3298
    %v3371 = vpack.c.b16 %v3303, %v3299
    %v3372 = vpack.c.b16 %v3308, %v3304
    %v3373 = vpack.c.b16 %v3309, %v3305
    %v3374 = vpack.c.b16 %v3310, %v3306
    %v3375 = vpack.c.b16 %v3311, %v3307
    %3440 = vmatpush.bf16.msra.mxu0 %v3340
    %3441 = vmatpush.bf16.msra.mxu0 %v3336
    %3442 = vmatpush.bf16.msra.mxu0 %v3332
    %3443 = vmatpush.bf16.msra.mxu0 %v3328
    %3444 = vmatpush.bf16.msra.mxu0 %v3324
    %3445 = vmatpush.bf16.msra.mxu0 %v3320
    %3446 = vmatpush.bf16.msra.mxu0 %v3316
    %3447 = vmatpush.bf16.msra.mxu0 %v3312
    %3448 = vmatmul.bf16.gmra.mxu0 %v3116
    %v3449 = vpop.f32.mrf.mxu0
    %v3450 = vadd.f32 %v3105, %v3449
    %v3451 = vpop.f32.mrf.mxu0
    %3452 = vdwg.mxu0
    %3453 = vmatpush.bf16.msra.mxu0 %v3372
    %3454 = vmatpush.bf16.msra.mxu0 %v3368
    %3455 = vmatpush.bf16.msra.mxu0 %v3364
    %3456 = vmatpush.bf16.msra.mxu0 %v3360
    %3457 = vmatpush.bf16.msra.mxu0 %v3356
    %3458 = vmatpush.bf16.msra.mxu0 %v3352
    %3459 = vmatpush.bf16.msra.mxu0 %v3348
    %3460 = vmatpush.bf16.msra.mxu0 %v3344
    %3461 = vmatmul.bf16.gmra.mxu0 %v3117
    %v3462 = vpop.f32.mrf.mxu0
    %v3463 = vadd.f32 %v3450, %v3462
    %v3464 = vpop.f32.mrf.mxu0
    %3465 = vdwg.mxu0
    %3466 = vmatpush.bf16.msra.mxu0 %v3341
    %3467 = vmatpush.bf16.msra.mxu0 %v3337
    %3468 = vmatpush.bf16.msra.mxu0 %v3333
    %3469 = vmatpush.bf16.msra.mxu0 %v3329
    %3470 = vmatpush.bf16.msra.mxu0 %v3325
    %3471 = vmatpush.bf16.msra.mxu0 %v3321
    %3472 = vmatpush.bf16.msra.mxu0 %v3317
    %3473 = vmatpush.bf16.msra.mxu0 %v3313
    %3474 = vmatmul.bf16.gmra.mxu0 %v3116
    %v3475 = vpop.f32.mrf.mxu0
    %v3476 = vadd.f32 %v3106, %v3475
    %v3477 = vpop.f32.mrf.mxu0
    %3478 = vdwg.mxu0
    %3479 = vmatpush.bf16.msra.mxu0 %v3373
    %3480 = vmatpush.bf16.msra.mxu0 %v3369
    %3481 = vmatpush.bf16.msra.mxu0 %v3365
    %3482 = vmatpush.bf16.msra.mxu0 %v3361
    %3483 = vmatpush.bf16.msra.mxu0 %v3357
    %3484 = vmatpush.bf16.msra.mxu0 %v3353
    %3485 = vmatpush.bf16.msra.mxu0 %v3349
    %3486 = vmatpush.bf16.msra.mxu0 %v3345
    %3487 = vmatmul.bf16.gmra.mxu0 %v3117
    %v3488 = vpop.f32.mrf.mxu0
    %v3489 = vadd.f32 %v3476, %v3488
    %v3490 = vpop.f32.mrf.mxu0
    %3491 = vdwg.mxu0
    %3492 = vmatpush.bf16.msra.mxu0 %v3342
    %3493 = vmatpush.bf16.msra.mxu0 %v3338
    %3494 = vmatpush.bf16.msra.mxu0 %v3334
    %3495 = vmatpush.bf16.msra.mxu0 %v3330
    %3496 = vmatpush.bf16.msra.mxu0 %v3326
    %3497 = vmatpush.bf16.msra.mxu0 %v3322
    %3498 = vmatpush.bf16.msra.mxu0 %v3318
    %3499 = vmatpush.bf16.msra.mxu0 %v3314
    %3500 = vmatmul.bf16.gmra.mxu0 %v3116
    %v3501 = vpop.f32.mrf.mxu0
    %v3502 = vadd.f32 %v3107, %v3501
    %v3503 = vpop.f32.mrf.mxu0
    %3504 = vdwg.mxu0
    %3505 = vmatpush.bf16.msra.mxu0 %v3374
    %3506 = vmatpush.bf16.msra.mxu0 %v3370
    %3507 = vmatpush.bf16.msra.mxu0 %v3366
    %3508 = vmatpush.bf16.msra.mxu0 %v3362
    %3509 = vmatpush.bf16.msra.mxu0 %v3358
    %3510 = vmatpush.bf16.msra.mxu0 %v3354
    %3511 = vmatpush.bf16.msra.mxu0 %v3350
    %3512 = vmatpush.bf16.msra.mxu0 %v3346
    %3513 = vmatmul.bf16.gmra.mxu0 %v3117
    %v3514 = vpop.f32.mrf.mxu0
    %v3515 = vadd.f32 %v3502, %v3514
    %v3516 = vpop.f32.mrf.mxu0
    %3517 = vdwg.mxu0
    %3518 = vmatpush.bf16.msra.mxu0 %v3343
    %3519 = vmatpush.bf16.msra.mxu0 %v3339
    %3520 = vmatpush.bf16.msra.mxu0 %v3335
    %3521 = vmatpush.bf16.msra.mxu0 %v3331
    %3522 = vmatpush.bf16.msra.mxu0 %v3327
    %3523 = vmatpush.bf16.msra.mxu0 %v3323
    %3524 = vmatpush.bf16.msra.mxu0 %v3319
    %3525 = vmatpush.bf16.msra.mxu0 %v3315
    %3526 = vmatmul.bf16.gmra.mxu0 %v3116
    %v3527 = vpop.f32.mrf.mxu0
    %v3528 = vadd.f32 %v3108, %v3527
    %v3529 = vpop.f32.mrf.mxu0
    %3530 = vdwg.mxu0
    %3531 = vmatpush.bf16.msra.mxu0 %v3375
    %3532 = vmatpush.bf16.msra.mxu0 %v3371
    %3533 = vmatpush.bf16.msra.mxu0 %v3367
    %3534 = vmatpush.bf16.msra.mxu0 %v3363
    %3535 = vmatpush.bf16.msra.mxu0 %v3359
    %3536 = vmatpush.bf16.msra.mxu0 %v3355
    %3537 = vmatpush.bf16.msra.mxu0 %v3351
    %3538 = vmatpush.bf16.msra.mxu0 %v3347
    %3539 = vmatmul.bf16.gmra.mxu0 %v3117
    %v3540 = vpop.f32.mrf.mxu0
    %v3541 = vadd.f32 %v3528, %v3540
    %v3542 = vpop.f32.mrf.mxu0
    %3543 = vdwg.mxu0
    %v3544 = vxor.u32 %v3463, 2147483648
    %v3545 = vmul.f32 %v3544, 1.442695
    %v3546 = vpow.pop %v3545
    %v3547 = vadd.f32 %v3546, 1.0
    %v3548 = vrcp.pop %v3547
    %v3549 = vmul.f32 %v3547, %v3548
    %v3550 = vsub.f32 1.0, %v3549
    %v3551 = vmul.f32 %v3548, %v3550
    %v3552 = vadd.f32 %v3548, %v3551
    %vm3553 = vweird.f32 %v3547
    %vm3554 = vweird.f32 %v3548
    %vm3555 = vmor %vm3553, %vm3554
    %v3556 = vsel %vm3555, %v3548, %v3552
    %v3557 = vand.u32 2147483647, %v3547
    %vm3558 = vcmp.eq.f32.partialorder %v3557, 8.507059e+37
    %v3559 = vand.u32 %v3547, 2147483648
    %v3560 = vor.u32 1.1754944e-38, %v3559
    %v3561 = vsel %vm3558, %v3560, %v3556
    %v3562 = vmul.f32 1.0, %v3561
    %v3563 = vxor.u32 %v3489, 2147483648
    %v3564 = vmul.f32 %v3563, 1.442695
    %v3565 = vpow.pop %v3564
    %v3566 = vadd.f32 %v3565, 1.0
    %v3567 = vrcp.pop %v3566
    %v3568 = vmul.f32 %v3566, %v3567
    %v3569 = vsub.f32 1.0, %v3568
    %v3570 = vmul.f32 %v3567, %v3569
    %v3571 = vadd.f32 %v3567, %v3570
    %vm3572 = vweird.f32 %v3566
    %vm3573 = vweird.f32 %v3567
    %vm3574 = vmor %vm3572, %vm3573
    %v3575 = vsel %vm3574, %v3567, %v3571
    %v3576 = vand.u32 2147483647, %v3566
    %vm3577 = vcmp.eq.f32.partialorder %v3576, 8.507059e+37
    %v3578 = vand.u32 %v3566, 2147483648
    %v3579 = vor.u32 1.1754944e-38, %v3578
    %v3580 = vsel %vm3577, %v3579, %v3575
    %v3581 = vmul.f32 1.0, %v3580
    %v3582 = vtanh.pop %v3515
    %v3583 = vxor.u32 %v3541, 2147483648
    %v3584 = vmul.f32 %v3583, 1.442695
    %v3585 = vpow.pop %v3584
    %v3586 = vadd.f32 %v3585, 1.0
    %v3587 = vrcp.pop %v3586
    %v3588 = vmul.f32 %v3586, %v3587
    %v3589 = vsub.f32 1.0, %v3588
    %v3590 = vmul.f32 %v3587, %v3589
    %v3591 = vadd.f32 %v3587, %v3590
    %vm3592 = vweird.f32 %v3586
    %vm3593 = vweird.f32 %v3587
    %vm3594 = vmor %vm3592, %vm3593
    %v3595 = vsel %vm3594, %v3587, %v3591
    %v3596 = vand.u32 2147483647, %v3586
    %vm3597 = vcmp.eq.f32.partialorder %v3596, 8.507059e+37
    %v3598 = vand.u32 %v3586, 2147483648
    %v3599 = vor.u32 1.1754944e-38, %v3598
    %v3600 = vsel %vm3597, %v3599, %v3595
    %v3601 = vmul.f32 1.0, %v3600
    %v3602 = vmul.f32 %v3581, %v2458
    %v3603 = vmul.f32 %v3562, %v3582
    %v3604 = vadd.f32 %v3602, %v3603
    %v3605 = vtanh.pop %v3604
    %v3606 = vmul.f32 %v3601, %v3605
    %s3607 = scalar_lea.vmem %s3, 12
    %v3608 = vld [vmem:[%s3607] sm:$0xf]
    %3609 = vst [vmem:[#allocation2] sm:$0xf] %v3608
    %3610 = vst [vmem:[#allocation2 + $0x4] sm:$0xf] %v3034
    %v3611 = vld [vmem:[#allocation2] sm:$0xff]
    %v3612 = vld [vmem:[%s4] sm:$0xff]
    %v3613 = vld [vmem:[%s4 + $0x8] sm:$0xff]
    %v3614 = vld [vmem:[%s4 + $0x10] sm:$0xff]
    %v3615 = vld [vmem:[%s4 + $0x18] sm:$0xff]
    %v3616 = vld [vmem:[%s4 + $0x20] sm:$0xff]
    %v3617 = vld [vmem:[%s4 + $0x28] sm:$0xff]
    %v3618 = vld [vmem:[%s4 + $0x30] sm:$0xff]
    %v3619 = vld [vmem:[%s4 + $0x38] sm:$0xff]
    %v3620 = vld [vmem:[%s4 + $0x40] sm:$0xff]
    %v3621 = vld [vmem:[%s4 + $0x48] sm:$0xff]
    %v3622 = vld [vmem:[%s4 + $0x50] sm:$0xff]
    %v3623 = vld [vmem:[%s4 + $0x58] sm:$0xff]
    %v3624 = vld [vmem:[%s4 + $0x60] sm:$0xff]
    %v3625 = vld [vmem:[%s4 + $0x68] sm:$0xff]
    %v3626 = vld [vmem:[%s4 + $0x70] sm:$0xff]
    %v3627 = vld [vmem:[%s4 + $0x78] sm:$0xff]
    %v3628 = vld [vmem:[%s4 + $0x80] sm:$0xff]
    %v3629 = vld [vmem:[%s4 + $0x88] sm:$0xff]
    %v3630 = vld [vmem:[%s4 + $0x90] sm:$0xff]
    %v3631 = vld [vmem:[%s4 + $0x98] sm:$0xff]
    %v3632 = vld [vmem:[%s4 + $0xa0] sm:$0xff]
    %v3633 = vld [vmem:[%s4 + $0xa8] sm:$0xff]
    %v3634 = vld [vmem:[%s4 + $0xb0] sm:$0xff]
    %v3635 = vld [vmem:[%s4 + $0xb8] sm:$0xff]
    %v3636 = vld [vmem:[%s4 + $0xc0] sm:$0xff]
    %v3637 = vld [vmem:[%s4 + $0xc8] sm:$0xff]
    %v3638 = vld [vmem:[%s4 + $0xd0] sm:$0xff]
    %v3639 = vld [vmem:[%s4 + $0xd8] sm:$0xff]
    %v3640 = vld [vmem:[%s4 + $0xe0] sm:$0xff]
    %v3641 = vld [vmem:[%s4 + $0xe8] sm:$0xff]
    %v3642 = vld [vmem:[%s4 + $0xf0] sm:$0xff]
    %v3643 = vld [vmem:[%s4 + $0xf8] sm:$0xff]
    %v3644 = vld [vmem:[%s4 + $0x100] sm:$0xff]
    %v3645 = vld [vmem:[%s4 + $0x108] sm:$0xff]
    %v3646 = vld [vmem:[%s4 + $0x110] sm:$0xff]
    %v3647 = vld [vmem:[%s4 + $0x118] sm:$0xff]
    %v3648 = vld [vmem:[%s4 + $0x120] sm:$0xff]
    %v3649 = vld [vmem:[%s4 + $0x128] sm:$0xff]
    %v3650 = vld [vmem:[%s4 + $0x130] sm:$0xff]
    %v3651 = vld [vmem:[%s4 + $0x138] sm:$0xff]
    %v3652 = vld [vmem:[%s4 + $0x140] sm:$0xff]
    %v3653 = vld [vmem:[%s4 + $0x148] sm:$0xff]
    %v3654 = vld [vmem:[%s4 + $0x150] sm:$0xff]
    %v3655 = vld [vmem:[%s4 + $0x158] sm:$0xff]
    %v3656 = vld [vmem:[%s4 + $0x160] sm:$0xff]
    %v3657 = vld [vmem:[%s4 + $0x168] sm:$0xff]
    %v3658 = vld [vmem:[%s4 + $0x170] sm:$0xff]
    %v3659 = vld [vmem:[%s4 + $0x178] sm:$0xff]
    %v3660 = vld [vmem:[%s4 + $0x180] sm:$0xff]
    %v3661 = vld [vmem:[%s4 + $0x188] sm:$0xff]
    %v3662 = vld [vmem:[%s4 + $0x190] sm:$0xff]
    %v3663 = vld [vmem:[%s4 + $0x198] sm:$0xff]
    %v3664 = vld [vmem:[%s4 + $0x1a0] sm:$0xff]
    %v3665 = vld [vmem:[%s4 + $0x1a8] sm:$0xff]
    %v3666 = vld [vmem:[%s4 + $0x1b0] sm:$0xff]
    %v3667 = vld [vmem:[%s4 + $0x1b8] sm:$0xff]
    %v3668 = vld [vmem:[%s4 + $0x1c0] sm:$0xff]
    %v3669 = vld [vmem:[%s4 + $0x1c8] sm:$0xff]
    %v3670 = vld [vmem:[%s4 + $0x1d0] sm:$0xff]
    %v3671 = vld [vmem:[%s4 + $0x1d8] sm:$0xff]
    %v3672 = vld [vmem:[%s4 + $0x1e0] sm:$0xff]
    %v3673 = vld [vmem:[%s4 + $0x1e8] sm:$0xff]
    %v3674 = vld [vmem:[%s4 + $0x1f0] sm:$0xff]
    %v3675 = vld [vmem:[%s4 + $0x1f8] sm:$0xff]
    %v3676 = vld [vmem:[%s5] sm:$0xf]
    %v3678 = vperm.slane %v3676, 0
    %v3679 = vperm.slane %v3676, 1
    %v3680 = vperm.slane %v3676, 2
    %v3681 = vperm.slane %v3676, 3
    %v3687 = vunpack.c.l.b16 %v3611
    %v3688 = vunpack.c.h.b16 %v3611
    %v3689 = vpack.c.b16 %v3687, %v3687
    %v3690 = vpack.c.b16 %v3688, %v3688
    %v3757 = vunpack.c.l.b16 %v3612
    %v3758 = vunpack.c.h.b16 %v3612
    %v3759 = vunpack.c.l.b16 %v3613
    %v3760 = vunpack.c.h.b16 %v3613
    %v3761 = vunpack.c.l.b16 %v3614
    %v3762 = vunpack.c.h.b16 %v3614
    %v3763 = vunpack.c.l.b16 %v3615
    %v3764 = vunpack.c.h.b16 %v3615
    %v3765 = vunpack.c.l.b16 %v3616
    %v3766 = vunpack.c.h.b16 %v3616
    %v3767 = vunpack.c.l.b16 %v3617
    %v3768 = vunpack.c.h.b16 %v3617
    %v3769 = vunpack.c.l.b16 %v3618
    %v3770 = vunpack.c.h.b16 %v3618
    %v3771 = vunpack.c.l.b16 %v3619
    %v3772 = vunpack.c.h.b16 %v3619
    %v3773 = vunpack.c.l.b16 %v3620
    %v3774 = vunpack.c.h.b16 %v3620
    %v3775 = vunpack.c.l.b16 %v3621
    %v3776 = vunpack.c.h.b16 %v3621
    %v3777 = vunpack.c.l.b16 %v3622
    %v3778 = vunpack.c.h.b16 %v3622
    %v3779 = vunpack.c.l.b16 %v3623
    %v3780 = vunpack.c.h.b16 %v3623
    %v3781 = vunpack.c.l.b16 %v3624
    %v3782 = vunpack.c.h.b16 %v3624
    %v3783 = vunpack.c.l.b16 %v3625
    %v3784 = vunpack.c.h.b16 %v3625
    %v3785 = vunpack.c.l.b16 %v3626
    %v3786 = vunpack.c.h.b16 %v3626
    %v3787 = vunpack.c.l.b16 %v3627
    %v3788 = vunpack.c.h.b16 %v3627
    %v3789 = vunpack.c.l.b16 %v3628
    %v3790 = vunpack.c.h.b16 %v3628
    %v3791 = vunpack.c.l.b16 %v3629
    %v3792 = vunpack.c.h.b16 %v3629
    %v3793 = vunpack.c.l.b16 %v3630
    %v3794 = vunpack.c.h.b16 %v3630
    %v3795 = vunpack.c.l.b16 %v3631
    %v3796 = vunpack.c.h.b16 %v3631
    %v3797 = vunpack.c.l.b16 %v3632
    %v3798 = vunpack.c.h.b16 %v3632
    %v3799 = vunpack.c.l.b16 %v3633
    %v3800 = vunpack.c.h.b16 %v3633
    %v3801 = vunpack.c.l.b16 %v3634
    %v3802 = vunpack.c.h.b16 %v3634
    %v3803 = vunpack.c.l.b16 %v3635
    %v3804 = vunpack.c.h.b16 %v3635
    %v3805 = vunpack.c.l.b16 %v3636
    %v3806 = vunpack.c.h.b16 %v3636
    %v3807 = vunpack.c.l.b16 %v3637
    %v3808 = vunpack.c.h.b16 %v3637
    %v3809 = vunpack.c.l.b16 %v3638
    %v3810 = vunpack.c.h.b16 %v3638
    %v3811 = vunpack.c.l.b16 %v3639
    %v3812 = vunpack.c.h.b16 %v3639
    %v3813 = vunpack.c.l.b16 %v3640
    %v3814 = vunpack.c.h.b16 %v3640
    %v3815 = vunpack.c.l.b16 %v3641
    %v3816 = vunpack.c.h.b16 %v3641
    %v3817 = vunpack.c.l.b16 %v3642
    %v3818 = vunpack.c.h.b16 %v3642
    %v3819 = vunpack.c.l.b16 %v3643
    %v3820 = vunpack.c.h.b16 %v3643
    %v3821 = vunpack.c.l.b16 %v3644
    %v3822 = vunpack.c.h.b16 %v3644
    %v3823 = vunpack.c.l.b16 %v3645
    %v3824 = vunpack.c.h.b16 %v3645
    %v3825 = vunpack.c.l.b16 %v3646
    %v3826 = vunpack.c.h.b16 %v3646
    %v3827 = vunpack.c.l.b16 %v3647
    %v3828 = vunpack.c.h.b16 %v3647
    %v3829 = vunpack.c.l.b16 %v3648
    %v3830 = vunpack.c.h.b16 %v3648
    %v3831 = vunpack.c.l.b16 %v3649
    %v3832 = vunpack.c.h.b16 %v3649
    %v3833 = vunpack.c.l.b16 %v3650
    %v3834 = vunpack.c.h.b16 %v3650
    %v3835 = vunpack.c.l.b16 %v3651
    %v3836 = vunpack.c.h.b16 %v3651
    %v3837 = vunpack.c.l.b16 %v3652
    %v3838 = vunpack.c.h.b16 %v3652
    %v3839 = vunpack.c.l.b16 %v3653
    %v3840 = vunpack.c.h.b16 %v3653
    %v3841 = vunpack.c.l.b16 %v3654
    %v3842 = vunpack.c.h.b16 %v3654
    %v3843 = vunpack.c.l.b16 %v3655
    %v3844 = vunpack.c.h.b16 %v3655
    %v3845 = vunpack.c.l.b16 %v3656
    %v3846 = vunpack.c.h.b16 %v3656
    %v3847 = vunpack.c.l.b16 %v3657
    %v3848 = vunpack.c.h.b16 %v3657
    %v3849 = vunpack.c.l.b16 %v3658
    %v3850 = vunpack.c.h.b16 %v3658
    %v3851 = vunpack.c.l.b16 %v3659
    %v3852 = vunpack.c.h.b16 %v3659
    %v3853 = vunpack.c.l.b16 %v3660
    %v3854 = vunpack.c.h.b16 %v3660
    %v3855 = vunpack.c.l.b16 %v3661
    %v3856 = vunpack.c.h.b16 %v3661
    %v3857 = vunpack.c.l.b16 %v3662
    %v3858 = vunpack.c.h.b16 %v3662
    %v3859 = vunpack.c.l.b16 %v3663
    %v3860 = vunpack.c.h.b16 %v3663
    %v3861 = vunpack.c.l.b16 %v3664
    %v3862 = vunpack.c.h.b16 %v3664
    %v3863 = vunpack.c.l.b16 %v3665
    %v3864 = vunpack.c.h.b16 %v3665
    %v3865 = vunpack.c.l.b16 %v3666
    %v3866 = vunpack.c.h.b16 %v3666
    %v3867 = vunpack.c.l.b16 %v3667
    %v3868 = vunpack.c.h.b16 %v3667
    %v3869 = vunpack.c.l.b16 %v3668
    %v3870 = vunpack.c.h.b16 %v3668
    %v3871 = vunpack.c.l.b16 %v3669
    %v3872 = vunpack.c.h.b16 %v3669
    %v3873 = vunpack.c.l.b16 %v3670
    %v3874 = vunpack.c.h.b16 %v3670
    %v3875 = vunpack.c.l.b16 %v3671
    %v3876 = vunpack.c.h.b16 %v3671
    %v3877 = vunpack.c.l.b16 %v3672
    %v3878 = vunpack.c.h.b16 %v3672
    %v3879 = vunpack.c.l.b16 %v3673
    %v3880 = vunpack.c.h.b16 %v3673
    %v3881 = vunpack.c.l.b16 %v3674
    %v3882 = vunpack.c.h.b16 %v3674
    %v3883 = vunpack.c.l.b16 %v3675
    %v3884 = vunpack.c.h.b16 %v3675
    %v3885 = vpack.c.b16 %v3761, %v3757
    %v3886 = vpack.c.b16 %v3762, %v3758
    %v3887 = vpack.c.b16 %v3763, %v3759
    %v3888 = vpack.c.b16 %v3764, %v3760
    %v3889 = vpack.c.b16 %v3769, %v3765
    %v3890 = vpack.c.b16 %v3770, %v3766
    %v3891 = vpack.c.b16 %v3771, %v3767
    %v3892 = vpack.c.b16 %v3772, %v3768
    %v3893 = vpack.c.b16 %v3777, %v3773
    %v3894 = vpack.c.b16 %v3778, %v3774
    %v3895 = vpack.c.b16 %v3779, %v3775
    %v3896 = vpack.c.b16 %v3780, %v3776
    %v3897 = vpack.c.b16 %v3785, %v3781
    %v3898 = vpack.c.b16 %v3786, %v3782
    %v3899 = vpack.c.b16 %v3787, %v3783
    %v3900 = vpack.c.b16 %v3788, %v3784
    %v3901 = vpack.c.b16 %v3793, %v3789
    %v3902 = vpack.c.b16 %v3794, %v3790
    %v3903 = vpack.c.b16 %v3795, %v3791
    %v3904 = vpack.c.b16 %v3796, %v3792
    %v3905 = vpack.c.b16 %v3801, %v3797
    %v3906 = vpack.c.b16 %v3802, %v3798
    %v3907 = vpack.c.b16 %v3803, %v3799
    %v3908 = vpack.c.b16 %v3804, %v3800
    %v3909 = vpack.c.b16 %v3809, %v3805
    %v3910 = vpack.c.b16 %v3810, %v3806
    %v3911 = vpack.c.b16 %v3811, %v3807
    %v3912 = vpack.c.b16 %v3812, %v3808
    %v3913 = vpack.c.b16 %v3817, %v3813
    %v3914 = vpack.c.b16 %v3818, %v3814
    %v3915 = vpack.c.b16 %v3819, %v3815
    %v3916 = vpack.c.b16 %v3820, %v3816
    %v3917 = vpack.c.b16 %v3825, %v3821
    %v3918 = vpack.c.b16 %v3826, %v3822
    %v3919 = vpack.c.b16 %v3827, %v3823
    %v3920 = vpack.c.b16 %v3828, %v3824
    %v3921 = vpack.c.b16 %v3833, %v3829
    %v3922 = vpack.c.b16 %v3834, %v3830
    %v3923 = vpack.c.b16 %v3835, %v3831
    %v3924 = vpack.c.b16 %v3836, %v3832
    %v3925 = vpack.c.b16 %v3841, %v3837
    %v3926 = vpack.c.b16 %v3842, %v3838
    %v3927 = vpack.c.b16 %v3843, %v3839
    %v3928 = vpack.c.b16 %v3844, %v3840
    %v3929 = vpack.c.b16 %v3849, %v3845
    %v3930 = vpack.c.b16 %v3850, %v3846
    %v3931 = vpack.c.b16 %v3851, %v3847
    %v3932 = vpack.c.b16 %v3852, %v3848
    %v3933 = vpack.c.b16 %v3857, %v3853
    %v3934 = vpack.c.b16 %v3858, %v3854
    %v3935 = vpack.c.b16 %v3859, %v3855
    %v3936 = vpack.c.b16 %v3860, %v3856
    %v3937 = vpack.c.b16 %v3865, %v3861
    %v3938 = vpack.c.b16 %v3866, %v3862
    %v3939 = vpack.c.b16 %v3867, %v3863
    %v3940 = vpack.c.b16 %v3868, %v3864
    %v3941 = vpack.c.b16 %v3873, %v3869
    %v3942 = vpack.c.b16 %v3874, %v3870
    %v3943 = vpack.c.b16 %v3875, %v3871
    %v3944 = vpack.c.b16 %v3876, %v3872
    %v3945 = vpack.c.b16 %v3881, %v3877
    %v3946 = vpack.c.b16 %v3882, %v3878
    %v3947 = vpack.c.b16 %v3883, %v3879
    %v3948 = vpack.c.b16 %v3884, %v3880
    %4013 = vmatpush.bf16.msra.mxu0 %v3913
    %4014 = vmatpush.bf16.msra.mxu0 %v3909
    %4015 = vmatpush.bf16.msra.mxu0 %v3905
    %4016 = vmatpush.bf16.msra.mxu0 %v3901
    %4017 = vmatpush.bf16.msra.mxu0 %v3897
    %4018 = vmatpush.bf16.msra.mxu0 %v3893
    %4019 = vmatpush.bf16.msra.mxu0 %v3889
    %4020 = vmatpush.bf16.msra.mxu0 %v3885
    %4021 = vmatmul.bf16.gmra.mxu0 %v3689
    %v4022 = vpop.f32.mrf.mxu0
    %v4023 = vadd.f32 %v3678, %v4022
    %v4024 = vpop.f32.mrf.mxu0
    %4025 = vdwg.mxu0
    %4026 = vmatpush.bf16.msra.mxu0 %v3945
    %4027 = vmatpush.bf16.msra.mxu0 %v3941
    %4028 = vmatpush.bf16.msra.mxu0 %v3937
    %4029 = vmatpush.bf16.msra.mxu0 %v3933
    %4030 = vmatpush.bf16.msra.mxu0 %v3929
    %4031 = vmatpush.bf16.msra.mxu0 %v3925
    %4032 = vmatpush.bf16.msra.mxu0 %v3921
    %4033 = vmatpush.bf16.msra.mxu0 %v3917
    %4034 = vmatmul.bf16.gmra.mxu0 %v3690
    %v4035 = vpop.f32.mrf.mxu0
    %v4036 = vadd.f32 %v4023, %v4035
    %v4037 = vpop.f32.mrf.mxu0
    %4038 = vdwg.mxu0
    %4039 = vmatpush.bf16.msra.mxu0 %v3914
    %4040 = vmatpush.bf16.msra.mxu0 %v3910
    %4041 = vmatpush.bf16.msra.mxu0 %v3906
    %4042 = vmatpush.bf16.msra.mxu0 %v3902
    %4043 = vmatpush.bf16.msra.mxu0 %v3898
    %4044 = vmatpush.bf16.msra.mxu0 %v3894
    %4045 = vmatpush.bf16.msra.mxu0 %v3890
    %4046 = vmatpush.bf16.msra.mxu0 %v3886
    %4047 = vmatmul.bf16.gmra.mxu0 %v3689
    %v4048 = vpop.f32.mrf.mxu0
    %v4049 = vadd.f32 %v3679, %v4048
    %v4050 = vpop.f32.mrf.mxu0
    %4051 = vdwg.mxu0
    %4052 = vmatpush.bf16.msra.mxu0 %v3946
    %4053 = vmatpush.bf16.msra.mxu0 %v3942
    %4054 = vmatpush.bf16.msra.mxu0 %v3938
    %4055 = vmatpush.bf16.msra.mxu0 %v3934
    %4056 = vmatpush.bf16.msra.mxu0 %v3930
    %4057 = vmatpush.bf16.msra.mxu0 %v3926
    %4058 = vmatpush.bf16.msra.mxu0 %v3922
    %4059 = vmatpush.bf16.msra.mxu0 %v3918
    %4060 = vmatmul.bf16.gmra.mxu0 %v3690
    %v4061 = vpop.f32.mrf.mxu0
    %v4062 = vadd.f32 %v4049, %v4061
    %v4063 = vpop.f32.mrf.mxu0
    %4064 = vdwg.mxu0
    %4065 = vmatpush.bf16.msra.mxu0 %v3915
    %4066 = vmatpush.bf16.msra.mxu0 %v3911
    %4067 = vmatpush.bf16.msra.mxu0 %v3907
    %4068 = vmatpush.bf16.msra.mxu0 %v3903
    %4069 = vmatpush.bf16.msra.mxu0 %v3899
    %4070 = vmatpush.bf16.msra.mxu0 %v3895
    %4071 = vmatpush.bf16.msra.mxu0 %v3891
    %4072 = vmatpush.bf16.msra.mxu0 %v3887
    %4073 = vmatmul.bf16.gmra.mxu0 %v3689
    %v4074 = vpop.f32.mrf.mxu0
    %v4075 = vadd.f32 %v3680, %v4074
    %v4076 = vpop.f32.mrf.mxu0
    %4077 = vdwg.mxu0
    %4078 = vmatpush.bf16.msra.mxu0 %v3947
    %4079 = vmatpush.bf16.msra.mxu0 %v3943
    %4080 = vmatpush.bf16.msra.mxu0 %v3939
    %4081 = vmatpush.bf16.msra.mxu0 %v3935
    %4082 = vmatpush.bf16.msra.mxu0 %v3931
    %4083 = vmatpush.bf16.msra.mxu0 %v3927
    %4084 = vmatpush.bf16.msra.mxu0 %v3923
    %4085 = vmatpush.bf16.msra.mxu0 %v3919
    %4086 = vmatmul.bf16.gmra.mxu0 %v3690
    %v4087 = vpop.f32.mrf.mxu0
    %v4088 = vadd.f32 %v4075, %v4087
    %v4089 = vpop.f32.mrf.mxu0
    %4090 = vdwg.mxu0
    %4091 = vmatpush.bf16.msra.mxu0 %v3916
    %4092 = vmatpush.bf16.msra.mxu0 %v3912
    %4093 = vmatpush.bf16.msra.mxu0 %v3908
    %4094 = vmatpush.bf16.msra.mxu0 %v3904
    %4095 = vmatpush.bf16.msra.mxu0 %v3900
    %4096 = vmatpush.bf16.msra.mxu0 %v3896
    %4097 = vmatpush.bf16.msra.mxu0 %v3892
    %4098 = vmatpush.bf16.msra.mxu0 %v3888
    %4099 = vmatmul.bf16.gmra.mxu0 %v3689
    %v4100 = vpop.f32.mrf.mxu0
    %v4101 = vadd.f32 %v3681, %v4100
    %v4102 = vpop.f32.mrf.mxu0
    %4103 = vdwg.mxu0
    %4104 = vmatpush.bf16.msra.mxu0 %v3948
    %4105 = vmatpush.bf16.msra.mxu0 %v3944
    %4106 = vmatpush.bf16.msra.mxu0 %v3940
    %4107 = vmatpush.bf16.msra.mxu0 %v3936
    %4108 = vmatpush.bf16.msra.mxu0 %v3932
    %4109 = vmatpush.bf16.msra.mxu0 %v3928
    %4110 = vmatpush.bf16.msra.mxu0 %v3924
    %4111 = vmatpush.bf16.msra.mxu0 %v3920
    %4112 = vmatmul.bf16.gmra.mxu0 %v3690
    %v4113 = vpop.f32.mrf.mxu0
    %v4114 = vadd.f32 %v4101, %v4113
    %v4115 = vpop.f32.mrf.mxu0
    %4116 = vdwg.mxu0
    %v4117 = vxor.u32 %v4036, 2147483648
    %v4118 = vmul.f32 %v4117, 1.442695
    %v4119 = vpow.pop %v4118
    %v4120 = vadd.f32 %v4119, 1.0
    %v4121 = vrcp.pop %v4120
    %v4122 = vmul.f32 %v4120, %v4121
    %v4123 = vsub.f32 1.0, %v4122
    %v4124 = vmul.f32 %v4121, %v4123
    %v4125 = vadd.f32 %v4121, %v4124
    %vm4126 = vweird.f32 %v4120
    %vm4127 = vweird.f32 %v4121
    %vm4128 = vmor %vm4126, %vm4127
    %v4129 = vsel %vm4128, %v4121, %v4125
    %v4130 = vand.u32 2147483647, %v4120
    %vm4131 = vcmp.eq.f32.partialorder %v4130, 8.507059e+37
    %v4132 = vand.u32 %v4120, 2147483648
    %v4133 = vor.u32 1.1754944e-38, %v4132
    %v4134 = vsel %vm4131, %v4133, %v4129
    %v4135 = vmul.f32 1.0, %v4134
    %v4136 = vxor.u32 %v4062, 2147483648
    %v4137 = vmul.f32 %v4136, 1.442695
    %v4138 = vpow.pop %v4137
    %v4139 = vadd.f32 %v4138, 1.0
    %v4140 = vrcp.pop %v4139
    %v4141 = vmul.f32 %v4139, %v4140
    %v4142 = vsub.f32 1.0, %v4141
    %v4143 = vmul.f32 %v4140, %v4142
    %v4144 = vadd.f32 %v4140, %v4143
    %vm4145 = vweird.f32 %v4139
    %vm4146 = vweird.f32 %v4140
    %vm4147 = vmor %vm4145, %vm4146
    %v4148 = vsel %vm4147, %v4140, %v4144
    %v4149 = vand.u32 2147483647, %v4139
    %vm4150 = vcmp.eq.f32.partialorder %v4149, 8.507059e+37
    %v4151 = vand.u32 %v4139, 2147483648
    %v4152 = vor.u32 1.1754944e-38, %v4151
    %v4153 = vsel %vm4150, %v4152, %v4148
    %v4154 = vmul.f32 1.0, %v4153
    %v4155 = vtanh.pop %v4088
    %v4156 = vxor.u32 %v4114, 2147483648
    %v4157 = vmul.f32 %v4156, 1.442695
    %v4158 = vpow.pop %v4157
    %v4159 = vadd.f32 %v4158, 1.0
    %v4160 = vrcp.pop %v4159
    %v4161 = vmul.f32 %v4159, %v4160
    %v4162 = vsub.f32 1.0, %v4161
    %v4163 = vmul.f32 %v4160, %v4162
    %v4164 = vadd.f32 %v4160, %v4163
    %vm4165 = vweird.f32 %v4159
    %vm4166 = vweird.f32 %v4160
    %vm4167 = vmor %vm4165, %vm4166
    %v4168 = vsel %vm4167, %v4160, %v4164
    %v4169 = vand.u32 2147483647, %v4159
    %vm4170 = vcmp.eq.f32.partialorder %v4169, 8.507059e+37
    %v4171 = vand.u32 %v4159, 2147483648
    %v4172 = vor.u32 1.1754944e-38, %v4171
    %v4173 = vsel %vm4170, %v4172, %v4168
    %v4174 = vmul.f32 1.0, %v4173
    %v4175 = vmul.f32 %v4154, %v3031
    %v4176 = vmul.f32 %v4135, %v4155
    %v4177 = vadd.f32 %v4175, %v4176
    %v4178 = vtanh.pop %v4177
    %v4179 = vmul.f32 %v4174, %v4178
    %v4180 = vpack.c.bf16 %v4179, %v4179
    %4181 = vst [vmem:[#allocation3] sm:$0xf] %v4180
    %v4182 = vpack.c.bf16 %v3606, %v3606
    %4183 = vst [vmem:[#allocation3 + $0x4] sm:$0xf] %v4182
    %v4184 = vld [vmem:[#allocation3] sm:$0xff]
    %v4185 = vld [vmem:[#allocation4] sm:$0xff]
    %v4186 = vld [vmem:[#allocation4 + $0x8] sm:$0xff]
    %v4187 = vld [vmem:[#allocation4 + $0x10] sm:$0xff]
    %v4188 = vld [vmem:[#allocation4 + $0x18] sm:$0xff]
    %v4189 = vld [vmem:[#allocation4 + $0x20] sm:$0xff]
    %v4190 = vld [vmem:[#allocation4 + $0x28] sm:$0xff]
    %v4191 = vld [vmem:[#allocation4 + $0x30] sm:$0xff]
    %v4192 = vld [vmem:[#allocation4 + $0x38] sm:$0xff]
    %v4193 = vld [vmem:[#allocation4 + $0x40] sm:$0xff]
    %v4194 = vld [vmem:[#allocation4 + $0x48] sm:$0xff]
    %v4195 = vld [vmem:[#allocation4 + $0x50] sm:$0xff]
    %v4196 = vld [vmem:[#allocation4 + $0x58] sm:$0xff]
    %v4197 = vld [vmem:[#allocation4 + $0x60] sm:$0xff]
    %v4198 = vld [vmem:[#allocation4 + $0x68] sm:$0xff]
    %v4199 = vld [vmem:[#allocation4 + $0x70] sm:$0xff]
    %v4200 = vld [vmem:[#allocation4 + $0x78] sm:$0xff]
    %v4201 = vld [vmem:[#allocation4 + $0x80] sm:$0xff]
    %v4202 = vld [vmem:[#allocation4 + $0x88] sm:$0xff]
    %v4203 = vld [vmem:[#allocation4 + $0x90] sm:$0xff]
    %v4204 = vld [vmem:[#allocation4 + $0x98] sm:$0xff]
    %v4205 = vld [vmem:[#allocation4 + $0xa0] sm:$0xff]
    %v4206 = vld [vmem:[#allocation4 + $0xa8] sm:$0xff]
    %v4207 = vld [vmem:[#allocation4 + $0xb0] sm:$0xff]
    %v4208 = vld [vmem:[#allocation4 + $0xb8] sm:$0xff]
    %v4209 = vld [vmem:[#allocation4 + $0xc0] sm:$0xff]
    %v4210 = vld [vmem:[#allocation4 + $0xc8] sm:$0xff]
    %v4211 = vld [vmem:[#allocation4 + $0xd0] sm:$0xff]
    %v4212 = vld [vmem:[#allocation4 + $0xd8] sm:$0xff]
    %v4213 = vld [vmem:[#allocation4 + $0xe0] sm:$0xff]
    %v4214 = vld [vmem:[#allocation4 + $0xe8] sm:$0xff]
    %v4215 = vld [vmem:[#allocation4 + $0xf0] sm:$0xff]
    %v4216 = vld [vmem:[#allocation4 + $0xf8] sm:$0xff]
    %v4217 = vld [vmem:[#allocation4 + $0x100] sm:$0xff]
    %v4218 = vld [vmem:[#allocation4 + $0x108] sm:$0xff]
    %v4219 = vld [vmem:[#allocation4 + $0x110] sm:$0xff]
    %v4220 = vld [vmem:[#allocation4 + $0x118] sm:$0xff]
    %v4221 = vld [vmem:[#allocation4 + $0x120] sm:$0xff]
    %v4222 = vld [vmem:[#allocation4 + $0x128] sm:$0xff]
    %v4223 = vld [vmem:[#allocation4 + $0x130] sm:$0xff]
    %v4224 = vld [vmem:[#allocation4 + $0x138] sm:$0xff]
    %v4225 = vld [vmem:[#allocation4 + $0x140] sm:$0xff]
    %v4226 = vld [vmem:[#allocation4 + $0x148] sm:$0xff]
    %v4227 = vld [vmem:[#allocation4 + $0x150] sm:$0xff]
    %v4228 = vld [vmem:[#allocation4 + $0x158] sm:$0xff]
    %v4229 = vld [vmem:[#allocation4 + $0x160] sm:$0xff]
    %v4230 = vld [vmem:[#allocation4 + $0x168] sm:$0xff]
    %v4231 = vld [vmem:[#allocation4 + $0x170] sm:$0xff]
    %v4232 = vld [vmem:[#allocation4 + $0x178] sm:$0xff]
    %v4233 = vld [vmem:[#allocation4 + $0x180] sm:$0xff]
    %v4234 = vld [vmem:[#allocation4 + $0x188] sm:$0xff]
    %v4235 = vld [vmem:[#allocation4 + $0x190] sm:$0xff]
    %v4236 = vld [vmem:[#allocation4 + $0x198] sm:$0xff]
    %v4237 = vld [vmem:[#allocation4 + $0x1a0] sm:$0xff]
    %v4238 = vld [vmem:[#allocation4 + $0x1a8] sm:$0xff]
    %v4239 = vld [vmem:[#allocation4 + $0x1b0] sm:$0xff]
    %v4240 = vld [vmem:[#allocation4 + $0x1b8] sm:$0xff]
    %v4241 = vld [vmem:[#allocation4 + $0x1c0] sm:$0xff]
    %v4242 = vld [vmem:[#allocation4 + $0x1c8] sm:$0xff]
    %v4243 = vld [vmem:[#allocation4 + $0x1d0] sm:$0xff]
    %v4244 = vld [vmem:[#allocation4 + $0x1d8] sm:$0xff]
    %v4245 = vld [vmem:[#allocation4 + $0x1e0] sm:$0xff]
    %v4246 = vld [vmem:[#allocation4 + $0x1e8] sm:$0xff]
    %v4247 = vld [vmem:[#allocation4 + $0x1f0] sm:$0xff]
    %v4248 = vld [vmem:[#allocation4 + $0x1f8] sm:$0xff]
    %v4249 = vld [vmem:[%s7] sm:$0xf]
    %v4251 = vperm.slane %v4249, 0
    %v4252 = vperm.slane %v4249, 1
    %v4253 = vperm.slane %v4249, 2
    %v4254 = vperm.slane %v4249, 3
    %v4260 = vunpack.c.l.b16 %v4184
    %v4261 = vunpack.c.h.b16 %v4184
    %v4262 = vpack.c.b16 %v4260, %v4260
    %v4263 = vpack.c.b16 %v4261, %v4261
    %v4330 = vunpack.c.l.b16 %v4185
    %v4331 = vunpack.c.h.b16 %v4185
    %v4332 = vunpack.c.l.b16 %v4186
    %v4333 = vunpack.c.h.b16 %v4186
    %v4334 = vunpack.c.l.b16 %v4187
    %v4335 = vunpack.c.h.b16 %v4187
    %v4336 = vunpack.c.l.b16 %v4188
    %v4337 = vunpack.c.h.b16 %v4188
    %v4338 = vunpack.c.l.b16 %v4189
    %v4339 = vunpack.c.h.b16 %v4189
    %v4340 = vunpack.c.l.b16 %v4190
    %v4341 = vunpack.c.h.b16 %v4190
    %v4342 = vunpack.c.l.b16 %v4191
    %v4343 = vunpack.c.h.b16 %v4191
    %v4344 = vunpack.c.l.b16 %v4192
    %v4345 = vunpack.c.h.b16 %v4192
    %v4346 = vunpack.c.l.b16 %v4193
    %v4347 = vunpack.c.h.b16 %v4193
    %v4348 = vunpack.c.l.b16 %v4194
    %v4349 = vunpack.c.h.b16 %v4194
    %v4350 = vunpack.c.l.b16 %v4195
    %v4351 = vunpack.c.h.b16 %v4195
    %v4352 = vunpack.c.l.b16 %v4196
    %v4353 = vunpack.c.h.b16 %v4196
    %v4354 = vunpack.c.l.b16 %v4197
    %v4355 = vunpack.c.h.b16 %v4197
    %v4356 = vunpack.c.l.b16 %v4198
    %v4357 = vunpack.c.h.b16 %v4198
    %v4358 = vunpack.c.l.b16 %v4199
    %v4359 = vunpack.c.h.b16 %v4199
    %v4360 = vunpack.c.l.b16 %v4200
    %v4361 = vunpack.c.h.b16 %v4200
    %v4362 = vunpack.c.l.b16 %v4201
    %v4363 = vunpack.c.h.b16 %v4201
    %v4364 = vunpack.c.l.b16 %v4202
    %v4365 = vunpack.c.h.b16 %v4202
    %v4366 = vunpack.c.l.b16 %v4203
    %v4367 = vunpack.c.h.b16 %v4203
    %v4368 = vunpack.c.l.b16 %v4204
    %v4369 = vunpack.c.h.b16 %v4204
    %v4370 = vunpack.c.l.b16 %v4205
    %v4371 = vunpack.c.h.b16 %v4205
    %v4372 = vunpack.c.l.b16 %v4206
    %v4373 = vunpack.c.h.b16 %v4206
    %v4374 = vunpack.c.l.b16 %v4207
    %v4375 = vunpack.c.h.b16 %v4207
    %v4376 = vunpack.c.l.b16 %v4208
    %v4377 = vunpack.c.h.b16 %v4208
    %v4378 = vunpack.c.l.b16 %v4209
    %v4379 = vunpack.c.h.b16 %v4209
    %v4380 = vunpack.c.l.b16 %v4210
    %v4381 = vunpack.c.h.b16 %v4210
    %v4382 = vunpack.c.l.b16 %v4211
    %v4383 = vunpack.c.h.b16 %v4211
    %v4384 = vunpack.c.l.b16 %v4212
    %v4385 = vunpack.c.h.b16 %v4212
    %v4386 = vunpack.c.l.b16 %v4213
    %v4387 = vunpack.c.h.b16 %v4213
    %v4388 = vunpack.c.l.b16 %v4214
    %v4389 = vunpack.c.h.b16 %v4214
    %v4390 = vunpack.c.l.b16 %v4215
    %v4391 = vunpack.c.h.b16 %v4215
    %v4392 = vunpack.c.l.b16 %v4216
    %v4393 = vunpack.c.h.b16 %v4216
    %v4394 = vunpack.c.l.b16 %v4217
    %v4395 = vunpack.c.h.b16 %v4217
    %v4396 = vunpack.c.l.b16 %v4218
    %v4397 = vunpack.c.h.b16 %v4218
    %v4398 = vunpack.c.l.b16 %v4219
    %v4399 = vunpack.c.h.b16 %v4219
    %v4400 = vunpack.c.l.b16 %v4220
    %v4401 = vunpack.c.h.b16 %v4220
    %v4402 = vunpack.c.l.b16 %v4221
    %v4403 = vunpack.c.h.b16 %v4221
    %v4404 = vunpack.c.l.b16 %v4222
    %v4405 = vunpack.c.h.b16 %v4222
    %v4406 = vunpack.c.l.b16 %v4223
    %v4407 = vunpack.c.h.b16 %v4223
    %v4408 = vunpack.c.l.b16 %v4224
    %v4409 = vunpack.c.h.b16 %v4224
    %v4410 = vunpack.c.l.b16 %v4225
    %v4411 = vunpack.c.h.b16 %v4225
    %v4412 = vunpack.c.l.b16 %v4226
    %v4413 = vunpack.c.h.b16 %v4226
    %v4414 = vunpack.c.l.b16 %v4227
    %v4415 = vunpack.c.h.b16 %v4227
    %v4416 = vunpack.c.l.b16 %v4228
    %v4417 = vunpack.c.h.b16 %v4228
    %v4418 = vunpack.c.l.b16 %v4229
    %v4419 = vunpack.c.h.b16 %v4229
    %v4420 = vunpack.c.l.b16 %v4230
    %v4421 = vunpack.c.h.b16 %v4230
    %v4422 = vunpack.c.l.b16 %v4231
    %v4423 = vunpack.c.h.b16 %v4231
    %v4424 = vunpack.c.l.b16 %v4232
    %v4425 = vunpack.c.h.b16 %v4232
    %v4426 = vunpack.c.l.b16 %v4233
    %v4427 = vunpack.c.h.b16 %v4233
    %v4428 = vunpack.c.l.b16 %v4234
    %v4429 = vunpack.c.h.b16 %v4234
    %v4430 = vunpack.c.l.b16 %v4235
    %v4431 = vunpack.c.h.b16 %v4235
    %v4432 = vunpack.c.l.b16 %v4236
    %v4433 = vunpack.c.h.b16 %v4236
    %v4434 = vunpack.c.l.b16 %v4237
    %v4435 = vunpack.c.h.b16 %v4237
    %v4436 = vunpack.c.l.b16 %v4238
    %v4437 = vunpack.c.h.b16 %v4238
    %v4438 = vunpack.c.l.b16 %v4239
    %v4439 = vunpack.c.h.b16 %v4239
    %v4440 = vunpack.c.l.b16 %v4240
    %v4441 = vunpack.c.h.b16 %v4240
    %v4442 = vunpack.c.l.b16 %v4241
    %v4443 = vunpack.c.h.b16 %v4241
    %v4444 = vunpack.c.l.b16 %v4242
    %v4445 = vunpack.c.h.b16 %v4242
    %v4446 = vunpack.c.l.b16 %v4243
    %v4447 = vunpack.c.h.b16 %v4243
    %v4448 = vunpack.c.l.b16 %v4244
    %v4449 = vunpack.c.h.b16 %v4244
    %v4450 = vunpack.c.l.b16 %v4245
    %v4451 = vunpack.c.h.b16 %v4245
    %v4452 = vunpack.c.l.b16 %v4246
    %v4453 = vunpack.c.h.b16 %v4246
    %v4454 = vunpack.c.l.b16 %v4247
    %v4455 = vunpack.c.h.b16 %v4247
    %v4456 = vunpack.c.l.b16 %v4248
    %v4457 = vunpack.c.h.b16 %v4248
    %v4458 = vpack.c.b16 %v4334, %v4330
    %v4459 = vpack.c.b16 %v4335, %v4331
    %v4460 = vpack.c.b16 %v4336, %v4332
    %v4461 = vpack.c.b16 %v4337, %v4333
    %v4462 = vpack.c.b16 %v4342, %v4338
    %v4463 = vpack.c.b16 %v4343, %v4339
    %v4464 = vpack.c.b16 %v4344, %v4340
    %v4465 = vpack.c.b16 %v4345, %v4341
    %v4466 = vpack.c.b16 %v4350, %v4346
    %v4467 = vpack.c.b16 %v4351, %v4347
    %v4468 = vpack.c.b16 %v4352, %v4348
    %v4469 = vpack.c.b16 %v4353, %v4349
    %v4470 = vpack.c.b16 %v4358, %v4354
    %v4471 = vpack.c.b16 %v4359, %v4355
    %v4472 = vpack.c.b16 %v4360, %v4356
    %v4473 = vpack.c.b16 %v4361, %v4357
    %v4474 = vpack.c.b16 %v4366, %v4362
    %v4475 = vpack.c.b16 %v4367, %v4363
    %v4476 = vpack.c.b16 %v4368, %v4364
    %v4477 = vpack.c.b16 %v4369, %v4365
    %v4478 = vpack.c.b16 %v4374, %v4370
    %v4479 = vpack.c.b16 %v4375, %v4371
    %v4480 = vpack.c.b16 %v4376, %v4372
    %v4481 = vpack.c.b16 %v4377, %v4373
    %v4482 = vpack.c.b16 %v4382, %v4378
    %v4483 = vpack.c.b16 %v4383, %v4379
    %v4484 = vpack.c.b16 %v4384, %v4380
    %v4485 = vpack.c.b16 %v4385, %v4381
    %v4486 = vpack.c.b16 %v4390, %v4386
    %v4487 = vpack.c.b16 %v4391, %v4387
    %v4488 = vpack.c.b16 %v4392, %v4388
    %v4489 = vpack.c.b16 %v4393, %v4389
    %v4490 = vpack.c.b16 %v4398, %v4394
    %v4491 = vpack.c.b16 %v4399, %v4395
    %v4492 = vpack.c.b16 %v4400, %v4396
    %v4493 = vpack.c.b16 %v4401, %v4397
    %v4494 = vpack.c.b16 %v4406, %v4402
    %v4495 = vpack.c.b16 %v4407, %v4403
    %v4496 = vpack.c.b16 %v4408, %v4404
    %v4497 = vpack.c.b16 %v4409, %v4405
    %v4498 = vpack.c.b16 %v4414, %v4410
    %v4499 = vpack.c.b16 %v4415, %v4411
    %v4500 = vpack.c.b16 %v4416, %v4412
    %v4501 = vpack.c.b16 %v4417, %v4413
    %v4502 = vpack.c.b16 %v4422, %v4418
    %v4503 = vpack.c.b16 %v4423, %v4419
    %v4504 = vpack.c.b16 %v4424, %v4420
    %v4505 = vpack.c.b16 %v4425, %v4421
    %v4506 = vpack.c.b16 %v4430, %v4426
    %v4507 = vpack.c.b16 %v4431, %v4427
    %v4508 = vpack.c.b16 %v4432, %v4428
    %v4509 = vpack.c.b16 %v4433, %v4429
    %v4510 = vpack.c.b16 %v4438, %v4434
    %v4511 = vpack.c.b16 %v4439, %v4435
    %v4512 = vpack.c.b16 %v4440, %v4436
    %v4513 = vpack.c.b16 %v4441, %v4437
    %v4514 = vpack.c.b16 %v4446, %v4442
    %v4515 = vpack.c.b16 %v4447, %v4443
    %v4516 = vpack.c.b16 %v4448, %v4444
    %v4517 = vpack.c.b16 %v4449, %v4445
    %v4518 = vpack.c.b16 %v4454, %v4450
    %v4519 = vpack.c.b16 %v4455, %v4451
    %v4520 = vpack.c.b16 %v4456, %v4452
    %v4521 = vpack.c.b16 %v4457, %v4453
    %4586 = vmatpush.bf16.msra.mxu0 %v4486
    %4587 = vmatpush.bf16.msra.mxu0 %v4482
    %4588 = vmatpush.bf16.msra.mxu0 %v4478
    %4589 = vmatpush.bf16.msra.mxu0 %v4474
    %4590 = vmatpush.bf16.msra.mxu0 %v4470
    %4591 = vmatpush.bf16.msra.mxu0 %v4466
    %4592 = vmatpush.bf16.msra.mxu0 %v4462
    %4593 = vmatpush.bf16.msra.mxu0 %v4458
    %4594 = vmatmul.bf16.gmra.mxu0 %v4262
    %v4595 = vpop.f32.mrf.mxu0
    %v4596 = vadd.f32 %v4251, %v4595
    %v4597 = vpop.f32.mrf.mxu0
    %4598 = vdwg.mxu0
    %4599 = vmatpush.bf16.msra.mxu0 %v4518
    %4600 = vmatpush.bf16.msra.mxu0 %v4514
    %4601 = vmatpush.bf16.msra.mxu0 %v4510
    %4602 = vmatpush.bf16.msra.mxu0 %v4506
    %4603 = vmatpush.bf16.msra.mxu0 %v4502
    %4604 = vmatpush.bf16.msra.mxu0 %v4498
    %4605 = vmatpush.bf16.msra.mxu0 %v4494
    %4606 = vmatpush.bf16.msra.mxu0 %v4490
    %4607 = vmatmul.bf16.gmra.mxu0 %v4263
    %v4608 = vpop.f32.mrf.mxu0
    %v4609 = vadd.f32 %v4596, %v4608
    %v4610 = vpop.f32.mrf.mxu0
    %4611 = vdwg.mxu0
    %4612 = vmatpush.bf16.msra.mxu0 %v4487
    %4613 = vmatpush.bf16.msra.mxu0 %v4483
    %4614 = vmatpush.bf16.msra.mxu0 %v4479
    %4615 = vmatpush.bf16.msra.mxu0 %v4475
    %4616 = vmatpush.bf16.msra.mxu0 %v4471
    %4617 = vmatpush.bf16.msra.mxu0 %v4467
    %4618 = vmatpush.bf16.msra.mxu0 %v4463
    %4619 = vmatpush.bf16.msra.mxu0 %v4459
    %4620 = vmatmul.bf16.gmra.mxu0 %v4262
    %v4621 = vpop.f32.mrf.mxu0
    %v4622 = vadd.f32 %v4252, %v4621
    %v4623 = vpop.f32.mrf.mxu0
    %4624 = vdwg.mxu0
    %4625 = vmatpush.bf16.msra.mxu0 %v4519
    %4626 = vmatpush.bf16.msra.mxu0 %v4515
    %4627 = vmatpush.bf16.msra.mxu0 %v4511
    %4628 = vmatpush.bf16.msra.mxu0 %v4507
    %4629 = vmatpush.bf16.msra.mxu0 %v4503
    %4630 = vmatpush.bf16.msra.mxu0 %v4499
    %4631 = vmatpush.bf16.msra.mxu0 %v4495
    %4632 = vmatpush.bf16.msra.mxu0 %v4491
    %4633 = vmatmul.bf16.gmra.mxu0 %v4263
    %v4634 = vpop.f32.mrf.mxu0
    %v4635 = vadd.f32 %v4622, %v4634
    %v4636 = vpop.f32.mrf.mxu0
    %4637 = vdwg.mxu0
    %4638 = vmatpush.bf16.msra.mxu0 %v4488
    %4639 = vmatpush.bf16.msra.mxu0 %v4484
    %4640 = vmatpush.bf16.msra.mxu0 %v4480
    %4641 = vmatpush.bf16.msra.mxu0 %v4476
    %4642 = vmatpush.bf16.msra.mxu0 %v4472
    %4643 = vmatpush.bf16.msra.mxu0 %v4468
    %4644 = vmatpush.bf16.msra.mxu0 %v4464
    %4645 = vmatpush.bf16.msra.mxu0 %v4460
    %4646 = vmatmul.bf16.gmra.mxu0 %v4262
    %v4647 = vpop.f32.mrf.mxu0
    %v4648 = vadd.f32 %v4253, %v4647
    %v4649 = vpop.f32.mrf.mxu0
    %4650 = vdwg.mxu0
    %4651 = vmatpush.bf16.msra.mxu0 %v4520
    %4652 = vmatpush.bf16.msra.mxu0 %v4516
    %4653 = vmatpush.bf16.msra.mxu0 %v4512
    %4654 = vmatpush.bf16.msra.mxu0 %v4508
    %4655 = vmatpush.bf16.msra.mxu0 %v4504
    %4656 = vmatpush.bf16.msra.mxu0 %v4500
    %4657 = vmatpush.bf16.msra.mxu0 %v4496
    %4658 = vmatpush.bf16.msra.mxu0 %v4492
    %4659 = vmatmul.bf16.gmra.mxu0 %v4263
    %v4660 = vpop.f32.mrf.mxu0
    %v4661 = vadd.f32 %v4648, %v4660
    %v4662 = vpop.f32.mrf.mxu0
    %4663 = vdwg.mxu0
    %4664 = vmatpush.bf16.msra.mxu0 %v4489
    %4665 = vmatpush.bf16.msra.mxu0 %v4485
    %4666 = vmatpush.bf16.msra.mxu0 %v4481
    %4667 = vmatpush.bf16.msra.mxu0 %v4477
    %4668 = vmatpush.bf16.msra.mxu0 %v4473
    %4669 = vmatpush.bf16.msra.mxu0 %v4469
    %4670 = vmatpush.bf16.msra.mxu0 %v4465
    %4671 = vmatpush.bf16.msra.mxu0 %v4461
    %4672 = vmatmul.bf16.gmra.mxu0 %v4262
    %v4673 = vpop.f32.mrf.mxu0
    %v4674 = vadd.f32 %v4254, %v4673
    %v4675 = vpop.f32.mrf.mxu0
    %4676 = vdwg.mxu0
    %4677 = vmatpush.bf16.msra.mxu0 %v4521
    %4678 = vmatpush.bf16.msra.mxu0 %v4517
    %4679 = vmatpush.bf16.msra.mxu0 %v4513
    %4680 = vmatpush.bf16.msra.mxu0 %v4509
    %4681 = vmatpush.bf16.msra.mxu0 %v4505
    %4682 = vmatpush.bf16.msra.mxu0 %v4501
    %4683 = vmatpush.bf16.msra.mxu0 %v4497
    %4684 = vmatpush.bf16.msra.mxu0 %v4493
    %4685 = vmatmul.bf16.gmra.mxu0 %v4263
    %v4686 = vpop.f32.mrf.mxu0
    %v4687 = vadd.f32 %v4674, %v4686
    %v4688 = vpop.f32.mrf.mxu0
    %4689 = vdwg.mxu0
    %v4690 = vxor.u32 %v4609, 2147483648
    %v4691 = vmul.f32 %v4690, 1.442695
    %v4692 = vpow.pop %v4691
    %v4693 = vadd.f32 %v4692, 1.0
    %v4694 = vrcp.pop %v4693
    %v4695 = vmul.f32 %v4693, %v4694
    %v4696 = vsub.f32 1.0, %v4695
    %v4697 = vmul.f32 %v4694, %v4696
    %v4698 = vadd.f32 %v4694, %v4697
    %vm4699 = vweird.f32 %v4693
    %vm4700 = vweird.f32 %v4694
    %vm4701 = vmor %vm4699, %vm4700
    %v4702 = vsel %vm4701, %v4694, %v4698
    %v4703 = vand.u32 2147483647, %v4693
    %vm4704 = vcmp.eq.f32.partialorder %v4703, 8.507059e+37
    %v4705 = vand.u32 %v4693, 2147483648
    %v4706 = vor.u32 1.1754944e-38, %v4705
    %v4707 = vsel %vm4704, %v4706, %v4702
    %v4708 = vmul.f32 1.0, %v4707
    %v4709 = vxor.u32 %v4635, 2147483648
    %v4710 = vmul.f32 %v4709, 1.442695
    %v4711 = vpow.pop %v4710
    %v4712 = vadd.f32 %v4711, 1.0
    %v4713 = vrcp.pop %v4712
    %v4714 = vmul.f32 %v4712, %v4713
    %v4715 = vsub.f32 1.0, %v4714
    %v4716 = vmul.f32 %v4713, %v4715
    %v4717 = vadd.f32 %v4713, %v4716
    %vm4718 = vweird.f32 %v4712
    %vm4719 = vweird.f32 %v4713
    %vm4720 = vmor %vm4718, %vm4719
    %v4721 = vsel %vm4720, %v4713, %v4717
    %v4722 = vand.u32 2147483647, %v4712
    %vm4723 = vcmp.eq.f32.partialorder %v4722, 8.507059e+37
    %v4724 = vand.u32 %v4712, 2147483648
    %v4725 = vor.u32 1.1754944e-38, %v4724
    %v4726 = vsel %vm4723, %v4725, %v4721
    %v4727 = vmul.f32 1.0, %v4726
    %v4728 = vtanh.pop %v4661
    %v4729 = vxor.u32 %v4687, 2147483648
    %v4730 = vmul.f32 %v4729, 1.442695
    %v4731 = vpow.pop %v4730
    %v4732 = vadd.f32 %v4731, 1.0
    %v4733 = vrcp.pop %v4732
    %v4734 = vmul.f32 %v4732, %v4733
    %v4735 = vsub.f32 1.0, %v4734
    %v4736 = vmul.f32 %v4733, %v4735
    %v4737 = vadd.f32 %v4733, %v4736
    %vm4738 = vweird.f32 %v4732
    %vm4739 = vweird.f32 %v4733
    %vm4740 = vmor %vm4738, %vm4739
    %v4741 = vsel %vm4740, %v4733, %v4737
    %v4742 = vand.u32 2147483647, %v4732
    %vm4743 = vcmp.eq.f32.partialorder %v4742, 8.507059e+37
    %v4744 = vand.u32 %v4732, 2147483648
    %v4745 = vor.u32 1.1754944e-38, %v4744
    %v4746 = vsel %vm4743, %v4745, %v4741
    %v4747 = vmul.f32 1.0, %v4746
    %v4748 = vmul.f32 %v4727, %v3604
    %v4749 = vmul.f32 %v4708, %v4728
    %v4750 = vadd.f32 %v4748, %v4749
    %v4751 = vtanh.pop %v4750
    %v4752 = vmul.f32 %v4747, %v4751
    %s4753 = scalar_lea.vmem %s3, 16
    %v4754 = vld [vmem:[%s4753] sm:$0xf]
    %4755 = vst [vmem:[#allocation2] sm:$0xf] %v4754
    %4756 = vst [vmem:[#allocation2 + $0x4] sm:$0xf] %v4180
    %v4757 = vld [vmem:[#allocation2] sm:$0xff]
    %v4758 = vld [vmem:[%s4] sm:$0xff]
    %v4759 = vld [vmem:[%s4 + $0x8] sm:$0xff]
    %v4760 = vld [vmem:[%s4 + $0x10] sm:$0xff]
    %v4761 = vld [vmem:[%s4 + $0x18] sm:$0xff]
    %v4762 = vld [vmem:[%s4 + $0x20] sm:$0xff]
    %v4763 = vld [vmem:[%s4 + $0x28] sm:$0xff]
    %v4764 = vld [vmem:[%s4 + $0x30] sm:$0xff]
    %v4765 = vld [vmem:[%s4 + $0x38] sm:$0xff]
    %v4766 = vld [vmem:[%s4 + $0x40] sm:$0xff]
    %v4767 = vld [vmem:[%s4 + $0x48] sm:$0xff]
    %v4768 = vld [vmem:[%s4 + $0x50] sm:$0xff]
    %v4769 = vld [vmem:[%s4 + $0x58] sm:$0xff]
    %v4770 = vld [vmem:[%s4 + $0x60] sm:$0xff]
    %v4771 = vld [vmem:[%s4 + $0x68] sm:$0xff]
    %v4772 = vld [vmem:[%s4 + $0x70] sm:$0xff]
    %v4773 = vld [vmem:[%s4 + $0x78] sm:$0xff]
    %v4774 = vld [vmem:[%s4 + $0x80] sm:$0xff]
    %v4775 = vld [vmem:[%s4 + $0x88] sm:$0xff]
    %v4776 = vld [vmem:[%s4 + $0x90] sm:$0xff]
    %v4777 = vld [vmem:[%s4 + $0x98] sm:$0xff]
    %v4778 = vld [vmem:[%s4 + $0xa0] sm:$0xff]
    %v4779 = vld [vmem:[%s4 + $0xa8] sm:$0xff]
    %v4780 = vld [vmem:[%s4 + $0xb0] sm:$0xff]
    %v4781 = vld [vmem:[%s4 + $0xb8] sm:$0xff]
    %v4782 = vld [vmem:[%s4 + $0xc0] sm:$0xff]
    %v4783 = vld [vmem:[%s4 + $0xc8] sm:$0xff]
    %v4784 = vld [vmem:[%s4 + $0xd0] sm:$0xff]
    %v4785 = vld [vmem:[%s4 + $0xd8] sm:$0xff]
    %v4786 = vld [vmem:[%s4 + $0xe0] sm:$0xff]
    %v4787 = vld [vmem:[%s4 + $0xe8] sm:$0xff]
    %v4788 = vld [vmem:[%s4 + $0xf0] sm:$0xff]
    %v4789 = vld [vmem:[%s4 + $0xf8] sm:$0xff]
    %v4790 = vld [vmem:[%s4 + $0x100] sm:$0xff]
    %v4791 = vld [vmem:[%s4 + $0x108] sm:$0xff]
    %v4792 = vld [vmem:[%s4 + $0x110] sm:$0xff]
    %v4793 = vld [vmem:[%s4 + $0x118] sm:$0xff]
    %v4794 = vld [vmem:[%s4 + $0x120] sm:$0xff]
    %v4795 = vld [vmem:[%s4 + $0x128] sm:$0xff]
    %v4796 = vld [vmem:[%s4 + $0x130] sm:$0xff]
    %v4797 = vld [vmem:[%s4 + $0x138] sm:$0xff]
    %v4798 = vld [vmem:[%s4 + $0x140] sm:$0xff]
    %v4799 = vld [vmem:[%s4 + $0x148] sm:$0xff]
    %v4800 = vld [vmem:[%s4 + $0x150] sm:$0xff]
    %v4801 = vld [vmem:[%s4 + $0x158] sm:$0xff]
    %v4802 = vld [vmem:[%s4 + $0x160] sm:$0xff]
    %v4803 = vld [vmem:[%s4 + $0x168] sm:$0xff]
    %v4804 = vld [vmem:[%s4 + $0x170] sm:$0xff]
    %v4805 = vld [vmem:[%s4 + $0x178] sm:$0xff]
    %v4806 = vld [vmem:[%s4 + $0x180] sm:$0xff]
    %v4807 = vld [vmem:[%s4 + $0x188] sm:$0xff]
    %v4808 = vld [vmem:[%s4 + $0x190] sm:$0xff]
    %v4809 = vld [vmem:[%s4 + $0x198] sm:$0xff]
    %v4810 = vld [vmem:[%s4 + $0x1a0] sm:$0xff]
    %v4811 = vld [vmem:[%s4 + $0x1a8] sm:$0xff]
    %v4812 = vld [vmem:[%s4 + $0x1b0] sm:$0xff]
    %v4813 = vld [vmem:[%s4 + $0x1b8] sm:$0xff]
    %v4814 = vld [vmem:[%s4 + $0x1c0] sm:$0xff]
    %v4815 = vld [vmem:[%s4 + $0x1c8] sm:$0xff]
    %v4816 = vld [vmem:[%s4 + $0x1d0] sm:$0xff]
    %v4817 = vld [vmem:[%s4 + $0x1d8] sm:$0xff]
    %v4818 = vld [vmem:[%s4 + $0x1e0] sm:$0xff]
    %v4819 = vld [vmem:[%s4 + $0x1e8] sm:$0xff]
    %v4820 = vld [vmem:[%s4 + $0x1f0] sm:$0xff]
    %v4821 = vld [vmem:[%s4 + $0x1f8] sm:$0xff]
    %v4822 = vld [vmem:[%s5] sm:$0xf]
    %v4824 = vperm.slane %v4822, 0
    %v4825 = vperm.slane %v4822, 1
    %v4826 = vperm.slane %v4822, 2
    %v4827 = vperm.slane %v4822, 3
    %v4833 = vunpack.c.l.b16 %v4757
    %v4834 = vunpack.c.h.b16 %v4757
    %v4835 = vpack.c.b16 %v4833, %v4833
    %v4836 = vpack.c.b16 %v4834, %v4834
    %v4903 = vunpack.c.l.b16 %v4758
    %v4904 = vunpack.c.h.b16 %v4758
    %v4905 = vunpack.c.l.b16 %v4759
    %v4906 = vunpack.c.h.b16 %v4759
    %v4907 = vunpack.c.l.b16 %v4760
    %v4908 = vunpack.c.h.b16 %v4760
    %v4909 = vunpack.c.l.b16 %v4761
    %v4910 = vunpack.c.h.b16 %v4761
    %v4911 = vunpack.c.l.b16 %v4762
    %v4912 = vunpack.c.h.b16 %v4762
    %v4913 = vunpack.c.l.b16 %v4763
    %v4914 = vunpack.c.h.b16 %v4763
    %v4915 = vunpack.c.l.b16 %v4764
    %v4916 = vunpack.c.h.b16 %v4764
    %v4917 = vunpack.c.l.b16 %v4765
    %v4918 = vunpack.c.h.b16 %v4765
    %v4919 = vunpack.c.l.b16 %v4766
    %v4920 = vunpack.c.h.b16 %v4766
    %v4921 = vunpack.c.l.b16 %v4767
    %v4922 = vunpack.c.h.b16 %v4767
    %v4923 = vunpack.c.l.b16 %v4768
    %v4924 = vunpack.c.h.b16 %v4768
    %v4925 = vunpack.c.l.b16 %v4769
    %v4926 = vunpack.c.h.b16 %v4769
    %v4927 = vunpack.c.l.b16 %v4770
    %v4928 = vunpack.c.h.b16 %v4770
    %v4929 = vunpack.c.l.b16 %v4771
    %v4930 = vunpack.c.h.b16 %v4771
    %v4931 = vunpack.c.l.b16 %v4772
    %v4932 = vunpack.c.h.b16 %v4772
    %v4933 = vunpack.c.l.b16 %v4773
    %v4934 = vunpack.c.h.b16 %v4773
    %v4935 = vunpack.c.l.b16 %v4774
    %v4936 = vunpack.c.h.b16 %v4774
    %v4937 = vunpack.c.l.b16 %v4775
    %v4938 = vunpack.c.h.b16 %v4775
    %v4939 = vunpack.c.l.b16 %v4776
    %v4940 = vunpack.c.h.b16 %v4776
    %v4941 = vunpack.c.l.b16 %v4777
    %v4942 = vunpack.c.h.b16 %v4777
    %v4943 = vunpack.c.l.b16 %v4778
    %v4944 = vunpack.c.h.b16 %v4778
    %v4945 = vunpack.c.l.b16 %v4779
    %v4946 = vunpack.c.h.b16 %v4779
    %v4947 = vunpack.c.l.b16 %v4780
    %v4948 = vunpack.c.h.b16 %v4780
    %v4949 = vunpack.c.l.b16 %v4781
    %v4950 = vunpack.c.h.b16 %v4781
    %v4951 = vunpack.c.l.b16 %v4782
    %v4952 = vunpack.c.h.b16 %v4782
    %v4953 = vunpack.c.l.b16 %v4783
    %v4954 = vunpack.c.h.b16 %v4783
    %v4955 = vunpack.c.l.b16 %v4784
    %v4956 = vunpack.c.h.b16 %v4784
    %v4957 = vunpack.c.l.b16 %v4785
    %v4958 = vunpack.c.h.b16 %v4785
    %v4959 = vunpack.c.l.b16 %v4786
    %v4960 = vunpack.c.h.b16 %v4786
    %v4961 = vunpack.c.l.b16 %v4787
    %v4962 = vunpack.c.h.b16 %v4787
    %v4963 = vunpack.c.l.b16 %v4788
    %v4964 = vunpack.c.h.b16 %v4788
    %v4965 = vunpack.c.l.b16 %v4789
    %v4966 = vunpack.c.h.b16 %v4789
    %v4967 = vunpack.c.l.b16 %v4790
    %v4968 = vunpack.c.h.b16 %v4790
    %v4969 = vunpack.c.l.b16 %v4791
    %v4970 = vunpack.c.h.b16 %v4791
    %v4971 = vunpack.c.l.b16 %v4792
    %v4972 = vunpack.c.h.b16 %v4792
    %v4973 = vunpack.c.l.b16 %v4793
    %v4974 = vunpack.c.h.b16 %v4793
    %v4975 = vunpack.c.l.b16 %v4794
    %v4976 = vunpack.c.h.b16 %v4794
    %v4977 = vunpack.c.l.b16 %v4795
    %v4978 = vunpack.c.h.b16 %v4795
    %v4979 = vunpack.c.l.b16 %v4796
    %v4980 = vunpack.c.h.b16 %v4796
    %v4981 = vunpack.c.l.b16 %v4797
    %v4982 = vunpack.c.h.b16 %v4797
    %v4983 = vunpack.c.l.b16 %v4798
    %v4984 = vunpack.c.h.b16 %v4798
    %v4985 = vunpack.c.l.b16 %v4799
    %v4986 = vunpack.c.h.b16 %v4799
    %v4987 = vunpack.c.l.b16 %v4800
    %v4988 = vunpack.c.h.b16 %v4800
    %v4989 = vunpack.c.l.b16 %v4801
    %v4990 = vunpack.c.h.b16 %v4801
    %v4991 = vunpack.c.l.b16 %v4802
    %v4992 = vunpack.c.h.b16 %v4802
    %v4993 = vunpack.c.l.b16 %v4803
    %v4994 = vunpack.c.h.b16 %v4803
    %v4995 = vunpack.c.l.b16 %v4804
    %v4996 = vunpack.c.h.b16 %v4804
    %v4997 = vunpack.c.l.b16 %v4805
    %v4998 = vunpack.c.h.b16 %v4805
    %v4999 = vunpack.c.l.b16 %v4806
    %v5000 = vunpack.c.h.b16 %v4806
    %v5001 = vunpack.c.l.b16 %v4807
    %v5002 = vunpack.c.h.b16 %v4807
    %v5003 = vunpack.c.l.b16 %v4808
    %v5004 = vunpack.c.h.b16 %v4808
    %v5005 = vunpack.c.l.b16 %v4809
    %v5006 = vunpack.c.h.b16 %v4809
    %v5007 = vunpack.c.l.b16 %v4810
    %v5008 = vunpack.c.h.b16 %v4810
    %v5009 = vunpack.c.l.b16 %v4811
    %v5010 = vunpack.c.h.b16 %v4811
    %v5011 = vunpack.c.l.b16 %v4812
    %v5012 = vunpack.c.h.b16 %v4812
    %v5013 = vunpack.c.l.b16 %v4813
    %v5014 = vunpack.c.h.b16 %v4813
    %v5015 = vunpack.c.l.b16 %v4814
    %v5016 = vunpack.c.h.b16 %v4814
    %v5017 = vunpack.c.l.b16 %v4815
    %v5018 = vunpack.c.h.b16 %v4815
    %v5019 = vunpack.c.l.b16 %v4816
    %v5020 = vunpack.c.h.b16 %v4816
    %v5021 = vunpack.c.l.b16 %v4817
    %v5022 = vunpack.c.h.b16 %v4817
    %v5023 = vunpack.c.l.b16 %v4818
    %v5024 = vunpack.c.h.b16 %v4818
    %v5025 = vunpack.c.l.b16 %v4819
    %v5026 = vunpack.c.h.b16 %v4819
    %v5027 = vunpack.c.l.b16 %v4820
    %v5028 = vunpack.c.h.b16 %v4820
    %v5029 = vunpack.c.l.b16 %v4821
    %v5030 = vunpack.c.h.b16 %v4821
    %v5031 = vpack.c.b16 %v4907, %v4903
    %v5032 = vpack.c.b16 %v4908, %v4904
    %v5033 = vpack.c.b16 %v4909, %v4905
    %v5034 = vpack.c.b16 %v4910, %v4906
    %v5035 = vpack.c.b16 %v4915, %v4911
    %v5036 = vpack.c.b16 %v4916, %v4912
    %v5037 = vpack.c.b16 %v4917, %v4913
    %v5038 = vpack.c.b16 %v4918, %v4914
    %v5039 = vpack.c.b16 %v4923, %v4919
    %v5040 = vpack.c.b16 %v4924, %v4920
    %v5041 = vpack.c.b16 %v4925, %v4921
    %v5042 = vpack.c.b16 %v4926, %v4922
    %v5043 = vpack.c.b16 %v4931, %v4927
    %v5044 = vpack.c.b16 %v4932, %v4928
    %v5045 = vpack.c.b16 %v4933, %v4929
    %v5046 = vpack.c.b16 %v4934, %v4930
    %v5047 = vpack.c.b16 %v4939, %v4935
    %v5048 = vpack.c.b16 %v4940, %v4936
    %v5049 = vpack.c.b16 %v4941, %v4937
    %v5050 = vpack.c.b16 %v4942, %v4938
    %v5051 = vpack.c.b16 %v4947, %v4943
    %v5052 = vpack.c.b16 %v4948, %v4944
    %v5053 = vpack.c.b16 %v4949, %v4945
    %v5054 = vpack.c.b16 %v4950, %v4946
    %v5055 = vpack.c.b16 %v4955, %v4951
    %v5056 = vpack.c.b16 %v4956, %v4952
    %v5057 = vpack.c.b16 %v4957, %v4953
    %v5058 = vpack.c.b16 %v4958, %v4954
    %v5059 = vpack.c.b16 %v4963, %v4959
    %v5060 = vpack.c.b16 %v4964, %v4960
    %v5061 = vpack.c.b16 %v4965, %v4961
    %v5062 = vpack.c.b16 %v4966, %v4962
    %v5063 = vpack.c.b16 %v4971, %v4967
    %v5064 = vpack.c.b16 %v4972, %v4968
    %v5065 = vpack.c.b16 %v4973, %v4969
    %v5066 = vpack.c.b16 %v4974, %v4970
    %v5067 = vpack.c.b16 %v4979, %v4975
    %v5068 = vpack.c.b16 %v4980, %v4976
    %v5069 = vpack.c.b16 %v4981, %v4977
    %v5070 = vpack.c.b16 %v4982, %v4978
    %v5071 = vpack.c.b16 %v4987, %v4983
    %v5072 = vpack.c.b16 %v4988, %v4984
    %v5073 = vpack.c.b16 %v4989, %v4985
    %v5074 = vpack.c.b16 %v4990, %v4986
    %v5075 = vpack.c.b16 %v4995, %v4991
    %v5076 = vpack.c.b16 %v4996, %v4992
    %v5077 = vpack.c.b16 %v4997, %v4993
    %v5078 = vpack.c.b16 %v4998, %v4994
    %v5079 = vpack.c.b16 %v5003, %v4999
    %v5080 = vpack.c.b16 %v5004, %v5000
    %v5081 = vpack.c.b16 %v5005, %v5001
    %v5082 = vpack.c.b16 %v5006, %v5002
    %v5083 = vpack.c.b16 %v5011, %v5007
    %v5084 = vpack.c.b16 %v5012, %v5008
    %v5085 = vpack.c.b16 %v5013, %v5009
    %v5086 = vpack.c.b16 %v5014, %v5010
    %v5087 = vpack.c.b16 %v5019, %v5015
    %v5088 = vpack.c.b16 %v5020, %v5016
    %v5089 = vpack.c.b16 %v5021, %v5017
    %v5090 = vpack.c.b16 %v5022, %v5018
    %v5091 = vpack.c.b16 %v5027, %v5023
    %v5092 = vpack.c.b16 %v5028, %v5024
    %v5093 = vpack.c.b16 %v5029, %v5025
    %v5094 = vpack.c.b16 %v5030, %v5026
    %5159 = vmatpush.bf16.msra.mxu0 %v5059
    %5160 = vmatpush.bf16.msra.mxu0 %v5055
    %5161 = vmatpush.bf16.msra.mxu0 %v5051
    %5162 = vmatpush.bf16.msra.mxu0 %v5047
    %5163 = vmatpush.bf16.msra.mxu0 %v5043
    %5164 = vmatpush.bf16.msra.mxu0 %v5039
    %5165 = vmatpush.bf16.msra.mxu0 %v5035
    %5166 = vmatpush.bf16.msra.mxu0 %v5031
    %5167 = vmatmul.bf16.gmra.mxu0 %v4835
    %v5168 = vpop.f32.mrf.mxu0
    %v5169 = vadd.f32 %v4824, %v5168
    %v5170 = vpop.f32.mrf.mxu0
    %5171 = vdwg.mxu0
    %5172 = vmatpush.bf16.msra.mxu0 %v5091
    %5173 = vmatpush.bf16.msra.mxu0 %v5087
    %5174 = vmatpush.bf16.msra.mxu0 %v5083
    %5175 = vmatpush.bf16.msra.mxu0 %v5079
    %5176 = vmatpush.bf16.msra.mxu0 %v5075
    %5177 = vmatpush.bf16.msra.mxu0 %v5071
    %5178 = vmatpush.bf16.msra.mxu0 %v5067
    %5179 = vmatpush.bf16.msra.mxu0 %v5063
    %5180 = vmatmul.bf16.gmra.mxu0 %v4836
    %v5181 = vpop.f32.mrf.mxu0
    %v5182 = vadd.f32 %v5169, %v5181
    %v5183 = vpop.f32.mrf.mxu0
    %5184 = vdwg.mxu0
    %5185 = vmatpush.bf16.msra.mxu0 %v5060
    %5186 = vmatpush.bf16.msra.mxu0 %v5056
    %5187 = vmatpush.bf16.msra.mxu0 %v5052
    %5188 = vmatpush.bf16.msra.mxu0 %v5048
    %5189 = vmatpush.bf16.msra.mxu0 %v5044
    %5190 = vmatpush.bf16.msra.mxu0 %v5040
    %5191 = vmatpush.bf16.msra.mxu0 %v5036
    %5192 = vmatpush.bf16.msra.mxu0 %v5032
    %5193 = vmatmul.bf16.gmra.mxu0 %v4835
    %v5194 = vpop.f32.mrf.mxu0
    %v5195 = vadd.f32 %v4825, %v5194
    %v5196 = vpop.f32.mrf.mxu0
    %5197 = vdwg.mxu0
    %5198 = vmatpush.bf16.msra.mxu0 %v5092
    %5199 = vmatpush.bf16.msra.mxu0 %v5088
    %5200 = vmatpush.bf16.msra.mxu0 %v5084
    %5201 = vmatpush.bf16.msra.mxu0 %v5080
    %5202 = vmatpush.bf16.msra.mxu0 %v5076
    %5203 = vmatpush.bf16.msra.mxu0 %v5072
    %5204 = vmatpush.bf16.msra.mxu0 %v5068
    %5205 = vmatpush.bf16.msra.mxu0 %v5064
    %5206 = vmatmul.bf16.gmra.mxu0 %v4836
    %v5207 = vpop.f32.mrf.mxu0
    %v5208 = vadd.f32 %v5195, %v5207
    %v5209 = vpop.f32.mrf.mxu0
    %5210 = vdwg.mxu0
    %5211 = vmatpush.bf16.msra.mxu0 %v5061
    %5212 = vmatpush.bf16.msra.mxu0 %v5057
    %5213 = vmatpush.bf16.msra.mxu0 %v5053
    %5214 = vmatpush.bf16.msra.mxu0 %v5049
    %5215 = vmatpush.bf16.msra.mxu0 %v5045
    %5216 = vmatpush.bf16.msra.mxu0 %v5041
    %5217 = vmatpush.bf16.msra.mxu0 %v5037
    %5218 = vmatpush.bf16.msra.mxu0 %v5033
    %5219 = vmatmul.bf16.gmra.mxu0 %v4835
    %v5220 = vpop.f32.mrf.mxu0
    %v5221 = vadd.f32 %v4826, %v5220
    %v5222 = vpop.f32.mrf.mxu0
    %5223 = vdwg.mxu0
    %5224 = vmatpush.bf16.msra.mxu0 %v5093
    %5225 = vmatpush.bf16.msra.mxu0 %v5089
    %5226 = vmatpush.bf16.msra.mxu0 %v5085
    %5227 = vmatpush.bf16.msra.mxu0 %v5081
    %5228 = vmatpush.bf16.msra.mxu0 %v5077
    %5229 = vmatpush.bf16.msra.mxu0 %v5073
    %5230 = vmatpush.bf16.msra.mxu0 %v5069
    %5231 = vmatpush.bf16.msra.mxu0 %v5065
    %5232 = vmatmul.bf16.gmra.mxu0 %v4836
    %v5233 = vpop.f32.mrf.mxu0
    %v5234 = vadd.f32 %v5221, %v5233
    %v5235 = vpop.f32.mrf.mxu0
    %5236 = vdwg.mxu0
    %5237 = vmatpush.bf16.msra.mxu0 %v5062
    %5238 = vmatpush.bf16.msra.mxu0 %v5058
    %5239 = vmatpush.bf16.msra.mxu0 %v5054
    %5240 = vmatpush.bf16.msra.mxu0 %v5050
    %5241 = vmatpush.bf16.msra.mxu0 %v5046
    %5242 = vmatpush.bf16.msra.mxu0 %v5042
    %5243 = vmatpush.bf16.msra.mxu0 %v5038
    %5244 = vmatpush.bf16.msra.mxu0 %v5034
    %5245 = vmatmul.bf16.gmra.mxu0 %v4835
    %v5246 = vpop.f32.mrf.mxu0
    %v5247 = vadd.f32 %v4827, %v5246
    %v5248 = vpop.f32.mrf.mxu0
    %5249 = vdwg.mxu0
    %5250 = vmatpush.bf16.msra.mxu0 %v5094
    %5251 = vmatpush.bf16.msra.mxu0 %v5090
    %5252 = vmatpush.bf16.msra.mxu0 %v5086
    %5253 = vmatpush.bf16.msra.mxu0 %v5082
    %5254 = vmatpush.bf16.msra.mxu0 %v5078
    %5255 = vmatpush.bf16.msra.mxu0 %v5074
    %5256 = vmatpush.bf16.msra.mxu0 %v5070
    %5257 = vmatpush.bf16.msra.mxu0 %v5066
    %5258 = vmatmul.bf16.gmra.mxu0 %v4836
    %v5259 = vpop.f32.mrf.mxu0
    %v5260 = vadd.f32 %v5247, %v5259
    %v5261 = vpop.f32.mrf.mxu0
    %5262 = vdwg.mxu0
    %v5263 = vxor.u32 %v5182, 2147483648
    %v5264 = vmul.f32 %v5263, 1.442695
    %v5265 = vpow.pop %v5264
    %v5266 = vadd.f32 %v5265, 1.0
    %v5267 = vrcp.pop %v5266
    %v5268 = vmul.f32 %v5266, %v5267
    %v5269 = vsub.f32 1.0, %v5268
    %v5270 = vmul.f32 %v5267, %v5269
    %v5271 = vadd.f32 %v5267, %v5270
    %vm5272 = vweird.f32 %v5266
    %vm5273 = vweird.f32 %v5267
    %vm5274 = vmor %vm5272, %vm5273
    %v5275 = vsel %vm5274, %v5267, %v5271
    %v5276 = vand.u32 2147483647, %v5266
    %vm5277 = vcmp.eq.f32.partialorder %v5276, 8.507059e+37
    %v5278 = vand.u32 %v5266, 2147483648
    %v5279 = vor.u32 1.1754944e-38, %v5278
    %v5280 = vsel %vm5277, %v5279, %v5275
    %v5281 = vmul.f32 1.0, %v5280
    %v5282 = vxor.u32 %v5208, 2147483648
    %v5283 = vmul.f32 %v5282, 1.442695
    %v5284 = vpow.pop %v5283
    %v5285 = vadd.f32 %v5284, 1.0
    %v5286 = vrcp.pop %v5285
    %v5287 = vmul.f32 %v5285, %v5286
    %v5288 = vsub.f32 1.0, %v5287
    %v5289 = vmul.f32 %v5286, %v5288
    %v5290 = vadd.f32 %v5286, %v5289
    %vm5291 = vweird.f32 %v5285
    %vm5292 = vweird.f32 %v5286
    %vm5293 = vmor %vm5291, %vm5292
    %v5294 = vsel %vm5293, %v5286, %v5290
    %v5295 = vand.u32 2147483647, %v5285
    %vm5296 = vcmp.eq.f32.partialorder %v5295, 8.507059e+37
    %v5297 = vand.u32 %v5285, 2147483648
    %v5298 = vor.u32 1.1754944e-38, %v5297
    %v5299 = vsel %vm5296, %v5298, %v5294
    %v5300 = vmul.f32 1.0, %v5299
    %v5301 = vtanh.pop %v5234
    %v5302 = vxor.u32 %v5260, 2147483648
    %v5303 = vmul.f32 %v5302, 1.442695
    %v5304 = vpow.pop %v5303
    %v5305 = vadd.f32 %v5304, 1.0
    %v5306 = vrcp.pop %v5305
    %v5307 = vmul.f32 %v5305, %v5306
    %v5308 = vsub.f32 1.0, %v5307
    %v5309 = vmul.f32 %v5306, %v5308
    %v5310 = vadd.f32 %v5306, %v5309
    %vm5311 = vweird.f32 %v5305
    %vm5312 = vweird.f32 %v5306
    %vm5313 = vmor %vm5311, %vm5312
    %v5314 = vsel %vm5313, %v5306, %v5310
    %v5315 = vand.u32 2147483647, %v5305
    %vm5316 = vcmp.eq.f32.partialorder %v5315, 8.507059e+37
    %v5317 = vand.u32 %v5305, 2147483648
    %v5318 = vor.u32 1.1754944e-38, %v5317
    %v5319 = vsel %vm5316, %v5318, %v5314
    %v5320 = vmul.f32 1.0, %v5319
    %v5321 = vmul.f32 %v5300, %v4177
    %v5322 = vmul.f32 %v5281, %v5301
    %v5323 = vadd.f32 %v5321, %v5322
    %v5324 = vtanh.pop %v5323
    %v5325 = vmul.f32 %v5320, %v5324
    %v5326 = vpack.c.bf16 %v5325, %v5325
    %5327 = vst [vmem:[#allocation3] sm:$0xf] %v5326
    %v5328 = vpack.c.bf16 %v4752, %v4752
    %5329 = vst [vmem:[#allocation3 + $0x4] sm:$0xf] %v5328
    %v5330 = vld [vmem:[#allocation3] sm:$0xff]
    %v5331 = vld [vmem:[#allocation4] sm:$0xff]
    %v5332 = vld [vmem:[#allocation4 + $0x8] sm:$0xff]
    %v5333 = vld [vmem:[#allocation4 + $0x10] sm:$0xff]
    %v5334 = vld [vmem:[#allocation4 + $0x18] sm:$0xff]
    %v5335 = vld [vmem:[#allocation4 + $0x20] sm:$0xff]
    %v5336 = vld [vmem:[#allocation4 + $0x28] sm:$0xff]
    %v5337 = vld [vmem:[#allocation4 + $0x30] sm:$0xff]
    %v5338 = vld [vmem:[#allocation4 + $0x38] sm:$0xff]
    %v5339 = vld [vmem:[#allocation4 + $0x40] sm:$0xff]
    %v5340 = vld [vmem:[#allocation4 + $0x48] sm:$0xff]
    %v5341 = vld [vmem:[#allocation4 + $0x50] sm:$0xff]
    %v5342 = vld [vmem:[#allocation4 + $0x58] sm:$0xff]
    %v5343 = vld [vmem:[#allocation4 + $0x60] sm:$0xff]
    %v5344 = vld [vmem:[#allocation4 + $0x68] sm:$0xff]
    %v5345 = vld [vmem:[#allocation4 + $0x70] sm:$0xff]
    %v5346 = vld [vmem:[#allocation4 + $0x78] sm:$0xff]
    %v5347 = vld [vmem:[#allocation4 + $0x80] sm:$0xff]
    %v5348 = vld [vmem:[#allocation4 + $0x88] sm:$0xff]
    %v5349 = vld [vmem:[#allocation4 + $0x90] sm:$0xff]
    %v5350 = vld [vmem:[#allocation4 + $0x98] sm:$0xff]
    %v5351 = vld [vmem:[#allocation4 + $0xa0] sm:$0xff]
    %v5352 = vld [vmem:[#allocation4 + $0xa8] sm:$0xff]
    %v5353 = vld [vmem:[#allocation4 + $0xb0] sm:$0xff]
    %v5354 = vld [vmem:[#allocation4 + $0xb8] sm:$0xff]
    %v5355 = vld [vmem:[#allocation4 + $0xc0] sm:$0xff]
    %v5356 = vld [vmem:[#allocation4 + $0xc8] sm:$0xff]
    %v5357 = vld [vmem:[#allocation4 + $0xd0] sm:$0xff]
    %v5358 = vld [vmem:[#allocation4 + $0xd8] sm:$0xff]
    %v5359 = vld [vmem:[#allocation4 + $0xe0] sm:$0xff]
    %v5360 = vld [vmem:[#allocation4 + $0xe8] sm:$0xff]
    %v5361 = vld [vmem:[#allocation4 + $0xf0] sm:$0xff]
    %v5362 = vld [vmem:[#allocation4 + $0xf8] sm:$0xff]
    %v5363 = vld [vmem:[#allocation4 + $0x100] sm:$0xff]
    %v5364 = vld [vmem:[#allocation4 + $0x108] sm:$0xff]
    %v5365 = vld [vmem:[#allocation4 + $0x110] sm:$0xff]
    %v5366 = vld [vmem:[#allocation4 + $0x118] sm:$0xff]
    %v5367 = vld [vmem:[#allocation4 + $0x120] sm:$0xff]
    %v5368 = vld [vmem:[#allocation4 + $0x128] sm:$0xff]
    %v5369 = vld [vmem:[#allocation4 + $0x130] sm:$0xff]
    %v5370 = vld [vmem:[#allocation4 + $0x138] sm:$0xff]
    %v5371 = vld [vmem:[#allocation4 + $0x140] sm:$0xff]
    %v5372 = vld [vmem:[#allocation4 + $0x148] sm:$0xff]
    %v5373 = vld [vmem:[#allocation4 + $0x150] sm:$0xff]
    %v5374 = vld [vmem:[#allocation4 + $0x158] sm:$0xff]
    %v5375 = vld [vmem:[#allocation4 + $0x160] sm:$0xff]
    %v5376 = vld [vmem:[#allocation4 + $0x168] sm:$0xff]
    %v5377 = vld [vmem:[#allocation4 + $0x170] sm:$0xff]
    %v5378 = vld [vmem:[#allocation4 + $0x178] sm:$0xff]
    %v5379 = vld [vmem:[#allocation4 + $0x180] sm:$0xff]
    %v5380 = vld [vmem:[#allocation4 + $0x188] sm:$0xff]
    %v5381 = vld [vmem:[#allocation4 + $0x190] sm:$0xff]
    %v5382 = vld [vmem:[#allocation4 + $0x198] sm:$0xff]
    %v5383 = vld [vmem:[#allocation4 + $0x1a0] sm:$0xff]
    %v5384 = vld [vmem:[#allocation4 + $0x1a8] sm:$0xff]
    %v5385 = vld [vmem:[#allocation4 + $0x1b0] sm:$0xff]
    %v5386 = vld [vmem:[#allocation4 + $0x1b8] sm:$0xff]
    %v5387 = vld [vmem:[#allocation4 + $0x1c0] sm:$0xff]
    %v5388 = vld [vmem:[#allocation4 + $0x1c8] sm:$0xff]
    %v5389 = vld [vmem:[#allocation4 + $0x1d0] sm:$0xff]
    %v5390 = vld [vmem:[#allocation4 + $0x1d8] sm:$0xff]
    %v5391 = vld [vmem:[#allocation4 + $0x1e0] sm:$0xff]
    %v5392 = vld [vmem:[#allocation4 + $0x1e8] sm:$0xff]
    %v5393 = vld [vmem:[#allocation4 + $0x1f0] sm:$0xff]
    %v5394 = vld [vmem:[#allocation4 + $0x1f8] sm:$0xff]
    %v5395 = vld [vmem:[%s7] sm:$0xf]
    %v5397 = vperm.slane %v5395, 0
    %v5398 = vperm.slane %v5395, 1
    %v5399 = vperm.slane %v5395, 2
    %v5400 = vperm.slane %v5395, 3
    %v5406 = vunpack.c.l.b16 %v5330
    %v5407 = vunpack.c.h.b16 %v5330
    %v5408 = vpack.c.b16 %v5406, %v5406
    %v5409 = vpack.c.b16 %v5407, %v5407
    %v5476 = vunpack.c.l.b16 %v5331
    %v5477 = vunpack.c.h.b16 %v5331
    %v5478 = vunpack.c.l.b16 %v5332
    %v5479 = vunpack.c.h.b16 %v5332
    %v5480 = vunpack.c.l.b16 %v5333
    %v5481 = vunpack.c.h.b16 %v5333
    %v5482 = vunpack.c.l.b16 %v5334
    %v5483 = vunpack.c.h.b16 %v5334
    %v5484 = vunpack.c.l.b16 %v5335
    %v5485 = vunpack.c.h.b16 %v5335
    %v5486 = vunpack.c.l.b16 %v5336
    %v5487 = vunpack.c.h.b16 %v5336
    %v5488 = vunpack.c.l.b16 %v5337
    %v5489 = vunpack.c.h.b16 %v5337
    %v5490 = vunpack.c.l.b16 %v5338
    %v5491 = vunpack.c.h.b16 %v5338
    %v5492 = vunpack.c.l.b16 %v5339
    %v5493 = vunpack.c.h.b16 %v5339
    %v5494 = vunpack.c.l.b16 %v5340
    %v5495 = vunpack.c.h.b16 %v5340
    %v5496 = vunpack.c.l.b16 %v5341
    %v5497 = vunpack.c.h.b16 %v5341
    %v5498 = vunpack.c.l.b16 %v5342
    %v5499 = vunpack.c.h.b16 %v5342
    %v5500 = vunpack.c.l.b16 %v5343
    %v5501 = vunpack.c.h.b16 %v5343
    %v5502 = vunpack.c.l.b16 %v5344
    %v5503 = vunpack.c.h.b16 %v5344
    %v5504 = vunpack.c.l.b16 %v5345
    %v5505 = vunpack.c.h.b16 %v5345
    %v5506 = vunpack.c.l.b16 %v5346
    %v5507 = vunpack.c.h.b16 %v5346
    %v5508 = vunpack.c.l.b16 %v5347
    %v5509 = vunpack.c.h.b16 %v5347
    %v5510 = vunpack.c.l.b16 %v5348
    %v5511 = vunpack.c.h.b16 %v5348
    %v5512 = vunpack.c.l.b16 %v5349
    %v5513 = vunpack.c.h.b16 %v5349
    %v5514 = vunpack.c.l.b16 %v5350
    %v5515 = vunpack.c.h.b16 %v5350
    %v5516 = vunpack.c.l.b16 %v5351
    %v5517 = vunpack.c.h.b16 %v5351
    %v5518 = vunpack.c.l.b16 %v5352
    %v5519 = vunpack.c.h.b16 %v5352
    %v5520 = vunpack.c.l.b16 %v5353
    %v5521 = vunpack.c.h.b16 %v5353
    %v5522 = vunpack.c.l.b16 %v5354
    %v5523 = vunpack.c.h.b16 %v5354
    %v5524 = vunpack.c.l.b16 %v5355
    %v5525 = vunpack.c.h.b16 %v5355
    %v5526 = vunpack.c.l.b16 %v5356
    %v5527 = vunpack.c.h.b16 %v5356
    %v5528 = vunpack.c.l.b16 %v5357
    %v5529 = vunpack.c.h.b16 %v5357
    %v5530 = vunpack.c.l.b16 %v5358
    %v5531 = vunpack.c.h.b16 %v5358
    %v5532 = vunpack.c.l.b16 %v5359
    %v5533 = vunpack.c.h.b16 %v5359
    %v5534 = vunpack.c.l.b16 %v5360
    %v5535 = vunpack.c.h.b16 %v5360
    %v5536 = vunpack.c.l.b16 %v5361
    %v5537 = vunpack.c.h.b16 %v5361
    %v5538 = vunpack.c.l.b16 %v5362
    %v5539 = vunpack.c.h.b16 %v5362
    %v5540 = vunpack.c.l.b16 %v5363
    %v5541 = vunpack.c.h.b16 %v5363
    %v5542 = vunpack.c.l.b16 %v5364
    %v5543 = vunpack.c.h.b16 %v5364
    %v5544 = vunpack.c.l.b16 %v5365
    %v5545 = vunpack.c.h.b16 %v5365
    %v5546 = vunpack.c.l.b16 %v5366
    %v5547 = vunpack.c.h.b16 %v5366
    %v5548 = vunpack.c.l.b16 %v5367
    %v5549 = vunpack.c.h.b16 %v5367
    %v5550 = vunpack.c.l.b16 %v5368
    %v5551 = vunpack.c.h.b16 %v5368
    %v5552 = vunpack.c.l.b16 %v5369
    %v5553 = vunpack.c.h.b16 %v5369
    %v5554 = vunpack.c.l.b16 %v5370
    %v5555 = vunpack.c.h.b16 %v5370
    %v5556 = vunpack.c.l.b16 %v5371
    %v5557 = vunpack.c.h.b16 %v5371
    %v5558 = vunpack.c.l.b16 %v5372
    %v5559 = vunpack.c.h.b16 %v5372
    %v5560 = vunpack.c.l.b16 %v5373
    %v5561 = vunpack.c.h.b16 %v5373
    %v5562 = vunpack.c.l.b16 %v5374
    %v5563 = vunpack.c.h.b16 %v5374
    %v5564 = vunpack.c.l.b16 %v5375
    %v5565 = vunpack.c.h.b16 %v5375
    %v5566 = vunpack.c.l.b16 %v5376
    %v5567 = vunpack.c.h.b16 %v5376
    %v5568 = vunpack.c.l.b16 %v5377
    %v5569 = vunpack.c.h.b16 %v5377
    %v5570 = vunpack.c.l.b16 %v5378
    %v5571 = vunpack.c.h.b16 %v5378
    %v5572 = vunpack.c.l.b16 %v5379
    %v5573 = vunpack.c.h.b16 %v5379
    %v5574 = vunpack.c.l.b16 %v5380
    %v5575 = vunpack.c.h.b16 %v5380
    %v5576 = vunpack.c.l.b16 %v5381
    %v5577 = vunpack.c.h.b16 %v5381
    %v5578 = vunpack.c.l.b16 %v5382
    %v5579 = vunpack.c.h.b16 %v5382
    %v5580 = vunpack.c.l.b16 %v5383
    %v5581 = vunpack.c.h.b16 %v5383
    %v5582 = vunpack.c.l.b16 %v5384
    %v5583 = vunpack.c.h.b16 %v5384
    %v5584 = vunpack.c.l.b16 %v5385
    %v5585 = vunpack.c.h.b16 %v5385
    %v5586 = vunpack.c.l.b16 %v5386
    %v5587 = vunpack.c.h.b16 %v5386
    %v5588 = vunpack.c.l.b16 %v5387
    %v5589 = vunpack.c.h.b16 %v5387
    %v5590 = vunpack.c.l.b16 %v5388
    %v5591 = vunpack.c.h.b16 %v5388
    %v5592 = vunpack.c.l.b16 %v5389
    %v5593 = vunpack.c.h.b16 %v5389
    %v5594 = vunpack.c.l.b16 %v5390
    %v5595 = vunpack.c.h.b16 %v5390
    %v5596 = vunpack.c.l.b16 %v5391
    %v5597 = vunpack.c.h.b16 %v5391
    %v5598 = vunpack.c.l.b16 %v5392
    %v5599 = vunpack.c.h.b16 %v5392
    %v5600 = vunpack.c.l.b16 %v5393
    %v5601 = vunpack.c.h.b16 %v5393
    %v5602 = vunpack.c.l.b16 %v5394
    %v5603 = vunpack.c.h.b16 %v5394
    %v5604 = vpack.c.b16 %v5480, %v5476
    %v5605 = vpack.c.b16 %v5481, %v5477
    %v5606 = vpack.c.b16 %v5482, %v5478
    %v5607 = vpack.c.b16 %v5483, %v5479
    %v5608 = vpack.c.b16 %v5488, %v5484
    %v5609 = vpack.c.b16 %v5489, %v5485
    %v5610 = vpack.c.b16 %v5490, %v5486
    %v5611 = vpack.c.b16 %v5491, %v5487
    %v5612 = vpack.c.b16 %v5496, %v5492
    %v5613 = vpack.c.b16 %v5497, %v5493
    %v5614 = vpack.c.b16 %v5498, %v5494
    %v5615 = vpack.c.b16 %v5499, %v5495
    %v5616 = vpack.c.b16 %v5504, %v5500
    %v5617 = vpack.c.b16 %v5505, %v5501
    %v5618 = vpack.c.b16 %v5506, %v5502
    %v5619 = vpack.c.b16 %v5507, %v5503
    %v5620 = vpack.c.b16 %v5512, %v5508
    %v5621 = vpack.c.b16 %v5513, %v5509
    %v5622 = vpack.c.b16 %v5514, %v5510
    %v5623 = vpack.c.b16 %v5515, %v5511
    %v5624 = vpack.c.b16 %v5520, %v5516
    %v5625 = vpack.c.b16 %v5521, %v5517
    %v5626 = vpack.c.b16 %v5522, %v5518
    %v5627 = vpack.c.b16 %v5523, %v5519
    %v5628 = vpack.c.b16 %v5528, %v5524
    %v5629 = vpack.c.b16 %v5529, %v5525
    %v5630 = vpack.c.b16 %v5530, %v5526
    %v5631 = vpack.c.b16 %v5531, %v5527
    %v5632 = vpack.c.b16 %v5536, %v5532
    %v5633 = vpack.c.b16 %v5537, %v5533
    %v5634 = vpack.c.b16 %v5538, %v5534
    %v5635 = vpack.c.b16 %v5539, %v5535
    %v5636 = vpack.c.b16 %v5544, %v5540
    %v5637 = vpack.c.b16 %v5545, %v5541
    %v5638 = vpack.c.b16 %v5546, %v5542
    %v5639 = vpack.c.b16 %v5547, %v5543
    %v5640 = vpack.c.b16 %v5552, %v5548
    %v5641 = vpack.c.b16 %v5553, %v5549
    %v5642 = vpack.c.b16 %v5554, %v5550
    %v5643 = vpack.c.b16 %v5555, %v5551
    %v5644 = vpack.c.b16 %v5560, %v5556
    %v5645 = vpack.c.b16 %v5561, %v5557
    %v5646 = vpack.c.b16 %v5562, %v5558
    %v5647 = vpack.c.b16 %v5563, %v5559
    %v5648 = vpack.c.b16 %v5568, %v5564
    %v5649 = vpack.c.b16 %v5569, %v5565
    %v5650 = vpack.c.b16 %v5570, %v5566
    %v5651 = vpack.c.b16 %v5571, %v5567
    %v5652 = vpack.c.b16 %v5576, %v5572
    %v5653 = vpack.c.b16 %v5577, %v5573
    %v5654 = vpack.c.b16 %v5578, %v5574
    %v5655 = vpack.c.b16 %v5579, %v5575
    %v5656 = vpack.c.b16 %v5584, %v5580
    %v5657 = vpack.c.b16 %v5585, %v5581
    %v5658 = vpack.c.b16 %v5586, %v5582
    %v5659 = vpack.c.b16 %v5587, %v5583
    %v5660 = vpack.c.b16 %v5592, %v5588
    %v5661 = vpack.c.b16 %v5593, %v5589
    %v5662 = vpack.c.b16 %v5594, %v5590
    %v5663 = vpack.c.b16 %v5595, %v5591
    %v5664 = vpack.c.b16 %v5600, %v5596
    %v5665 = vpack.c.b16 %v5601, %v5597
    %v5666 = vpack.c.b16 %v5602, %v5598
    %v5667 = vpack.c.b16 %v5603, %v5599
    %5732 = vmatpush.bf16.msra.mxu0 %v5632
    %5733 = vmatpush.bf16.msra.mxu0 %v5628
    %5734 = vmatpush.bf16.msra.mxu0 %v5624
    %5735 = vmatpush.bf16.msra.mxu0 %v5620
    %5736 = vmatpush.bf16.msra.mxu0 %v5616
    %5737 = vmatpush.bf16.msra.mxu0 %v5612
    %5738 = vmatpush.bf16.msra.mxu0 %v5608
    %5739 = vmatpush.bf16.msra.mxu0 %v5604
    %5740 = vmatmul.bf16.gmra.mxu0 %v5408
    %v5741 = vpop.f32.mrf.mxu0
    %v5742 = vadd.f32 %v5397, %v5741
    %v5743 = vpop.f32.mrf.mxu0
    %5744 = vdwg.mxu0
    %5745 = vmatpush.bf16.msra.mxu0 %v5664
    %5746 = vmatpush.bf16.msra.mxu0 %v5660
    %5747 = vmatpush.bf16.msra.mxu0 %v5656
    %5748 = vmatpush.bf16.msra.mxu0 %v5652
    %5749 = vmatpush.bf16.msra.mxu0 %v5648
    %5750 = vmatpush.bf16.msra.mxu0 %v5644
    %5751 = vmatpush.bf16.msra.mxu0 %v5640
    %5752 = vmatpush.bf16.msra.mxu0 %v5636
    %5753 = vmatmul.bf16.gmra.mxu0 %v5409
    %v5754 = vpop.f32.mrf.mxu0
    %v5755 = vadd.f32 %v5742, %v5754
    %v5756 = vpop.f32.mrf.mxu0
    %5757 = vdwg.mxu0
    %5758 = vmatpush.bf16.msra.mxu0 %v5633
    %5759 = vmatpush.bf16.msra.mxu0 %v5629
    %5760 = vmatpush.bf16.msra.mxu0 %v5625
    %5761 = vmatpush.bf16.msra.mxu0 %v5621
    %5762 = vmatpush.bf16.msra.mxu0 %v5617
    %5763 = vmatpush.bf16.msra.mxu0 %v5613
    %5764 = vmatpush.bf16.msra.mxu0 %v5609
    %5765 = vmatpush.bf16.msra.mxu0 %v5605
    %5766 = vmatmul.bf16.gmra.mxu0 %v5408
    %v5767 = vpop.f32.mrf.mxu0
    %v5768 = vadd.f32 %v5398, %v5767
    %v5769 = vpop.f32.mrf.mxu0
    %5770 = vdwg.mxu0
    %5771 = vmatpush.bf16.msra.mxu0 %v5665
    %5772 = vmatpush.bf16.msra.mxu0 %v5661
    %5773 = vmatpush.bf16.msra.mxu0 %v5657
    %5774 = vmatpush.bf16.msra.mxu0 %v5653
    %5775 = vmatpush.bf16.msra.mxu0 %v5649
    %5776 = vmatpush.bf16.msra.mxu0 %v5645
    %5777 = vmatpush.bf16.msra.mxu0 %v5641
    %5778 = vmatpush.bf16.msra.mxu0 %v5637
    %5779 = vmatmul.bf16.gmra.mxu0 %v5409
    %v5780 = vpop.f32.mrf.mxu0
    %v5781 = vadd.f32 %v5768, %v5780
    %v5782 = vpop.f32.mrf.mxu0
    %5783 = vdwg.mxu0
    %5784 = vmatpush.bf16.msra.mxu0 %v5634
    %5785 = vmatpush.bf16.msra.mxu0 %v5630
    %5786 = vmatpush.bf16.msra.mxu0 %v5626
    %5787 = vmatpush.bf16.msra.mxu0 %v5622
    %5788 = vmatpush.bf16.msra.mxu0 %v5618
    %5789 = vmatpush.bf16.msra.mxu0 %v5614
    %5790 = vmatpush.bf16.msra.mxu0 %v5610
    %5791 = vmatpush.bf16.msra.mxu0 %v5606
    %5792 = vmatmul.bf16.gmra.mxu0 %v5408
    %v5793 = vpop.f32.mrf.mxu0
    %v5794 = vadd.f32 %v5399, %v5793
    %v5795 = vpop.f32.mrf.mxu0
    %5796 = vdwg.mxu0
    %5797 = vmatpush.bf16.msra.mxu0 %v5666
    %5798 = vmatpush.bf16.msra.mxu0 %v5662
    %5799 = vmatpush.bf16.msra.mxu0 %v5658
    %5800 = vmatpush.bf16.msra.mxu0 %v5654
    %5801 = vmatpush.bf16.msra.mxu0 %v5650
    %5802 = vmatpush.bf16.msra.mxu0 %v5646
    %5803 = vmatpush.bf16.msra.mxu0 %v5642
    %5804 = vmatpush.bf16.msra.mxu0 %v5638
    %5805 = vmatmul.bf16.gmra.mxu0 %v5409
    %v5806 = vpop.f32.mrf.mxu0
    %v5807 = vadd.f32 %v5794, %v5806
    %v5808 = vpop.f32.mrf.mxu0
    %5809 = vdwg.mxu0
    %5810 = vmatpush.bf16.msra.mxu0 %v5635
    %5811 = vmatpush.bf16.msra.mxu0 %v5631
    %5812 = vmatpush.bf16.msra.mxu0 %v5627
    %5813 = vmatpush.bf16.msra.mxu0 %v5623
    %5814 = vmatpush.bf16.msra.mxu0 %v5619
    %5815 = vmatpush.bf16.msra.mxu0 %v5615
    %5816 = vmatpush.bf16.msra.mxu0 %v5611
    %5817 = vmatpush.bf16.msra.mxu0 %v5607
    %5818 = vmatmul.bf16.gmra.mxu0 %v5408
    %v5819 = vpop.f32.mrf.mxu0
    %v5820 = vadd.f32 %v5400, %v5819
    %v5821 = vpop.f32.mrf.mxu0
    %5822 = vdwg.mxu0
    %5823 = vmatpush.bf16.msra.mxu0 %v5667
    %5824 = vmatpush.bf16.msra.mxu0 %v5663
    %5825 = vmatpush.bf16.msra.mxu0 %v5659
    %5826 = vmatpush.bf16.msra.mxu0 %v5655
    %5827 = vmatpush.bf16.msra.mxu0 %v5651
    %5828 = vmatpush.bf16.msra.mxu0 %v5647
    %5829 = vmatpush.bf16.msra.mxu0 %v5643
    %5830 = vmatpush.bf16.msra.mxu0 %v5639
    %5831 = vmatmul.bf16.gmra.mxu0 %v5409
    %v5832 = vpop.f32.mrf.mxu0
    %v5833 = vadd.f32 %v5820, %v5832
    %v5834 = vpop.f32.mrf.mxu0
    %5835 = vdwg.mxu0
    %v5836 = vxor.u32 %v5755, 2147483648
    %v5837 = vmul.f32 %v5836, 1.442695
    %v5838 = vpow.pop %v5837
    %v5839 = vadd.f32 %v5838, 1.0
    %v5840 = vrcp.pop %v5839
    %v5841 = vmul.f32 %v5839, %v5840
    %v5842 = vsub.f32 1.0, %v5841
    %v5843 = vmul.f32 %v5840, %v5842
    %v5844 = vadd.f32 %v5840, %v5843
    %vm5845 = vweird.f32 %v5839
    %vm5846 = vweird.f32 %v5840
    %vm5847 = vmor %vm5845, %vm5846
    %v5848 = vsel %vm5847, %v5840, %v5844
    %v5849 = vand.u32 2147483647, %v5839
    %vm5850 = vcmp.eq.f32.partialorder %v5849, 8.507059e+37
    %v5851 = vand.u32 %v5839, 2147483648
    %v5852 = vor.u32 1.1754944e-38, %v5851
    %v5853 = vsel %vm5850, %v5852, %v5848
    %v5854 = vmul.f32 1.0, %v5853
    %v5855 = vxor.u32 %v5781, 2147483648
    %v5856 = vmul.f32 %v5855, 1.442695
    %v5857 = vpow.pop %v5856
    %v5858 = vadd.f32 %v5857, 1.0
    %v5859 = vrcp.pop %v5858
    %v5860 = vmul.f32 %v5858, %v5859
    %v5861 = vsub.f32 1.0, %v5860
    %v5862 = vmul.f32 %v5859, %v5861
    %v5863 = vadd.f32 %v5859, %v5862
    %vm5864 = vweird.f32 %v5858
    %vm5865 = vweird.f32 %v5859
    %vm5866 = vmor %vm5864, %vm5865
    %v5867 = vsel %vm5866, %v5859, %v5863
    %v5868 = vand.u32 2147483647, %v5858
    %vm5869 = vcmp.eq.f32.partialorder %v5868, 8.507059e+37
    %v5870 = vand.u32 %v5858, 2147483648
    %v5871 = vor.u32 1.1754944e-38, %v5870
    %v5872 = vsel %vm5869, %v5871, %v5867
    %v5873 = vmul.f32 1.0, %v5872
    %v5874 = vtanh.pop %v5807
    %v5875 = vxor.u32 %v5833, 2147483648
    %v5876 = vmul.f32 %v5875, 1.442695
    %v5877 = vpow.pop %v5876
    %v5878 = vadd.f32 %v5877, 1.0
    %v5879 = vrcp.pop %v5878
    %v5880 = vmul.f32 %v5878, %v5879
    %v5881 = vsub.f32 1.0, %v5880
    %v5882 = vmul.f32 %v5879, %v5881
    %v5883 = vadd.f32 %v5879, %v5882
    %vm5884 = vweird.f32 %v5878
    %vm5885 = vweird.f32 %v5879
    %vm5886 = vmor %vm5884, %vm5885
    %v5887 = vsel %vm5886, %v5879, %v5883
    %v5888 = vand.u32 2147483647, %v5878
    %vm5889 = vcmp.eq.f32.partialorder %v5888, 8.507059e+37
    %v5890 = vand.u32 %v5878, 2147483648
    %v5891 = vor.u32 1.1754944e-38, %v5890
    %v5892 = vsel %vm5889, %v5891, %v5887
    %v5893 = vmul.f32 1.0, %v5892
    %v5894 = vmul.f32 %v5873, %v4750
    %v5895 = vmul.f32 %v5854, %v5874
    %v5896 = vadd.f32 %v5894, %v5895
    %v5897 = vtanh.pop %v5896
    %v5898 = vmul.f32 %v5893, %v5897
    %s5899 = scalar_lea.vmem %s3, 20
    %v5900 = vld [vmem:[%s5899] sm:$0xf]
    %5901 = vst [vmem:[#allocation2] sm:$0xf] %v5900
    %5902 = vst [vmem:[#allocation2 + $0x4] sm:$0xf] %v5326
    %v5903 = vld [vmem:[#allocation2] sm:$0xff]
    %v5904 = vld [vmem:[%s4] sm:$0xff]
    %v5905 = vld [vmem:[%s4 + $0x8] sm:$0xff]
    %v5906 = vld [vmem:[%s4 + $0x10] sm:$0xff]
    %v5907 = vld [vmem:[%s4 + $0x18] sm:$0xff]
    %v5908 = vld [vmem:[%s4 + $0x20] sm:$0xff]
    %v5909 = vld [vmem:[%s4 + $0x28] sm:$0xff]
    %v5910 = vld [vmem:[%s4 + $0x30] sm:$0xff]
    %v5911 = vld [vmem:[%s4 + $0x38] sm:$0xff]
    %v5912 = vld [vmem:[%s4 + $0x40] sm:$0xff]
    %v5913 = vld [vmem:[%s4 + $0x48] sm:$0xff]
    %v5914 = vld [vmem:[%s4 + $0x50] sm:$0xff]
    %v5915 = vld [vmem:[%s4 + $0x58] sm:$0xff]
    %v5916 = vld [vmem:[%s4 + $0x60] sm:$0xff]
    %v5917 = vld [vmem:[%s4 + $0x68] sm:$0xff]
    %v5918 = vld [vmem:[%s4 + $0x70] sm:$0xff]
    %v5919 = vld [vmem:[%s4 + $0x78] sm:$0xff]
    %v5920 = vld [vmem:[%s4 + $0x80] sm:$0xff]
    %v5921 = vld [vmem:[%s4 + $0x88] sm:$0xff]
    %v5922 = vld [vmem:[%s4 + $0x90] sm:$0xff]
    %v5923 = vld [vmem:[%s4 + $0x98] sm:$0xff]
    %v5924 = vld [vmem:[%s4 + $0xa0] sm:$0xff]
    %v5925 = vld [vmem:[%s4 + $0xa8] sm:$0xff]
    %v5926 = vld [vmem:[%s4 + $0xb0] sm:$0xff]
    %v5927 = vld [vmem:[%s4 + $0xb8] sm:$0xff]
    %v5928 = vld [vmem:[%s4 + $0xc0] sm:$0xff]
    %v5929 = vld [vmem:[%s4 + $0xc8] sm:$0xff]
    %v5930 = vld [vmem:[%s4 + $0xd0] sm:$0xff]
    %v5931 = vld [vmem:[%s4 + $0xd8] sm:$0xff]
    %v5932 = vld [vmem:[%s4 + $0xe0] sm:$0xff]
    %v5933 = vld [vmem:[%s4 + $0xe8] sm:$0xff]
    %v5934 = vld [vmem:[%s4 + $0xf0] sm:$0xff]
    %v5935 = vld [vmem:[%s4 + $0xf8] sm:$0xff]
    %v5936 = vld [vmem:[%s4 + $0x100] sm:$0xff]
    %v5937 = vld [vmem:[%s4 + $0x108] sm:$0xff]
    %v5938 = vld [vmem:[%s4 + $0x110] sm:$0xff]
    %v5939 = vld [vmem:[%s4 + $0x118] sm:$0xff]
    %v5940 = vld [vmem:[%s4 + $0x120] sm:$0xff]
    %v5941 = vld [vmem:[%s4 + $0x128] sm:$0xff]
    %v5942 = vld [vmem:[%s4 + $0x130] sm:$0xff]
    %v5943 = vld [vmem:[%s4 + $0x138] sm:$0xff]
    %v5944 = vld [vmem:[%s4 + $0x140] sm:$0xff]
    %v5945 = vld [vmem:[%s4 + $0x148] sm:$0xff]
    %v5946 = vld [vmem:[%s4 + $0x150] sm:$0xff]
    %v5947 = vld [vmem:[%s4 + $0x158] sm:$0xff]
    %v5948 = vld [vmem:[%s4 + $0x160] sm:$0xff]
    %v5949 = vld [vmem:[%s4 + $0x168] sm:$0xff]
    %v5950 = vld [vmem:[%s4 + $0x170] sm:$0xff]
    %v5951 = vld [vmem:[%s4 + $0x178] sm:$0xff]
    %v5952 = vld [vmem:[%s4 + $0x180] sm:$0xff]
    %v5953 = vld [vmem:[%s4 + $0x188] sm:$0xff]
    %v5954 = vld [vmem:[%s4 + $0x190] sm:$0xff]
    %v5955 = vld [vmem:[%s4 + $0x198] sm:$0xff]
    %v5956 = vld [vmem:[%s4 + $0x1a0] sm:$0xff]
    %v5957 = vld [vmem:[%s4 + $0x1a8] sm:$0xff]
    %v5958 = vld [vmem:[%s4 + $0x1b0] sm:$0xff]
    %v5959 = vld [vmem:[%s4 + $0x1b8] sm:$0xff]
    %v5960 = vld [vmem:[%s4 + $0x1c0] sm:$0xff]
    %v5961 = vld [vmem:[%s4 + $0x1c8] sm:$0xff]
    %v5962 = vld [vmem:[%s4 + $0x1d0] sm:$0xff]
    %v5963 = vld [vmem:[%s4 + $0x1d8] sm:$0xff]
    %v5964 = vld [vmem:[%s4 + $0x1e0] sm:$0xff]
    %v5965 = vld [vmem:[%s4 + $0x1e8] sm:$0xff]
    %v5966 = vld [vmem:[%s4 + $0x1f0] sm:$0xff]
    %v5967 = vld [vmem:[%s4 + $0x1f8] sm:$0xff]
    %v5968 = vld [vmem:[%s5] sm:$0xf]
    %v5970 = vperm.slane %v5968, 0
    %v5971 = vperm.slane %v5968, 1
    %v5972 = vperm.slane %v5968, 2
    %v5973 = vperm.slane %v5968, 3
    %v5979 = vunpack.c.l.b16 %v5903
    %v5980 = vunpack.c.h.b16 %v5903
    %v5981 = vpack.c.b16 %v5979, %v5979
    %v5982 = vpack.c.b16 %v5980, %v5980
    %v6049 = vunpack.c.l.b16 %v5904
    %v6050 = vunpack.c.h.b16 %v5904
    %v6051 = vunpack.c.l.b16 %v5905
    %v6052 = vunpack.c.h.b16 %v5905
    %v6053 = vunpack.c.l.b16 %v5906
    %v6054 = vunpack.c.h.b16 %v5906
    %v6055 = vunpack.c.l.b16 %v5907
    %v6056 = vunpack.c.h.b16 %v5907
    %v6057 = vunpack.c.l.b16 %v5908
    %v6058 = vunpack.c.h.b16 %v5908
    %v6059 = vunpack.c.l.b16 %v5909
    %v6060 = vunpack.c.h.b16 %v5909
    %v6061 = vunpack.c.l.b16 %v5910
    %v6062 = vunpack.c.h.b16 %v5910
    %v6063 = vunpack.c.l.b16 %v5911
    %v6064 = vunpack.c.h.b16 %v5911
    %v6065 = vunpack.c.l.b16 %v5912
    %v6066 = vunpack.c.h.b16 %v5912
    %v6067 = vunpack.c.l.b16 %v5913
    %v6068 = vunpack.c.h.b16 %v5913
    %v6069 = vunpack.c.l.b16 %v5914
    %v6070 = vunpack.c.h.b16 %v5914
    %v6071 = vunpack.c.l.b16 %v5915
    %v6072 = vunpack.c.h.b16 %v5915
    %v6073 = vunpack.c.l.b16 %v5916
    %v6074 = vunpack.c.h.b16 %v5916
    %v6075 = vunpack.c.l.b16 %v5917
    %v6076 = vunpack.c.h.b16 %v5917
    %v6077 = vunpack.c.l.b16 %v5918
    %v6078 = vunpack.c.h.b16 %v5918
    %v6079 = vunpack.c.l.b16 %v5919
    %v6080 = vunpack.c.h.b16 %v5919
    %v6081 = vunpack.c.l.b16 %v5920
    %v6082 = vunpack.c.h.b16 %v5920
    %v6083 = vunpack.c.l.b16 %v5921
    %v6084 = vunpack.c.h.b16 %v5921
    %v6085 = vunpack.c.l.b16 %v5922
    %v6086 = vunpack.c.h.b16 %v5922
    %v6087 = vunpack.c.l.b16 %v5923
    %v6088 = vunpack.c.h.b16 %v5923
    %v6089 = vunpack.c.l.b16 %v5924
    %v6090 = vunpack.c.h.b16 %v5924
    %v6091 = vunpack.c.l.b16 %v5925
    %v6092 = vunpack.c.h.b16 %v5925
    %v6093 = vunpack.c.l.b16 %v5926
    %v6094 = vunpack.c.h.b16 %v5926
    %v6095 = vunpack.c.l.b16 %v5927
    %v6096 = vunpack.c.h.b16 %v5927
    %v6097 = vunpack.c.l.b16 %v5928
    %v6098 = vunpack.c.h.b16 %v5928
    %v6099 = vunpack.c.l.b16 %v5929
    %v6100 = vunpack.c.h.b16 %v5929
    %v6101 = vunpack.c.l.b16 %v5930
    %v6102 = vunpack.c.h.b16 %v5930
    %v6103 = vunpack.c.l.b16 %v5931
    %v6104 = vunpack.c.h.b16 %v5931
    %v6105 = vunpack.c.l.b16 %v5932
    %v6106 = vunpack.c.h.b16 %v5932
    %v6107 = vunpack.c.l.b16 %v5933
    %v6108 = vunpack.c.h.b16 %v5933
    %v6109 = vunpack.c.l.b16 %v5934
    %v6110 = vunpack.c.h.b16 %v5934
    %v6111 = vunpack.c.l.b16 %v5935
    %v6112 = vunpack.c.h.b16 %v5935
    %v6113 = vunpack.c.l.b16 %v5936
    %v6114 = vunpack.c.h.b16 %v5936
    %v6115 = vunpack.c.l.b16 %v5937
    %v6116 = vunpack.c.h.b16 %v5937
    %v6117 = vunpack.c.l.b16 %v5938
    %v6118 = vunpack.c.h.b16 %v5938
    %v6119 = vunpack.c.l.b16 %v5939
    %v6120 = vunpack.c.h.b16 %v5939
    %v6121 = vunpack.c.l.b16 %v5940
    %v6122 = vunpack.c.h.b16 %v5940
    %v6123 = vunpack.c.l.b16 %v5941
    %v6124 = vunpack.c.h.b16 %v5941
    %v6125 = vunpack.c.l.b16 %v5942
    %v6126 = vunpack.c.h.b16 %v5942
    %v6127 = vunpack.c.l.b16 %v5943
    %v6128 = vunpack.c.h.b16 %v5943
    %v6129 = vunpack.c.l.b16 %v5944
    %v6130 = vunpack.c.h.b16 %v5944
    %v6131 = vunpack.c.l.b16 %v5945
    %v6132 = vunpack.c.h.b16 %v5945
    %v6133 = vunpack.c.l.b16 %v5946
    %v6134 = vunpack.c.h.b16 %v5946
    %v6135 = vunpack.c.l.b16 %v5947
    %v6136 = vunpack.c.h.b16 %v5947
    %v6137 = vunpack.c.l.b16 %v5948
    %v6138 = vunpack.c.h.b16 %v5948
    %v6139 = vunpack.c.l.b16 %v5949
    %v6140 = vunpack.c.h.b16 %v5949
    %v6141 = vunpack.c.l.b16 %v5950
    %v6142 = vunpack.c.h.b16 %v5950
    %v6143 = vunpack.c.l.b16 %v5951
    %v6144 = vunpack.c.h.b16 %v5951
    %v6145 = vunpack.c.l.b16 %v5952
    %v6146 = vunpack.c.h.b16 %v5952
    %v6147 = vunpack.c.l.b16 %v5953
    %v6148 = vunpack.c.h.b16 %v5953
    %v6149 = vunpack.c.l.b16 %v5954
    %v6150 = vunpack.c.h.b16 %v5954
    %v6151 = vunpack.c.l.b16 %v5955
    %v6152 = vunpack.c.h.b16 %v5955
    %v6153 = vunpack.c.l.b16 %v5956
    %v6154 = vunpack.c.h.b16 %v5956
    %v6155 = vunpack.c.l.b16 %v5957
    %v6156 = vunpack.c.h.b16 %v5957
    %v6157 = vunpack.c.l.b16 %v5958
    %v6158 = vunpack.c.h.b16 %v5958
    %v6159 = vunpack.c.l.b16 %v5959
    %v6160 = vunpack.c.h.b16 %v5959
    %v6161 = vunpack.c.l.b16 %v5960
    %v6162 = vunpack.c.h.b16 %v5960
    %v6163 = vunpack.c.l.b16 %v5961
    %v6164 = vunpack.c.h.b16 %v5961
    %v6165 = vunpack.c.l.b16 %v5962
    %v6166 = vunpack.c.h.b16 %v5962
    %v6167 = vunpack.c.l.b16 %v5963
    %v6168 = vunpack.c.h.b16 %v5963
    %v6169 = vunpack.c.l.b16 %v5964
    %v6170 = vunpack.c.h.b16 %v5964
    %v6171 = vunpack.c.l.b16 %v5965
    %v6172 = vunpack.c.h.b16 %v5965
    %v6173 = vunpack.c.l.b16 %v5966
    %v6174 = vunpack.c.h.b16 %v5966
    %v6175 = vunpack.c.l.b16 %v5967
    %v6176 = vunpack.c.h.b16 %v5967
    %v6177 = vpack.c.b16 %v6053, %v6049
    %v6178 = vpack.c.b16 %v6054, %v6050
    %v6179 = vpack.c.b16 %v6055, %v6051
    %v6180 = vpack.c.b16 %v6056, %v6052
    %v6181 = vpack.c.b16 %v6061, %v6057
    %v6182 = vpack.c.b16 %v6062, %v6058
    %v6183 = vpack.c.b16 %v6063, %v6059
    %v6184 = vpack.c.b16 %v6064, %v6060
    %v6185 = vpack.c.b16 %v6069, %v6065
    %v6186 = vpack.c.b16 %v6070, %v6066
    %v6187 = vpack.c.b16 %v6071, %v6067
    %v6188 = vpack.c.b16 %v6072, %v6068
    %v6189 = vpack.c.b16 %v6077, %v6073
    %v6190 = vpack.c.b16 %v6078, %v6074
    %v6191 = vpack.c.b16 %v6079, %v6075
    %v6192 = vpack.c.b16 %v6080, %v6076
    %v6193 = vpack.c.b16 %v6085, %v6081
    %v6194 = vpack.c.b16 %v6086, %v6082
    %v6195 = vpack.c.b16 %v6087, %v6083
    %v6196 = vpack.c.b16 %v6088, %v6084
    %v6197 = vpack.c.b16 %v6093, %v6089
    %v6198 = vpack.c.b16 %v6094, %v6090
    %v6199 = vpack.c.b16 %v6095, %v6091
    %v6200 = vpack.c.b16 %v6096, %v6092
    %v6201 = vpack.c.b16 %v6101, %v6097
    %v6202 = vpack.c.b16 %v6102, %v6098
    %v6203 = vpack.c.b16 %v6103, %v6099
    %v6204 = vpack.c.b16 %v6104, %v6100
    %v6205 = vpack.c.b16 %v6109, %v6105
    %v6206 = vpack.c.b16 %v6110, %v6106
    %v6207 = vpack.c.b16 %v6111, %v6107
    %v6208 = vpack.c.b16 %v6112, %v6108
    %v6209 = vpack.c.b16 %v6117, %v6113
    %v6210 = vpack.c.b16 %v6118, %v6114
    %v6211 = vpack.c.b16 %v6119, %v6115
    %v6212 = vpack.c.b16 %v6120, %v6116
    %v6213 = vpack.c.b16 %v6125, %v6121
    %v6214 = vpack.c.b16 %v6126, %v6122
    %v6215 = vpack.c.b16 %v6127, %v6123
    %v6216 = vpack.c.b16 %v6128, %v6124
    %v6217 = vpack.c.b16 %v6133, %v6129
    %v6218 = vpack.c.b16 %v6134, %v6130
    %v6219 = vpack.c.b16 %v6135, %v6131
    %v6220 = vpack.c.b16 %v6136, %v6132
    %v6221 = vpack.c.b16 %v6141, %v6137
    %v6222 = vpack.c.b16 %v6142, %v6138
    %v6223 = vpack.c.b16 %v6143, %v6139
    %v6224 = vpack.c.b16 %v6144, %v6140
    %v6225 = vpack.c.b16 %v6149, %v6145
    %v6226 = vpack.c.b16 %v6150, %v6146
    %v6227 = vpack.c.b16 %v6151, %v6147
    %v6228 = vpack.c.b16 %v6152, %v6148
    %v6229 = vpack.c.b16 %v6157, %v6153
    %v6230 = vpack.c.b16 %v6158, %v6154
    %v6231 = vpack.c.b16 %v6159, %v6155
    %v6232 = vpack.c.b16 %v6160, %v6156
    %v6233 = vpack.c.b16 %v6165, %v6161
    %v6234 = vpack.c.b16 %v6166, %v6162
    %v6235 = vpack.c.b16 %v6167, %v6163
    %v6236 = vpack.c.b16 %v6168, %v6164
    %v6237 = vpack.c.b16 %v6173, %v6169
    %v6238 = vpack.c.b16 %v6174, %v6170
    %v6239 = vpack.c.b16 %v6175, %v6171
    %v6240 = vpack.c.b16 %v6176, %v6172
    %6305 = vmatpush.bf16.msra.mxu0 %v6205
    %6306 = vmatpush.bf16.msra.mxu0 %v6201
    %6307 = vmatpush.bf16.msra.mxu0 %v6197
    %6308 = vmatpush.bf16.msra.mxu0 %v6193
    %6309 = vmatpush.bf16.msra.mxu0 %v6189
    %6310 = vmatpush.bf16.msra.mxu0 %v6185
    %6311 = vmatpush.bf16.msra.mxu0 %v6181
    %6312 = vmatpush.bf16.msra.mxu0 %v6177
    %6313 = vmatmul.bf16.gmra.mxu0 %v5981
    %v6314 = vpop.f32.mrf.mxu0
    %v6315 = vadd.f32 %v5970, %v6314
    %v6316 = vpop.f32.mrf.mxu0
    %6317 = vdwg.mxu0
    %6318 = vmatpush.bf16.msra.mxu0 %v6237
    %6319 = vmatpush.bf16.msra.mxu0 %v6233
    %6320 = vmatpush.bf16.msra.mxu0 %v6229
    %6321 = vmatpush.bf16.msra.mxu0 %v6225
    %6322 = vmatpush.bf16.msra.mxu0 %v6221
    %6323 = vmatpush.bf16.msra.mxu0 %v6217
    %6324 = vmatpush.bf16.msra.mxu0 %v6213
    %6325 = vmatpush.bf16.msra.mxu0 %v6209
    %6326 = vmatmul.bf16.gmra.mxu0 %v5982
    %v6327 = vpop.f32.mrf.mxu0
    %v6328 = vadd.f32 %v6315, %v6327
    %v6329 = vpop.f32.mrf.mxu0
    %6330 = vdwg.mxu0
    %6331 = vmatpush.bf16.msra.mxu0 %v6206
    %6332 = vmatpush.bf16.msra.mxu0 %v6202
    %6333 = vmatpush.bf16.msra.mxu0 %v6198
    %6334 = vmatpush.bf16.msra.mxu0 %v6194
    %6335 = vmatpush.bf16.msra.mxu0 %v6190
    %6336 = vmatpush.bf16.msra.mxu0 %v6186
    %6337 = vmatpush.bf16.msra.mxu0 %v6182
    %6338 = vmatpush.bf16.msra.mxu0 %v6178
    %6339 = vmatmul.bf16.gmra.mxu0 %v5981
    %v6340 = vpop.f32.mrf.mxu0
    %v6341 = vadd.f32 %v5971, %v6340
    %v6342 = vpop.f32.mrf.mxu0
    %6343 = vdwg.mxu0
    %6344 = vmatpush.bf16.msra.mxu0 %v6238
    %6345 = vmatpush.bf16.msra.mxu0 %v6234
    %6346 = vmatpush.bf16.msra.mxu0 %v6230
    %6347 = vmatpush.bf16.msra.mxu0 %v6226
    %6348 = vmatpush.bf16.msra.mxu0 %v6222
    %6349 = vmatpush.bf16.msra.mxu0 %v6218
    %6350 = vmatpush.bf16.msra.mxu0 %v6214
    %6351 = vmatpush.bf16.msra.mxu0 %v6210
    %6352 = vmatmul.bf16.gmra.mxu0 %v5982
    %v6353 = vpop.f32.mrf.mxu0
    %v6354 = vadd.f32 %v6341, %v6353
    %v6355 = vpop.f32.mrf.mxu0
    %6356 = vdwg.mxu0
    %6357 = vmatpush.bf16.msra.mxu0 %v6207
    %6358 = vmatpush.bf16.msra.mxu0 %v6203
    %6359 = vmatpush.bf16.msra.mxu0 %v6199
    %6360 = vmatpush.bf16.msra.mxu0 %v6195
    %6361 = vmatpush.bf16.msra.mxu0 %v6191
    %6362 = vmatpush.bf16.msra.mxu0 %v6187
    %6363 = vmatpush.bf16.msra.mxu0 %v6183
    %6364 = vmatpush.bf16.msra.mxu0 %v6179
    %6365 = vmatmul.bf16.gmra.mxu0 %v5981
    %v6366 = vpop.f32.mrf.mxu0
    %v6367 = vadd.f32 %v5972, %v6366
    %v6368 = vpop.f32.mrf.mxu0
    %6369 = vdwg.mxu0
    %6370 = vmatpush.bf16.msra.mxu0 %v6239
    %6371 = vmatpush.bf16.msra.mxu0 %v6235
    %6372 = vmatpush.bf16.msra.mxu0 %v6231
    %6373 = vmatpush.bf16.msra.mxu0 %v6227
    %6374 = vmatpush.bf16.msra.mxu0 %v6223
    %6375 = vmatpush.bf16.msra.mxu0 %v6219
    %6376 = vmatpush.bf16.msra.mxu0 %v6215
    %6377 = vmatpush.bf16.msra.mxu0 %v6211
    %6378 = vmatmul.bf16.gmra.mxu0 %v5982
    %v6379 = vpop.f32.mrf.mxu0
    %v6380 = vadd.f32 %v6367, %v6379
    %v6381 = vpop.f32.mrf.mxu0
    %6382 = vdwg.mxu0
    %6383 = vmatpush.bf16.msra.mxu0 %v6208
    %6384 = vmatpush.bf16.msra.mxu0 %v6204
    %6385 = vmatpush.bf16.msra.mxu0 %v6200
    %6386 = vmatpush.bf16.msra.mxu0 %v6196
    %6387 = vmatpush.bf16.msra.mxu0 %v6192
    %6388 = vmatpush.bf16.msra.mxu0 %v6188
    %6389 = vmatpush.bf16.msra.mxu0 %v6184
    %6390 = vmatpush.bf16.msra.mxu0 %v6180
    %6391 = vmatmul.bf16.gmra.mxu0 %v5981
    %v6392 = vpop.f32.mrf.mxu0
    %v6393 = vadd.f32 %v5973, %v6392
    %v6394 = vpop.f32.mrf.mxu0
    %6395 = vdwg.mxu0
    %6396 = vmatpush.bf16.msra.mxu0 %v6240
    %6397 = vmatpush.bf16.msra.mxu0 %v6236
    %6398 = vmatpush.bf16.msra.mxu0 %v6232
    %6399 = vmatpush.bf16.msra.mxu0 %v6228
    %6400 = vmatpush.bf16.msra.mxu0 %v6224
    %6401 = vmatpush.bf16.msra.mxu0 %v6220
    %6402 = vmatpush.bf16.msra.mxu0 %v6216
    %6403 = vmatpush.bf16.msra.mxu0 %v6212
    %6404 = vmatmul.bf16.gmra.mxu0 %v5982
    %v6405 = vpop.f32.mrf.mxu0
    %v6406 = vadd.f32 %v6393, %v6405
    %v6407 = vpop.f32.mrf.mxu0
    %6408 = vdwg.mxu0
    %v6409 = vxor.u32 %v6328, 2147483648
    %v6410 = vmul.f32 %v6409, 1.442695
    %v6411 = vpow.pop %v6410
    %v6412 = vadd.f32 %v6411, 1.0
    %v6413 = vrcp.pop %v6412
    %v6414 = vmul.f32 %v6412, %v6413
    %v6415 = vsub.f32 1.0, %v6414
    %v6416 = vmul.f32 %v6413, %v6415
    %v6417 = vadd.f32 %v6413, %v6416
    %vm6418 = vweird.f32 %v6412
    %vm6419 = vweird.f32 %v6413
    %vm6420 = vmor %vm6418, %vm6419
    %v6421 = vsel %vm6420, %v6413, %v6417
    %v6422 = vand.u32 2147483647, %v6412
    %vm6423 = vcmp.eq.f32.partialorder %v6422, 8.507059e+37
    %v6424 = vand.u32 %v6412, 2147483648
    %v6425 = vor.u32 1.1754944e-38, %v6424
    %v6426 = vsel %vm6423, %v6425, %v6421
    %v6427 = vmul.f32 1.0, %v6426
    %v6428 = vxor.u32 %v6354, 2147483648
    %v6429 = vmul.f32 %v6428, 1.442695
    %v6430 = vpow.pop %v6429
    %v6431 = vadd.f32 %v6430, 1.0
    %v6432 = vrcp.pop %v6431
    %v6433 = vmul.f32 %v6431, %v6432
    %v6434 = vsub.f32 1.0, %v6433
    %v6435 = vmul.f32 %v6432, %v6434
    %v6436 = vadd.f32 %v6432, %v6435
    %vm6437 = vweird.f32 %v6431
    %vm6438 = vweird.f32 %v6432
    %vm6439 = vmor %vm6437, %vm6438
    %v6440 = vsel %vm6439, %v6432, %v6436
    %v6441 = vand.u32 2147483647, %v6431
    %vm6442 = vcmp.eq.f32.partialorder %v6441, 8.507059e+37
    %v6443 = vand.u32 %v6431, 2147483648
    %v6444 = vor.u32 1.1754944e-38, %v6443
    %v6445 = vsel %vm6442, %v6444, %v6440
    %v6446 = vmul.f32 1.0, %v6445
    %v6447 = vtanh.pop %v6380
    %v6448 = vxor.u32 %v6406, 2147483648
    %v6449 = vmul.f32 %v6448, 1.442695
    %v6450 = vpow.pop %v6449
    %v6451 = vadd.f32 %v6450, 1.0
    %v6452 = vrcp.pop %v6451
    %v6453 = vmul.f32 %v6451, %v6452
    %v6454 = vsub.f32 1.0, %v6453
    %v6455 = vmul.f32 %v6452, %v6454
    %v6456 = vadd.f32 %v6452, %v6455
    %vm6457 = vweird.f32 %v6451
    %vm6458 = vweird.f32 %v6452
    %vm6459 = vmor %vm6457, %vm6458
    %v6460 = vsel %vm6459, %v6452, %v6456
    %v6461 = vand.u32 2147483647, %v6451
    %vm6462 = vcmp.eq.f32.partialorder %v6461, 8.507059e+37
    %v6463 = vand.u32 %v6451, 2147483648
    %v6464 = vor.u32 1.1754944e-38, %v6463
    %v6465 = vsel %vm6462, %v6464, %v6460
    %v6466 = vmul.f32 1.0, %v6465
    %v6467 = vmul.f32 %v6446, %v5323
    %v6468 = vmul.f32 %v6427, %v6447
    %v6469 = vadd.f32 %v6467, %v6468
    %v6470 = vtanh.pop %v6469
    %v6471 = vmul.f32 %v6466, %v6470
    %v6472 = vpack.c.bf16 %v6471, %v6471
    %6473 = vst [vmem:[#allocation3] sm:$0xf] %v6472
    %v6474 = vpack.c.bf16 %v5898, %v5898
    %6475 = vst [vmem:[#allocation3 + $0x4] sm:$0xf] %v6474
    %v6476 = vld [vmem:[#allocation3] sm:$0xff]
    %v6477 = vld [vmem:[#allocation4] sm:$0xff]
    %v6478 = vld [vmem:[#allocation4 + $0x8] sm:$0xff]
    %v6479 = vld [vmem:[#allocation4 + $0x10] sm:$0xff]
    %v6480 = vld [vmem:[#allocation4 + $0x18] sm:$0xff]
    %v6481 = vld [vmem:[#allocation4 + $0x20] sm:$0xff]
    %v6482 = vld [vmem:[#allocation4 + $0x28] sm:$0xff]
    %v6483 = vld [vmem:[#allocation4 + $0x30] sm:$0xff]
    %v6484 = vld [vmem:[#allocation4 + $0x38] sm:$0xff]
    %v6485 = vld [vmem:[#allocation4 + $0x40] sm:$0xff]
    %v6486 = vld [vmem:[#allocation4 + $0x48] sm:$0xff]
    %v6487 = vld [vmem:[#allocation4 + $0x50] sm:$0xff]
    %v6488 = vld [vmem:[#allocation4 + $0x58] sm:$0xff]
    %v6489 = vld [vmem:[#allocation4 + $0x60] sm:$0xff]
    %v6490 = vld [vmem:[#allocation4 + $0x68] sm:$0xff]
    %v6491 = vld [vmem:[#allocation4 + $0x70] sm:$0xff]
    %v6492 = vld [vmem:[#allocation4 + $0x78] sm:$0xff]
    %v6493 = vld [vmem:[#allocation4 + $0x80] sm:$0xff]
    %v6494 = vld [vmem:[#allocation4 + $0x88] sm:$0xff]
    %v6495 = vld [vmem:[#allocation4 + $0x90] sm:$0xff]
    %v6496 = vld [vmem:[#allocation4 + $0x98] sm:$0xff]
    %v6497 = vld [vmem:[#allocation4 + $0xa0] sm:$0xff]
    %v6498 = vld [vmem:[#allocation4 + $0xa8] sm:$0xff]
    %v6499 = vld [vmem:[#allocation4 + $0xb0] sm:$0xff]
    %v6500 = vld [vmem:[#allocation4 + $0xb8] sm:$0xff]
    %v6501 = vld [vmem:[#allocation4 + $0xc0] sm:$0xff]
    %v6502 = vld [vmem:[#allocation4 + $0xc8] sm:$0xff]
    %v6503 = vld [vmem:[#allocation4 + $0xd0] sm:$0xff]
    %v6504 = vld [vmem:[#allocation4 + $0xd8] sm:$0xff]
    %v6505 = vld [vmem:[#allocation4 + $0xe0] sm:$0xff]
    %v6506 = vld [vmem:[#allocation4 + $0xe8] sm:$0xff]
    %v6507 = vld [vmem:[#allocation4 + $0xf0] sm:$0xff]
    %v6508 = vld [vmem:[#allocation4 + $0xf8] sm:$0xff]
    %v6509 = vld [vmem:[#allocation4 + $0x100] sm:$0xff]
    %v6510 = vld [vmem:[#allocation4 + $0x108] sm:$0xff]
    %v6511 = vld [vmem:[#allocation4 + $0x110] sm:$0xff]
    %v6512 = vld [vmem:[#allocation4 + $0x118] sm:$0xff]
    %v6513 = vld [vmem:[#allocation4 + $0x120] sm:$0xff]
    %v6514 = vld [vmem:[#allocation4 + $0x128] sm:$0xff]
    %v6515 = vld [vmem:[#allocation4 + $0x130] sm:$0xff]
    %v6516 = vld [vmem:[#allocation4 + $0x138] sm:$0xff]
    %v6517 = vld [vmem:[#allocation4 + $0x140] sm:$0xff]
    %v6518 = vld [vmem:[#allocation4 + $0x148] sm:$0xff]
    %v6519 = vld [vmem:[#allocation4 + $0x150] sm:$0xff]
    %v6520 = vld [vmem:[#allocation4 + $0x158] sm:$0xff]
    %v6521 = vld [vmem:[#allocation4 + $0x160] sm:$0xff]
    %v6522 = vld [vmem:[#allocation4 + $0x168] sm:$0xff]
    %v6523 = vld [vmem:[#allocation4 + $0x170] sm:$0xff]
    %v6524 = vld [vmem:[#allocation4 + $0x178] sm:$0xff]
    %v6525 = vld [vmem:[#allocation4 + $0x180] sm:$0xff]
    %v6526 = vld [vmem:[#allocation4 + $0x188] sm:$0xff]
    %v6527 = vld [vmem:[#allocation4 + $0x190] sm:$0xff]
    %v6528 = vld [vmem:[#allocation4 + $0x198] sm:$0xff]
    %v6529 = vld [vmem:[#allocation4 + $0x1a0] sm:$0xff]
    %v6530 = vld [vmem:[#allocation4 + $0x1a8] sm:$0xff]
    %v6531 = vld [vmem:[#allocation4 + $0x1b0] sm:$0xff]
    %v6532 = vld [vmem:[#allocation4 + $0x1b8] sm:$0xff]
    %v6533 = vld [vmem:[#allocation4 + $0x1c0] sm:$0xff]
    %v6534 = vld [vmem:[#allocation4 + $0x1c8] sm:$0xff]
    %v6535 = vld [vmem:[#allocation4 + $0x1d0] sm:$0xff]
    %v6536 = vld [vmem:[#allocation4 + $0x1d8] sm:$0xff]
    %v6537 = vld [vmem:[#allocation4 + $0x1e0] sm:$0xff]
    %v6538 = vld [vmem:[#allocation4 + $0x1e8] sm:$0xff]
    %v6539 = vld [vmem:[#allocation4 + $0x1f0] sm:$0xff]
    %v6540 = vld [vmem:[#allocation4 + $0x1f8] sm:$0xff]
    %v6541 = vld [vmem:[%s7] sm:$0xf]
    %v6543 = vperm.slane %v6541, 0
    %v6544 = vperm.slane %v6541, 1
    %v6545 = vperm.slane %v6541, 2
    %v6546 = vperm.slane %v6541, 3
    %v6552 = vunpack.c.l.b16 %v6476
    %v6553 = vunpack.c.h.b16 %v6476
    %v6554 = vpack.c.b16 %v6552, %v6552
    %v6555 = vpack.c.b16 %v6553, %v6553
    %v6622 = vunpack.c.l.b16 %v6477
    %v6623 = vunpack.c.h.b16 %v6477
    %v6624 = vunpack.c.l.b16 %v6478
    %v6625 = vunpack.c.h.b16 %v6478
    %v6626 = vunpack.c.l.b16 %v6479
    %v6627 = vunpack.c.h.b16 %v6479
    %v6628 = vunpack.c.l.b16 %v6480
    %v6629 = vunpack.c.h.b16 %v6480
    %v6630 = vunpack.c.l.b16 %v6481
    %v6631 = vunpack.c.h.b16 %v6481
    %v6632 = vunpack.c.l.b16 %v6482
    %v6633 = vunpack.c.h.b16 %v6482
    %v6634 = vunpack.c.l.b16 %v6483
    %v6635 = vunpack.c.h.b16 %v6483
    %v6636 = vunpack.c.l.b16 %v6484
    %v6637 = vunpack.c.h.b16 %v6484
    %v6638 = vunpack.c.l.b16 %v6485
    %v6639 = vunpack.c.h.b16 %v6485
    %v6640 = vunpack.c.l.b16 %v6486
    %v6641 = vunpack.c.h.b16 %v6486
    %v6642 = vunpack.c.l.b16 %v6487
    %v6643 = vunpack.c.h.b16 %v6487
    %v6644 = vunpack.c.l.b16 %v6488
    %v6645 = vunpack.c.h.b16 %v6488
    %v6646 = vunpack.c.l.b16 %v6489
    %v6647 = vunpack.c.h.b16 %v6489
    %v6648 = vunpack.c.l.b16 %v6490
    %v6649 = vunpack.c.h.b16 %v6490
    %v6650 = vunpack.c.l.b16 %v6491
    %v6651 = vunpack.c.h.b16 %v6491
    %v6652 = vunpack.c.l.b16 %v6492
    %v6653 = vunpack.c.h.b16 %v6492
    %v6654 = vunpack.c.l.b16 %v6493
    %v6655 = vunpack.c.h.b16 %v6493
    %v6656 = vunpack.c.l.b16 %v6494
    %v6657 = vunpack.c.h.b16 %v6494
    %v6658 = vunpack.c.l.b16 %v6495
    %v6659 = vunpack.c.h.b16 %v6495
    %v6660 = vunpack.c.l.b16 %v6496
    %v6661 = vunpack.c.h.b16 %v6496
    %v6662 = vunpack.c.l.b16 %v6497
    %v6663 = vunpack.c.h.b16 %v6497
    %v6664 = vunpack.c.l.b16 %v6498
    %v6665 = vunpack.c.h.b16 %v6498
    %v6666 = vunpack.c.l.b16 %v6499
    %v6667 = vunpack.c.h.b16 %v6499
    %v6668 = vunpack.c.l.b16 %v6500
    %v6669 = vunpack.c.h.b16 %v6500
    %v6670 = vunpack.c.l.b16 %v6501
    %v6671 = vunpack.c.h.b16 %v6501
    %v6672 = vunpack.c.l.b16 %v6502
    %v6673 = vunpack.c.h.b16 %v6502
    %v6674 = vunpack.c.l.b16 %v6503
    %v6675 = vunpack.c.h.b16 %v6503
    %v6676 = vunpack.c.l.b16 %v6504
    %v6677 = vunpack.c.h.b16 %v6504
    %v6678 = vunpack.c.l.b16 %v6505
    %v6679 = vunpack.c.h.b16 %v6505
    %v6680 = vunpack.c.l.b16 %v6506
    %v6681 = vunpack.c.h.b16 %v6506
    %v6682 = vunpack.c.l.b16 %v6507
    %v6683 = vunpack.c.h.b16 %v6507
    %v6684 = vunpack.c.l.b16 %v6508
    %v6685 = vunpack.c.h.b16 %v6508
    %v6686 = vunpack.c.l.b16 %v6509
    %v6687 = vunpack.c.h.b16 %v6509
    %v6688 = vunpack.c.l.b16 %v6510
    %v6689 = vunpack.c.h.b16 %v6510
    %v6690 = vunpack.c.l.b16 %v6511
    %v6691 = vunpack.c.h.b16 %v6511
    %v6692 = vunpack.c.l.b16 %v6512
    %v6693 = vunpack.c.h.b16 %v6512
    %v6694 = vunpack.c.l.b16 %v6513
    %v6695 = vunpack.c.h.b16 %v6513
    %v6696 = vunpack.c.l.b16 %v6514
    %v6697 = vunpack.c.h.b16 %v6514
    %v6698 = vunpack.c.l.b16 %v6515
    %v6699 = vunpack.c.h.b16 %v6515
    %v6700 = vunpack.c.l.b16 %v6516
    %v6701 = vunpack.c.h.b16 %v6516
    %v6702 = vunpack.c.l.b16 %v6517
    %v6703 = vunpack.c.h.b16 %v6517
    %v6704 = vunpack.c.l.b16 %v6518
    %v6705 = vunpack.c.h.b16 %v6518
    %v6706 = vunpack.c.l.b16 %v6519
    %v6707 = vunpack.c.h.b16 %v6519
    %v6708 = vunpack.c.l.b16 %v6520
    %v6709 = vunpack.c.h.b16 %v6520
    %v6710 = vunpack.c.l.b16 %v6521
    %v6711 = vunpack.c.h.b16 %v6521
    %v6712 = vunpack.c.l.b16 %v6522
    %v6713 = vunpack.c.h.b16 %v6522
    %v6714 = vunpack.c.l.b16 %v6523
    %v6715 = vunpack.c.h.b16 %v6523
    %v6716 = vunpack.c.l.b16 %v6524
    %v6717 = vunpack.c.h.b16 %v6524
    %v6718 = vunpack.c.l.b16 %v6525
    %v6719 = vunpack.c.h.b16 %v6525
    %v6720 = vunpack.c.l.b16 %v6526
    %v6721 = vunpack.c.h.b16 %v6526
    %v6722 = vunpack.c.l.b16 %v6527
    %v6723 = vunpack.c.h.b16 %v6527
    %v6724 = vunpack.c.l.b16 %v6528
    %v6725 = vunpack.c.h.b16 %v6528
    %v6726 = vunpack.c.l.b16 %v6529
    %v6727 = vunpack.c.h.b16 %v6529
    %v6728 = vunpack.c.l.b16 %v6530
    %v6729 = vunpack.c.h.b16 %v6530
    %v6730 = vunpack.c.l.b16 %v6531
    %v6731 = vunpack.c.h.b16 %v6531
    %v6732 = vunpack.c.l.b16 %v6532
    %v6733 = vunpack.c.h.b16 %v6532
    %v6734 = vunpack.c.l.b16 %v6533
    %v6735 = vunpack.c.h.b16 %v6533
    %v6736 = vunpack.c.l.b16 %v6534
    %v6737 = vunpack.c.h.b16 %v6534
    %v6738 = vunpack.c.l.b16 %v6535
    %v6739 = vunpack.c.h.b16 %v6535
    %v6740 = vunpack.c.l.b16 %v6536
    %v6741 = vunpack.c.h.b16 %v6536
    %v6742 = vunpack.c.l.b16 %v6537
    %v6743 = vunpack.c.h.b16 %v6537
    %v6744 = vunpack.c.l.b16 %v6538
    %v6745 = vunpack.c.h.b16 %v6538
    %v6746 = vunpack.c.l.b16 %v6539
    %v6747 = vunpack.c.h.b16 %v6539
    %v6748 = vunpack.c.l.b16 %v6540
    %v6749 = vunpack.c.h.b16 %v6540
    %v6750 = vpack.c.b16 %v6626, %v6622
    %v6751 = vpack.c.b16 %v6627, %v6623
    %v6752 = vpack.c.b16 %v6628, %v6624
    %v6753 = vpack.c.b16 %v6629, %v6625
    %v6754 = vpack.c.b16 %v6634, %v6630
    %v6755 = vpack.c.b16 %v6635, %v6631
    %v6756 = vpack.c.b16 %v6636, %v6632
    %v6757 = vpack.c.b16 %v6637, %v6633
    %v6758 = vpack.c.b16 %v6642, %v6638
    %v6759 = vpack.c.b16 %v6643, %v6639
    %v6760 = vpack.c.b16 %v6644, %v6640
    %v6761 = vpack.c.b16 %v6645, %v6641
    %v6762 = vpack.c.b16 %v6650, %v6646
    %v6763 = vpack.c.b16 %v6651, %v6647
    %v6764 = vpack.c.b16 %v6652, %v6648
    %v6765 = vpack.c.b16 %v6653, %v6649
    %v6766 = vpack.c.b16 %v6658, %v6654
    %v6767 = vpack.c.b16 %v6659, %v6655
    %v6768 = vpack.c.b16 %v6660, %v6656
    %v6769 = vpack.c.b16 %v6661, %v6657
    %v6770 = vpack.c.b16 %v6666, %v6662
    %v6771 = vpack.c.b16 %v6667, %v6663
    %v6772 = vpack.c.b16 %v6668, %v6664
    %v6773 = vpack.c.b16 %v6669, %v6665
    %v6774 = vpack.c.b16 %v6674, %v6670
    %v6775 = vpack.c.b16 %v6675, %v6671
    %v6776 = vpack.c.b16 %v6676, %v6672
    %v6777 = vpack.c.b16 %v6677, %v6673
    %v6778 = vpack.c.b16 %v6682, %v6678
    %v6779 = vpack.c.b16 %v6683, %v6679
    %v6780 = vpack.c.b16 %v6684, %v6680
    %v6781 = vpack.c.b16 %v6685, %v6681
    %v6782 = vpack.c.b16 %v6690, %v6686
    %v6783 = vpack.c.b16 %v6691, %v6687
    %v6784 = vpack.c.b16 %v6692, %v6688
    %v6785 = vpack.c.b16 %v6693, %v6689
    %v6786 = vpack.c.b16 %v6698, %v6694
    %v6787 = vpack.c.b16 %v6699, %v6695
    %v6788 = vpack.c.b16 %v6700, %v6696
    %v6789 = vpack.c.b16 %v6701, %v6697
    %v6790 = vpack.c.b16 %v6706, %v6702
    %v6791 = vpack.c.b16 %v6707, %v6703
    %v6792 = vpack.c.b16 %v6708, %v6704
    %v6793 = vpack.c.b16 %v6709, %v6705
    %v6794 = vpack.c.b16 %v6714, %v6710
    %v6795 = vpack.c.b16 %v6715, %v6711
    %v6796 = vpack.c.b16 %v6716, %v6712
    %v6797 = vpack.c.b16 %v6717, %v6713
    %v6798 = vpack.c.b16 %v6722, %v6718
    %v6799 = vpack.c.b16 %v6723, %v6719
    %v6800 = vpack.c.b16 %v6724, %v6720
    %v6801 = vpack.c.b16 %v6725, %v6721
    %v6802 = vpack.c.b16 %v6730, %v6726
    %v6803 = vpack.c.b16 %v6731, %v6727
    %v6804 = vpack.c.b16 %v6732, %v6728
    %v6805 = vpack.c.b16 %v6733, %v6729
    %v6806 = vpack.c.b16 %v6738, %v6734
    %v6807 = vpack.c.b16 %v6739, %v6735
    %v6808 = vpack.c.b16 %v6740, %v6736
    %v6809 = vpack.c.b16 %v6741, %v6737
    %v6810 = vpack.c.b16 %v6746, %v6742
    %v6811 = vpack.c.b16 %v6747, %v6743
    %v6812 = vpack.c.b16 %v6748, %v6744
    %v6813 = vpack.c.b16 %v6749, %v6745
    %6878 = vmatpush.bf16.msra.mxu0 %v6778
    %6879 = vmatpush.bf16.msra.mxu0 %v6774
    %6880 = vmatpush.bf16.msra.mxu0 %v6770
    %6881 = vmatpush.bf16.msra.mxu0 %v6766
    %6882 = vmatpush.bf16.msra.mxu0 %v6762
    %6883 = vmatpush.bf16.msra.mxu0 %v6758
    %6884 = vmatpush.bf16.msra.mxu0 %v6754
    %6885 = vmatpush.bf16.msra.mxu0 %v6750
    %6886 = vmatmul.bf16.gmra.mxu0 %v6554
    %v6887 = vpop.f32.mrf.mxu0
    %v6888 = vadd.f32 %v6543, %v6887
    %v6889 = vpop.f32.mrf.mxu0
    %6890 = vdwg.mxu0
    %6891 = vmatpush.bf16.msra.mxu0 %v6810
    %6892 = vmatpush.bf16.msra.mxu0 %v6806
    %6893 = vmatpush.bf16.msra.mxu0 %v6802
    %6894 = vmatpush.bf16.msra.mxu0 %v6798
    %6895 = vmatpush.bf16.msra.mxu0 %v6794
    %6896 = vmatpush.bf16.msra.mxu0 %v6790
    %6897 = vmatpush.bf16.msra.mxu0 %v6786
    %6898 = vmatpush.bf16.msra.mxu0 %v6782
    %6899 = vmatmul.bf16.gmra.mxu0 %v6555
    %v6900 = vpop.f32.mrf.mxu0
    %v6901 = vadd.f32 %v6888, %v6900
    %v6902 = vpop.f32.mrf.mxu0
    %6903 = vdwg.mxu0
    %6904 = vmatpush.bf16.msra.mxu0 %v6779
    %6905 = vmatpush.bf16.msra.mxu0 %v6775
    %6906 = vmatpush.bf16.msra.mxu0 %v6771
    %6907 = vmatpush.bf16.msra.mxu0 %v6767
    %6908 = vmatpush.bf16.msra.mxu0 %v6763
    %6909 = vmatpush.bf16.msra.mxu0 %v6759
    %6910 = vmatpush.bf16.msra.mxu0 %v6755
    %6911 = vmatpush.bf16.msra.mxu0 %v6751
    %6912 = vmatmul.bf16.gmra.mxu0 %v6554
    %v6913 = vpop.f32.mrf.mxu0
    %v6914 = vadd.f32 %v6544, %v6913
    %v6915 = vpop.f32.mrf.mxu0
    %6916 = vdwg.mxu0
    %6917 = vmatpush.bf16.msra.mxu0 %v6811
    %6918 = vmatpush.bf16.msra.mxu0 %v6807
    %6919 = vmatpush.bf16.msra.mxu0 %v6803
    %6920 = vmatpush.bf16.msra.mxu0 %v6799
    %6921 = vmatpush.bf16.msra.mxu0 %v6795
    %6922 = vmatpush.bf16.msra.mxu0 %v6791
    %6923 = vmatpush.bf16.msra.mxu0 %v6787
    %6924 = vmatpush.bf16.msra.mxu0 %v6783
    %6925 = vmatmul.bf16.gmra.mxu0 %v6555
    %v6926 = vpop.f32.mrf.mxu0
    %v6927 = vadd.f32 %v6914, %v6926
    %v6928 = vpop.f32.mrf.mxu0
    %6929 = vdwg.mxu0
    %6930 = vmatpush.bf16.msra.mxu0 %v6780
    %6931 = vmatpush.bf16.msra.mxu0 %v6776
    %6932 = vmatpush.bf16.msra.mxu0 %v6772
    %6933 = vmatpush.bf16.msra.mxu0 %v6768
    %6934 = vmatpush.bf16.msra.mxu0 %v6764
    %6935 = vmatpush.bf16.msra.mxu0 %v6760
    %6936 = vmatpush.bf16.msra.mxu0 %v6756
    %6937 = vmatpush.bf16.msra.mxu0 %v6752
    %6938 = vmatmul.bf16.gmra.mxu0 %v6554
    %v6939 = vpop.f32.mrf.mxu0
    %v6940 = vadd.f32 %v6545, %v6939
    %v6941 = vpop.f32.mrf.mxu0
    %6942 = vdwg.mxu0
    %6943 = vmatpush.bf16.msra.mxu0 %v6812
    %6944 = vmatpush.bf16.msra.mxu0 %v6808
    %6945 = vmatpush.bf16.msra.mxu0 %v6804
    %6946 = vmatpush.bf16.msra.mxu0 %v6800
    %6947 = vmatpush.bf16.msra.mxu0 %v6796
    %6948 = vmatpush.bf16.msra.mxu0 %v6792
    %6949 = vmatpush.bf16.msra.mxu0 %v6788
    %6950 = vmatpush.bf16.msra.mxu0 %v6784
    %6951 = vmatmul.bf16.gmra.mxu0 %v6555
    %v6952 = vpop.f32.mrf.mxu0
    %v6953 = vadd.f32 %v6940, %v6952
    %v6954 = vpop.f32.mrf.mxu0
    %6955 = vdwg.mxu0
    %6956 = vmatpush.bf16.msra.mxu0 %v6781
    %6957 = vmatpush.bf16.msra.mxu0 %v6777
    %6958 = vmatpush.bf16.msra.mxu0 %v6773
    %6959 = vmatpush.bf16.msra.mxu0 %v6769
    %6960 = vmatpush.bf16.msra.mxu0 %v6765
    %6961 = vmatpush.bf16.msra.mxu0 %v6761
    %6962 = vmatpush.bf16.msra.mxu0 %v6757
    %6963 = vmatpush.bf16.msra.mxu0 %v6753
    %6964 = vmatmul.bf16.gmra.mxu0 %v6554
    %v6965 = vpop.f32.mrf.mxu0
    %v6966 = vadd.f32 %v6546, %v6965
    %v6967 = vpop.f32.mrf.mxu0
    %6968 = vdwg.mxu0
    %6969 = vmatpush.bf16.msra.mxu0 %v6813
    %6970 = vmatpush.bf16.msra.mxu0 %v6809
    %6971 = vmatpush.bf16.msra.mxu0 %v6805
    %6972 = vmatpush.bf16.msra.mxu0 %v6801
    %6973 = vmatpush.bf16.msra.mxu0 %v6797
    %6974 = vmatpush.bf16.msra.mxu0 %v6793
    %6975 = vmatpush.bf16.msra.mxu0 %v6789
    %6976 = vmatpush.bf16.msra.mxu0 %v6785
    %6977 = vmatmul.bf16.gmra.mxu0 %v6555
    %v6978 = vpop.f32.mrf.mxu0
    %v6979 = vadd.f32 %v6966, %v6978
    %v6980 = vpop.f32.mrf.mxu0
    %6981 = vdwg.mxu0
    %v6982 = vxor.u32 %v6901, 2147483648
    %v6983 = vmul.f32 %v6982, 1.442695
    %v6984 = vpow.pop %v6983
    %v6985 = vadd.f32 %v6984, 1.0
    %v6986 = vrcp.pop %v6985
    %v6987 = vmul.f32 %v6985, %v6986
    %v6988 = vsub.f32 1.0, %v6987
    %v6989 = vmul.f32 %v6986, %v6988
    %v6990 = vadd.f32 %v6986, %v6989
    %vm6991 = vweird.f32 %v6985
    %vm6992 = vweird.f32 %v6986
    %vm6993 = vmor %vm6991, %vm6992
    %v6994 = vsel %vm6993, %v6986, %v6990
    %v6995 = vand.u32 2147483647, %v6985
    %vm6996 = vcmp.eq.f32.partialorder %v6995, 8.507059e+37
    %v6997 = vand.u32 %v6985, 2147483648
    %v6998 = vor.u32 1.1754944e-38, %v6997
    %v6999 = vsel %vm6996, %v6998, %v6994
    %v7000 = vmul.f32 1.0, %v6999
    %v7001 = vxor.u32 %v6927, 2147483648
    %v7002 = vmul.f32 %v7001, 1.442695
    %v7003 = vpow.pop %v7002
    %v7004 = vadd.f32 %v7003, 1.0
    %v7005 = vrcp.pop %v7004
    %v7006 = vmul.f32 %v7004, %v7005
    %v7007 = vsub.f32 1.0, %v7006
    %v7008 = vmul.f32 %v7005, %v7007
    %v7009 = vadd.f32 %v7005, %v7008
    %vm7010 = vweird.f32 %v7004
    %vm7011 = vweird.f32 %v7005
    %vm7012 = vmor %vm7010, %vm7011
    %v7013 = vsel %vm7012, %v7005, %v7009
    %v7014 = vand.u32 2147483647, %v7004
    %vm7015 = vcmp.eq.f32.partialorder %v7014, 8.507059e+37
    %v7016 = vand.u32 %v7004, 2147483648
    %v7017 = vor.u32 1.1754944e-38, %v7016
    %v7018 = vsel %vm7015, %v7017, %v7013
    %v7019 = vmul.f32 1.0, %v7018
    %v7020 = vtanh.pop %v6953
    %v7021 = vxor.u32 %v6979, 2147483648
    %v7022 = vmul.f32 %v7021, 1.442695
    %v7023 = vpow.pop %v7022
    %v7024 = vadd.f32 %v7023, 1.0
    %v7025 = vrcp.pop %v7024
    %v7026 = vmul.f32 %v7024, %v7025
    %v7027 = vsub.f32 1.0, %v7026
    %v7028 = vmul.f32 %v7025, %v7027
    %v7029 = vadd.f32 %v7025, %v7028
    %vm7030 = vweird.f32 %v7024
    %vm7031 = vweird.f32 %v7025
    %vm7032 = vmor %vm7030, %vm7031
    %v7033 = vsel %vm7032, %v7025, %v7029
    %v7034 = vand.u32 2147483647, %v7024
    %vm7035 = vcmp.eq.f32.partialorder %v7034, 8.507059e+37
    %v7036 = vand.u32 %v7024, 2147483648
    %v7037 = vor.u32 1.1754944e-38, %v7036
    %v7038 = vsel %vm7035, %v7037, %v7033
    %v7039 = vmul.f32 1.0, %v7038
    %v7040 = vmul.f32 %v7019, %v5896
    %v7041 = vmul.f32 %v7000, %v7020
    %v7042 = vadd.f32 %v7040, %v7041
    %v7043 = vtanh.pop %v7042
    %v7044 = vmul.f32 %v7039, %v7043
    %s7045 = scalar_lea.vmem %s3, 24
    %v7046 = vld [vmem:[%s7045] sm:$0xf]
    %7047 = vst [vmem:[#allocation2] sm:$0xf] %v7046
    %7048 = vst [vmem:[#allocation2 + $0x4] sm:$0xf] %v6472
    %v7049 = vld [vmem:[#allocation2] sm:$0xff]
    %v7050 = vld [vmem:[%s4] sm:$0xff]
    %v7051 = vld [vmem:[%s4 + $0x8] sm:$0xff]
    %v7052 = vld [vmem:[%s4 + $0x10] sm:$0xff]
    %v7053 = vld [vmem:[%s4 + $0x18] sm:$0xff]
    %v7054 = vld [vmem:[%s4 + $0x20] sm:$0xff]
    %v7055 = vld [vmem:[%s4 + $0x28] sm:$0xff]
    %v7056 = vld [vmem:[%s4 + $0x30] sm:$0xff]
    %v7057 = vld [vmem:[%s4 + $0x38] sm:$0xff]
    %v7058 = vld [vmem:[%s4 + $0x40] sm:$0xff]
    %v7059 = vld [vmem:[%s4 + $0x48] sm:$0xff]
    %v7060 = vld [vmem:[%s4 + $0x50] sm:$0xff]
    %v7061 = vld [vmem:[%s4 + $0x58] sm:$0xff]
    %v7062 = vld [vmem:[%s4 + $0x60] sm:$0xff]
    %v7063 = vld [vmem:[%s4 + $0x68] sm:$0xff]
    %v7064 = vld [vmem:[%s4 + $0x70] sm:$0xff]
    %v7065 = vld [vmem:[%s4 + $0x78] sm:$0xff]
    %v7066 = vld [vmem:[%s4 + $0x80] sm:$0xff]
    %v7067 = vld [vmem:[%s4 + $0x88] sm:$0xff]
    %v7068 = vld [vmem:[%s4 + $0x90] sm:$0xff]
    %v7069 = vld [vmem:[%s4 + $0x98] sm:$0xff]
    %v7070 = vld [vmem:[%s4 + $0xa0] sm:$0xff]
    %v7071 = vld [vmem:[%s4 + $0xa8] sm:$0xff]
    %v7072 = vld [vmem:[%s4 + $0xb0] sm:$0xff]
    %v7073 = vld [vmem:[%s4 + $0xb8] sm:$0xff]
    %v7074 = vld [vmem:[%s4 + $0xc0] sm:$0xff]
    %v7075 = vld [vmem:[%s4 + $0xc8] sm:$0xff]
    %v7076 = vld [vmem:[%s4 + $0xd0] sm:$0xff]
    %v7077 = vld [vmem:[%s4 + $0xd8] sm:$0xff]
    %v7078 = vld [vmem:[%s4 + $0xe0] sm:$0xff]
    %v7079 = vld [vmem:[%s4 + $0xe8] sm:$0xff]
    %v7080 = vld [vmem:[%s4 + $0xf0] sm:$0xff]
    %v7081 = vld [vmem:[%s4 + $0xf8] sm:$0xff]
    %v7082 = vld [vmem:[%s4 + $0x100] sm:$0xff]
    %v7083 = vld [vmem:[%s4 + $0x108] sm:$0xff]
    %v7084 = vld [vmem:[%s4 + $0x110] sm:$0xff]
    %v7085 = vld [vmem:[%s4 + $0x118] sm:$0xff]
    %v7086 = vld [vmem:[%s4 + $0x120] sm:$0xff]
    %v7087 = vld [vmem:[%s4 + $0x128] sm:$0xff]
    %v7088 = vld [vmem:[%s4 + $0x130] sm:$0xff]
    %v7089 = vld [vmem:[%s4 + $0x138] sm:$0xff]
    %v7090 = vld [vmem:[%s4 + $0x140] sm:$0xff]
    %v7091 = vld [vmem:[%s4 + $0x148] sm:$0xff]
    %v7092 = vld [vmem:[%s4 + $0x150] sm:$0xff]
    %v7093 = vld [vmem:[%s4 + $0x158] sm:$0xff]
    %v7094 = vld [vmem:[%s4 + $0x160] sm:$0xff]
    %v7095 = vld [vmem:[%s4 + $0x168] sm:$0xff]
    %v7096 = vld [vmem:[%s4 + $0x170] sm:$0xff]
    %v7097 = vld [vmem:[%s4 + $0x178] sm:$0xff]
    %v7098 = vld [vmem:[%s4 + $0x180] sm:$0xff]
    %v7099 = vld [vmem:[%s4 + $0x188] sm:$0xff]
    %v7100 = vld [vmem:[%s4 + $0x190] sm:$0xff]
    %v7101 = vld [vmem:[%s4 + $0x198] sm:$0xff]
    %v7102 = vld [vmem:[%s4 + $0x1a0] sm:$0xff]
    %v7103 = vld [vmem:[%s4 + $0x1a8] sm:$0xff]
    %v7104 = vld [vmem:[%s4 + $0x1b0] sm:$0xff]
    %v7105 = vld [vmem:[%s4 + $0x1b8] sm:$0xff]
    %v7106 = vld [vmem:[%s4 + $0x1c0] sm:$0xff]
    %v7107 = vld [vmem:[%s4 + $0x1c8] sm:$0xff]
    %v7108 = vld [vmem:[%s4 + $0x1d0] sm:$0xff]
    %v7109 = vld [vmem:[%s4 + $0x1d8] sm:$0xff]
    %v7110 = vld [vmem:[%s4 + $0x1e0] sm:$0xff]
    %v7111 = vld [vmem:[%s4 + $0x1e8] sm:$0xff]
    %v7112 = vld [vmem:[%s4 + $0x1f0] sm:$0xff]
    %v7113 = vld [vmem:[%s4 + $0x1f8] sm:$0xff]
    %v7114 = vld [vmem:[%s5] sm:$0xf]
    %v7116 = vperm.slane %v7114, 0
    %v7117 = vperm.slane %v7114, 1
    %v7118 = vperm.slane %v7114, 2
    %v7119 = vperm.slane %v7114, 3
    %v7125 = vunpack.c.l.b16 %v7049
    %v7126 = vunpack.c.h.b16 %v7049
    %v7127 = vpack.c.b16 %v7125, %v7125
    %v7128 = vpack.c.b16 %v7126, %v7126
    %v7195 = vunpack.c.l.b16 %v7050
    %v7196 = vunpack.c.h.b16 %v7050
    %v7197 = vunpack.c.l.b16 %v7051
    %v7198 = vunpack.c.h.b16 %v7051
    %v7199 = vunpack.c.l.b16 %v7052
    %v7200 = vunpack.c.h.b16 %v7052
    %v7201 = vunpack.c.l.b16 %v7053
    %v7202 = vunpack.c.h.b16 %v7053
    %v7203 = vunpack.c.l.b16 %v7054
    %v7204 = vunpack.c.h.b16 %v7054
    %v7205 = vunpack.c.l.b16 %v7055
    %v7206 = vunpack.c.h.b16 %v7055
    %v7207 = vunpack.c.l.b16 %v7056
    %v7208 = vunpack.c.h.b16 %v7056
    %v7209 = vunpack.c.l.b16 %v7057
    %v7210 = vunpack.c.h.b16 %v7057
    %v7211 = vunpack.c.l.b16 %v7058
    %v7212 = vunpack.c.h.b16 %v7058
    %v7213 = vunpack.c.l.b16 %v7059
    %v7214 = vunpack.c.h.b16 %v7059
    %v7215 = vunpack.c.l.b16 %v7060
    %v7216 = vunpack.c.h.b16 %v7060
    %v7217 = vunpack.c.l.b16 %v7061
    %v7218 = vunpack.c.h.b16 %v7061
    %v7219 = vunpack.c.l.b16 %v7062
    %v7220 = vunpack.c.h.b16 %v7062
    %v7221 = vunpack.c.l.b16 %v7063
    %v7222 = vunpack.c.h.b16 %v7063
    %v7223 = vunpack.c.l.b16 %v7064
    %v7224 = vunpack.c.h.b16 %v7064
    %v7225 = vunpack.c.l.b16 %v7065
    %v7226 = vunpack.c.h.b16 %v7065
    %v7227 = vunpack.c.l.b16 %v7066
    %v7228 = vunpack.c.h.b16 %v7066
    %v7229 = vunpack.c.l.b16 %v7067
    %v7230 = vunpack.c.h.b16 %v7067
    %v7231 = vunpack.c.l.b16 %v7068
    %v7232 = vunpack.c.h.b16 %v7068
    %v7233 = vunpack.c.l.b16 %v7069
    %v7234 = vunpack.c.h.b16 %v7069
    %v7235 = vunpack.c.l.b16 %v7070
    %v7236 = vunpack.c.h.b16 %v7070
    %v7237 = vunpack.c.l.b16 %v7071
    %v7238 = vunpack.c.h.b16 %v7071
    %v7239 = vunpack.c.l.b16 %v7072
    %v7240 = vunpack.c.h.b16 %v7072
    %v7241 = vunpack.c.l.b16 %v7073
    %v7242 = vunpack.c.h.b16 %v7073
    %v7243 = vunpack.c.l.b16 %v7074
    %v7244 = vunpack.c.h.b16 %v7074
    %v7245 = vunpack.c.l.b16 %v7075
    %v7246 = vunpack.c.h.b16 %v7075
    %v7247 = vunpack.c.l.b16 %v7076
    %v7248 = vunpack.c.h.b16 %v7076
    %v7249 = vunpack.c.l.b16 %v7077
    %v7250 = vunpack.c.h.b16 %v7077
    %v7251 = vunpack.c.l.b16 %v7078
    %v7252 = vunpack.c.h.b16 %v7078
    %v7253 = vunpack.c.l.b16 %v7079
    %v7254 = vunpack.c.h.b16 %v7079
    %v7255 = vunpack.c.l.b16 %v7080
    %v7256 = vunpack.c.h.b16 %v7080
    %v7257 = vunpack.c.l.b16 %v7081
    %v7258 = vunpack.c.h.b16 %v7081
    %v7259 = vunpack.c.l.b16 %v7082
    %v7260 = vunpack.c.h.b16 %v7082
    %v7261 = vunpack.c.l.b16 %v7083
    %v7262 = vunpack.c.h.b16 %v7083
    %v7263 = vunpack.c.l.b16 %v7084
    %v7264 = vunpack.c.h.b16 %v7084
    %v7265 = vunpack.c.l.b16 %v7085
    %v7266 = vunpack.c.h.b16 %v7085
    %v7267 = vunpack.c.l.b16 %v7086
    %v7268 = vunpack.c.h.b16 %v7086
    %v7269 = vunpack.c.l.b16 %v7087
    %v7270 = vunpack.c.h.b16 %v7087
    %v7271 = vunpack.c.l.b16 %v7088
    %v7272 = vunpack.c.h.b16 %v7088
    %v7273 = vunpack.c.l.b16 %v7089
    %v7274 = vunpack.c.h.b16 %v7089
    %v7275 = vunpack.c.l.b16 %v7090
    %v7276 = vunpack.c.h.b16 %v7090
    %v7277 = vunpack.c.l.b16 %v7091
    %v7278 = vunpack.c.h.b16 %v7091
    %v7279 = vunpack.c.l.b16 %v7092
    %v7280 = vunpack.c.h.b16 %v7092
    %v7281 = vunpack.c.l.b16 %v7093
    %v7282 = vunpack.c.h.b16 %v7093
    %v7283 = vunpack.c.l.b16 %v7094
    %v7284 = vunpack.c.h.b16 %v7094
    %v7285 = vunpack.c.l.b16 %v7095
    %v7286 = vunpack.c.h.b16 %v7095
    %v7287 = vunpack.c.l.b16 %v7096
    %v7288 = vunpack.c.h.b16 %v7096
    %v7289 = vunpack.c.l.b16 %v7097
    %v7290 = vunpack.c.h.b16 %v7097
    %v7291 = vunpack.c.l.b16 %v7098
    %v7292 = vunpack.c.h.b16 %v7098
    %v7293 = vunpack.c.l.b16 %v7099
    %v7294 = vunpack.c.h.b16 %v7099
    %v7295 = vunpack.c.l.b16 %v7100
    %v7296 = vunpack.c.h.b16 %v7100
    %v7297 = vunpack.c.l.b16 %v7101
    %v7298 = vunpack.c.h.b16 %v7101
    %v7299 = vunpack.c.l.b16 %v7102
    %v7300 = vunpack.c.h.b16 %v7102
    %v7301 = vunpack.c.l.b16 %v7103
    %v7302 = vunpack.c.h.b16 %v7103
    %v7303 = vunpack.c.l.b16 %v7104
    %v7304 = vunpack.c.h.b16 %v7104
    %v7305 = vunpack.c.l.b16 %v7105
    %v7306 = vunpack.c.h.b16 %v7105
    %v7307 = vunpack.c.l.b16 %v7106
    %v7308 = vunpack.c.h.b16 %v7106
    %v7309 = vunpack.c.l.b16 %v7107
    %v7310 = vunpack.c.h.b16 %v7107
    %v7311 = vunpack.c.l.b16 %v7108
    %v7312 = vunpack.c.h.b16 %v7108
    %v7313 = vunpack.c.l.b16 %v7109
    %v7314 = vunpack.c.h.b16 %v7109
    %v7315 = vunpack.c.l.b16 %v7110
    %v7316 = vunpack.c.h.b16 %v7110
    %v7317 = vunpack.c.l.b16 %v7111
    %v7318 = vunpack.c.h.b16 %v7111
    %v7319 = vunpack.c.l.b16 %v7112
    %v7320 = vunpack.c.h.b16 %v7112
    %v7321 = vunpack.c.l.b16 %v7113
    %v7322 = vunpack.c.h.b16 %v7113
    %v7323 = vpack.c.b16 %v7199, %v7195
    %v7324 = vpack.c.b16 %v7200, %v7196
    %v7325 = vpack.c.b16 %v7201, %v7197
    %v7326 = vpack.c.b16 %v7202, %v7198
    %v7327 = vpack.c.b16 %v7207, %v7203
    %v7328 = vpack.c.b16 %v7208, %v7204
    %v7329 = vpack.c.b16 %v7209, %v7205
    %v7330 = vpack.c.b16 %v7210, %v7206
    %v7331 = vpack.c.b16 %v7215, %v7211
    %v7332 = vpack.c.b16 %v7216, %v7212
    %v7333 = vpack.c.b16 %v7217, %v7213
    %v7334 = vpack.c.b16 %v7218, %v7214
    %v7335 = vpack.c.b16 %v7223, %v7219
    %v7336 = vpack.c.b16 %v7224, %v7220
    %v7337 = vpack.c.b16 %v7225, %v7221
    %v7338 = vpack.c.b16 %v7226, %v7222
    %v7339 = vpack.c.b16 %v7231, %v7227
    %v7340 = vpack.c.b16 %v7232, %v7228
    %v7341 = vpack.c.b16 %v7233, %v7229
    %v7342 = vpack.c.b16 %v7234, %v7230
    %v7343 = vpack.c.b16 %v7239, %v7235
    %v7344 = vpack.c.b16 %v7240, %v7236
    %v7345 = vpack.c.b16 %v7241, %v7237
    %v7346 = vpack.c.b16 %v7242, %v7238
    %v7347 = vpack.c.b16 %v7247, %v7243
    %v7348 = vpack.c.b16 %v7248, %v7244
    %v7349 = vpack.c.b16 %v7249, %v7245
    %v7350 = vpack.c.b16 %v7250, %v7246
    %v7351 = vpack.c.b16 %v7255, %v7251
    %v7352 = vpack.c.b16 %v7256, %v7252
    %v7353 = vpack.c.b16 %v7257, %v7253
    %v7354 = vpack.c.b16 %v7258, %v7254
    %v7355 = vpack.c.b16 %v7263, %v7259
    %v7356 = vpack.c.b16 %v7264, %v7260
    %v7357 = vpack.c.b16 %v7265, %v7261
    %v7358 = vpack.c.b16 %v7266, %v7262
    %v7359 = vpack.c.b16 %v7271, %v7267
    %v7360 = vpack.c.b16 %v7272, %v7268
    %v7361 = vpack.c.b16 %v7273, %v7269
    %v7362 = vpack.c.b16 %v7274, %v7270
    %v7363 = vpack.c.b16 %v7279, %v7275
    %v7364 = vpack.c.b16 %v7280, %v7276
    %v7365 = vpack.c.b16 %v7281, %v7277
    %v7366 = vpack.c.b16 %v7282, %v7278
    %v7367 = vpack.c.b16 %v7287, %v7283
    %v7368 = vpack.c.b16 %v7288, %v7284
    %v7369 = vpack.c.b16 %v7289, %v7285
    %v7370 = vpack.c.b16 %v7290, %v7286
    %v7371 = vpack.c.b16 %v7295, %v7291
    %v7372 = vpack.c.b16 %v7296, %v7292
    %v7373 = vpack.c.b16 %v7297, %v7293
    %v7374 = vpack.c.b16 %v7298, %v7294
    %v7375 = vpack.c.b16 %v7303, %v7299
    %v7376 = vpack.c.b16 %v7304, %v7300
    %v7377 = vpack.c.b16 %v7305, %v7301
    %v7378 = vpack.c.b16 %v7306, %v7302
    %v7379 = vpack.c.b16 %v7311, %v7307
    %v7380 = vpack.c.b16 %v7312, %v7308
    %v7381 = vpack.c.b16 %v7313, %v7309
    %v7382 = vpack.c.b16 %v7314, %v7310
    %v7383 = vpack.c.b16 %v7319, %v7315
    %v7384 = vpack.c.b16 %v7320, %v7316
    %v7385 = vpack.c.b16 %v7321, %v7317
    %v7386 = vpack.c.b16 %v7322, %v7318
    %7451 = vmatpush.bf16.msra.mxu0 %v7351
    %7452 = vmatpush.bf16.msra.mxu0 %v7347
    %7453 = vmatpush.bf16.msra.mxu0 %v7343
    %7454 = vmatpush.bf16.msra.mxu0 %v7339
    %7455 = vmatpush.bf16.msra.mxu0 %v7335
    %7456 = vmatpush.bf16.msra.mxu0 %v7331
    %7457 = vmatpush.bf16.msra.mxu0 %v7327
    %7458 = vmatpush.bf16.msra.mxu0 %v7323
    %7459 = vmatmul.bf16.gmra.mxu0 %v7127
    %v7460 = vpop.f32.mrf.mxu0
    %v7461 = vadd.f32 %v7116, %v7460
    %v7462 = vpop.f32.mrf.mxu0
    %7463 = vdwg.mxu0
    %7464 = vmatpush.bf16.msra.mxu0 %v7383
    %7465 = vmatpush.bf16.msra.mxu0 %v7379
    %7466 = vmatpush.bf16.msra.mxu0 %v7375
    %7467 = vmatpush.bf16.msra.mxu0 %v7371
    %7468 = vmatpush.bf16.msra.mxu0 %v7367
    %7469 = vmatpush.bf16.msra.mxu0 %v7363
    %7470 = vmatpush.bf16.msra.mxu0 %v7359
    %7471 = vmatpush.bf16.msra.mxu0 %v7355
    %7472 = vmatmul.bf16.gmra.mxu0 %v7128
    %v7473 = vpop.f32.mrf.mxu0
    %v7474 = vadd.f32 %v7461, %v7473
    %v7475 = vpop.f32.mrf.mxu0
    %7476 = vdwg.mxu0
    %7477 = vmatpush.bf16.msra.mxu0 %v7352
    %7478 = vmatpush.bf16.msra.mxu0 %v7348
    %7479 = vmatpush.bf16.msra.mxu0 %v7344
    %7480 = vmatpush.bf16.msra.mxu0 %v7340
    %7481 = vmatpush.bf16.msra.mxu0 %v7336
    %7482 = vmatpush.bf16.msra.mxu0 %v7332
    %7483 = vmatpush.bf16.msra.mxu0 %v7328
    %7484 = vmatpush.bf16.msra.mxu0 %v7324
    %7485 = vmatmul.bf16.gmra.mxu0 %v7127
    %v7486 = vpop.f32.mrf.mxu0
    %v7487 = vadd.f32 %v7117, %v7486
    %v7488 = vpop.f32.mrf.mxu0
    %7489 = vdwg.mxu0
    %7490 = vmatpush.bf16.msra.mxu0 %v7384
    %7491 = vmatpush.bf16.msra.mxu0 %v7380
    %7492 = vmatpush.bf16.msra.mxu0 %v7376
    %7493 = vmatpush.bf16.msra.mxu0 %v7372
    %7494 = vmatpush.bf16.msra.mxu0 %v7368
    %7495 = vmatpush.bf16.msra.mxu0 %v7364
    %7496 = vmatpush.bf16.msra.mxu0 %v7360
    %7497 = vmatpush.bf16.msra.mxu0 %v7356
    %7498 = vmatmul.bf16.gmra.mxu0 %v7128
    %v7499 = vpop.f32.mrf.mxu0
    %v7500 = vadd.f32 %v7487, %v7499
    %v7501 = vpop.f32.mrf.mxu0
    %7502 = vdwg.mxu0
    %7503 = vmatpush.bf16.msra.mxu0 %v7353
    %7504 = vmatpush.bf16.msra.mxu0 %v7349
    %7505 = vmatpush.bf16.msra.mxu0 %v7345
    %7506 = vmatpush.bf16.msra.mxu0 %v7341
    %7507 = vmatpush.bf16.msra.mxu0 %v7337
    %7508 = vmatpush.bf16.msra.mxu0 %v7333
    %7509 = vmatpush.bf16.msra.mxu0 %v7329
    %7510 = vmatpush.bf16.msra.mxu0 %v7325
    %7511 = vmatmul.bf16.gmra.mxu0 %v7127
    %v7512 = vpop.f32.mrf.mxu0
    %v7513 = vadd.f32 %v7118, %v7512
    %v7514 = vpop.f32.mrf.mxu0
    %7515 = vdwg.mxu0
    %7516 = vmatpush.bf16.msra.mxu0 %v7385
    %7517 = vmatpush.bf16.msra.mxu0 %v7381
    %7518 = vmatpush.bf16.msra.mxu0 %v7377
    %7519 = vmatpush.bf16.msra.mxu0 %v7373
    %7520 = vmatpush.bf16.msra.mxu0 %v7369
    %7521 = vmatpush.bf16.msra.mxu0 %v7365
    %7522 = vmatpush.bf16.msra.mxu0 %v7361
    %7523 = vmatpush.bf16.msra.mxu0 %v7357
    %7524 = vmatmul.bf16.gmra.mxu0 %v7128
    %v7525 = vpop.f32.mrf.mxu0
    %v7526 = vadd.f32 %v7513, %v7525
    %v7527 = vpop.f32.mrf.mxu0
    %7528 = vdwg.mxu0
    %7529 = vmatpush.bf16.msra.mxu0 %v7354
    %7530 = vmatpush.bf16.msra.mxu0 %v7350
    %7531 = vmatpush.bf16.msra.mxu0 %v7346
    %7532 = vmatpush.bf16.msra.mxu0 %v7342
    %7533 = vmatpush.bf16.msra.mxu0 %v7338
    %7534 = vmatpush.bf16.msra.mxu0 %v7334
    %7535 = vmatpush.bf16.msra.mxu0 %v7330
    %7536 = vmatpush.bf16.msra.mxu0 %v7326
    %7537 = vmatmul.bf16.gmra.mxu0 %v7127
    %v7538 = vpop.f32.mrf.mxu0
    %v7539 = vadd.f32 %v7119, %v7538
    %v7540 = vpop.f32.mrf.mxu0
    %7541 = vdwg.mxu0
    %7542 = vmatpush.bf16.msra.mxu0 %v7386
    %7543 = vmatpush.bf16.msra.mxu0 %v7382
    %7544 = vmatpush.bf16.msra.mxu0 %v7378
    %7545 = vmatpush.bf16.msra.mxu0 %v7374
    %7546 = vmatpush.bf16.msra.mxu0 %v7370
    %7547 = vmatpush.bf16.msra.mxu0 %v7366
    %7548 = vmatpush.bf16.msra.mxu0 %v7362
    %7549 = vmatpush.bf16.msra.mxu0 %v7358
    %7550 = vmatmul.bf16.gmra.mxu0 %v7128
    %v7551 = vpop.f32.mrf.mxu0
    %v7552 = vadd.f32 %v7539, %v7551
    %v7553 = vpop.f32.mrf.mxu0
    %7554 = vdwg.mxu0
    %v7555 = vxor.u32 %v7474, 2147483648
    %v7556 = vmul.f32 %v7555, 1.442695
    %v7557 = vpow.pop %v7556
    %v7558 = vadd.f32 %v7557, 1.0
    %v7559 = vrcp.pop %v7558
    %v7560 = vmul.f32 %v7558, %v7559
    %v7561 = vsub.f32 1.0, %v7560
    %v7562 = vmul.f32 %v7559, %v7561
    %v7563 = vadd.f32 %v7559, %v7562
    %vm7564 = vweird.f32 %v7558
    %vm7565 = vweird.f32 %v7559
    %vm7566 = vmor %vm7564, %vm7565
    %v7567 = vsel %vm7566, %v7559, %v7563
    %v7568 = vand.u32 2147483647, %v7558
    %vm7569 = vcmp.eq.f32.partialorder %v7568, 8.507059e+37
    %v7570 = vand.u32 %v7558, 2147483648
    %v7571 = vor.u32 1.1754944e-38, %v7570
    %v7572 = vsel %vm7569, %v7571, %v7567
    %v7573 = vmul.f32 1.0, %v7572
    %v7574 = vxor.u32 %v7500, 2147483648
    %v7575 = vmul.f32 %v7574, 1.442695
    %v7576 = vpow.pop %v7575
    %v7577 = vadd.f32 %v7576, 1.0
    %v7578 = vrcp.pop %v7577
    %v7579 = vmul.f32 %v7577, %v7578
    %v7580 = vsub.f32 1.0, %v7579
    %v7581 = vmul.f32 %v7578, %v7580
    %v7582 = vadd.f32 %v7578, %v7581
    %vm7583 = vweird.f32 %v7577
    %vm7584 = vweird.f32 %v7578
    %vm7585 = vmor %vm7583, %vm7584
    %v7586 = vsel %vm7585, %v7578, %v7582
    %v7587 = vand.u32 2147483647, %v7577
    %vm7588 = vcmp.eq.f32.partialorder %v7587, 8.507059e+37
    %v7589 = vand.u32 %v7577, 2147483648
    %v7590 = vor.u32 1.1754944e-38, %v7589
    %v7591 = vsel %vm7588, %v7590, %v7586
    %v7592 = vmul.f32 1.0, %v7591
    %v7593 = vtanh.pop %v7526
    %v7594 = vxor.u32 %v7552, 2147483648
    %v7595 = vmul.f32 %v7594, 1.442695
    %v7596 = vpow.pop %v7595
    %v7597 = vadd.f32 %v7596, 1.0
    %v7598 = vrcp.pop %v7597
    %v7599 = vmul.f32 %v7597, %v7598
    %v7600 = vsub.f32 1.0, %v7599
    %v7601 = vmul.f32 %v7598, %v7600
    %v7602 = vadd.f32 %v7598, %v7601
    %vm7603 = vweird.f32 %v7597
    %vm7604 = vweird.f32 %v7598
    %vm7605 = vmor %vm7603, %vm7604
    %v7606 = vsel %vm7605, %v7598, %v7602
    %v7607 = vand.u32 2147483647, %v7597
    %vm7608 = vcmp.eq.f32.partialorder %v7607, 8.507059e+37
    %v7609 = vand.u32 %v7597, 2147483648
    %v7610 = vor.u32 1.1754944e-38, %v7609
    %v7611 = vsel %vm7608, %v7610, %v7606
    %v7612 = vmul.f32 1.0, %v7611
    %v7613 = vmul.f32 %v7592, %v6469
    %v7614 = vmul.f32 %v7573, %v7593
    %v7615 = vadd.f32 %v7613, %v7614
    %v7616 = vtanh.pop %v7615
    %v7617 = vmul.f32 %v7612, %v7616
    %v7618 = vpack.c.bf16 %v7617, %v7617
    %7619 = vst [vmem:[#allocation3] sm:$0xf] %v7618
    %v7620 = vpack.c.bf16 %v7044, %v7044
    %7621 = vst [vmem:[#allocation3 + $0x4] sm:$0xf] %v7620
    %v7622 = vld [vmem:[#allocation3] sm:$0xff]
    %v7623 = vld [vmem:[#allocation4] sm:$0xff]
    %v7624 = vld [vmem:[#allocation4 + $0x8] sm:$0xff]
    %v7625 = vld [vmem:[#allocation4 + $0x10] sm:$0xff]
    %v7626 = vld [vmem:[#allocation4 + $0x18] sm:$0xff]
    %v7627 = vld [vmem:[#allocation4 + $0x20] sm:$0xff]
    %v7628 = vld [vmem:[#allocation4 + $0x28] sm:$0xff]
    %v7629 = vld [vmem:[#allocation4 + $0x30] sm:$0xff]
    %v7630 = vld [vmem:[#allocation4 + $0x38] sm:$0xff]
    %v7631 = vld [vmem:[#allocation4 + $0x40] sm:$0xff]
    %v7632 = vld [vmem:[#allocation4 + $0x48] sm:$0xff]
    %v7633 = vld [vmem:[#allocation4 + $0x50] sm:$0xff]
    %v7634 = vld [vmem:[#allocation4 + $0x58] sm:$0xff]
    %v7635 = vld [vmem:[#allocation4 + $0x60] sm:$0xff]
    %v7636 = vld [vmem:[#allocation4 + $0x68] sm:$0xff]
    %v7637 = vld [vmem:[#allocation4 + $0x70] sm:$0xff]
    %v7638 = vld [vmem:[#allocation4 + $0x78] sm:$0xff]
    %v7639 = vld [vmem:[#allocation4 + $0x80] sm:$0xff]
    %v7640 = vld [vmem:[#allocation4 + $0x88] sm:$0xff]
    %v7641 = vld [vmem:[#allocation4 + $0x90] sm:$0xff]
    %v7642 = vld [vmem:[#allocation4 + $0x98] sm:$0xff]
    %v7643 = vld [vmem:[#allocation4 + $0xa0] sm:$0xff]
    %v7644 = vld [vmem:[#allocation4 + $0xa8] sm:$0xff]
    %v7645 = vld [vmem:[#allocation4 + $0xb0] sm:$0xff]
    %v7646 = vld [vmem:[#allocation4 + $0xb8] sm:$0xff]
    %v7647 = vld [vmem:[#allocation4 + $0xc0] sm:$0xff]
    %v7648 = vld [vmem:[#allocation4 + $0xc8] sm:$0xff]
    %v7649 = vld [vmem:[#allocation4 + $0xd0] sm:$0xff]
    %v7650 = vld [vmem:[#allocation4 + $0xd8] sm:$0xff]
    %v7651 = vld [vmem:[#allocation4 + $0xe0] sm:$0xff]
    %v7652 = vld [vmem:[#allocation4 + $0xe8] sm:$0xff]
    %v7653 = vld [vmem:[#allocation4 + $0xf0] sm:$0xff]
    %v7654 = vld [vmem:[#allocation4 + $0xf8] sm:$0xff]
    %v7655 = vld [vmem:[#allocation4 + $0x100] sm:$0xff]
    %v7656 = vld [vmem:[#allocation4 + $0x108] sm:$0xff]
    %v7657 = vld [vmem:[#allocation4 + $0x110] sm:$0xff]
    %v7658 = vld [vmem:[#allocation4 + $0x118] sm:$0xff]
    %v7659 = vld [vmem:[#allocation4 + $0x120] sm:$0xff]
    %v7660 = vld [vmem:[#allocation4 + $0x128] sm:$0xff]
    %v7661 = vld [vmem:[#allocation4 + $0x130] sm:$0xff]
    %v7662 = vld [vmem:[#allocation4 + $0x138] sm:$0xff]
    %v7663 = vld [vmem:[#allocation4 + $0x140] sm:$0xff]
    %v7664 = vld [vmem:[#allocation4 + $0x148] sm:$0xff]
    %v7665 = vld [vmem:[#allocation4 + $0x150] sm:$0xff]
    %v7666 = vld [vmem:[#allocation4 + $0x158] sm:$0xff]
    %v7667 = vld [vmem:[#allocation4 + $0x160] sm:$0xff]
    %v7668 = vld [vmem:[#allocation4 + $0x168] sm:$0xff]
    %v7669 = vld [vmem:[#allocation4 + $0x170] sm:$0xff]
    %v7670 = vld [vmem:[#allocation4 + $0x178] sm:$0xff]
    %v7671 = vld [vmem:[#allocation4 + $0x180] sm:$0xff]
    %v7672 = vld [vmem:[#allocation4 + $0x188] sm:$0xff]
    %v7673 = vld [vmem:[#allocation4 + $0x190] sm:$0xff]
    %v7674 = vld [vmem:[#allocation4 + $0x198] sm:$0xff]
    %v7675 = vld [vmem:[#allocation4 + $0x1a0] sm:$0xff]
    %v7676 = vld [vmem:[#allocation4 + $0x1a8] sm:$0xff]
    %v7677 = vld [vmem:[#allocation4 + $0x1b0] sm:$0xff]
    %v7678 = vld [vmem:[#allocation4 + $0x1b8] sm:$0xff]
    %v7679 = vld [vmem:[#allocation4 + $0x1c0] sm:$0xff]
    %v7680 = vld [vmem:[#allocation4 + $0x1c8] sm:$0xff]
    %v7681 = vld [vmem:[#allocation4 + $0x1d0] sm:$0xff]
    %v7682 = vld [vmem:[#allocation4 + $0x1d8] sm:$0xff]
    %v7683 = vld [vmem:[#allocation4 + $0x1e0] sm:$0xff]
    %v7684 = vld [vmem:[#allocation4 + $0x1e8] sm:$0xff]
    %v7685 = vld [vmem:[#allocation4 + $0x1f0] sm:$0xff]
    %v7686 = vld [vmem:[#allocation4 + $0x1f8] sm:$0xff]
    %v7687 = vld [vmem:[%s7] sm:$0xf]
    %v7689 = vperm.slane %v7687, 0
    %v7690 = vperm.slane %v7687, 1
    %v7691 = vperm.slane %v7687, 2
    %v7692 = vperm.slane %v7687, 3
    %v7698 = vunpack.c.l.b16 %v7622
    %v7699 = vunpack.c.h.b16 %v7622
    %v7700 = vpack.c.b16 %v7698, %v7698
    %v7701 = vpack.c.b16 %v7699, %v7699
    %v7768 = vunpack.c.l.b16 %v7623
    %v7769 = vunpack.c.h.b16 %v7623
    %v7770 = vunpack.c.l.b16 %v7624
    %v7771 = vunpack.c.h.b16 %v7624
    %v7772 = vunpack.c.l.b16 %v7625
    %v7773 = vunpack.c.h.b16 %v7625
    %v7774 = vunpack.c.l.b16 %v7626
    %v7775 = vunpack.c.h.b16 %v7626
    %v7776 = vunpack.c.l.b16 %v7627
    %v7777 = vunpack.c.h.b16 %v7627
    %v7778 = vunpack.c.l.b16 %v7628
    %v7779 = vunpack.c.h.b16 %v7628
    %v7780 = vunpack.c.l.b16 %v7629
    %v7781 = vunpack.c.h.b16 %v7629
    %v7782 = vunpack.c.l.b16 %v7630
    %v7783 = vunpack.c.h.b16 %v7630
    %v7784 = vunpack.c.l.b16 %v7631
    %v7785 = vunpack.c.h.b16 %v7631
    %v7786 = vunpack.c.l.b16 %v7632
    %v7787 = vunpack.c.h.b16 %v7632
    %v7788 = vunpack.c.l.b16 %v7633
    %v7789 = vunpack.c.h.b16 %v7633
    %v7790 = vunpack.c.l.b16 %v7634
    %v7791 = vunpack.c.h.b16 %v7634
    %v7792 = vunpack.c.l.b16 %v7635
    %v7793 = vunpack.c.h.b16 %v7635
    %v7794 = vunpack.c.l.b16 %v7636
    %v7795 = vunpack.c.h.b16 %v7636
    %v7796 = vunpack.c.l.b16 %v7637
    %v7797 = vunpack.c.h.b16 %v7637
    %v7798 = vunpack.c.l.b16 %v7638
    %v7799 = vunpack.c.h.b16 %v7638
    %v7800 = vunpack.c.l.b16 %v7639
    %v7801 = vunpack.c.h.b16 %v7639
    %v7802 = vunpack.c.l.b16 %v7640
    %v7803 = vunpack.c.h.b16 %v7640
    %v7804 = vunpack.c.l.b16 %v7641
    %v7805 = vunpack.c.h.b16 %v7641
    %v7806 = vunpack.c.l.b16 %v7642
    %v7807 = vunpack.c.h.b16 %v7642
    %v7808 = vunpack.c.l.b16 %v7643
    %v7809 = vunpack.c.h.b16 %v7643
    %v7810 = vunpack.c.l.b16 %v7644
    %v7811 = vunpack.c.h.b16 %v7644
    %v7812 = vunpack.c.l.b16 %v7645
    %v7813 = vunpack.c.h.b16 %v7645
    %v7814 = vunpack.c.l.b16 %v7646
    %v7815 = vunpack.c.h.b16 %v7646
    %v7816 = vunpack.c.l.b16 %v7647
    %v7817 = vunpack.c.h.b16 %v7647
    %v7818 = vunpack.c.l.b16 %v7648
    %v7819 = vunpack.c.h.b16 %v7648
    %v7820 = vunpack.c.l.b16 %v7649
    %v7821 = vunpack.c.h.b16 %v7649
    %v7822 = vunpack.c.l.b16 %v7650
    %v7823 = vunpack.c.h.b16 %v7650
    %v7824 = vunpack.c.l.b16 %v7651
    %v7825 = vunpack.c.h.b16 %v7651
    %v7826 = vunpack.c.l.b16 %v7652
    %v7827 = vunpack.c.h.b16 %v7652
    %v7828 = vunpack.c.l.b16 %v7653
    %v7829 = vunpack.c.h.b16 %v7653
    %v7830 = vunpack.c.l.b16 %v7654
    %v7831 = vunpack.c.h.b16 %v7654
    %v7832 = vunpack.c.l.b16 %v7655
    %v7833 = vunpack.c.h.b16 %v7655
    %v7834 = vunpack.c.l.b16 %v7656
    %v7835 = vunpack.c.h.b16 %v7656
    %v7836 = vunpack.c.l.b16 %v7657
    %v7837 = vunpack.c.h.b16 %v7657
    %v7838 = vunpack.c.l.b16 %v7658
    %v7839 = vunpack.c.h.b16 %v7658
    %v7840 = vunpack.c.l.b16 %v7659
    %v7841 = vunpack.c.h.b16 %v7659
    %v7842 = vunpack.c.l.b16 %v7660
    %v7843 = vunpack.c.h.b16 %v7660
    %v7844 = vunpack.c.l.b16 %v7661
    %v7845 = vunpack.c.h.b16 %v7661
    %v7846 = vunpack.c.l.b16 %v7662
    %v7847 = vunpack.c.h.b16 %v7662
    %v7848 = vunpack.c.l.b16 %v7663
    %v7849 = vunpack.c.h.b16 %v7663
    %v7850 = vunpack.c.l.b16 %v7664
    %v7851 = vunpack.c.h.b16 %v7664
    %v7852 = vunpack.c.l.b16 %v7665
    %v7853 = vunpack.c.h.b16 %v7665
    %v7854 = vunpack.c.l.b16 %v7666
    %v7855 = vunpack.c.h.b16 %v7666
    %v7856 = vunpack.c.l.b16 %v7667
    %v7857 = vunpack.c.h.b16 %v7667
    %v7858 = vunpack.c.l.b16 %v7668
    %v7859 = vunpack.c.h.b16 %v7668
    %v7860 = vunpack.c.l.b16 %v7669
    %v7861 = vunpack.c.h.b16 %v7669
    %v7862 = vunpack.c.l.b16 %v7670
    %v7863 = vunpack.c.h.b16 %v7670
    %v7864 = vunpack.c.l.b16 %v7671
    %v7865 = vunpack.c.h.b16 %v7671
    %v7866 = vunpack.c.l.b16 %v7672
    %v7867 = vunpack.c.h.b16 %v7672
    %v7868 = vunpack.c.l.b16 %v7673
    %v7869 = vunpack.c.h.b16 %v7673
    %v7870 = vunpack.c.l.b16 %v7674
    %v7871 = vunpack.c.h.b16 %v7674
    %v7872 = vunpack.c.l.b16 %v7675
    %v7873 = vunpack.c.h.b16 %v7675
    %v7874 = vunpack.c.l.b16 %v7676
    %v7875 = vunpack.c.h.b16 %v7676
    %v7876 = vunpack.c.l.b16 %v7677
    %v7877 = vunpack.c.h.b16 %v7677
    %v7878 = vunpack.c.l.b16 %v7678
    %v7879 = vunpack.c.h.b16 %v7678
    %v7880 = vunpack.c.l.b16 %v7679
    %v7881 = vunpack.c.h.b16 %v7679
    %v7882 = vunpack.c.l.b16 %v7680
    %v7883 = vunpack.c.h.b16 %v7680
    %v7884 = vunpack.c.l.b16 %v7681
    %v7885 = vunpack.c.h.b16 %v7681
    %v7886 = vunpack.c.l.b16 %v7682
    %v7887 = vunpack.c.h.b16 %v7682
    %v7888 = vunpack.c.l.b16 %v7683
    %v7889 = vunpack.c.h.b16 %v7683
    %v7890 = vunpack.c.l.b16 %v7684
    %v7891 = vunpack.c.h.b16 %v7684
    %v7892 = vunpack.c.l.b16 %v7685
    %v7893 = vunpack.c.h.b16 %v7685
    %v7894 = vunpack.c.l.b16 %v7686
    %v7895 = vunpack.c.h.b16 %v7686
    %v7896 = vpack.c.b16 %v7772, %v7768
    %v7897 = vpack.c.b16 %v7773, %v7769
    %v7898 = vpack.c.b16 %v7774, %v7770
    %v7899 = vpack.c.b16 %v7775, %v7771
    %v7900 = vpack.c.b16 %v7780, %v7776
    %v7901 = vpack.c.b16 %v7781, %v7777
    %v7902 = vpack.c.b16 %v7782, %v7778
    %v7903 = vpack.c.b16 %v7783, %v7779
    %v7904 = vpack.c.b16 %v7788, %v7784
    %v7905 = vpack.c.b16 %v7789, %v7785
    %v7906 = vpack.c.b16 %v7790, %v7786
    %v7907 = vpack.c.b16 %v7791, %v7787
    %v7908 = vpack.c.b16 %v7796, %v7792
    %v7909 = vpack.c.b16 %v7797, %v7793
    %v7910 = vpack.c.b16 %v7798, %v7794
    %v7911 = vpack.c.b16 %v7799, %v7795
    %v7912 = vpack.c.b16 %v7804, %v7800
    %v7913 = vpack.c.b16 %v7805, %v7801
    %v7914 = vpack.c.b16 %v7806, %v7802
    %v7915 = vpack.c.b16 %v7807, %v7803
    %v7916 = vpack.c.b16 %v7812, %v7808
    %v7917 = vpack.c.b16 %v7813, %v7809
    %v7918 = vpack.c.b16 %v7814, %v7810
    %v7919 = vpack.c.b16 %v7815, %v7811
    %v7920 = vpack.c.b16 %v7820, %v7816
    %v7921 = vpack.c.b16 %v7821, %v7817
    %v7922 = vpack.c.b16 %v7822, %v7818
    %v7923 = vpack.c.b16 %v7823, %v7819
    %v7924 = vpack.c.b16 %v7828, %v7824
    %v7925 = vpack.c.b16 %v7829, %v7825
    %v7926 = vpack.c.b16 %v7830, %v7826
    %v7927 = vpack.c.b16 %v7831, %v7827
    %v7928 = vpack.c.b16 %v7836, %v7832
    %v7929 = vpack.c.b16 %v7837, %v7833
    %v7930 = vpack.c.b16 %v7838, %v7834
    %v7931 = vpack.c.b16 %v7839, %v7835
    %v7932 = vpack.c.b16 %v7844, %v7840
    %v7933 = vpack.c.b16 %v7845, %v7841
    %v7934 = vpack.c.b16 %v7846, %v7842
    %v7935 = vpack.c.b16 %v7847, %v7843
    %v7936 = vpack.c.b16 %v7852, %v7848
    %v7937 = vpack.c.b16 %v7853, %v7849
    %v7938 = vpack.c.b16 %v7854, %v7850
    %v7939 = vpack.c.b16 %v7855, %v7851
    %v7940 = vpack.c.b16 %v7860, %v7856
    %v7941 = vpack.c.b16 %v7861, %v7857
    %v7942 = vpack.c.b16 %v7862, %v7858
    %v7943 = vpack.c.b16 %v7863, %v7859
    %v7944 = vpack.c.b16 %v7868, %v7864
    %v7945 = vpack.c.b16 %v7869, %v7865
    %v7946 = vpack.c.b16 %v7870, %v7866
    %v7947 = vpack.c.b16 %v7871, %v7867
    %v7948 = vpack.c.b16 %v7876, %v7872
    %v7949 = vpack.c.b16 %v7877, %v7873
    %v7950 = vpack.c.b16 %v7878, %v7874
    %v7951 = vpack.c.b16 %v7879, %v7875
    %v7952 = vpack.c.b16 %v7884, %v7880
    %v7953 = vpack.c.b16 %v7885, %v7881
    %v7954 = vpack.c.b16 %v7886, %v7882
    %v7955 = vpack.c.b16 %v7887, %v7883
    %v7956 = vpack.c.b16 %v7892, %v7888
    %v7957 = vpack.c.b16 %v7893, %v7889
    %v7958 = vpack.c.b16 %v7894, %v7890
    %v7959 = vpack.c.b16 %v7895, %v7891
    %8024 = vmatpush.bf16.msra.mxu0 %v7924
    %8025 = vmatpush.bf16.msra.mxu0 %v7920
    %8026 = vmatpush.bf16.msra.mxu0 %v7916
    %8027 = vmatpush.bf16.msra.mxu0 %v7912
    %8028 = vmatpush.bf16.msra.mxu0 %v7908
    %8029 = vmatpush.bf16.msra.mxu0 %v7904
    %8030 = vmatpush.bf16.msra.mxu0 %v7900
    %8031 = vmatpush.bf16.msra.mxu0 %v7896
    %8032 = vmatmul.bf16.gmra.mxu0 %v7700
    %v8033 = vpop.f32.mrf.mxu0
    %v8034 = vadd.f32 %v7689, %v8033
    %v8035 = vpop.f32.mrf.mxu0
    %8036 = vdwg.mxu0
    %8037 = vmatpush.bf16.msra.mxu0 %v7956
    %8038 = vmatpush.bf16.msra.mxu0 %v7952
    %8039 = vmatpush.bf16.msra.mxu0 %v7948
    %8040 = vmatpush.bf16.msra.mxu0 %v7944
    %8041 = vmatpush.bf16.msra.mxu0 %v7940
    %8042 = vmatpush.bf16.msra.mxu0 %v7936
    %8043 = vmatpush.bf16.msra.mxu0 %v7932
    %8044 = vmatpush.bf16.msra.mxu0 %v7928
    %8045 = vmatmul.bf16.gmra.mxu0 %v7701
    %v8046 = vpop.f32.mrf.mxu0
    %v8047 = vadd.f32 %v8034, %v8046
    %v8048 = vpop.f32.mrf.mxu0
    %8049 = vdwg.mxu0
    %8050 = vmatpush.bf16.msra.mxu0 %v7925
    %8051 = vmatpush.bf16.msra.mxu0 %v7921
    %8052 = vmatpush.bf16.msra.mxu0 %v7917
    %8053 = vmatpush.bf16.msra.mxu0 %v7913
    %8054 = vmatpush.bf16.msra.mxu0 %v7909
    %8055 = vmatpush.bf16.msra.mxu0 %v7905
    %8056 = vmatpush.bf16.msra.mxu0 %v7901
    %8057 = vmatpush.bf16.msra.mxu0 %v7897
    %8058 = vmatmul.bf16.gmra.mxu0 %v7700
    %v8059 = vpop.f32.mrf.mxu0
    %v8060 = vadd.f32 %v7690, %v8059
    %v8061 = vpop.f32.mrf.mxu0
    %8062 = vdwg.mxu0
    %8063 = vmatpush.bf16.msra.mxu0 %v7957
    %8064 = vmatpush.bf16.msra.mxu0 %v7953
    %8065 = vmatpush.bf16.msra.mxu0 %v7949
    %8066 = vmatpush.bf16.msra.mxu0 %v7945
    %8067 = vmatpush.bf16.msra.mxu0 %v7941
    %8068 = vmatpush.bf16.msra.mxu0 %v7937
    %8069 = vmatpush.bf16.msra.mxu0 %v7933
    %8070 = vmatpush.bf16.msra.mxu0 %v7929
    %8071 = vmatmul.bf16.gmra.mxu0 %v7701
    %v8072 = vpop.f32.mrf.mxu0
    %v8073 = vadd.f32 %v8060, %v8072
    %v8074 = vpop.f32.mrf.mxu0
    %8075 = vdwg.mxu0
    %8076 = vmatpush.bf16.msra.mxu0 %v7926
    %8077 = vmatpush.bf16.msra.mxu0 %v7922
    %8078 = vmatpush.bf16.msra.mxu0 %v7918
    %8079 = vmatpush.bf16.msra.mxu0 %v7914
    %8080 = vmatpush.bf16.msra.mxu0 %v7910
    %8081 = vmatpush.bf16.msra.mxu0 %v7906
    %8082 = vmatpush.bf16.msra.mxu0 %v7902
    %8083 = vmatpush.bf16.msra.mxu0 %v7898
    %8084 = vmatmul.bf16.gmra.mxu0 %v7700
    %v8085 = vpop.f32.mrf.mxu0
    %v8086 = vadd.f32 %v7691, %v8085
    %v8087 = vpop.f32.mrf.mxu0
    %8088 = vdwg.mxu0
    %8089 = vmatpush.bf16.msra.mxu0 %v7958
    %8090 = vmatpush.bf16.msra.mxu0 %v7954
    %8091 = vmatpush.bf16.msra.mxu0 %v7950
    %8092 = vmatpush.bf16.msra.mxu0 %v7946
    %8093 = vmatpush.bf16.msra.mxu0 %v7942
    %8094 = vmatpush.bf16.msra.mxu0 %v7938
    %8095 = vmatpush.bf16.msra.mxu0 %v7934
    %8096 = vmatpush.bf16.msra.mxu0 %v7930
    %8097 = vmatmul.bf16.gmra.mxu0 %v7701
    %v8098 = vpop.f32.mrf.mxu0
    %v8099 = vadd.f32 %v8086, %v8098
    %v8100 = vpop.f32.mrf.mxu0
    %8101 = vdwg.mxu0
    %8102 = vmatpush.bf16.msra.mxu0 %v7927
    %8103 = vmatpush.bf16.msra.mxu0 %v7923
    %8104 = vmatpush.bf16.msra.mxu0 %v7919
    %8105 = vmatpush.bf16.msra.mxu0 %v7915
    %8106 = vmatpush.bf16.msra.mxu0 %v7911
    %8107 = vmatpush.bf16.msra.mxu0 %v7907
    %8108 = vmatpush.bf16.msra.mxu0 %v7903
    %8109 = vmatpush.bf16.msra.mxu0 %v7899
    %8110 = vmatmul.bf16.gmra.mxu0 %v7700
    %v8111 = vpop.f32.mrf.mxu0
    %v8112 = vadd.f32 %v7692, %v8111
    %v8113 = vpop.f32.mrf.mxu0
    %8114 = vdwg.mxu0
    %8115 = vmatpush.bf16.msra.mxu0 %v7959
    %8116 = vmatpush.bf16.msra.mxu0 %v7955
    %8117 = vmatpush.bf16.msra.mxu0 %v7951
    %8118 = vmatpush.bf16.msra.mxu0 %v7947
    %8119 = vmatpush.bf16.msra.mxu0 %v7943
    %8120 = vmatpush.bf16.msra.mxu0 %v7939
    %8121 = vmatpush.bf16.msra.mxu0 %v7935
    %8122 = vmatpush.bf16.msra.mxu0 %v7931
    %8123 = vmatmul.bf16.gmra.mxu0 %v7701
    %v8124 = vpop.f32.mrf.mxu0
    %v8125 = vadd.f32 %v8112, %v8124
    %v8126 = vpop.f32.mrf.mxu0
    %8127 = vdwg.mxu0
    %v8128 = vxor.u32 %v8047, 2147483648
    %v8129 = vmul.f32 %v8128, 1.442695
    %v8130 = vpow.pop %v8129
    %v8131 = vadd.f32 %v8130, 1.0
    %v8132 = vrcp.pop %v8131
    %v8133 = vmul.f32 %v8131, %v8132
    %v8134 = vsub.f32 1.0, %v8133
    %v8135 = vmul.f32 %v8132, %v8134
    %v8136 = vadd.f32 %v8132, %v8135
    %vm8137 = vweird.f32 %v8131
    %vm8138 = vweird.f32 %v8132
    %vm8139 = vmor %vm8137, %vm8138
    %v8140 = vsel %vm8139, %v8132, %v8136
    %v8141 = vand.u32 2147483647, %v8131
    %vm8142 = vcmp.eq.f32.partialorder %v8141, 8.507059e+37
    %v8143 = vand.u32 %v8131, 2147483648
    %v8144 = vor.u32 1.1754944e-38, %v8143
    %v8145 = vsel %vm8142, %v8144, %v8140
    %v8146 = vmul.f32 1.0, %v8145
    %v8147 = vxor.u32 %v8073, 2147483648
    %v8148 = vmul.f32 %v8147, 1.442695
    %v8149 = vpow.pop %v8148
    %v8150 = vadd.f32 %v8149, 1.0
    %v8151 = vrcp.pop %v8150
    %v8152 = vmul.f32 %v8150, %v8151
    %v8153 = vsub.f32 1.0, %v8152
    %v8154 = vmul.f32 %v8151, %v8153
    %v8155 = vadd.f32 %v8151, %v8154
    %vm8156 = vweird.f32 %v8150
    %vm8157 = vweird.f32 %v8151
    %vm8158 = vmor %vm8156, %vm8157
    %v8159 = vsel %vm8158, %v8151, %v8155
    %v8160 = vand.u32 2147483647, %v8150
    %vm8161 = vcmp.eq.f32.partialorder %v8160, 8.507059e+37
    %v8162 = vand.u32 %v8150, 2147483648
    %v8163 = vor.u32 1.1754944e-38, %v8162
    %v8164 = vsel %vm8161, %v8163, %v8159
    %v8165 = vmul.f32 1.0, %v8164
    %v8166 = vtanh.pop %v8099
    %v8167 = vxor.u32 %v8125, 2147483648
    %v8168 = vmul.f32 %v8167, 1.442695
    %v8169 = vpow.pop %v8168
    %v8170 = vadd.f32 %v8169, 1.0
    %v8171 = vrcp.pop %v8170
    %v8172 = vmul.f32 %v8170, %v8171
    %v8173 = vsub.f32 1.0, %v8172
    %v8174 = vmul.f32 %v8171, %v8173
    %v8175 = vadd.f32 %v8171, %v8174
    %vm8176 = vweird.f32 %v8170
    %vm8177 = vweird.f32 %v8171
    %vm8178 = vmor %vm8176, %vm8177
    %v8179 = vsel %vm8178, %v8171, %v8175
    %v8180 = vand.u32 2147483647, %v8170
    %vm8181 = vcmp.eq.f32.partialorder %v8180, 8.507059e+37
    %v8182 = vand.u32 %v8170, 2147483648
    %v8183 = vor.u32 1.1754944e-38, %v8182
    %v8184 = vsel %vm8181, %v8183, %v8179
    %v8185 = vmul.f32 1.0, %v8184
    %v8186 = vmul.f32 %v8165, %v7042
    %v8187 = vmul.f32 %v8146, %v8166
    %v8188 = vadd.f32 %v8186, %v8187
    %v8189 = vtanh.pop %v8188
    %v8190 = vmul.f32 %v8185, %v8189
    %s8191 = scalar_lea.vmem %s3, 28
    %v8192 = vld [vmem:[%s8191] sm:$0xf]
    %8193 = vst [vmem:[#allocation2] sm:$0xf] %v8192
    %8194 = vst [vmem:[#allocation2 + $0x4] sm:$0xf] %v7618
    %v8195 = vld [vmem:[#allocation2] sm:$0xff]
    %v8196 = vld [vmem:[%s4] sm:$0xff]
    %v8197 = vld [vmem:[%s4 + $0x8] sm:$0xff]
    %v8198 = vld [vmem:[%s4 + $0x10] sm:$0xff]
    %v8199 = vld [vmem:[%s4 + $0x18] sm:$0xff]
    %v8200 = vld [vmem:[%s4 + $0x20] sm:$0xff]
    %v8201 = vld [vmem:[%s4 + $0x28] sm:$0xff]
    %v8202 = vld [vmem:[%s4 + $0x30] sm:$0xff]
    %v8203 = vld [vmem:[%s4 + $0x38] sm:$0xff]
    %v8204 = vld [vmem:[%s4 + $0x40] sm:$0xff]
    %v8205 = vld [vmem:[%s4 + $0x48] sm:$0xff]
    %v8206 = vld [vmem:[%s4 + $0x50] sm:$0xff]
    %v8207 = vld [vmem:[%s4 + $0x58] sm:$0xff]
    %v8208 = vld [vmem:[%s4 + $0x60] sm:$0xff]
    %v8209 = vld [vmem:[%s4 + $0x68] sm:$0xff]
    %v8210 = vld [vmem:[%s4 + $0x70] sm:$0xff]
    %v8211 = vld [vmem:[%s4 + $0x78] sm:$0xff]
    %v8212 = vld [vmem:[%s4 + $0x80] sm:$0xff]
    %v8213 = vld [vmem:[%s4 + $0x88] sm:$0xff]
    %v8214 = vld [vmem:[%s4 + $0x90] sm:$0xff]
    %v8215 = vld [vmem:[%s4 + $0x98] sm:$0xff]
    %v8216 = vld [vmem:[%s4 + $0xa0] sm:$0xff]
    %v8217 = vld [vmem:[%s4 + $0xa8] sm:$0xff]
    %v8218 = vld [vmem:[%s4 + $0xb0] sm:$0xff]
    %v8219 = vld [vmem:[%s4 + $0xb8] sm:$0xff]
    %v8220 = vld [vmem:[%s4 + $0xc0] sm:$0xff]
    %v8221 = vld [vmem:[%s4 + $0xc8] sm:$0xff]
    %v8222 = vld [vmem:[%s4 + $0xd0] sm:$0xff]
    %v8223 = vld [vmem:[%s4 + $0xd8] sm:$0xff]
    %v8224 = vld [vmem:[%s4 + $0xe0] sm:$0xff]
    %v8225 = vld [vmem:[%s4 + $0xe8] sm:$0xff]
    %v8226 = vld [vmem:[%s4 + $0xf0] sm:$0xff]
    %v8227 = vld [vmem:[%s4 + $0xf8] sm:$0xff]
    %v8228 = vld [vmem:[%s4 + $0x100] sm:$0xff]
    %v8229 = vld [vmem:[%s4 + $0x108] sm:$0xff]
    %v8230 = vld [vmem:[%s4 + $0x110] sm:$0xff]
    %v8231 = vld [vmem:[%s4 + $0x118] sm:$0xff]
    %v8232 = vld [vmem:[%s4 + $0x120] sm:$0xff]
    %v8233 = vld [vmem:[%s4 + $0x128] sm:$0xff]
    %v8234 = vld [vmem:[%s4 + $0x130] sm:$0xff]
    %v8235 = vld [vmem:[%s4 + $0x138] sm:$0xff]
    %v8236 = vld [vmem:[%s4 + $0x140] sm:$0xff]
    %v8237 = vld [vmem:[%s4 + $0x148] sm:$0xff]
    %v8238 = vld [vmem:[%s4 + $0x150] sm:$0xff]
    %v8239 = vld [vmem:[%s4 + $0x158] sm:$0xff]
    %v8240 = vld [vmem:[%s4 + $0x160] sm:$0xff]
    %v8241 = vld [vmem:[%s4 + $0x168] sm:$0xff]
    %v8242 = vld [vmem:[%s4 + $0x170] sm:$0xff]
    %v8243 = vld [vmem:[%s4 + $0x178] sm:$0xff]
    %v8244 = vld [vmem:[%s4 + $0x180] sm:$0xff]
    %v8245 = vld [vmem:[%s4 + $0x188] sm:$0xff]
    %v8246 = vld [vmem:[%s4 + $0x190] sm:$0xff]
    %v8247 = vld [vmem:[%s4 + $0x198] sm:$0xff]
    %v8248 = vld [vmem:[%s4 + $0x1a0] sm:$0xff]
    %v8249 = vld [vmem:[%s4 + $0x1a8] sm:$0xff]
    %v8250 = vld [vmem:[%s4 + $0x1b0] sm:$0xff]
    %v8251 = vld [vmem:[%s4 + $0x1b8] sm:$0xff]
    %v8252 = vld [vmem:[%s4 + $0x1c0] sm:$0xff]
    %v8253 = vld [vmem:[%s4 + $0x1c8] sm:$0xff]
    %v8254 = vld [vmem:[%s4 + $0x1d0] sm:$0xff]
    %v8255 = vld [vmem:[%s4 + $0x1d8] sm:$0xff]
    %v8256 = vld [vmem:[%s4 + $0x1e0] sm:$0xff]
    %v8257 = vld [vmem:[%s4 + $0x1e8] sm:$0xff]
    %v8258 = vld [vmem:[%s4 + $0x1f0] sm:$0xff]
    %v8259 = vld [vmem:[%s4 + $0x1f8] sm:$0xff]
    %v8260 = vld [vmem:[%s5] sm:$0xf]
    %v8262 = vperm.slane %v8260, 0
    %v8263 = vperm.slane %v8260, 1
    %v8264 = vperm.slane %v8260, 2
    %v8265 = vperm.slane %v8260, 3
    %v8271 = vunpack.c.l.b16 %v8195
    %v8272 = vunpack.c.h.b16 %v8195
    %v8273 = vpack.c.b16 %v8271, %v8271
    %v8274 = vpack.c.b16 %v8272, %v8272
    %v8341 = vunpack.c.l.b16 %v8196
    %v8342 = vunpack.c.h.b16 %v8196
    %v8343 = vunpack.c.l.b16 %v8197
    %v8344 = vunpack.c.h.b16 %v8197
    %v8345 = vunpack.c.l.b16 %v8198
    %v8346 = vunpack.c.h.b16 %v8198
    %v8347 = vunpack.c.l.b16 %v8199
    %v8348 = vunpack.c.h.b16 %v8199
    %v8349 = vunpack.c.l.b16 %v8200
    %v8350 = vunpack.c.h.b16 %v8200
    %v8351 = vunpack.c.l.b16 %v8201
    %v8352 = vunpack.c.h.b16 %v8201
    %v8353 = vunpack.c.l.b16 %v8202
    %v8354 = vunpack.c.h.b16 %v8202
    %v8355 = vunpack.c.l.b16 %v8203
    %v8356 = vunpack.c.h.b16 %v8203
    %v8357 = vunpack.c.l.b16 %v8204
    %v8358 = vunpack.c.h.b16 %v8204
    %v8359 = vunpack.c.l.b16 %v8205
    %v8360 = vunpack.c.h.b16 %v8205
    %v8361 = vunpack.c.l.b16 %v8206
    %v8362 = vunpack.c.h.b16 %v8206
    %v8363 = vunpack.c.l.b16 %v8207
    %v8364 = vunpack.c.h.b16 %v8207
    %v8365 = vunpack.c.l.b16 %v8208
    %v8366 = vunpack.c.h.b16 %v8208
    %v8367 = vunpack.c.l.b16 %v8209
    %v8368 = vunpack.c.h.b16 %v8209
    %v8369 = vunpack.c.l.b16 %v8210
    %v8370 = vunpack.c.h.b16 %v8210
    %v8371 = vunpack.c.l.b16 %v8211
    %v8372 = vunpack.c.h.b16 %v8211
    %v8373 = vunpack.c.l.b16 %v8212
    %v8374 = vunpack.c.h.b16 %v8212
    %v8375 = vunpack.c.l.b16 %v8213
    %v8376 = vunpack.c.h.b16 %v8213
    %v8377 = vunpack.c.l.b16 %v8214
    %v8378 = vunpack.c.h.b16 %v8214
    %v8379 = vunpack.c.l.b16 %v8215
    %v8380 = vunpack.c.h.b16 %v8215
    %v8381 = vunpack.c.l.b16 %v8216
    %v8382 = vunpack.c.h.b16 %v8216
    %v8383 = vunpack.c.l.b16 %v8217
    %v8384 = vunpack.c.h.b16 %v8217
    %v8385 = vunpack.c.l.b16 %v8218
    %v8386 = vunpack.c.h.b16 %v8218
    %v8387 = vunpack.c.l.b16 %v8219
    %v8388 = vunpack.c.h.b16 %v8219
    %v8389 = vunpack.c.l.b16 %v8220
    %v8390 = vunpack.c.h.b16 %v8220
    %v8391 = vunpack.c.l.b16 %v8221
    %v8392 = vunpack.c.h.b16 %v8221
    %v8393 = vunpack.c.l.b16 %v8222
    %v8394 = vunpack.c.h.b16 %v8222
    %v8395 = vunpack.c.l.b16 %v8223
    %v8396 = vunpack.c.h.b16 %v8223
    %v8397 = vunpack.c.l.b16 %v8224
    %v8398 = vunpack.c.h.b16 %v8224
    %v8399 = vunpack.c.l.b16 %v8225
    %v8400 = vunpack.c.h.b16 %v8225
    %v8401 = vunpack.c.l.b16 %v8226
    %v8402 = vunpack.c.h.b16 %v8226
    %v8403 = vunpack.c.l.b16 %v8227
    %v8404 = vunpack.c.h.b16 %v8227
    %v8405 = vunpack.c.l.b16 %v8228
    %v8406 = vunpack.c.h.b16 %v8228
    %v8407 = vunpack.c.l.b16 %v8229
    %v8408 = vunpack.c.h.b16 %v8229
    %v8409 = vunpack.c.l.b16 %v8230
    %v8410 = vunpack.c.h.b16 %v8230
    %v8411 = vunpack.c.l.b16 %v8231
    %v8412 = vunpack.c.h.b16 %v8231
    %v8413 = vunpack.c.l.b16 %v8232
    %v8414 = vunpack.c.h.b16 %v8232
    %v8415 = vunpack.c.l.b16 %v8233
    %v8416 = vunpack.c.h.b16 %v8233
    %v8417 = vunpack.c.l.b16 %v8234
    %v8418 = vunpack.c.h.b16 %v8234
    %v8419 = vunpack.c.l.b16 %v8235
    %v8420 = vunpack.c.h.b16 %v8235
    %v8421 = vunpack.c.l.b16 %v8236
    %v8422 = vunpack.c.h.b16 %v8236
    %v8423 = vunpack.c.l.b16 %v8237
    %v8424 = vunpack.c.h.b16 %v8237
    %v8425 = vunpack.c.l.b16 %v8238
    %v8426 = vunpack.c.h.b16 %v8238
    %v8427 = vunpack.c.l.b16 %v8239
    %v8428 = vunpack.c.h.b16 %v8239
    %v8429 = vunpack.c.l.b16 %v8240
    %v8430 = vunpack.c.h.b16 %v8240
    %v8431 = vunpack.c.l.b16 %v8241
    %v8432 = vunpack.c.h.b16 %v8241
    %v8433 = vunpack.c.l.b16 %v8242
    %v8434 = vunpack.c.h.b16 %v8242
    %v8435 = vunpack.c.l.b16 %v8243
    %v8436 = vunpack.c.h.b16 %v8243
    %v8437 = vunpack.c.l.b16 %v8244
    %v8438 = vunpack.c.h.b16 %v8244
    %v8439 = vunpack.c.l.b16 %v8245
    %v8440 = vunpack.c.h.b16 %v8245
    %v8441 = vunpack.c.l.b16 %v8246
    %v8442 = vunpack.c.h.b16 %v8246
    %v8443 = vunpack.c.l.b16 %v8247
    %v8444 = vunpack.c.h.b16 %v8247
    %v8445 = vunpack.c.l.b16 %v8248
    %v8446 = vunpack.c.h.b16 %v8248
    %v8447 = vunpack.c.l.b16 %v8249
    %v8448 = vunpack.c.h.b16 %v8249
    %v8449 = vunpack.c.l.b16 %v8250
    %v8450 = vunpack.c.h.b16 %v8250
    %v8451 = vunpack.c.l.b16 %v8251
    %v8452 = vunpack.c.h.b16 %v8251
    %v8453 = vunpack.c.l.b16 %v8252
    %v8454 = vunpack.c.h.b16 %v8252
    %v8455 = vunpack.c.l.b16 %v8253
    %v8456 = vunpack.c.h.b16 %v8253
    %v8457 = vunpack.c.l.b16 %v8254
    %v8458 = vunpack.c.h.b16 %v8254
    %v8459 = vunpack.c.l.b16 %v8255
    %v8460 = vunpack.c.h.b16 %v8255
    %v8461 = vunpack.c.l.b16 %v8256
    %v8462 = vunpack.c.h.b16 %v8256
    %v8463 = vunpack.c.l.b16 %v8257
    %v8464 = vunpack.c.h.b16 %v8257
    %v8465 = vunpack.c.l.b16 %v8258
    %v8466 = vunpack.c.h.b16 %v8258
    %v8467 = vunpack.c.l.b16 %v8259
    %v8468 = vunpack.c.h.b16 %v8259
    %v8469 = vpack.c.b16 %v8345, %v8341
    %v8470 = vpack.c.b16 %v8346, %v8342
    %v8471 = vpack.c.b16 %v8347, %v8343
    %v8472 = vpack.c.b16 %v8348, %v8344
    %v8473 = vpack.c.b16 %v8353, %v8349
    %v8474 = vpack.c.b16 %v8354, %v8350
    %v8475 = vpack.c.b16 %v8355, %v8351
    %v8476 = vpack.c.b16 %v8356, %v8352
    %v8477 = vpack.c.b16 %v8361, %v8357
    %v8478 = vpack.c.b16 %v8362, %v8358
    %v8479 = vpack.c.b16 %v8363, %v8359
    %v8480 = vpack.c.b16 %v8364, %v8360
    %v8481 = vpack.c.b16 %v8369, %v8365
    %v8482 = vpack.c.b16 %v8370, %v8366
    %v8483 = vpack.c.b16 %v8371, %v8367
    %v8484 = vpack.c.b16 %v8372, %v8368
    %v8485 = vpack.c.b16 %v8377, %v8373
    %v8486 = vpack.c.b16 %v8378, %v8374
    %v8487 = vpack.c.b16 %v8379, %v8375
    %v8488 = vpack.c.b16 %v8380, %v8376
    %v8489 = vpack.c.b16 %v8385, %v8381
    %v8490 = vpack.c.b16 %v8386, %v8382
    %v8491 = vpack.c.b16 %v8387, %v8383
    %v8492 = vpack.c.b16 %v8388, %v8384
    %v8493 = vpack.c.b16 %v8393, %v8389
    %v8494 = vpack.c.b16 %v8394, %v8390
    %v8495 = vpack.c.b16 %v8395, %v8391
    %v8496 = vpack.c.b16 %v8396, %v8392
    %v8497 = vpack.c.b16 %v8401, %v8397
    %v8498 = vpack.c.b16 %v8402, %v8398
    %v8499 = vpack.c.b16 %v8403, %v8399
    %v8500 = vpack.c.b16 %v8404, %v8400
    %v8501 = vpack.c.b16 %v8409, %v8405
    %v8502 = vpack.c.b16 %v8410, %v8406
    %v8503 = vpack.c.b16 %v8411, %v8407
    %v8504 = vpack.c.b16 %v8412, %v8408
    %v8505 = vpack.c.b16 %v8417, %v8413
    %v8506 = vpack.c.b16 %v8418, %v8414
    %v8507 = vpack.c.b16 %v8419, %v8415
    %v8508 = vpack.c.b16 %v8420, %v8416
    %v8509 = vpack.c.b16 %v8425, %v8421
    %v8510 = vpack.c.b16 %v8426, %v8422
    %v8511 = vpack.c.b16 %v8427, %v8423
    %v8512 = vpack.c.b16 %v8428, %v8424
    %v8513 = vpack.c.b16 %v8433, %v8429
    %v8514 = vpack.c.b16 %v8434, %v8430
    %v8515 = vpack.c.b16 %v8435, %v8431
    %v8516 = vpack.c.b16 %v8436, %v8432
    %v8517 = vpack.c.b16 %v8441, %v8437
    %v8518 = vpack.c.b16 %v8442, %v8438
    %v8519 = vpack.c.b16 %v8443, %v8439
    %v8520 = vpack.c.b16 %v8444, %v8440
    %v8521 = vpack.c.b16 %v8449, %v8445
    %v8522 = vpack.c.b16 %v8450, %v8446
    %v8523 = vpack.c.b16 %v8451, %v8447
    %v8524 = vpack.c.b16 %v8452, %v8448
    %v8525 = vpack.c.b16 %v8457, %v8453
    %v8526 = vpack.c.b16 %v8458, %v8454
    %v8527 = vpack.c.b16 %v8459, %v8455
    %v8528 = vpack.c.b16 %v8460, %v8456
    %v8529 = vpack.c.b16 %v8465, %v8461
    %v8530 = vpack.c.b16 %v8466, %v8462
    %v8531 = vpack.c.b16 %v8467, %v8463
    %v8532 = vpack.c.b16 %v8468, %v8464
    %8597 = vmatpush.bf16.msra.mxu0 %v8497
    %8598 = vmatpush.bf16.msra.mxu0 %v8493
    %8599 = vmatpush.bf16.msra.mxu0 %v8489
    %8600 = vmatpush.bf16.msra.mxu0 %v8485
    %8601 = vmatpush.bf16.msra.mxu0 %v8481
    %8602 = vmatpush.bf16.msra.mxu0 %v8477
    %8603 = vmatpush.bf16.msra.mxu0 %v8473
    %8604 = vmatpush.bf16.msra.mxu0 %v8469
    %8605 = vmatmul.bf16.gmra.mxu0 %v8273
    %v8606 = vpop.f32.mrf.mxu0
    %v8607 = vadd.f32 %v8262, %v8606
    %v8608 = vpop.f32.mrf.mxu0
    %8609 = vdwg.mxu0
    %8610 = vmatpush.bf16.msra.mxu0 %v8529
    %8611 = vmatpush.bf16.msra.mxu0 %v8525
    %8612 = vmatpush.bf16.msra.mxu0 %v8521
    %8613 = vmatpush.bf16.msra.mxu0 %v8517
    %8614 = vmatpush.bf16.msra.mxu0 %v8513
    %8615 = vmatpush.bf16.msra.mxu0 %v8509
    %8616 = vmatpush.bf16.msra.mxu0 %v8505
    %8617 = vmatpush.bf16.msra.mxu0 %v8501
    %8618 = vmatmul.bf16.gmra.mxu0 %v8274
    %v8619 = vpop.f32.mrf.mxu0
    %v8620 = vadd.f32 %v8607, %v8619
    %v8621 = vpop.f32.mrf.mxu0
    %8622 = vdwg.mxu0
    %8623 = vmatpush.bf16.msra.mxu0 %v8498
    %8624 = vmatpush.bf16.msra.mxu0 %v8494
    %8625 = vmatpush.bf16.msra.mxu0 %v8490
    %8626 = vmatpush.bf16.msra.mxu0 %v8486
    %8627 = vmatpush.bf16.msra.mxu0 %v8482
    %8628 = vmatpush.bf16.msra.mxu0 %v8478
    %8629 = vmatpush.bf16.msra.mxu0 %v8474
    %8630 = vmatpush.bf16.msra.mxu0 %v8470
    %8631 = vmatmul.bf16.gmra.mxu0 %v8273
    %v8632 = vpop.f32.mrf.mxu0
    %v8633 = vadd.f32 %v8263, %v8632
    %v8634 = vpop.f32.mrf.mxu0
    %8635 = vdwg.mxu0
    %8636 = vmatpush.bf16.msra.mxu0 %v8530
    %8637 = vmatpush.bf16.msra.mxu0 %v8526
    %8638 = vmatpush.bf16.msra.mxu0 %v8522
    %8639 = vmatpush.bf16.msra.mxu0 %v8518
    %8640 = vmatpush.bf16.msra.mxu0 %v8514
    %8641 = vmatpush.bf16.msra.mxu0 %v8510
    %8642 = vmatpush.bf16.msra.mxu0 %v8506
    %8643 = vmatpush.bf16.msra.mxu0 %v8502
    %8644 = vmatmul.bf16.gmra.mxu0 %v8274
    %v8645 = vpop.f32.mrf.mxu0
    %v8646 = vadd.f32 %v8633, %v8645
    %v8647 = vpop.f32.mrf.mxu0
    %8648 = vdwg.mxu0
    %8649 = vmatpush.bf16.msra.mxu0 %v8499
    %8650 = vmatpush.bf16.msra.mxu0 %v8495
    %8651 = vmatpush.bf16.msra.mxu0 %v8491
    %8652 = vmatpush.bf16.msra.mxu0 %v8487
    %8653 = vmatpush.bf16.msra.mxu0 %v8483
    %8654 = vmatpush.bf16.msra.mxu0 %v8479
    %8655 = vmatpush.bf16.msra.mxu0 %v8475
    %8656 = vmatpush.bf16.msra.mxu0 %v8471
    %8657 = vmatmul.bf16.gmra.mxu0 %v8273
    %v8658 = vpop.f32.mrf.mxu0
    %v8659 = vadd.f32 %v8264, %v8658
    %v8660 = vpop.f32.mrf.mxu0
    %8661 = vdwg.mxu0
    %8662 = vmatpush.bf16.msra.mxu0 %v8531
    %8663 = vmatpush.bf16.msra.mxu0 %v8527
    %8664 = vmatpush.bf16.msra.mxu0 %v8523
    %8665 = vmatpush.bf16.msra.mxu0 %v8519
    %8666 = vmatpush.bf16.msra.mxu0 %v8515
    %8667 = vmatpush.bf16.msra.mxu0 %v8511
    %8668 = vmatpush.bf16.msra.mxu0 %v8507
    %8669 = vmatpush.bf16.msra.mxu0 %v8503
    %8670 = vmatmul.bf16.gmra.mxu0 %v8274
    %v8671 = vpop.f32.mrf.mxu0
    %v8672 = vadd.f32 %v8659, %v8671
    %v8673 = vpop.f32.mrf.mxu0
    %8674 = vdwg.mxu0
    %8675 = vmatpush.bf16.msra.mxu0 %v8500
    %8676 = vmatpush.bf16.msra.mxu0 %v8496
    %8677 = vmatpush.bf16.msra.mxu0 %v8492
    %8678 = vmatpush.bf16.msra.mxu0 %v8488
    %8679 = vmatpush.bf16.msra.mxu0 %v8484
    %8680 = vmatpush.bf16.msra.mxu0 %v8480
    %8681 = vmatpush.bf16.msra.mxu0 %v8476
    %8682 = vmatpush.bf16.msra.mxu0 %v8472
    %8683 = vmatmul.bf16.gmra.mxu0 %v8273
    %v8684 = vpop.f32.mrf.mxu0
    %v8685 = vadd.f32 %v8265, %v8684
    %v8686 = vpop.f32.mrf.mxu0
    %8687 = vdwg.mxu0
    %8688 = vmatpush.bf16.msra.mxu0 %v8532
    %8689 = vmatpush.bf16.msra.mxu0 %v8528
    %8690 = vmatpush.bf16.msra.mxu0 %v8524
    %8691 = vmatpush.bf16.msra.mxu0 %v8520
    %8692 = vmatpush.bf16.msra.mxu0 %v8516
    %8693 = vmatpush.bf16.msra.mxu0 %v8512
    %8694 = vmatpush.bf16.msra.mxu0 %v8508
    %8695 = vmatpush.bf16.msra.mxu0 %v8504
    %8696 = vmatmul.bf16.gmra.mxu0 %v8274
    %v8697 = vpop.f32.mrf.mxu0
    %v8698 = vadd.f32 %v8685, %v8697
    %v8699 = vpop.f32.mrf.mxu0
    %8700 = vdwg.mxu0
    %v8701 = vxor.u32 %v8620, 2147483648
    %v8702 = vmul.f32 %v8701, 1.442695
    %v8703 = vpow.pop %v8702
    %v8704 = vadd.f32 %v8703, 1.0
    %v8705 = vrcp.pop %v8704
    %v8706 = vmul.f32 %v8704, %v8705
    %v8707 = vsub.f32 1.0, %v8706
    %v8708 = vmul.f32 %v8705, %v8707
    %v8709 = vadd.f32 %v8705, %v8708
    %vm8710 = vweird.f32 %v8704
    %vm8711 = vweird.f32 %v8705
    %vm8712 = vmor %vm8710, %vm8711
    %v8713 = vsel %vm8712, %v8705, %v8709
    %v8714 = vand.u32 2147483647, %v8704
    %vm8715 = vcmp.eq.f32.partialorder %v8714, 8.507059e+37
    %v8716 = vand.u32 %v8704, 2147483648
    %v8717 = vor.u32 1.1754944e-38, %v8716
    %v8718 = vsel %vm8715, %v8717, %v8713
    %v8719 = vmul.f32 1.0, %v8718
    %v8720 = vxor.u32 %v8646, 2147483648
    %v8721 = vmul.f32 %v8720, 1.442695
    %v8722 = vpow.pop %v8721
    %v8723 = vadd.f32 %v8722, 1.0
    %v8724 = vrcp.pop %v8723
    %v8725 = vmul.f32 %v8723, %v8724
    %v8726 = vsub.f32 1.0, %v8725
    %v8727 = vmul.f32 %v8724, %v8726
    %v8728 = vadd.f32 %v8724, %v8727
    %vm8729 = vweird.f32 %v8723
    %vm8730 = vweird.f32 %v8724
    %vm8731 = vmor %vm8729, %vm8730
    %v8732 = vsel %vm8731, %v8724, %v8728
    %v8733 = vand.u32 2147483647, %v8723
    %vm8734 = vcmp.eq.f32.partialorder %v8733, 8.507059e+37
    %v8735 = vand.u32 %v8723, 2147483648
    %v8736 = vor.u32 1.1754944e-38, %v8735
    %v8737 = vsel %vm8734, %v8736, %v8732
    %v8738 = vmul.f32 1.0, %v8737
    %v8739 = vtanh.pop %v8672
    %v8740 = vxor.u32 %v8698, 2147483648
    %v8741 = vmul.f32 %v8740, 1.442695
    %v8742 = vpow.pop %v8741
    %v8743 = vadd.f32 %v8742, 1.0
    %v8744 = vrcp.pop %v8743
    %v8745 = vmul.f32 %v8743, %v8744
    %v8746 = vsub.f32 1.0, %v8745
    %v8747 = vmul.f32 %v8744, %v8746
    %v8748 = vadd.f32 %v8744, %v8747
    %vm8749 = vweird.f32 %v8743
    %vm8750 = vweird.f32 %v8744
    %vm8751 = vmor %vm8749, %vm8750
    %v8752 = vsel %vm8751, %v8744, %v8748
    %v8753 = vand.u32 2147483647, %v8743
    %vm8754 = vcmp.eq.f32.partialorder %v8753, 8.507059e+37
    %v8755 = vand.u32 %v8743, 2147483648
    %v8756 = vor.u32 1.1754944e-38, %v8755
    %v8757 = vsel %vm8754, %v8756, %v8752
    %v8758 = vmul.f32 1.0, %v8757
    %v8759 = vmul.f32 %v8738, %v7615
    %v8760 = vmul.f32 %v8719, %v8739
    %v8761 = vadd.f32 %v8759, %v8760
    %v8762 = vtanh.pop %v8761
    %v8763 = vmul.f32 %v8758, %v8762
    %v8764 = vpack.c.bf16 %v8763, %v8763
    %8765 = vst [vmem:[#allocation3] sm:$0xf] %v8764
    %v8766 = vpack.c.bf16 %v8190, %v8190
    %8767 = vst [vmem:[#allocation3 + $0x4] sm:$0xf] %v8766
    %v8768 = vld [vmem:[#allocation3] sm:$0xff]
    %v8769 = vld [vmem:[#allocation4] sm:$0xff]
    %v8770 = vld [vmem:[#allocation4 + $0x8] sm:$0xff]
    %v8771 = vld [vmem:[#allocation4 + $0x10] sm:$0xff]
    %v8772 = vld [vmem:[#allocation4 + $0x18] sm:$0xff]
    %v8773 = vld [vmem:[#allocation4 + $0x20] sm:$0xff]
    %v8774 = vld [vmem:[#allocation4 + $0x28] sm:$0xff]
    %v8775 = vld [vmem:[#allocation4 + $0x30] sm:$0xff]
    %v8776 = vld [vmem:[#allocation4 + $0x38] sm:$0xff]
    %v8777 = vld [vmem:[#allocation4 + $0x40] sm:$0xff]
    %v8778 = vld [vmem:[#allocation4 + $0x48] sm:$0xff]
    %v8779 = vld [vmem:[#allocation4 + $0x50] sm:$0xff]
    %v8780 = vld [vmem:[#allocation4 + $0x58] sm:$0xff]
    %v8781 = vld [vmem:[#allocation4 + $0x60] sm:$0xff]
    %v8782 = vld [vmem:[#allocation4 + $0x68] sm:$0xff]
    %v8783 = vld [vmem:[#allocation4 + $0x70] sm:$0xff]
    %v8784 = vld [vmem:[#allocation4 + $0x78] sm:$0xff]
    %v8785 = vld [vmem:[#allocation4 + $0x80] sm:$0xff]
    %v8786 = vld [vmem:[#allocation4 + $0x88] sm:$0xff]
    %v8787 = vld [vmem:[#allocation4 + $0x90] sm:$0xff]
    %v8788 = vld [vmem:[#allocation4 + $0x98] sm:$0xff]
    %v8789 = vld [vmem:[#allocation4 + $0xa0] sm:$0xff]
    %v8790 = vld [vmem:[#allocation4 + $0xa8] sm:$0xff]
    %v8791 = vld [vmem:[#allocation4 + $0xb0] sm:$0xff]
    %v8792 = vld [vmem:[#allocation4 + $0xb8] sm:$0xff]
    %v8793 = vld [vmem:[#allocation4 + $0xc0] sm:$0xff]
    %v8794 = vld [vmem:[#allocation4 + $0xc8] sm:$0xff]
    %v8795 = vld [vmem:[#allocation4 + $0xd0] sm:$0xff]
    %v8796 = vld [vmem:[#allocation4 + $0xd8] sm:$0xff]
    %v8797 = vld [vmem:[#allocation4 + $0xe0] sm:$0xff]
    %v8798 = vld [vmem:[#allocation4 + $0xe8] sm:$0xff]
    %v8799 = vld [vmem:[#allocation4 + $0xf0] sm:$0xff]
    %v8800 = vld [vmem:[#allocation4 + $0xf8] sm:$0xff]
    %v8801 = vld [vmem:[#allocation4 + $0x100] sm:$0xff]
    %v8802 = vld [vmem:[#allocation4 + $0x108] sm:$0xff]
    %v8803 = vld [vmem:[#allocation4 + $0x110] sm:$0xff]
    %v8804 = vld [vmem:[#allocation4 + $0x118] sm:$0xff]
    %v8805 = vld [vmem:[#allocation4 + $0x120] sm:$0xff]
    %v8806 = vld [vmem:[#allocation4 + $0x128] sm:$0xff]
    %v8807 = vld [vmem:[#allocation4 + $0x130] sm:$0xff]
    %v8808 = vld [vmem:[#allocation4 + $0x138] sm:$0xff]
    %v8809 = vld [vmem:[#allocation4 + $0x140] sm:$0xff]
    %v8810 = vld [vmem:[#allocation4 + $0x148] sm:$0xff]
    %v8811 = vld [vmem:[#allocation4 + $0x150] sm:$0xff]
    %v8812 = vld [vmem:[#allocation4 + $0x158] sm:$0xff]
    %v8813 = vld [vmem:[#allocation4 + $0x160] sm:$0xff]
    %v8814 = vld [vmem:[#allocation4 + $0x168] sm:$0xff]
    %v8815 = vld [vmem:[#allocation4 + $0x170] sm:$0xff]
    %v8816 = vld [vmem:[#allocation4 + $0x178] sm:$0xff]
    %v8817 = vld [vmem:[#allocation4 + $0x180] sm:$0xff]
    %v8818 = vld [vmem:[#allocation4 + $0x188] sm:$0xff]
    %v8819 = vld [vmem:[#allocation4 + $0x190] sm:$0xff]
    %v8820 = vld [vmem:[#allocation4 + $0x198] sm:$0xff]
    %v8821 = vld [vmem:[#allocation4 + $0x1a0] sm:$0xff]
    %v8822 = vld [vmem:[#allocation4 + $0x1a8] sm:$0xff]
    %v8823 = vld [vmem:[#allocation4 + $0x1b0] sm:$0xff]
    %v8824 = vld [vmem:[#allocation4 + $0x1b8] sm:$0xff]
    %v8825 = vld [vmem:[#allocation4 + $0x1c0] sm:$0xff]
    %v8826 = vld [vmem:[#allocation4 + $0x1c8] sm:$0xff]
    %v8827 = vld [vmem:[#allocation4 + $0x1d0] sm:$0xff]
    %v8828 = vld [vmem:[#allocation4 + $0x1d8] sm:$0xff]
    %v8829 = vld [vmem:[#allocation4 + $0x1e0] sm:$0xff]
    %v8830 = vld [vmem:[#allocation4 + $0x1e8] sm:$0xff]
    %v8831 = vld [vmem:[#allocation4 + $0x1f0] sm:$0xff]
    %v8832 = vld [vmem:[#allocation4 + $0x1f8] sm:$0xff]
    %v8833 = vld [vmem:[%s7] sm:$0xf]
    %v8835 = vperm.slane %v8833, 0
    %v8836 = vperm.slane %v8833, 1
    %v8837 = vperm.slane %v8833, 2
    %v8838 = vperm.slane %v8833, 3
    %v8844 = vunpack.c.l.b16 %v8768
    %v8845 = vunpack.c.h.b16 %v8768
    %v8846 = vpack.c.b16 %v8844, %v8844
    %v8847 = vpack.c.b16 %v8845, %v8845
    %v8914 = vunpack.c.l.b16 %v8769
    %v8915 = vunpack.c.h.b16 %v8769
    %v8916 = vunpack.c.l.b16 %v8770
    %v8917 = vunpack.c.h.b16 %v8770
    %v8918 = vunpack.c.l.b16 %v8771
    %v8919 = vunpack.c.h.b16 %v8771
    %v8920 = vunpack.c.l.b16 %v8772
    %v8921 = vunpack.c.h.b16 %v8772
    %v8922 = vunpack.c.l.b16 %v8773
    %v8923 = vunpack.c.h.b16 %v8773
    %v8924 = vunpack.c.l.b16 %v8774
    %v8925 = vunpack.c.h.b16 %v8774
    %v8926 = vunpack.c.l.b16 %v8775
    %v8927 = vunpack.c.h.b16 %v8775
    %v8928 = vunpack.c.l.b16 %v8776
    %v8929 = vunpack.c.h.b16 %v8776
    %v8930 = vunpack.c.l.b16 %v8777
    %v8931 = vunpack.c.h.b16 %v8777
    %v8932 = vunpack.c.l.b16 %v8778
    %v8933 = vunpack.c.h.b16 %v8778
    %v8934 = vunpack.c.l.b16 %v8779
    %v8935 = vunpack.c.h.b16 %v8779
    %v8936 = vunpack.c.l.b16 %v8780
    %v8937 = vunpack.c.h.b16 %v8780
    %v8938 = vunpack.c.l.b16 %v8781
    %v8939 = vunpack.c.h.b16 %v8781
    %v8940 = vunpack.c.l.b16 %v8782
    %v8941 = vunpack.c.h.b16 %v8782
    %v8942 = vunpack.c.l.b16 %v8783
    %v8943 = vunpack.c.h.b16 %v8783
    %v8944 = vunpack.c.l.b16 %v8784
    %v8945 = vunpack.c.h.b16 %v8784
    %v8946 = vunpack.c.l.b16 %v8785
    %v8947 = vunpack.c.h.b16 %v8785
    %v8948 = vunpack.c.l.b16 %v8786
    %v8949 = vunpack.c.h.b16 %v8786
    %v8950 = vunpack.c.l.b16 %v8787
    %v8951 = vunpack.c.h.b16 %v8787
    %v8952 = vunpack.c.l.b16 %v8788
    %v8953 = vunpack.c.h.b16 %v8788
    %v8954 = vunpack.c.l.b16 %v8789
    %v8955 = vunpack.c.h.b16 %v8789
    %v8956 = vunpack.c.l.b16 %v8790
    %v8957 = vunpack.c.h.b16 %v8790
    %v8958 = vunpack.c.l.b16 %v8791
    %v8959 = vunpack.c.h.b16 %v8791
    %v8960 = vunpack.c.l.b16 %v8792
    %v8961 = vunpack.c.h.b16 %v8792
    %v8962 = vunpack.c.l.b16 %v8793
    %v8963 = vunpack.c.h.b16 %v8793
    %v8964 = vunpack.c.l.b16 %v8794
    %v8965 = vunpack.c.h.b16 %v8794
    %v8966 = vunpack.c.l.b16 %v8795
    %v8967 = vunpack.c.h.b16 %v8795
    %v8968 = vunpack.c.l.b16 %v8796
    %v8969 = vunpack.c.h.b16 %v8796
    %v8970 = vunpack.c.l.b16 %v8797
    %v8971 = vunpack.c.h.b16 %v8797
    %v8972 = vunpack.c.l.b16 %v8798
    %v8973 = vunpack.c.h.b16 %v8798
    %v8974 = vunpack.c.l.b16 %v8799
    %v8975 = vunpack.c.h.b16 %v8799
    %v8976 = vunpack.c.l.b16 %v8800
    %v8977 = vunpack.c.h.b16 %v8800
    %v8978 = vunpack.c.l.b16 %v8801
    %v8979 = vunpack.c.h.b16 %v8801
    %v8980 = vunpack.c.l.b16 %v8802
    %v8981 = vunpack.c.h.b16 %v8802
    %v8982 = vunpack.c.l.b16 %v8803
    %v8983 = vunpack.c.h.b16 %v8803
    %v8984 = vunpack.c.l.b16 %v8804
    %v8985 = vunpack.c.h.b16 %v8804
    %v8986 = vunpack.c.l.b16 %v8805
    %v8987 = vunpack.c.h.b16 %v8805
    %v8988 = vunpack.c.l.b16 %v8806
    %v8989 = vunpack.c.h.b16 %v8806
    %v8990 = vunpack.c.l.b16 %v8807
    %v8991 = vunpack.c.h.b16 %v8807
    %v8992 = vunpack.c.l.b16 %v8808
    %v8993 = vunpack.c.h.b16 %v8808
    %v8994 = vunpack.c.l.b16 %v8809
    %v8995 = vunpack.c.h.b16 %v8809
    %v8996 = vunpack.c.l.b16 %v8810
    %v8997 = vunpack.c.h.b16 %v8810
    %v8998 = vunpack.c.l.b16 %v8811
    %v8999 = vunpack.c.h.b16 %v8811
    %v9000 = vunpack.c.l.b16 %v8812
    %v9001 = vunpack.c.h.b16 %v8812
    %v9002 = vunpack.c.l.b16 %v8813
    %v9003 = vunpack.c.h.b16 %v8813
    %v9004 = vunpack.c.l.b16 %v8814
    %v9005 = vunpack.c.h.b16 %v8814
    %v9006 = vunpack.c.l.b16 %v8815
    %v9007 = vunpack.c.h.b16 %v8815
    %v9008 = vunpack.c.l.b16 %v8816
    %v9009 = vunpack.c.h.b16 %v8816
    %v9010 = vunpack.c.l.b16 %v8817
    %v9011 = vunpack.c.h.b16 %v8817
    %v9012 = vunpack.c.l.b16 %v8818
    %v9013 = vunpack.c.h.b16 %v8818
    %v9014 = vunpack.c.l.b16 %v8819
    %v9015 = vunpack.c.h.b16 %v8819
    %v9016 = vunpack.c.l.b16 %v8820
    %v9017 = vunpack.c.h.b16 %v8820
    %v9018 = vunpack.c.l.b16 %v8821
    %v9019 = vunpack.c.h.b16 %v8821
    %v9020 = vunpack.c.l.b16 %v8822
    %v9021 = vunpack.c.h.b16 %v8822
    %v9022 = vunpack.c.l.b16 %v8823
    %v9023 = vunpack.c.h.b16 %v8823
    %v9024 = vunpack.c.l.b16 %v8824
    %v9025 = vunpack.c.h.b16 %v8824
    %v9026 = vunpack.c.l.b16 %v8825
    %v9027 = vunpack.c.h.b16 %v8825
    %v9028 = vunpack.c.l.b16 %v8826
    %v9029 = vunpack.c.h.b16 %v8826
    %v9030 = vunpack.c.l.b16 %v8827
    %v9031 = vunpack.c.h.b16 %v8827
    %v9032 = vunpack.c.l.b16 %v8828
    %v9033 = vunpack.c.h.b16 %v8828
    %v9034 = vunpack.c.l.b16 %v8829
    %v9035 = vunpack.c.h.b16 %v8829
    %v9036 = vunpack.c.l.b16 %v8830
    %v9037 = vunpack.c.h.b16 %v8830
    %v9038 = vunpack.c.l.b16 %v8831
    %v9039 = vunpack.c.h.b16 %v8831
    %v9040 = vunpack.c.l.b16 %v8832
    %v9041 = vunpack.c.h.b16 %v8832
    %v9042 = vpack.c.b16 %v8918, %v8914
    %v9043 = vpack.c.b16 %v8919, %v8915
    %v9044 = vpack.c.b16 %v8920, %v8916
    %v9045 = vpack.c.b16 %v8921, %v8917
    %v9046 = vpack.c.b16 %v8926, %v8922
    %v9047 = vpack.c.b16 %v8927, %v8923
    %v9048 = vpack.c.b16 %v8928, %v8924
    %v9049 = vpack.c.b16 %v8929, %v8925
    %v9050 = vpack.c.b16 %v8934, %v8930
    %v9051 = vpack.c.b16 %v8935, %v8931
    %v9052 = vpack.c.b16 %v8936, %v8932
    %v9053 = vpack.c.b16 %v8937, %v8933
    %v9054 = vpack.c.b16 %v8942, %v8938
    %v9055 = vpack.c.b16 %v8943, %v8939
    %v9056 = vpack.c.b16 %v8944, %v8940
    %v9057 = vpack.c.b16 %v8945, %v8941
    %v9058 = vpack.c.b16 %v8950, %v8946
    %v9059 = vpack.c.b16 %v8951, %v8947
    %v9060 = vpack.c.b16 %v8952, %v8948
    %v9061 = vpack.c.b16 %v8953, %v8949
    %v9062 = vpack.c.b16 %v8958, %v8954
    %v9063 = vpack.c.b16 %v8959, %v8955
    %v9064 = vpack.c.b16 %v8960, %v8956
    %v9065 = vpack.c.b16 %v8961, %v8957
    %v9066 = vpack.c.b16 %v8966, %v8962
    %v9067 = vpack.c.b16 %v8967, %v8963
    %v9068 = vpack.c.b16 %v8968, %v8964
    %v9069 = vpack.c.b16 %v8969, %v8965
    %v9070 = vpack.c.b16 %v8974, %v8970
    %v9071 = vpack.c.b16 %v8975, %v8971
    %v9072 = vpack.c.b16 %v8976, %v8972
    %v9073 = vpack.c.b16 %v8977, %v8973
    %v9074 = vpack.c.b16 %v8982, %v8978
    %v9075 = vpack.c.b16 %v8983, %v8979
    %v9076 = vpack.c.b16 %v8984, %v8980
    %v9077 = vpack.c.b16 %v8985, %v8981
    %v9078 = vpack.c.b16 %v8990, %v8986
    %v9079 = vpack.c.b16 %v8991, %v8987
    %v9080 = vpack.c.b16 %v8992, %v8988
    %v9081 = vpack.c.b16 %v8993, %v8989
    %v9082 = vpack.c.b16 %v8998, %v8994
    %v9083 = vpack.c.b16 %v8999, %v8995
    %v9084 = vpack.c.b16 %v9000, %v8996
    %v9085 = vpack.c.b16 %v9001, %v8997
    %v9086 = vpack.c.b16 %v9006, %v9002
    %v9087 = vpack.c.b16 %v9007, %v9003
    %v9088 = vpack.c.b16 %v9008, %v9004
    %v9089 = vpack.c.b16 %v9009, %v9005
    %v9090 = vpack.c.b16 %v9014, %v9010
    %v9091 = vpack.c.b16 %v9015, %v9011
    %v9092 = vpack.c.b16 %v9016, %v9012
    %v9093 = vpack.c.b16 %v9017, %v9013
    %v9094 = vpack.c.b16 %v9022, %v9018
    %v9095 = vpack.c.b16 %v9023, %v9019
    %v9096 = vpack.c.b16 %v9024, %v9020
    %v9097 = vpack.c.b16 %v9025, %v9021
    %v9098 = vpack.c.b16 %v9030, %v9026
    %v9099 = vpack.c.b16 %v9031, %v9027
    %v9100 = vpack.c.b16 %v9032, %v9028
    %v9101 = vpack.c.b16 %v9033, %v9029
    %v9102 = vpack.c.b16 %v9038, %v9034
    %v9103 = vpack.c.b16 %v9039, %v9035
    %v9104 = vpack.c.b16 %v9040, %v9036
    %v9105 = vpack.c.b16 %v9041, %v9037
    %9170 = vmatpush.bf16.msra.mxu0 %v9070
    %9171 = vmatpush.bf16.msra.mxu0 %v9066
    %9172 = vmatpush.bf16.msra.mxu0 %v9062
    %9173 = vmatpush.bf16.msra.mxu0 %v9058
    %9174 = vmatpush.bf16.msra.mxu0 %v9054
    %9175 = vmatpush.bf16.msra.mxu0 %v9050
    %9176 = vmatpush.bf16.msra.mxu0 %v9046
    %9177 = vmatpush.bf16.msra.mxu0 %v9042
    %9178 = vmatmul.bf16.gmra.mxu0 %v8846
    %v9179 = vpop.f32.mrf.mxu0
    %v9180 = vadd.f32 %v8835, %v9179
    %v9181 = vpop.f32.mrf.mxu0
    %9182 = vdwg.mxu0
    %9183 = vmatpush.bf16.msra.mxu0 %v9102
    %9184 = vmatpush.bf16.msra.mxu0 %v9098
    %9185 = vmatpush.bf16.msra.mxu0 %v9094
    %9186 = vmatpush.bf16.msra.mxu0 %v9090
    %9187 = vmatpush.bf16.msra.mxu0 %v9086
    %9188 = vmatpush.bf16.msra.mxu0 %v9082
    %9189 = vmatpush.bf16.msra.mxu0 %v9078
    %9190 = vmatpush.bf16.msra.mxu0 %v9074
    %9191 = vmatmul.bf16.gmra.mxu0 %v8847
    %v9192 = vpop.f32.mrf.mxu0
    %v9193 = vadd.f32 %v9180, %v9192
    %v9194 = vpop.f32.mrf.mxu0
    %9195 = vdwg.mxu0
    %9196 = vmatpush.bf16.msra.mxu0 %v9071
    %9197 = vmatpush.bf16.msra.mxu0 %v9067
    %9198 = vmatpush.bf16.msra.mxu0 %v9063
    %9199 = vmatpush.bf16.msra.mxu0 %v9059
    %9200 = vmatpush.bf16.msra.mxu0 %v9055
    %9201 = vmatpush.bf16.msra.mxu0 %v9051
    %9202 = vmatpush.bf16.msra.mxu0 %v9047
    %9203 = vmatpush.bf16.msra.mxu0 %v9043
    %9204 = vmatmul.bf16.gmra.mxu0 %v8846
    %v9205 = vpop.f32.mrf.mxu0
    %v9206 = vadd.f32 %v8836, %v9205
    %v9207 = vpop.f32.mrf.mxu0
    %9208 = vdwg.mxu0
    %9209 = vmatpush.bf16.msra.mxu0 %v9103
    %9210 = vmatpush.bf16.msra.mxu0 %v9099
    %9211 = vmatpush.bf16.msra.mxu0 %v9095
    %9212 = vmatpush.bf16.msra.mxu0 %v9091
    %9213 = vmatpush.bf16.msra.mxu0 %v9087
    %9214 = vmatpush.bf16.msra.mxu0 %v9083
    %9215 = vmatpush.bf16.msra.mxu0 %v9079
    %9216 = vmatpush.bf16.msra.mxu0 %v9075
    %9217 = vmatmul.bf16.gmra.mxu0 %v8847
    %v9218 = vpop.f32.mrf.mxu0
    %v9219 = vadd.f32 %v9206, %v9218
    %v9220 = vpop.f32.mrf.mxu0
    %9221 = vdwg.mxu0
    %9222 = vmatpush.bf16.msra.mxu0 %v9072
    %9223 = vmatpush.bf16.msra.mxu0 %v9068
    %9224 = vmatpush.bf16.msra.mxu0 %v9064
    %9225 = vmatpush.bf16.msra.mxu0 %v9060
    %9226 = vmatpush.bf16.msra.mxu0 %v9056
    %9227 = vmatpush.bf16.msra.mxu0 %v9052
    %9228 = vmatpush.bf16.msra.mxu0 %v9048
    %9229 = vmatpush.bf16.msra.mxu0 %v9044
    %9230 = vmatmul.bf16.gmra.mxu0 %v8846
    %v9231 = vpop.f32.mrf.mxu0
    %v9232 = vadd.f32 %v8837, %v9231
    %v9233 = vpop.f32.mrf.mxu0
    %9234 = vdwg.mxu0
    %9235 = vmatpush.bf16.msra.mxu0 %v9104
    %9236 = vmatpush.bf16.msra.mxu0 %v9100
    %9237 = vmatpush.bf16.msra.mxu0 %v9096
    %9238 = vmatpush.bf16.msra.mxu0 %v9092
    %9239 = vmatpush.bf16.msra.mxu0 %v9088
    %9240 = vmatpush.bf16.msra.mxu0 %v9084
    %9241 = vmatpush.bf16.msra.mxu0 %v9080
    %9242 = vmatpush.bf16.msra.mxu0 %v9076
    %9243 = vmatmul.bf16.gmra.mxu0 %v8847
    %v9244 = vpop.f32.mrf.mxu0
    %v9245 = vadd.f32 %v9232, %v9244
    %v9246 = vpop.f32.mrf.mxu0
    %9247 = vdwg.mxu0
    %9248 = vmatpush.bf16.msra.mxu0 %v9073
    %9249 = vmatpush.bf16.msra.mxu0 %v9069
    %9250 = vmatpush.bf16.msra.mxu0 %v9065
    %9251 = vmatpush.bf16.msra.mxu0 %v9061
    %9252 = vmatpush.bf16.msra.mxu0 %v9057
    %9253 = vmatpush.bf16.msra.mxu0 %v9053
    %9254 = vmatpush.bf16.msra.mxu0 %v9049
    %9255 = vmatpush.bf16.msra.mxu0 %v9045
    %9256 = vmatmul.bf16.gmra.mxu0 %v8846
    %v9257 = vpop.f32.mrf.mxu0
    %v9258 = vadd.f32 %v8838, %v9257
    %v9259 = vpop.f32.mrf.mxu0
    %9260 = vdwg.mxu0
    %9261 = vmatpush.bf16.msra.mxu0 %v9105
    %9262 = vmatpush.bf16.msra.mxu0 %v9101
    %9263 = vmatpush.bf16.msra.mxu0 %v9097
    %9264 = vmatpush.bf16.msra.mxu0 %v9093
    %9265 = vmatpush.bf16.msra.mxu0 %v9089
    %9266 = vmatpush.bf16.msra.mxu0 %v9085
    %9267 = vmatpush.bf16.msra.mxu0 %v9081
    %9268 = vmatpush.bf16.msra.mxu0 %v9077
    %9269 = vmatmul.bf16.gmra.mxu0 %v8847
    %v9270 = vpop.f32.mrf.mxu0
    %v9271 = vadd.f32 %v9258, %v9270
    %v9272 = vpop.f32.mrf.mxu0
    %9273 = vdwg.mxu0
    %v9274 = vxor.u32 %v9193, 2147483648
    %v9275 = vmul.f32 %v9274, 1.442695
    %v9276 = vpow.pop %v9275
    %v9277 = vadd.f32 %v9276, 1.0
    %v9278 = vrcp.pop %v9277
    %v9279 = vmul.f32 %v9277, %v9278
    %v9280 = vsub.f32 1.0, %v9279
    %v9281 = vmul.f32 %v9278, %v9280
    %v9282 = vadd.f32 %v9278, %v9281
    %vm9283 = vweird.f32 %v9277
    %vm9284 = vweird.f32 %v9278
    %vm9285 = vmor %vm9283, %vm9284
    %v9286 = vsel %vm9285, %v9278, %v9282
    %v9287 = vand.u32 2147483647, %v9277
    %vm9288 = vcmp.eq.f32.partialorder %v9287, 8.507059e+37
    %v9289 = vand.u32 %v9277, 2147483648
    %v9290 = vor.u32 1.1754944e-38, %v9289
    %v9291 = vsel %vm9288, %v9290, %v9286
    %v9292 = vmul.f32 1.0, %v9291
    %v9293 = vxor.u32 %v9219, 2147483648
    %v9294 = vmul.f32 %v9293, 1.442695
    %v9295 = vpow.pop %v9294
    %v9296 = vadd.f32 %v9295, 1.0
    %v9297 = vrcp.pop %v9296
    %v9298 = vmul.f32 %v9296, %v9297
    %v9299 = vsub.f32 1.0, %v9298
    %v9300 = vmul.f32 %v9297, %v9299
    %v9301 = vadd.f32 %v9297, %v9300
    %vm9302 = vweird.f32 %v9296
    %vm9303 = vweird.f32 %v9297
    %vm9304 = vmor %vm9302, %vm9303
    %v9305 = vsel %vm9304, %v9297, %v9301
    %v9306 = vand.u32 2147483647, %v9296
    %vm9307 = vcmp.eq.f32.partialorder %v9306, 8.507059e+37
    %v9308 = vand.u32 %v9296, 2147483648
    %v9309 = vor.u32 1.1754944e-38, %v9308
    %v9310 = vsel %vm9307, %v9309, %v9305
    %v9311 = vmul.f32 1.0, %v9310
    %v9312 = vtanh.pop %v9245
    %v9313 = vxor.u32 %v9271, 2147483648
    %v9314 = vmul.f32 %v9313, 1.442695
    %v9315 = vpow.pop %v9314
    %v9316 = vadd.f32 %v9315, 1.0
    %v9317 = vrcp.pop %v9316
    %v9318 = vmul.f32 %v9316, %v9317
    %v9319 = vsub.f32 1.0, %v9318
    %v9320 = vmul.f32 %v9317, %v9319
    %v9321 = vadd.f32 %v9317, %v9320
    %vm9322 = vweird.f32 %v9316
    %vm9323 = vweird.f32 %v9317
    %vm9324 = vmor %vm9322, %vm9323
    %v9325 = vsel %vm9324, %v9317, %v9321
    %v9326 = vand.u32 2147483647, %v9316
    %vm9327 = vcmp.eq.f32.partialorder %v9326, 8.507059e+37
    %v9328 = vand.u32 %v9316, 2147483648
    %v9329 = vor.u32 1.1754944e-38, %v9328
    %v9330 = vsel %vm9327, %v9329, %v9325
    %v9331 = vmul.f32 1.0, %v9330
    %v9332 = vmul.f32 %v9311, %v8188
    %v9333 = vmul.f32 %v9292, %v9312
    %v9334 = vadd.f32 %v9332, %v9333
    %v9335 = vtanh.pop %v9334
    %v9336 = vmul.f32 %v9331, %v9335
    %v9337 = vtanh.pop %v8763
    %v9338 = vpack.c.bf16 %v9337, %v9337
    %v9339 = vld [vmem:[%s8] sm:$0xf]
    %v9340 = vld [vmem:[%s8 + $0x4] sm:$0xf]
    %v9341 = vld [vmem:[%s8 + $0x8] sm:$0xf]
    %v9342 = vld [vmem:[%s8 + $0xc] sm:$0xf]
    %v9343 = vld [vmem:[%s8 + $0x10] sm:$0xf]
    %v9344 = vld [vmem:[%s8 + $0x14] sm:$0xf]
    %v9345 = vld [vmem:[%s8 + $0x18] sm:$0xf]
    %v9346 = vld [vmem:[%s8 + $0x1c] sm:$0xf]
    %v9347 = vld [vmem:[%s8 + $0x20] sm:$0xf]
    %v9348 = vld [vmem:[%s8 + $0x24] sm:$0xf]
    %v9349 = vld [vmem:[%s8 + $0x28] sm:$0xf]
    %v9350 = vld [vmem:[%s8 + $0x2c] sm:$0xf]
    %v9351 = vld [vmem:[%s8 + $0x30] sm:$0xf]
    %v9352 = vld [vmem:[%s8 + $0x34] sm:$0xf]
    %v9353 = vld [vmem:[%s8 + $0x38] sm:$0xf]
    %v9354 = vld [vmem:[%s8 + $0x3c] sm:$0xf]
    %v9355 = vpack.c.bf16 %v8762, %v8762
    %v9356 = vld [vmem:[%s9] sm:$0xf]
    %v9357 = vld [vmem:[%s9 + $0x4] sm:$0xf]
    %v9358 = vld [vmem:[%s9 + $0x8] sm:$0xf]
    %v9359 = vld [vmem:[%s9 + $0xc] sm:$0xf]
    %v9360 = vld [vmem:[%s9 + $0x10] sm:$0xf]
    %v9361 = vld [vmem:[%s9 + $0x14] sm:$0xf]
    %v9362 = vld [vmem:[%s9 + $0x18] sm:$0xf]
    %v9363 = vld [vmem:[%s9 + $0x1c] sm:$0xf]
    %v9364 = vld [vmem:[%s9 + $0x20] sm:$0xf]
    %v9365 = vld [vmem:[%s9 + $0x24] sm:$0xf]
    %v9366 = vld [vmem:[%s9 + $0x28] sm:$0xf]
    %v9367 = vld [vmem:[%s9 + $0x2c] sm:$0xf]
    %v9368 = vld [vmem:[%s9 + $0x30] sm:$0xf]
    %v9369 = vld [vmem:[%s9 + $0x34] sm:$0xf]
    %v9370 = vld [vmem:[%s9 + $0x38] sm:$0xf]
    %v9371 = vld [vmem:[%s9 + $0x3c] sm:$0xf]
    %v9388 = vunpack.c.l.b16 %v9356
    %v9389 = vunpack.c.l.b16 %v9357
    %v9390 = vunpack.c.l.b16 %v9358
    %v9391 = vunpack.c.l.b16 %v9359
    %v9392 = vunpack.c.l.b16 %v9360
    %v9393 = vunpack.c.l.b16 %v9361
    %v9394 = vunpack.c.l.b16 %v9362
    %v9395 = vunpack.c.l.b16 %v9363
    %v9396 = vunpack.c.l.b16 %v9364
    %v9397 = vunpack.c.l.b16 %v9365
    %v9398 = vunpack.c.l.b16 %v9366
    %v9399 = vunpack.c.l.b16 %v9367
    %v9400 = vunpack.c.l.b16 %v9368
    %v9401 = vunpack.c.l.b16 %v9369
    %v9402 = vunpack.c.l.b16 %v9370
    %v9403 = vunpack.c.l.b16 %v9371
    %v9404 = vpack.c.b16 %v9389, %v9388
    %v9405 = vpack.c.b16 %v9391, %v9390
    %v9406 = vpack.c.b16 %v9393, %v9392
    %v9407 = vpack.c.b16 %v9395, %v9394
    %v9408 = vpack.c.b16 %v9397, %v9396
    %v9409 = vpack.c.b16 %v9399, %v9398
    %v9410 = vpack.c.b16 %v9401, %v9400
    %v9411 = vpack.c.b16 %v9403, %v9402
    %9420 = vmatpush.bf16.msra.mxu0 %v9411
    %9421 = vmatpush.bf16.msra.mxu0 %v9410
    %9422 = vmatpush.bf16.msra.mxu0 %v9409
    %9423 = vmatpush.bf16.msra.mxu0 %v9408
    %9424 = vmatpush.bf16.msra.mxu0 %v9407
    %9425 = vmatpush.bf16.msra.mxu0 %v9406
    %9426 = vmatpush.bf16.msra.mxu0 %v9405
    %9427 = vmatpush.bf16.msra.mxu0 %v9404
    %9428 = vmatmul.bf16.gmra.mxu0 %v9355
    %v9429 = vpop.f32.mrf.mxu0
    %v9430 = vadd.f32 0.0, %v9429
    %v9431 = vpop.f32.mrf.mxu0
    %9432 = vdwg.mxu0
    %v9449 = vunpack.c.l.b16 %v9339
    %v9450 = vunpack.c.l.b16 %v9340
    %v9451 = vunpack.c.l.b16 %v9341
    %v9452 = vunpack.c.l.b16 %v9342
    %v9453 = vunpack.c.l.b16 %v9343
    %v9454 = vunpack.c.l.b16 %v9344
    %v9455 = vunpack.c.l.b16 %v9345
    %v9456 = vunpack.c.l.b16 %v9346
    %v9457 = vunpack.c.l.b16 %v9347
    %v9458 = vunpack.c.l.b16 %v9348
    %v9459 = vunpack.c.l.b16 %v9349
    %v9460 = vunpack.c.l.b16 %v9350
    %v9461 = vunpack.c.l.b16 %v9351
    %v9462 = vunpack.c.l.b16 %v9352
    %v9463 = vunpack.c.l.b16 %v9353
    %v9464 = vunpack.c.l.b16 %v9354
    %v9465 = vpack.c.b16 %v9450, %v9449
    %v9466 = vpack.c.b16 %v9452, %v9451
    %v9467 = vpack.c.b16 %v9454, %v9453
    %v9468 = vpack.c.b16 %v9456, %v9455
    %v9469 = vpack.c.b16 %v9458, %v9457
    %v9470 = vpack.c.b16 %v9460, %v9459
    %v9471 = vpack.c.b16 %v9462, %v9461
    %v9472 = vpack.c.b16 %v9464, %v9463
    %9481 = vmatpush.bf16.msra.mxu0 %v9472
    %9482 = vmatpush.bf16.msra.mxu0 %v9471
    %9483 = vmatpush.bf16.msra.mxu0 %v9470
    %9484 = vmatpush.bf16.msra.mxu0 %v9469
    %9485 = vmatpush.bf16.msra.mxu0 %v9468
    %9486 = vmatpush.bf16.msra.mxu0 %v9467
    %9487 = vmatpush.bf16.msra.mxu0 %v9466
    %9488 = vmatpush.bf16.msra.mxu0 %v9465
    %9489 = vmatmul.bf16.gmra.mxu0 %v9338
    %v9490 = vpop.f32.mrf.mxu0
    %v9491 = vadd.f32 %v9430, %v9490
    %v9492 = vpop.f32.mrf.mxu0
    %9493 = vdwg.mxu0
    %v9494 = vtanh.pop %v9336
    %v9495 = vpack.c.bf16 %v9494, %v9494
    %v9496 = vld [vmem:[%s10] sm:$0xf]
    %v9497 = vld [vmem:[%s10 + $0x4] sm:$0xf]
    %v9498 = vld [vmem:[%s10 + $0x8] sm:$0xf]
    %v9499 = vld [vmem:[%s10 + $0xc] sm:$0xf]
    %v9500 = vld [vmem:[%s10 + $0x10] sm:$0xf]
    %v9501 = vld [vmem:[%s10 + $0x14] sm:$0xf]
    %v9502 = vld [vmem:[%s10 + $0x18] sm:$0xf]
    %v9503 = vld [vmem:[%s10 + $0x1c] sm:$0xf]
    %v9504 = vld [vmem:[%s10 + $0x20] sm:$0xf]
    %v9505 = vld [vmem:[%s10 + $0x24] sm:$0xf]
    %v9506 = vld [vmem:[%s10 + $0x28] sm:$0xf]
    %v9507 = vld [vmem:[%s10 + $0x2c] sm:$0xf]
    %v9508 = vld [vmem:[%s10 + $0x30] sm:$0xf]
    %v9509 = vld [vmem:[%s10 + $0x34] sm:$0xf]
    %v9510 = vld [vmem:[%s10 + $0x38] sm:$0xf]
    %v9511 = vld [vmem:[%s10 + $0x3c] sm:$0xf]
    %v9528 = vunpack.c.l.b16 %v9496
    %v9529 = vunpack.c.l.b16 %v9497
    %v9530 = vunpack.c.l.b16 %v9498
    %v9531 = vunpack.c.l.b16 %v9499
    %v9532 = vunpack.c.l.b16 %v9500
    %v9533 = vunpack.c.l.b16 %v9501
    %v9534 = vunpack.c.l.b16 %v9502
    %v9535 = vunpack.c.l.b16 %v9503
    %v9536 = vunpack.c.l.b16 %v9504
    %v9537 = vunpack.c.l.b16 %v9505
    %v9538 = vunpack.c.l.b16 %v9506
    %v9539 = vunpack.c.l.b16 %v9507
    %v9540 = vunpack.c.l.b16 %v9508
    %v9541 = vunpack.c.l.b16 %v9509
    %v9542 = vunpack.c.l.b16 %v9510
    %v9543 = vunpack.c.l.b16 %v9511
    %v9544 = vpack.c.b16 %v9529, %v9528
    %v9545 = vpack.c.b16 %v9531, %v9530
    %v9546 = vpack.c.b16 %v9533, %v9532
    %v9547 = vpack.c.b16 %v9535, %v9534
    %v9548 = vpack.c.b16 %v9537, %v9536
    %v9549 = vpack.c.b16 %v9539, %v9538
    %v9550 = vpack.c.b16 %v9541, %v9540
    %v9551 = vpack.c.b16 %v9543, %v9542
    %9560 = vmatpush.bf16.msra.mxu0 %v9551
    %9561 = vmatpush.bf16.msra.mxu0 %v9550
    %9562 = vmatpush.bf16.msra.mxu0 %v9549
    %9563 = vmatpush.bf16.msra.mxu0 %v9548
    %9564 = vmatpush.bf16.msra.mxu0 %v9547
    %9565 = vmatpush.bf16.msra.mxu0 %v9546
    %9566 = vmatpush.bf16.msra.mxu0 %v9545
    %9567 = vmatpush.bf16.msra.mxu0 %v9544
    %9568 = vmatmul.bf16.gmra.mxu0 %v9495
    %v9569 = vpop.f32.mrf.mxu0
    %v9570 = vadd.f32 0.0, %v9569
    %v9571 = vpop.f32.mrf.mxu0
    %9572 = vdwg.mxu0
    %v9573 = vadd.f32 %v9491, %v9570
    %v9574 = vpack.c.bf16 %v9335, %v9335
    %v9575 = vld [vmem:[%s11] sm:$0xf]
    %v9576 = vld [vmem:[%s11 + $0x4] sm:$0xf]
    %v9577 = vld [vmem:[%s11 + $0x8] sm:$0xf]
    %v9578 = vld [vmem:[%s11 + $0xc] sm:$0xf]
    %v9579 = vld [vmem:[%s11 + $0x10] sm:$0xf]
    %v9580 = vld [vmem:[%s11 + $0x14] sm:$0xf]
    %v9581 = vld [vmem:[%s11 + $0x18] sm:$0xf]
    %v9582 = vld [vmem:[%s11 + $0x1c] sm:$0xf]
    %v9583 = vld [vmem:[%s11 + $0x20] sm:$0xf]
    %v9584 = vld [vmem:[%s11 + $0x24] sm:$0xf]
    %v9585 = vld [vmem:[%s11 + $0x28] sm:$0xf]
    %v9586 = vld [vmem:[%s11 + $0x2c] sm:$0xf]
    %v9587 = vld [vmem:[%s11 + $0x30] sm:$0xf]
    %v9588 = vld [vmem:[%s11 + $0x34] sm:$0xf]
    %v9589 = vld [vmem:[%s11 + $0x38] sm:$0xf]
    %v9590 = vld [vmem:[%s11 + $0x3c] sm:$0xf]
    %v9607 = vunpack.c.l.b16 %v9575
    %v9608 = vunpack.c.l.b16 %v9576
    %v9609 = vunpack.c.l.b16 %v9577
    %v9610 = vunpack.c.l.b16 %v9578
    %v9611 = vunpack.c.l.b16 %v9579
    %v9612 = vunpack.c.l.b16 %v9580
    %v9613 = vunpack.c.l.b16 %v9581
    %v9614 = vunpack.c.l.b16 %v9582
    %v9615 = vunpack.c.l.b16 %v9583
    %v9616 = vunpack.c.l.b16 %v9584
    %v9617 = vunpack.c.l.b16 %v9585
    %v9618 = vunpack.c.l.b16 %v9586
    %v9619 = vunpack.c.l.b16 %v9587
    %v9620 = vunpack.c.l.b16 %v9588
    %v9621 = vunpack.c.l.b16 %v9589
    %v9622 = vunpack.c.l.b16 %v9590
    %v9623 = vpack.c.b16 %v9608, %v9607
    %v9624 = vpack.c.b16 %v9610, %v9609
    %v9625 = vpack.c.b16 %v9612, %v9611
    %v9626 = vpack.c.b16 %v9614, %v9613
    %v9627 = vpack.c.b16 %v9616, %v9615
    %v9628 = vpack.c.b16 %v9618, %v9617
    %v9629 = vpack.c.b16 %v9620, %v9619
    %v9630 = vpack.c.b16 %v9622, %v9621
    %9639 = vmatpush.bf16.msra.mxu0 %v9630
    %9640 = vmatpush.bf16.msra.mxu0 %v9629
    %9641 = vmatpush.bf16.msra.mxu0 %v9628
    %9642 = vmatpush.bf16.msra.mxu0 %v9627
    %9643 = vmatpush.bf16.msra.mxu0 %v9626
    %9644 = vmatpush.bf16.msra.mxu0 %v9625
    %9645 = vmatpush.bf16.msra.mxu0 %v9624
    %9646 = vmatpush.bf16.msra.mxu0 %v9623
    %9647 = vmatmul.bf16.gmra.mxu0 %v9574
    %v9648 = vpop.f32.mrf.mxu0
    %v9649 = vadd.f32 0.0, %v9648
    %v9650 = vpop.f32.mrf.mxu0
    %9651 = vdwg.mxu0
    %v9652 = vadd.f32 %v9573, %v9649
    %v9653 = vld [vmem:[%s12] sm:$0x1]
    %v9655 = vperm.slane %v9653, 0
    %v9657 = vadd.f32 %v9652, %v9655
    %v9658 = vmul.f32 %v170, %v9657
    %v9659 = vtanh.pop %v9658
    %v9660 = vpack.c.bf16 %v9659, %v9659
    %v9661 = vld [vmem:[%s13] sm:$0xf]
    %v9662 = vld [vmem:[%s13 + $0x4] sm:$0xf]
    %v9663 = vld [vmem:[%s13 + $0x8] sm:$0xf]
    %v9664 = vld [vmem:[%s13 + $0xc] sm:$0xf]
    %v9665 = vld [vmem:[%s13 + $0x10] sm:$0xf]
    %v9666 = vld [vmem:[%s13 + $0x14] sm:$0xf]
    %v9667 = vld [vmem:[%s13 + $0x18] sm:$0xf]
    %v9668 = vld [vmem:[%s13 + $0x1c] sm:$0xf]
    %v9669 = vld [vmem:[%s13 + $0x20] sm:$0xf]
    %v9670 = vld [vmem:[%s13 + $0x24] sm:$0xf]
    %v9671 = vld [vmem:[%s13 + $0x28] sm:$0xf]
    %v9672 = vld [vmem:[%s13 + $0x2c] sm:$0xf]
    %v9673 = vld [vmem:[%s13 + $0x30] sm:$0xf]
    %v9674 = vld [vmem:[%s13 + $0x34] sm:$0xf]
    %v9675 = vld [vmem:[%s13 + $0x38] sm:$0xf]
    %v9676 = vld [vmem:[%s13 + $0x3c] sm:$0xf]
    %v9677 = vld [vmem:[%s14] sm:$0x1]
    %v9679 = vperm.slane %v9677, 0
    %v9697 = vunpack.c.l.b16 %v9661
    %v9698 = vunpack.c.l.b16 %v9662
    %v9699 = vunpack.c.l.b16 %v9663
    %v9700 = vunpack.c.l.b16 %v9664
    %v9701 = vunpack.c.l.b16 %v9665
    %v9702 = vunpack.c.l.b16 %v9666
    %v9703 = vunpack.c.l.b16 %v9667
    %v9704 = vunpack.c.l.b16 %v9668
    %v9705 = vunpack.c.l.b16 %v9669
    %v9706 = vunpack.c.l.b16 %v9670
    %v9707 = vunpack.c.l.b16 %v9671
    %v9708 = vunpack.c.l.b16 %v9672
    %v9709 = vunpack.c.l.b16 %v9673
    %v9710 = vunpack.c.l.b16 %v9674
    %v9711 = vunpack.c.l.b16 %v9675
    %v9712 = vunpack.c.l.b16 %v9676
    %v9713 = vpack.c.b16 %v9698, %v9697
    %v9714 = vpack.c.b16 %v9700, %v9699
    %v9715 = vpack.c.b16 %v9702, %v9701
    %v9716 = vpack.c.b16 %v9704, %v9703
    %v9717 = vpack.c.b16 %v9706, %v9705
    %v9718 = vpack.c.b16 %v9708, %v9707
    %v9719 = vpack.c.b16 %v9710, %v9709
    %v9720 = vpack.c.b16 %v9712, %v9711
    %9729 = vmatpush.bf16.msra.mxu0 %v9720
    %9730 = vmatpush.bf16.msra.mxu0 %v9719
    %9731 = vmatpush.bf16.msra.mxu0 %v9718
    %9732 = vmatpush.bf16.msra.mxu0 %v9717
    %9733 = vmatpush.bf16.msra.mxu0 %v9716
    %9734 = vmatpush.bf16.msra.mxu0 %v9715
    %9735 = vmatpush.bf16.msra.mxu0 %v9714
    %9736 = vmatpush.bf16.msra.mxu0 %v9713
    %9737 = vmatmul.bf16.gmra.mxu0 %v9660
    %v9738 = vpop.f32.mrf.mxu0
    %v9739 = vadd.f32 %v9679, %v9738
    %v9740 = vpop.f32.mrf.mxu0
    %9741 = vdwg.mxu0
    %v9742 = vtanh.pop %v9739
    %v9743 = vpack.c.bf16 %v9742, %v9742
    %v9744 = vld [vmem:[%s15] sm:$0xf]
    %v9745 = vld [vmem:[%s15 + $0x4] sm:$0xf]
    %v9746 = vld [vmem:[%s15 + $0x8] sm:$0xf]
    %v9747 = vld [vmem:[%s15 + $0xc] sm:$0xf]
    %v9748 = vld [vmem:[%s15 + $0x10] sm:$0xf]
    %v9749 = vld [vmem:[%s15 + $0x14] sm:$0xf]
    %v9750 = vld [vmem:[%s15 + $0x18] sm:$0xf]
    %v9751 = vld [vmem:[%s15 + $0x1c] sm:$0xf]
    %v9752 = vld [vmem:[%s15 + $0x20] sm:$0xf]
    %v9753 = vld [vmem:[%s15 + $0x24] sm:$0xf]
    %v9754 = vld [vmem:[%s15 + $0x28] sm:$0xf]
    %v9755 = vld [vmem:[%s15 + $0x2c] sm:$0xf]
    %v9756 = vld [vmem:[%s15 + $0x30] sm:$0xf]
    %v9757 = vld [vmem:[%s15 + $0x34] sm:$0xf]
    %v9758 = vld [vmem:[%s15 + $0x38] sm:$0xf]
    %v9759 = vld [vmem:[%s15 + $0x3c] sm:$0xf]
    %v9760 = vld [vmem:[%s16] sm:$0x1]
    %v9762 = vperm.slane %v9760, 0
    %v9780 = vunpack.c.l.b16 %v9744
    %v9781 = vunpack.c.l.b16 %v9745
    %v9782 = vunpack.c.l.b16 %v9746
    %v9783 = vunpack.c.l.b16 %v9747
    %v9784 = vunpack.c.l.b16 %v9748
    %v9785 = vunpack.c.l.b16 %v9749
    %v9786 = vunpack.c.l.b16 %v9750
    %v9787 = vunpack.c.l.b16 %v9751
    %v9788 = vunpack.c.l.b16 %v9752
    %v9789 = vunpack.c.l.b16 %v9753
    %v9790 = vunpack.c.l.b16 %v9754
    %v9791 = vunpack.c.l.b16 %v9755
    %v9792 = vunpack.c.l.b16 %v9756
    %v9793 = vunpack.c.l.b16 %v9757
    %v9794 = vunpack.c.l.b16 %v9758
    %v9795 = vunpack.c.l.b16 %v9759
    %v9796 = vpack.c.b16 %v9781, %v9780
    %v9797 = vpack.c.b16 %v9783, %v9782
    %v9798 = vpack.c.b16 %v9785, %v9784
    %v9799 = vpack.c.b16 %v9787, %v9786
    %v9800 = vpack.c.b16 %v9789, %v9788
    %v9801 = vpack.c.b16 %v9791, %v9790
    %v9802 = vpack.c.b16 %v9793, %v9792
    %v9803 = vpack.c.b16 %v9795, %v9794
    %9812 = vmatpush.bf16.msra.mxu0 %v9803
    %9813 = vmatpush.bf16.msra.mxu0 %v9802
    %9814 = vmatpush.bf16.msra.mxu0 %v9801
    %9815 = vmatpush.bf16.msra.mxu0 %v9800
    %9816 = vmatpush.bf16.msra.mxu0 %v9799
    %9817 = vmatpush.bf16.msra.mxu0 %v9798
    %9818 = vmatpush.bf16.msra.mxu0 %v9797
    %9819 = vmatpush.bf16.msra.mxu0 %v9796
    %9820 = vmatmul.bf16.gmra.mxu0 %v9743
    %v9821 = vpop.f32.mrf.mxu0
    %v9822 = vadd.f32 %v9762, %v9821
    %v9823 = vpop.f32.mrf.mxu0
    %9824 = vdwg.mxu0
    %9825 = vst [vmem:[%s17] sm:$0xff] %v9822
    // Predicated region
    $region74: #{vqa_forward.3} parent=1 // pred_check
      _
    $region75: #{vqa_forward.3} parent=1 // pred_check_branch
      %9827 = sbr.rel (0) target = $region77
    $region76: #{vqa_forward.3} parent=1 // pred_region
      _
    $region77: #{vqa_forward.3} parent=1 // pred_fallthru
      _
    // Predicated region
    $region78: #{vqa_forward.3} parent=1 // pred_check
      _
    $region79: #{vqa_forward.3} parent=1 // pred_check_branch
      %9829 = sbr.rel (0) target = $region81
    $region80: #{vqa_forward.3} parent=1 // pred_region
      _
    $region81: #{vqa_forward.3} parent=1 // pred_fallthru
      _
    %9830 = vsyncpa [#allocation5], 1

</llo_original>
